<compile_context>
chip_gen: v7x
topology: tpu7x:2x2x1
jax: 0.10.0
libtpu: 0.0.40
codegen_flags: <defaults>
</compile_context>

<pallas_src>
import functools
import math

import jax
import jax.numpy as jnp
import numpy as np
from jax.experimental import pallas as pl
from jax.experimental.pallas import tpu as pltpu


# ----------------------------- config ---------------------------------------
class Config:
    vocab_size = 50
    embed_dim = 32
    num_heads = 4
    ff_dim = 64
    num_layers = 2
    max_length = 16


_NEG_INF = -1e30  # finite large-negative (safe in f32 score math)

ENC_KEYS = ("wqkv", "bqkv", "wo", "bo", "ln1_g", "ln1_b",
            "w1", "b1", "w2", "b2", "ln2_g", "ln2_b")
DEC_KEYS = ("wqkv", "bqkv", "wo", "bo", "ln1_g", "ln1_b",
            "cwq", "cbq", "cwkv", "cbkv", "cwo", "cbo", "ln2_g", "ln2_b",
            "w1", "b1", "w2", "b2", "ln3_g", "ln3_b")


# --------------------- in-kernel helper routines -----------------------------
def _layernorm(x, g, b, eps=1e-5):
    """x: [S, D] f32; g, b: [1, D] f32."""
    mean = jnp.mean(x, axis=-1, keepdims=True)
    var = jnp.mean((x - mean) ** 2, axis=-1, keepdims=True)
    return (x - mean) * jax.lax.rsqrt(var + eps) * g + b


def _proj(x_f32, w_bf16, b_f32):
    """bf16 MXU matmul with f32 accumulation + f32 bias."""
    return jnp.dot(x_f32.astype(jnp.bfloat16), w_bf16,
                   preferred_element_type=jnp.float32) + b_f32


def _mha(q, k, v, num_heads, scr_ref, *, causal, probs_ref=None):
    """Per-head attention fully inside the kernel.

    Head outputs are written into `scr_ref` (VMEM scratch) at static lane
    offsets instead of a cross-lane concatenate.  Softmax denominator uses the
    (otherwise idle) EUP reciprocal.  Optionally writes per-head probs into
    probs_ref (block [1, H, Sq, Sk])."""
    Sq, D = q.shape
    Sk = k.shape[0]
    Dh = D // num_heads
    scale = 1.0 / math.sqrt(Dh)

    if causal:
        row = jax.lax.broadcasted_iota(jnp.int32, (Sq, Sk), 0)
        col = jax.lax.broadcasted_iota(jnp.int32, (Sq, Sk), 1)
        keep = col <= row

    for h in range(num_heads):
        sl = slice(h * Dh, (h + 1) * Dh)
        qh, kh, vh = q[:, sl], k[:, sl], v[:, sl]
        s = jax.lax.dot_general(
            qh, kh, (((1,), (1,)), ((), ())),
            preferred_element_type=jnp.float32) * scale
        if causal:
            s = jnp.where(keep, s, _NEG_INF)
        s = s - jnp.max(s, axis=-1, keepdims=True)
        e = jnp.exp(s)
        p = e * pl.reciprocal(jnp.sum(e, axis=-1, keepdims=True), approx=True)
        scr_ref[:Sq, sl] = jnp.dot(p, vh, preferred_element_type=jnp.float32)
        if probs_ref is not None:
            probs_ref[0, h, :, :] = p.astype(probs_ref.dtype)
    return scr_ref[:Sq, :]  # [Sq, D] f32


# --------------------------- fully fused kernel -------------------------------
def _text2python_kernel(*refs, num_heads, num_layers, coupled):
    (src_ids_ref, tgt_ids_ref, emb_ref, pe_ref, *rest) = refs
    enc = rest[:len(ENC_KEYS)]
    rest = rest[len(ENC_KEYS):]
    dec = rest[:len(DEC_KEYS)]
    rest = rest[len(DEC_KEYS):]
    (fc_w_ref, fc_b_ref, logits_ref, attn1_ref, attn2_ref, attn_scr) = rest

    (e_wqkv, e_bqkv, e_wo, e_bo, e_ln1g, e_ln1b,
     e_w1, e_b1, e_w2, e_b2, e_ln2g, e_ln2b) = enc
    (d_wqkv, d_bqkv, d_wo, d_bo, d_ln1g, d_ln1b,
     d_cwq, d_cbq, d_cwkv, d_cbkv, d_cwo, d_cbo, d_ln2g, d_ln2b,
     d_w1, d_b1, d_w2, d_b2, d_ln3g, d_ln3b) = dec

    Ve, D = emb_ref.shape
    emb_scale = math.sqrt(D)

    def embed(ids_ref):
        # Token gather as a one-hot matmul (no dynamic VMEM row indexing).
        tok = ids_ref[0]                                      # [S, 1] int32
        S = tok.shape[0]
        eq = tok == jax.lax.broadcasted_iota(jnp.int32, (S, Ve), 1)
        onehot = jnp.where(eq, 1.0, 0.0)                      # [S, Ve] f32
        x = jnp.dot(onehot, emb_ref[...], preferred_element_type=jnp.float32)
        # TODO(synk): SinusoidalEmbeddingLayer source not provided — sqrt(D)
        # scaling + additive sinusoidal PE assumed.
        return x * emb_scale + pe_ref[:S, :]

    def enc_layer(x, l, probs_ref):
        qkv = _proj(x, e_wqkv[l], e_bqkv[l])                  # fused QKV
        q, k, v = qkv[:, :D], qkv[:, D:2 * D], qkv[:, 2 * D:]
        a = _mha(q, k, v, num_heads, attn_scr, causal=False, probs_ref=probs_ref)
        a = _proj(a, e_wo[l], e_bo[l])
        x1 = _layernorm(x + a, e_ln1g[l], e_ln1b[l])
        h = jnp.maximum(_proj(x1, e_w1[l], e_b1[l]), 0.0)     # ReLU FFN
        ff = _proj(h, e_w2[l], e_b2[l])
        return _layernorm(x1 + ff, e_ln2g[l], e_ln2b[l])

    def dec_layer(x, mem, l, probs_ref):
        # masked (causal) self-attention with fused QKV
        qkv = _proj(x, d_wqkv[l], d_bqkv[l])
        q, k, v = qkv[:, :D], qkv[:, D:2 * D], qkv[:, 2 * D:]
        sa = _mha(q, k, v, num_heads, attn_scr, causal=True)
        sa = _proj(sa, d_wo[l], d_bo[l])
        x1 = _layernorm(x + sa, d_ln1g[l], d_ln1b[l])
        # cross-attention: queries from decoder state, fused K/V from memory
        qc = _proj(x1, d_cwq[l], d_cbq[l])
        kv = _proj(mem, d_cwkv[l], d_cbkv[l])
        kc, vc = kv[:, :D], kv[:, D:]
        ca = _mha(qc, kc, vc, num_heads, attn_scr, causal=False, probs_ref=probs_ref)
        ca = _proj(ca, d_cwo[l], d_cbo[l])
        x2 = _layernorm(x1 + ca, d_ln2g[l], d_ln2b[l])
        h = jnp.maximum(_proj(x2, d_w1[l], d_b1[l]), 0.0)     # ReLU FFN
        ff = _proj(h, d_w2[l], d_b2[l])
        return _layernorm(x2 + ff, d_ln3g[l], d_ln3b[l])

    src = embed(src_ids_ref)
    tgt = embed(tgt_ids_ref)

    last = num_layers - 1
    # TODO(synk): decoder returns cross-attn probs of the last layer; the
    # original private sub-module's convention is unverified.
    if coupled:
        for l in range(num_layers):
            src = enc_layer(src, l, attn1_ref if l == last else None)
            tgt = dec_layer(tgt, src, l, attn2_ref if l == last else None)
    else:
        for l in range(num_layers):
            src = enc_layer(src, l, attn1_ref if l == last else None)
        for l in range(num_layers):
            tgt = dec_layer(tgt, src, l, attn2_ref if l == last else None)

    # fused fc_out (vocab lane-padded to 128 for unmasked stores)
    logits = _proj(tgt, fc_w_ref[...], fc_b_ref[...])
    logits_ref[0] = logits.astype(logits_ref.dtype)


# ------------------------------ wrapper ---------------------------------------
def _full_spec(arr):
    nd = arr.ndim
    return pl.BlockSpec(arr.shape, lambda *_: (0,) * nd)


def text2python_forward(params, cfg, source_input, target_input, coupled=False):
    B, Ss = source_input.shape
    Bt, St = target_input.shape
    assert B == Bt
    D, H, L, V = cfg.embed_dim, cfg.num_heads, cfg.num_layers, cfg.vocab_size
    Vp = params["fc_w"].shape[1]
    Smax = max(Ss, St)

    src_ids = source_input.astype(jnp.int32).reshape(B, Ss, 1)
    tgt_ids = target_input.astype(jnp.int32).reshape(B, St, 1)
    pe = params["pe"][:Smax]

    enc_ws = [params["encoder"][k] for k in ENC_KEYS]
    dec_ws = [params["decoder"][k] for k in DEC_KEYS]
    inputs = [src_ids, tgt_ids, params["emb"], pe, *enc_ws, *dec_ws,
              params["fc_w"], params["fc_b"]]

    in_specs = [
        pl.BlockSpec((1, Ss, 1), lambda b: (b, 0, 0)),
        pl.BlockSpec((1, St, 1), lambda b: (b, 0, 0)),
        _full_spec(params["emb"]),
        _full_spec(pe),
        *[_full_spec(w) for w in enc_ws],
        *[_full_spec(w) for w in dec_ws],
        _full_spec(params["fc_w"]),
        _full_spec(params["fc_b"]),
    ]

    out_shape = (
        jax.ShapeDtypeStruct((B, St, Vp), jnp.float32),        # padded logits
        jax.ShapeDtypeStruct((B, H, Ss, Ss), jnp.float32),     # enc last-layer probs
        jax.ShapeDtypeStruct((B, H, St, Ss), jnp.float32),     # dec last-layer cross probs
    )
    out_specs = (
        pl.BlockSpec((1, St, Vp), lambda b: (b, 0, 0)),
        pl.BlockSpec((1, H, Ss, Ss), lambda b: (b, 0, 0, 0)),
        pl.BlockSpec((1, H, St, Ss), lambda b: (b, 0, 0, 0)),
    )

    kernel = functools.partial(_text2python_kernel, num_heads=H,
                               num_layers=L, coupled=coupled)
    logits_pad, attn1, attn2 = pl.pallas_call(
        kernel,
        out_shape=out_shape,
        grid=(B,),
        in_specs=in_specs,
        out_specs=out_specs,
        scratch_shapes=[pltpu.VMEM((Smax, D), jnp.float32)],
        compiler_params=pltpu.CompilerParams(
            dimension_semantics=("parallel",)),
    )(*inputs)

    return logits_pad[:, :, :V], attn1, attn2


# ------------------------------ embedding tables ------------------------------
def sinusoidal_pe(max_length, D):
    pos = np.arange(max_length, dtype=np.float32)[:, None]
    div = np.exp(np.arange(0, D, 2, dtype=np.float32) * (-math.log(10000.0) / D))
    pe = np.zeros((max_length, D), np.float32)
    pe[:, 0::2] = np.sin(pos * div)
    pe[:, 1::2] = np.cos(pos * div)
    return jnp.asarray(pe)


# ------------------------------ parameters -----------------------------------
def init_params(key, cfg):
    D, F, V, L = cfg.embed_dim, cfg.ff_dim, cfg.vocab_size, cfg.num_layers
    Vp = ((V + 127) // 128) * 128      # fc_out lane-dense padding
    Ve = ((V + 7) // 8) * 8            # emb-table sublane-aligned padding
    keys = jax.random.split(key, 2 + 2 * L)

    def dense(k, din, dout):
        return jax.random.normal(k, (din, dout), jnp.float32) * 0.02

    def qkv_w(k):
        kq, kk, kv = jax.random.split(k, 3)
        return jnp.concatenate(
            [dense(kq, D, D), dense(kk, D, D), dense(kv, D, D)], axis=1)

    emb = dense(keys[0], V, D) / 0.02 * 0.02  # keep scale 0.02
    emb_pad = jnp.zeros((Ve, D), jnp.float32).at[:V, :].set(emb)

    fc_w = dense(keys[1], D, V)
    fc_w_pad = jnp.zeros((D, Vp), jnp.float32).at[:, :V].set(fc_w).astype(jnp.bfloat16)
    fc_b_pad = jnp.zeros((1, Vp), jnp.float32)

    ones_v = jnp.ones((L, 1, D), jnp.float32)
    zeros_v = jnp.zeros((L, 1, D), jnp.float32)

    e_wqkv, e_wo, e_w1, e_w2 = [], [], [], []
    for i in range(L):
        lk = jax.random.split(keys[2 + i], 4)
        e_wqkv.append(qkv_w(lk[0]))
        e_wo.append(dense(lk[1], D, D))
        e_w1.append(dense(lk[2], D, F))
        e_w2.append(dense(lk[3], F, D))
    encoder = dict(
        wqkv=jnp.stack(e_wqkv).astype(jnp.bfloat16),
        bqkv=jnp.zeros((L, 1, 3 * D), jnp.float32),
        wo=jnp.stack(e_wo).astype(jnp.bfloat16),
        bo=zeros_v, ln1_g=ones_v, ln1_b=zeros_v,
        w1=jnp.stack(e_w1).astype(jnp.bfloat16),
        b1=jnp.zeros((L, 1, F), jnp.float32),
        w2=jnp.stack(e_w2).astype(jnp.bfloat16),
        b2=zeros_v, ln2_g=ones_v, ln2_b=zeros_v,
    )

    d_wqkv, d_wo, d_cwq, d_cwkv, d_cwo, d_w1, d_w2 = ([] for _ in range(7))
    for i in range(L):
        lk = jax.random.split(keys[2 + L + i], 7)
        d_wqkv.append(qkv_w(lk[0]))
        d_wo.append(dense(lk[1], D, D))
        d_cwq.append(dense(lk[2], D, D))
        kk_, kv_ = jax.random.split(lk[3])
        d_cwkv.append(jnp.concatenate([dense(kk_, D, D), dense(kv_, D, D)], axis=1))
        d_cwo.append(dense(lk[4], D, D))
        d_w1.append(dense(lk[5], D, F))
        d_w2.append(dense(lk[6], F, D))
    decoder = dict(
        wqkv=jnp.stack(d_wqkv).astype(jnp.bfloat16),
        bqkv=jnp.zeros((L, 1, 3 * D), jnp.float32),
        wo=jnp.stack(d_wo).astype(jnp.bfloat16),
        bo=zeros_v, ln1_g=ones_v, ln1_b=zeros_v,
        cwq=jnp.stack(d_cwq).astype(jnp.bfloat16),
        cbq=zeros_v,
        cwkv=jnp.stack(d_cwkv).astype(jnp.bfloat16),
        cbkv=jnp.zeros((L, 1, 2 * D), jnp.float32),
        cwo=jnp.stack(d_cwo).astype(jnp.bfloat16),
        cbo=zeros_v, ln2_g=ones_v, ln2_b=zeros_v,
        w1=jnp.stack(d_w1).astype(jnp.bfloat16),
        b1=jnp.zeros((L, 1, F), jnp.float32),
        w2=jnp.stack(d_w2).astype(jnp.bfloat16),
        b2=zeros_v, ln3_g=ones_v, ln3_b=zeros_v,
    )

    return dict(emb=emb_pad, pe=sinusoidal_pe(cfg.max_length, D),
                fc_w=fc_w_pad, fc_b=fc_b_pad,
                encoder=encoder, decoder=decoder)


# ---------------------------------- main -------------------------------------
if __name__ == "__main__":
    cfg = Config()
    batch, seq = 2, 8

    key = jax.random.PRNGKey(0)
    k_params, k_src, k_tgt = jax.random.split(key, 3)
    params = init_params(k_params, cfg)

    source_input = jax.random.randint(k_src, (batch, seq), 0, cfg.vocab_size,
                                      dtype=jnp.int32)
    target_input = jax.random.randint(k_tgt, (batch, seq), 0, cfg.vocab_size,
                                      dtype=jnp.int32)

    forward = jax.jit(lambda p, s, t: text2python_forward(p, cfg, s, t, coupled=False))
    logits, attn_enc, attn_dec = forward(params, source_input, target_input)
    jax.block_until_ready((logits, attn_enc, attn_dec))

    assert logits.shape == (batch, seq, cfg.vocab_size)
    assert attn_enc.shape == (batch, cfg.num_heads, seq, seq)
    assert attn_dec.shape == (batch, cfg.num_heads, seq, seq)
    assert bool(jnp.all(jnp.isfinite(logits)))
    assert bool(jnp.all(jnp.isfinite(attn_enc)))
    assert bool(jnp.all(jnp.isfinite(attn_dec)))
    print("KERNEL_OK")
</pallas_src>

<mosaic_0001>
module attributes {stable_mosaic.version = 11 : i64} {
  func.func @_text2python_kernel(%arg0: i32, %arg1: memref<1x8x1xi32, #tpu.memory_space<vmem>>, %arg2: memref<1x8x1xi32, #tpu.memory_space<vmem>>, %arg3: memref<56x32xf32, #tpu.memory_space<vmem>>, %arg4: memref<8x32xf32, #tpu.memory_space<vmem>>, %arg5: memref<2x32x96xbf16, #tpu.memory_space<vmem>>, %arg6: memref<2x1x96xf32, #tpu.memory_space<vmem>>, %arg7: memref<2x32x32xbf16, #tpu.memory_space<vmem>>, %arg8: memref<2x1x32xf32, #tpu.memory_space<vmem>>, %arg9: memref<2x1x32xf32, #tpu.memory_space<vmem>>, %arg10: memref<2x1x32xf32, #tpu.memory_space<vmem>>, %arg11: memref<2x32x64xbf16, #tpu.memory_space<vmem>>, %arg12: memref<2x1x64xf32, #tpu.memory_space<vmem>>, %arg13: memref<2x64x32xbf16, #tpu.memory_space<vmem>>, %arg14: memref<2x1x32xf32, #tpu.memory_space<vmem>>, %arg15: memref<2x1x32xf32, #tpu.memory_space<vmem>>, %arg16: memref<2x1x32xf32, #tpu.memory_space<vmem>>, %arg17: memref<2x32x96xbf16, #tpu.memory_space<vmem>>, %arg18: memref<2x1x96xf32, #tpu.memory_space<vmem>>, %arg19: memref<2x32x32xbf16, #tpu.memory_space<vmem>>, %arg20: memref<2x1x32xf32, #tpu.memory_space<vmem>>, %arg21: memref<2x1x32xf32, #tpu.memory_space<vmem>>, %arg22: memref<2x1x32xf32, #tpu.memory_space<vmem>>, %arg23: memref<2x32x32xbf16, #tpu.memory_space<vmem>>, %arg24: memref<2x1x32xf32, #tpu.memory_space<vmem>>, %arg25: memref<2x32x64xbf16, #tpu.memory_space<vmem>>, %arg26: memref<2x1x64xf32, #tpu.memory_space<vmem>>, %arg27: memref<2x32x32xbf16, #tpu.memory_space<vmem>>, %arg28: memref<2x1x32xf32, #tpu.memory_space<vmem>>, %arg29: memref<2x1x32xf32, #tpu.memory_space<vmem>>, %arg30: memref<2x1x32xf32, #tpu.memory_space<vmem>>, %arg31: memref<2x32x64xbf16, #tpu.memory_space<vmem>>, %arg32: memref<2x1x64xf32, #tpu.memory_space<vmem>>, %arg33: memref<2x64x32xbf16, #tpu.memory_space<vmem>>, %arg34: memref<2x1x32xf32, #tpu.memory_space<vmem>>, %arg35: memref<2x1x32xf32, #tpu.memory_space<vmem>>, %arg36: memref<2x1x32xf32, #tpu.memory_space<vmem>>, %arg37: memref<32x128xbf16, #tpu.memory_space<vmem>>, %arg38: memref<1x128xf32, #tpu.memory_space<vmem>>, %arg39: memref<1x8x128xf32, #tpu.memory_space<vmem>>, %arg40: memref<1x4x8x8xf32, #tpu.memory_space<vmem>>, %arg41: memref<1x4x8x8xf32, #tpu.memory_space<vmem>>, %arg42: memref<8x32xf32, #tpu.memory_space<vmem>>) attributes {dimension_semantics = [#tpu.dimension_semantics<parallel>], iteration_bounds = array<i64: 2>, scalar_prefetch = 0 : i64, scratch_operands = 1 : i64, tpu.core_type = #tpu.core_type<tc>, window_params = [{transform_indices = @transform_0, window_bounds = array<i64: 1, 8, 1>}, {transform_indices = @transform_1, window_bounds = array<i64: 1, 8, 1>}, {pipeline_mode = #tpu.pipeline_mode<synchronous>, transform_indices = @transform_2, window_bounds = array<i64: 56, 32>}, {pipeline_mode = #tpu.pipeline_mode<synchronous>, transform_indices = @transform_3, window_bounds = array<i64: 8, 32>}, {pipeline_mode = #tpu.pipeline_mode<synchronous>, transform_indices = @transform_4, window_bounds = array<i64: 2, 32, 96>}, {pipeline_mode = #tpu.pipeline_mode<synchronous>, transform_indices = @transform_5, window_bounds = array<i64: 2, 1, 96>}, {pipeline_mode = #tpu.pipeline_mode<synchronous>, transform_indices = @transform_6, window_bounds = array<i64: 2, 32, 32>}, {pipeline_mode = #tpu.pipeline_mode<synchronous>, transform_indices = @transform_7, window_bounds = array<i64: 2, 1, 32>}, {pipeline_mode = #tpu.pipeline_mode<synchronous>, transform_indices = @transform_8, window_bounds = array<i64: 2, 1, 32>}, {pipeline_mode = #tpu.pipeline_mode<synchronous>, transform_indices = @transform_9, window_bounds = array<i64: 2, 1, 32>}, {pipeline_mode = #tpu.pipeline_mode<synchronous>, transform_indices = @transform_10, window_bounds = array<i64: 2, 32, 64>}, {pipeline_mode = #tpu.pipeline_mode<synchronous>, transform_indices = @transform_11, window_bounds = array<i64: 2, 1, 64>}, {pipeline_mode = #tpu.pipeline_mode<synchronous>, transform_indices = @transform_12, window_bounds = array<i64: 2, 64, 32>}, {pipeline_mode = #tpu.pipeline_mode<synchronous>, transform_indices = @transform_13, window_bounds = array<i64: 2, 1, 32>}, {pipeline_mode = #tpu.pipeline_mode<synchronous>, transform_indices = @transform_14, window_bounds = array<i64: 2, 1, 32>}, {pipeline_mode = #tpu.pipeline_mode<synchronous>, transform_indices = @transform_15, window_bounds = array<i64: 2, 1, 32>}, {pipeline_mode = #tpu.pipeline_mode<synchronous>, transform_indices = @transform_16, window_bounds = array<i64: 2, 32, 96>}, {pipeline_mode = #tpu.pipeline_mode<synchronous>, transform_indices = @transform_17, window_bounds = array<i64: 2, 1, 96>}, {pipeline_mode = #tpu.pipeline_mode<synchronous>, transform_indices = @transform_18, window_bounds = array<i64: 2, 32, 32>}, {pipeline_mode = #tpu.pipeline_mode<synchronous>, transform_indices = @transform_19, window_bounds = array<i64: 2, 1, 32>}, {pipeline_mode = #tpu.pipeline_mode<synchronous>, transform_indices = @transform_20, window_bounds = array<i64: 2, 1, 32>}, {pipeline_mode = #tpu.pipeline_mode<synchronous>, transform_indices = @transform_21, window_bounds = array<i64: 2, 1, 32>}, {pipeline_mode = #tpu.pipeline_mode<synchronous>, transform_indices = @transform_22, window_bounds = array<i64: 2, 32, 32>}, {pipeline_mode = #tpu.pipeline_mode<synchronous>, transform_indices = @transform_23, window_bounds = array<i64: 2, 1, 32>}, {pipeline_mode = #tpu.pipeline_mode<synchronous>, transform_indices = @transform_24, window_bounds = array<i64: 2, 32, 64>}, {pipeline_mode = #tpu.pipeline_mode<synchronous>, transform_indices = @transform_25, window_bounds = array<i64: 2, 1, 64>}, {pipeline_mode = #tpu.pipeline_mode<synchronous>, transform_indices = @transform_26, window_bounds = array<i64: 2, 32, 32>}, {pipeline_mode = #tpu.pipeline_mode<synchronous>, transform_indices = @transform_27, window_bounds = array<i64: 2, 1, 32>}, {pipeline_mode = #tpu.pipeline_mode<synchronous>, transform_indices = @transform_28, window_bounds = array<i64: 2, 1, 32>}, {pipeline_mode = #tpu.pipeline_mode<synchronous>, transform_indices = @transform_29, window_bounds = array<i64: 2, 1, 32>}, {pipeline_mode = #tpu.pipeline_mode<synchronous>, transform_indices = @transform_30, window_bounds = array<i64: 2, 32, 64>}, {pipeline_mode = #tpu.pipeline_mode<synchronous>, transform_indices = @transform_31, window_bounds = array<i64: 2, 1, 64>}, {pipeline_mode = #tpu.pipeline_mode<synchronous>, transform_indices = @transform_32, window_bounds = array<i64: 2, 64, 32>}, {pipeline_mode = #tpu.pipeline_mode<synchronous>, transform_indices = @transform_33, window_bounds = array<i64: 2, 1, 32>}, {pipeline_mode = #tpu.pipeline_mode<synchronous>, transform_indices = @transform_34, window_bounds = array<i64: 2, 1, 32>}, {pipeline_mode = #tpu.pipeline_mode<synchronous>, transform_indices = @transform_35, window_bounds = array<i64: 2, 1, 32>}, {pipeline_mode = #tpu.pipeline_mode<synchronous>, transform_indices = @transform_36, window_bounds = array<i64: 32, 128>}, {pipeline_mode = #tpu.pipeline_mode<synchronous>, transform_indices = @transform_37, window_bounds = array<i64: 1, 128>}, {transform_indices = @transform_38, window_bounds = array<i64: 1, 8, 128>}, {transform_indices = @transform_39, window_bounds = array<i64: 1, 4, 8, 8>}, {transform_indices = @transform_40, window_bounds = array<i64: 1, 4, 8, 8>}]} {
    %c0 = arith.constant 0 : index
    %c0_0 = arith.constant 0 : index
    %c0_1 = arith.constant 0 : index
    %0 = vector.load %arg1[%c0, %c0_0, %c0_1] : memref<1x8x1xi32, #tpu.memory_space<vmem>>, vector<1x8x1xi32>
    %1 = vector.shape_cast %0 : vector<1x8x1xi32> to vector<8x1xi32>
    %2 = tpu.iota {dimensions = array<i32: 1>} : vector<8x56xi32>
    %3 = vector.broadcast %1 : vector<8x1xi32> to vector<8x56xi32>
    %4 = arith.cmpi eq, %3, %2 : vector<8x56xi32>
    %cst = arith.constant 1.000000e+00 : f32
    %cst_2 = arith.constant 0.000000e+00 : f32
    %5 = vector.broadcast %cst : f32 to vector<8x56xf32>
    %6 = vector.broadcast %cst_2 : f32 to vector<8x56xf32>
    %7 = arith.select %4, %5, %6 : vector<8x56xi1>, vector<8x56xf32>
    %c0_3 = arith.constant 0 : index
    %c0_4 = arith.constant 0 : index
    %8 = vector.load %arg3[%c0_3, %c0_4] : memref<56x32xf32, #tpu.memory_space<vmem>>, vector<56x32xf32>
    %cst_5 = arith.constant dense<0.000000e+00> : vector<8x32xf32>
    %9 = tpu.matmul %7, %8, %cst_5 {dimension_numbers = #tpu.dot_dimension_numbers<[1], [0], [0], [1], [0, 0, 1, 1], [], []>} : vector<8x56xf32>, vector<56x32xf32>, vector<8x32xf32> -> vector<8x32xf32>
    %cst_6 = arith.constant 5.65685415 : f32
    %10 = vector.broadcast %cst_6 : f32 to vector<8x32xf32>
    %11 = arith.mulf %9, %10 : vector<8x32xf32>
    %c0_7 = arith.constant 0 : index
    %c0_8 = arith.constant 0 : index
    %12 = vector.load %arg4[%c0_7, %c0_8] : memref<8x32xf32, #tpu.memory_space<vmem>>, vector<8x32xf32>
    %13 = arith.addf %11, %12 : vector<8x32xf32>
    %c0_9 = arith.constant 0 : index
    %c0_10 = arith.constant 0 : index
    %c0_11 = arith.constant 0 : index
    %14 = vector.load %arg2[%c0_9, %c0_10, %c0_11] : memref<1x8x1xi32, #tpu.memory_space<vmem>>, vector<1x8x1xi32>
    %15 = vector.shape_cast %14 : vector<1x8x1xi32> to vector<8x1xi32>
    %16 = tpu.iota {dimensions = array<i32: 1>} : vector<8x56xi32>
    %17 = vector.broadcast %15 : vector<8x1xi32> to vector<8x56xi32>
    %18 = arith.cmpi eq, %17, %16 : vector<8x56xi32>
    %cst_12 = arith.constant 1.000000e+00 : f32
    %cst_13 = arith.constant 0.000000e+00 : f32
    %19 = vector.broadcast %cst_12 : f32 to vector<8x56xf32>
    %20 = vector.broadcast %cst_13 : f32 to vector<8x56xf32>
    %21 = arith.select %18, %19, %20 : vector<8x56xi1>, vector<8x56xf32>
    %c0_14 = arith.constant 0 : index
    %c0_15 = arith.constant 0 : index
    %22 = vector.load %arg3[%c0_14, %c0_15] : memref<56x32xf32, #tpu.memory_space<vmem>>, vector<56x32xf32>
    %cst_16 = arith.constant dense<0.000000e+00> : vector<8x32xf32>
    %23 = tpu.matmul %21, %22, %cst_16 {dimension_numbers = #tpu.dot_dimension_numbers<[1], [0], [0], [1], [0, 0, 1, 1], [], []>} : vector<8x56xf32>, vector<56x32xf32>, vector<8x32xf32> -> vector<8x32xf32>
    %cst_17 = arith.constant 5.65685415 : f32
    %24 = vector.broadcast %cst_17 : f32 to vector<8x32xf32>
    %25 = arith.mulf %23, %24 : vector<8x32xf32>
    %c0_18 = arith.constant 0 : index
    %c0_19 = arith.constant 0 : index
    %26 = vector.load %arg4[%c0_18, %c0_19] : memref<8x32xf32, #tpu.memory_space<vmem>>, vector<8x32xf32>
    %27 = arith.addf %25, %26 : vector<8x32xf32>
    %c0_20 = arith.constant 0 : index
    %c0_21 = arith.constant 0 : index
    %c0_22 = arith.constant 0 : index
    %28 = vector.load %arg5[%c0_20, %c0_21, %c0_22] : memref<2x32x96xbf16, #tpu.memory_space<vmem>>, vector<1x32x96xbf16>
    %29 = vector.shape_cast %28 : vector<1x32x96xbf16> to vector<32x96xbf16>
    %c0_23 = arith.constant 0 : index
    %c0_24 = arith.constant 0 : index
    %c0_25 = arith.constant 0 : index
    %30 = vector.load %arg6[%c0_23, %c0_24, %c0_25] : memref<2x1x96xf32, #tpu.memory_space<vmem>>, vector<1x1x96xf32>
    %31 = vector.shape_cast %30 : vector<1x1x96xf32> to vector<1x96xf32>
    %32 = arith.truncf %13 : vector<8x32xf32> to vector<8x32xbf16>
    %cst_26 = arith.constant dense<0.000000e+00> : vector<8x96xf32>
    %33 = tpu.matmul %32, %29, %cst_26 {dimension_numbers = #tpu.dot_dimension_numbers<[1], [0], [0], [1], [0, 0, 1, 1], [], []>} : vector<8x32xbf16>, vector<32x96xbf16>, vector<8x96xf32> -> vector<8x96xf32>
    %34 = vector.broadcast %31 : vector<1x96xf32> to vector<8x96xf32>
    %35 = arith.addf %33, %34 : vector<8x96xf32>
    %36 = vector.extract_strided_slice %35 {offsets = [0, 0], sizes = [8, 32], strides = [1, 1]} : vector<8x96xf32> to vector<8x32xf32>
    %37 = vector.extract_strided_slice %35 {offsets = [0, 32], sizes = [8, 32], strides = [1, 1]} : vector<8x96xf32> to vector<8x32xf32>
    %38 = vector.extract_strided_slice %35 {offsets = [0, 64], sizes = [8, 32], strides = [1, 1]} : vector<8x96xf32> to vector<8x32xf32>
    %39 = vector.extract_strided_slice %36 {offsets = [0, 0], sizes = [8, 8], strides = [1, 1]} : vector<8x32xf32> to vector<8x8xf32>
    %40 = vector.extract_strided_slice %37 {offsets = [0, 0], sizes = [8, 8], strides = [1, 1]} : vector<8x32xf32> to vector<8x8xf32>
    %41 = vector.extract_strided_slice %38 {offsets = [0, 0], sizes = [8, 8], strides = [1, 1]} : vector<8x32xf32> to vector<8x8xf32>
    %cst_27 = arith.constant dense<0.000000e+00> : vector<8x8xf32>
    %42 = tpu.matmul %39, %40, %cst_27 {dimension_numbers = #tpu.dot_dimension_numbers<[1], [1], [0], [0], [0, 0, 1, 0], [], []>} : vector<8x8xf32>, vector<8x8xf32>, vector<8x8xf32> -> vector<8x8xf32>
    %cst_28 = arith.constant 0.353553385 : f32
    %43 = vector.broadcast %cst_28 : f32 to vector<8x8xf32>
    %44 = arith.mulf %42, %43 : vector<8x8xf32>
    %cst_29 = arith.constant dense<0xFF800000> : vector<8xf32>
    %45 = vector.multi_reduction <maximumf>, %44, %cst_29 [1] : vector<8x8xf32> to vector<8xf32>
    %46 = vector.shape_cast %45 : vector<8xf32> to vector<8x1xf32>
    %47 = vector.broadcast %46 : vector<8x1xf32> to vector<8x8xf32>
    %48 = arith.subf %44, %47 : vector<8x8xf32>
    %49 = math.exp %48 : vector<8x8xf32>
    %cst_30 = arith.constant dense<0.000000e+00> : vector<8xf32>
    %50 = vector.multi_reduction <add>, %49, %cst_30 [1] : vector<8x8xf32> to vector<8xf32>
    %51 = vector.shape_cast %50 : vector<8xf32> to vector<8x1xf32>
    %52 = tpu.reciprocal %51 {approx = true} : vector<8x1xf32> -> vector<8x1xf32>
    %53 = vector.broadcast %52 : vector<8x1xf32> to vector<8x8xf32>
    %54 = arith.mulf %49, %53 : vector<8x8xf32>
    %cst_31 = arith.constant dense<0.000000e+00> : vector<8x8xf32>
    %55 = tpu.matmul %54, %41, %cst_31 {dimension_numbers = #tpu.dot_dimension_numbers<[1], [0], [0], [1], [0, 0, 1, 1], [], []>} : vector<8x8xf32>, vector<8x8xf32>, vector<8x8xf32> -> vector<8x8xf32>
    %c0_32 = arith.constant 0 : index
    %c0_33 = arith.constant 0 : index
    %56 = vector.load %arg42[%c0_32, %c0_33] : memref<8x32xf32, #tpu.memory_space<vmem>>, vector<8x8xf32>
    tpu.vector_store %arg42[%c0_32, %c0_33], %55 {strides = array<i32>} : memref<8x32xf32, #tpu.memory_space<vmem>>, vector<8x8xf32>,
    %57 = vector.extract_strided_slice %36 {offsets = [0, 8], sizes = [8, 8], strides = [1, 1]} : vector<8x32xf32> to vector<8x8xf32>
    %58 = vector.extract_strided_slice %37 {offsets = [0, 8], sizes = [8, 8], strides = [1, 1]} : vector<8x32xf32> to vector<8x8xf32>
    %59 = vector.extract_strided_slice %38 {offsets = [0, 8], sizes = [8, 8], strides = [1, 1]} : vector<8x32xf32> to vector<8x8xf32>
    %cst_34 = arith.constant dense<0.000000e+00> : vector<8x8xf32>
    %60 = tpu.matmul %57, %58, %cst_34 {dimension_numbers = #tpu.dot_dimension_numbers<[1], [1], [0], [0], [0, 0, 1, 0], [], []>} : vector<8x8xf32>, vector<8x8xf32>, vector<8x8xf32> -> vector<8x8xf32>
    %cst_35 = arith.constant 0.353553385 : f32
    %61 = vector.broadcast %cst_35 : f32 to vector<8x8xf32>
    %62 = arith.mulf %60, %61 : vector<8x8xf32>
    %cst_36 = arith.constant dense<0xFF800000> : vector<8xf32>
    %63 = vector.multi_reduction <maximumf>, %62, %cst_36 [1] : vector<8x8xf32> to vector<8xf32>
    %64 = vector.shape_cast %63 : vector<8xf32> to vector<8x1xf32>
    %65 = vector.broadcast %64 : vector<8x1xf32> to vector<8x8xf32>
    %66 = arith.subf %62, %65 : vector<8x8xf32>
    %67 = math.exp %66 : vector<8x8xf32>
    %cst_37 = arith.constant dense<0.000000e+00> : vector<8xf32>
    %68 = vector.multi_reduction <add>, %67, %cst_37 [1] : vector<8x8xf32> to vector<8xf32>
    %69 = vector.shape_cast %68 : vector<8xf32> to vector<8x1xf32>
    %70 = tpu.reciprocal %69 {approx = true} : vector<8x1xf32> -> vector<8x1xf32>
    %71 = vector.broadcast %70 : vector<8x1xf32> to vector<8x8xf32>
    %72 = arith.mulf %67, %71 : vector<8x8xf32>
    %cst_38 = arith.constant dense<0.000000e+00> : vector<8x8xf32>
    %73 = tpu.matmul %72, %59, %cst_38 {dimension_numbers = #tpu.dot_dimension_numbers<[1], [0], [0], [1], [0, 0, 1, 1], [], []>} : vector<8x8xf32>, vector<8x8xf32>, vector<8x8xf32> -> vector<8x8xf32>
    %c0_39 = arith.constant 0 : index
    %c8 = arith.constant 8 : index
    %74 = vector.load %arg42[%c0_39, %c8] : memref<8x32xf32, #tpu.memory_space<vmem>>, vector<8x8xf32>
    tpu.vector_store %arg42[%c0_39, %c8], %73 {strides = array<i32>} : memref<8x32xf32, #tpu.memory_space<vmem>>, vector<8x8xf32>,
    %75 = vector.extract_strided_slice %36 {offsets = [0, 16], sizes = [8, 8], strides = [1, 1]} : vector<8x32xf32> to vector<8x8xf32>
    %76 = vector.extract_strided_slice %37 {offsets = [0, 16], sizes = [8, 8], strides = [1, 1]} : vector<8x32xf32> to vector<8x8xf32>
    %77 = vector.extract_strided_slice %38 {offsets = [0, 16], sizes = [8, 8], strides = [1, 1]} : vector<8x32xf32> to vector<8x8xf32>
    %cst_40 = arith.constant dense<0.000000e+00> : vector<8x8xf32>
    %78 = tpu.matmul %75, %76, %cst_40 {dimension_numbers = #tpu.dot_dimension_numbers<[1], [1], [0], [0], [0, 0, 1, 0], [], []>} : vector<8x8xf32>, vector<8x8xf32>, vector<8x8xf32> -> vector<8x8xf32>
    %cst_41 = arith.constant 0.353553385 : f32
    %79 = vector.broadcast %cst_41 : f32 to vector<8x8xf32>
    %80 = arith.mulf %78, %79 : vector<8x8xf32>
    %cst_42 = arith.constant dense<0xFF800000> : vector<8xf32>
    %81 = vector.multi_reduction <maximumf>, %80, %cst_42 [1] : vector<8x8xf32> to vector<8xf32>
    %82 = vector.shape_cast %81 : vector<8xf32> to vector<8x1xf32>
    %83 = vector.broadcast %82 : vector<8x1xf32> to vector<8x8xf32>
    %84 = arith.subf %80, %83 : vector<8x8xf32>
    %85 = math.exp %84 : vector<8x8xf32>
    %cst_43 = arith.constant dense<0.000000e+00> : vector<8xf32>
    %86 = vector.multi_reduction <add>, %85, %cst_43 [1] : vector<8x8xf32> to vector<8xf32>
    %87 = vector.shape_cast %86 : vector<8xf32> to vector<8x1xf32>
    %88 = tpu.reciprocal %87 {approx = true} : vector<8x1xf32> -> vector<8x1xf32>
    %89 = vector.broadcast %88 : vector<8x1xf32> to vector<8x8xf32>
    %90 = arith.mulf %85, %89 : vector<8x8xf32>
    %cst_44 = arith.constant dense<0.000000e+00> : vector<8x8xf32>
    %91 = tpu.matmul %90, %77, %cst_44 {dimension_numbers = #tpu.dot_dimension_numbers<[1], [0], [0], [1], [0, 0, 1, 1], [], []>} : vector<8x8xf32>, vector<8x8xf32>, vector<8x8xf32> -> vector<8x8xf32>
    %c0_45 = arith.constant 0 : index
    %c16 = arith.constant 16 : index
    %92 = vector.load %arg42[%c0_45, %c16] : memref<8x32xf32, #tpu.memory_space<vmem>>, vector<8x8xf32>
    tpu.vector_store %arg42[%c0_45, %c16], %91 {strides = array<i32>} : memref<8x32xf32, #tpu.memory_space<vmem>>, vector<8x8xf32>,
    %93 = vector.extract_strided_slice %36 {offsets = [0, 24], sizes = [8, 8], strides = [1, 1]} : vector<8x32xf32> to vector<8x8xf32>
    %94 = vector.extract_strided_slice %37 {offsets = [0, 24], sizes = [8, 8], strides = [1, 1]} : vector<8x32xf32> to vector<8x8xf32>
    %95 = vector.extract_strided_slice %38 {offsets = [0, 24], sizes = [8, 8], strides = [1, 1]} : vector<8x32xf32> to vector<8x8xf32>
    %cst_46 = arith.constant dense<0.000000e+00> : vector<8x8xf32>
    %96 = tpu.matmul %93, %94, %cst_46 {dimension_numbers = #tpu.dot_dimension_numbers<[1], [1], [0], [0], [0, 0, 1, 0], [], []>} : vector<8x8xf32>, vector<8x8xf32>, vector<8x8xf32> -> vector<8x8xf32>
    %cst_47 = arith.constant 0.353553385 : f32
    %97 = vector.broadcast %cst_47 : f32 to vector<8x8xf32>
    %98 = arith.mulf %96, %97 : vector<8x8xf32>
    %cst_48 = arith.constant dense<0xFF800000> : vector<8xf32>
    %99 = vector.multi_reduction <maximumf>, %98, %cst_48 [1] : vector<8x8xf32> to vector<8xf32>
    %100 = vector.shape_cast %99 : vector<8xf32> to vector<8x1xf32>
    %101 = vector.broadcast %100 : vector<8x1xf32> to vector<8x8xf32>
    %102 = arith.subf %98, %101 : vector<8x8xf32>
    %103 = math.exp %102 : vector<8x8xf32>
    %cst_49 = arith.constant dense<0.000000e+00> : vector<8xf32>
    %104 = vector.multi_reduction <add>, %103, %cst_49 [1] : vector<8x8xf32> to vector<8xf32>
    %105 = vector.shape_cast %104 : vector<8xf32> to vector<8x1xf32>
    %106 = tpu.reciprocal %105 {approx = true} : vector<8x1xf32> -> vector<8x1xf32>
    %107 = vector.broadcast %106 : vector<8x1xf32> to vector<8x8xf32>
    %108 = arith.mulf %103, %107 : vector<8x8xf32>
    %cst_50 = arith.constant dense<0.000000e+00> : vector<8x8xf32>
    %109 = tpu.matmul %108, %95, %cst_50 {dimension_numbers = #tpu.dot_dimension_numbers<[1], [0], [0], [1], [0, 0, 1, 1], [], []>} : vector<8x8xf32>, vector<8x8xf32>, vector<8x8xf32> -> vector<8x8xf32>
    %c0_51 = arith.constant 0 : index
    %c24 = arith.constant 24 : index
    %110 = vector.load %arg42[%c0_51, %c24] : memref<8x32xf32, #tpu.memory_space<vmem>>, vector<8x8xf32>
    tpu.vector_store %arg42[%c0_51, %c24], %109 {strides = array<i32>} : memref<8x32xf32, #tpu.memory_space<vmem>>, vector<8x8xf32>,
    %c0_52 = arith.constant 0 : index
    %c0_53 = arith.constant 0 : index
    %111 = vector.load %arg42[%c0_52, %c0_53] : memref<8x32xf32, #tpu.memory_space<vmem>>, vector<8x32xf32>
    %c0_54 = arith.constant 0 : index
    %c0_55 = arith.constant 0 : index
    %c0_56 = arith.constant 0 : index
    %112 = vector.load %arg7[%c0_54, %c0_55, %c0_56] : memref<2x32x32xbf16, #tpu.memory_space<vmem>>, vector<1x32x32xbf16>
    %113 = vector.shape_cast %112 : vector<1x32x32xbf16> to vector<32x32xbf16>
    %c0_57 = arith.constant 0 : index
    %c0_58 = arith.constant 0 : index
    %c0_59 = arith.constant 0 : index
    %114 = vector.load %arg8[%c0_57, %c0_58, %c0_59] : memref<2x1x32xf32, #tpu.memory_space<vmem>>, vector<1x1x32xf32>
    %115 = vector.shape_cast %114 : vector<1x1x32xf32> to vector<1x32xf32>
    %116 = arith.truncf %111 : vector<8x32xf32> to vector<8x32xbf16>
    %cst_60 = arith.constant dense<0.000000e+00> : vector<8x32xf32>
    %117 = tpu.matmul %116, %113, %cst_60 {dimension_numbers = #tpu.dot_dimension_numbers<[1], [0], [0], [1], [0, 0, 1, 1], [], []>} : vector<8x32xbf16>, vector<32x32xbf16>, vector<8x32xf32> -> vector<8x32xf32>
    %118 = vector.broadcast %115 : vector<1x32xf32> to vector<8x32xf32>
    %119 = arith.addf %117, %118 : vector<8x32xf32>
    %120 = arith.addf %13, %119 : vector<8x32xf32>
    %c0_61 = arith.constant 0 : index
    %c0_62 = arith.constant 0 : index
    %c0_63 = arith.constant 0 : index
    %121 = vector.load %arg9[%c0_61, %c0_62, %c0_63] : memref<2x1x32xf32, #tpu.memory_space<vmem>>, vector<1x1x32xf32>
    %122 = vector.shape_cast %121 : vector<1x1x32xf32> to vector<1x32xf32>
    %c0_64 = arith.constant 0 : index
    %c0_65 = arith.constant 0 : index
    %c0_66 = arith.constant 0 : index
    %123 = vector.load %arg10[%c0_64, %c0_65, %c0_66] : memref<2x1x32xf32, #tpu.memory_space<vmem>>, vector<1x1x32xf32>
    %124 = vector.shape_cast %123 : vector<1x1x32xf32> to vector<1x32xf32>
    %cst_67 = arith.constant dense<0.000000e+00> : vector<8xf32>
    %125 = vector.multi_reduction <add>, %120, %cst_67 [1] : vector<8x32xf32> to vector<8xf32>
    %126 = vector.shape_cast %125 : vector<8xf32> to vector<8x1xf32>
    %cst_68 = arith.constant 3.200000e+01 : f32
    %127 = vector.broadcast %cst_68 : f32 to vector<8x1xf32>
    %128 = arith.divf %126, %127 : vector<8x1xf32>
    %129 = vector.broadcast %128 : vector<8x1xf32> to vector<8x32xf32>
    %130 = arith.subf %120, %129 : vector<8x32xf32>
    %131 = arith.mulf %130, %130 : vector<8x32xf32>
    %cst_69 = arith.constant dense<0.000000e+00> : vector<8xf32>
    %132 = vector.multi_reduction <add>, %131, %cst_69 [1] : vector<8x32xf32> to vector<8xf32>
    %133 = vector.shape_cast %132 : vector<8xf32> to vector<8x1xf32>
    %cst_70 = arith.constant 3.200000e+01 : f32
    %134 = vector.broadcast %cst_70 : f32 to vector<8x1xf32>
    %135 = arith.divf %133, %134 : vector<8x1xf32>
    %136 = vector.broadcast %128 : vector<8x1xf32> to vector<8x32xf32>
    %137 = arith.subf %120, %136 : vector<8x32xf32>
    %cst_71 = arith.constant 9.99999974E-6 : f32
    %138 = vector.broadcast %cst_71 : f32 to vector<8x1xf32>
    %139 = arith.addf %135, %138 : vector<8x1xf32>
    %140 = math.rsqrt %139 : vector<8x1xf32>
    %141 = vector.broadcast %140 : vector<8x1xf32> to vector<8x32xf32>
    %142 = arith.mulf %137, %141 : vector<8x32xf32>
    %143 = vector.broadcast %122 : vector<1x32xf32> to vector<8x32xf32>
    %144 = arith.mulf %142, %143 : vector<8x32xf32>
    %145 = vector.broadcast %124 : vector<1x32xf32> to vector<8x32xf32>
    %146 = arith.addf %144, %145 : vector<8x32xf32>
    %c0_72 = arith.constant 0 : index
    %c0_73 = arith.constant 0 : index
    %c0_74 = arith.constant 0 : index
    %147 = vector.load %arg11[%c0_72, %c0_73, %c0_74] : memref<2x32x64xbf16, #tpu.memory_space<vmem>>, vector<1x32x64xbf16>
    %148 = vector.shape_cast %147 : vector<1x32x64xbf16> to vector<32x64xbf16>
    %c0_75 = arith.constant 0 : index
    %c0_76 = arith.constant 0 : index
    %c0_77 = arith.constant 0 : index
    %149 = vector.load %arg12[%c0_75, %c0_76, %c0_77] : memref<2x1x64xf32, #tpu.memory_space<vmem>>, vector<1x1x64xf32>
    %150 = vector.shape_cast %149 : vector<1x1x64xf32> to vector<1x64xf32>
    %151 = arith.truncf %146 : vector<8x32xf32> to vector<8x32xbf16>
    %cst_78 = arith.constant dense<0.000000e+00> : vector<8x64xf32>
    %152 = tpu.matmul %151, %148, %cst_78 {dimension_numbers = #tpu.dot_dimension_numbers<[1], [0], [0], [1], [0, 0, 1, 1], [], []>} : vector<8x32xbf16>, vector<32x64xbf16>, vector<8x64xf32> -> vector<8x64xf32>
    %153 = vector.broadcast %150 : vector<1x64xf32> to vector<8x64xf32>
    %154 = arith.addf %152, %153 : vector<8x64xf32>
    %cst_79 = arith.constant 0.000000e+00 : f32
    %155 = vector.broadcast %cst_79 : f32 to vector<8x64xf32>
    %156 = arith.maximumf %154, %155 : vector<8x64xf32>
    %c0_80 = arith.constant 0 : index
    %c0_81 = arith.constant 0 : index
    %c0_82 = arith.constant 0 : index
    %157 = vector.load %arg13[%c0_80, %c0_81, %c0_82] : memref<2x64x32xbf16, #tpu.memory_space<vmem>>, vector<1x64x32xbf16>
    %158 = vector.shape_cast %157 : vector<1x64x32xbf16> to vector<64x32xbf16>
    %c0_83 = arith.constant 0 : index
    %c0_84 = arith.constant 0 : index
    %c0_85 = arith.constant 0 : index
    %159 = vector.load %arg14[%c0_83, %c0_84, %c0_85] : memref<2x1x32xf32, #tpu.memory_space<vmem>>, vector<1x1x32xf32>
    %160 = vector.shape_cast %159 : vector<1x1x32xf32> to vector<1x32xf32>
    %161 = arith.truncf %156 : vector<8x64xf32> to vector<8x64xbf16>
    %cst_86 = arith.constant dense<0.000000e+00> : vector<8x32xf32>
    %162 = tpu.matmul %161, %158, %cst_86 {dimension_numbers = #tpu.dot_dimension_numbers<[1], [0], [0], [1], [0, 0, 1, 1], [], []>} : vector<8x64xbf16>, vector<64x32xbf16>, vector<8x32xf32> -> vector<8x32xf32>
    %163 = vector.broadcast %160 : vector<1x32xf32> to vector<8x32xf32>
    %164 = arith.addf %162, %163 : vector<8x32xf32>
    %165 = arith.addf %146, %164 : vector<8x32xf32>
    %c0_87 = arith.constant 0 : index
    %c0_88 = arith.constant 0 : index
    %c0_89 = arith.constant 0 : index
    %166 = vector.load %arg15[%c0_87, %c0_88, %c0_89] : memref<2x1x32xf32, #tpu.memory_space<vmem>>, vector<1x1x32xf32>
    %167 = vector.shape_cast %166 : vector<1x1x32xf32> to vector<1x32xf32>
    %c0_90 = arith.constant 0 : index
    %c0_91 = arith.constant 0 : index
    %c0_92 = arith.constant 0 : index
    %168 = vector.load %arg16[%c0_90, %c0_91, %c0_92] : memref<2x1x32xf32, #tpu.memory_space<vmem>>, vector<1x1x32xf32>
    %169 = vector.shape_cast %168 : vector<1x1x32xf32> to vector<1x32xf32>
    %cst_93 = arith.constant dense<0.000000e+00> : vector<8xf32>
    %170 = vector.multi_reduction <add>, %165, %cst_93 [1] : vector<8x32xf32> to vector<8xf32>
    %171 = vector.shape_cast %170 : vector<8xf32> to vector<8x1xf32>
    %cst_94 = arith.constant 3.200000e+01 : f32
    %172 = vector.broadcast %cst_94 : f32 to vector<8x1xf32>
    %173 = arith.divf %171, %172 : vector<8x1xf32>
    %174 = vector.broadcast %173 : vector<8x1xf32> to vector<8x32xf32>
    %175 = arith.subf %165, %174 : vector<8x32xf32>
    %176 = arith.mulf %175, %175 : vector<8x32xf32>
    %cst_95 = arith.constant dense<0.000000e+00> : vector<8xf32>
    %177 = vector.multi_reduction <add>, %176, %cst_95 [1] : vector<8x32xf32> to vector<8xf32>
    %178 = vector.shape_cast %177 : vector<8xf32> to vector<8x1xf32>
    %cst_96 = arith.constant 3.200000e+01 : f32
    %179 = vector.broadcast %cst_96 : f32 to vector<8x1xf32>
    %180 = arith.divf %178, %179 : vector<8x1xf32>
    %181 = vector.broadcast %173 : vector<8x1xf32> to vector<8x32xf32>
    %182 = arith.subf %165, %181 : vector<8x32xf32>
    %cst_97 = arith.constant 9.99999974E-6 : f32
    %183 = vector.broadcast %cst_97 : f32 to vector<8x1xf32>
    %184 = arith.addf %180, %183 : vector<8x1xf32>
    %185 = math.rsqrt %184 : vector<8x1xf32>
    %186 = vector.broadcast %185 : vector<8x1xf32> to vector<8x32xf32>
    %187 = arith.mulf %182, %186 : vector<8x32xf32>
    %188 = vector.broadcast %167 : vector<1x32xf32> to vector<8x32xf32>
    %189 = arith.mulf %187, %188 : vector<8x32xf32>
    %190 = vector.broadcast %169 : vector<1x32xf32> to vector<8x32xf32>
    %191 = arith.addf %189, %190 : vector<8x32xf32>
    %c1 = arith.constant 1 : index
    %c0_98 = arith.constant 0 : index
    %c0_99 = arith.constant 0 : index
    %192 = vector.load %arg5[%c1, %c0_98, %c0_99] : memref<2x32x96xbf16, #tpu.memory_space<vmem>>, vector<1x32x96xbf16>
    %193 = vector.shape_cast %192 : vector<1x32x96xbf16> to vector<32x96xbf16>
    %c1_100 = arith.constant 1 : index
    %c0_101 = arith.constant 0 : index
    %c0_102 = arith.constant 0 : index
    %194 = vector.load %arg6[%c1_100, %c0_101, %c0_102] : memref<2x1x96xf32, #tpu.memory_space<vmem>>, vector<1x1x96xf32>
    %195 = vector.shape_cast %194 : vector<1x1x96xf32> to vector<1x96xf32>
    %196 = arith.truncf %191 : vector<8x32xf32> to vector<8x32xbf16>
    %cst_103 = arith.constant dense<0.000000e+00> : vector<8x96xf32>
    %197 = tpu.matmul %196, %193, %cst_103 {dimension_numbers = #tpu.dot_dimension_numbers<[1], [0], [0], [1], [0, 0, 1, 1], [], []>} : vector<8x32xbf16>, vector<32x96xbf16>, vector<8x96xf32> -> vector<8x96xf32>
    %198 = vector.broadcast %195 : vector<1x96xf32> to vector<8x96xf32>
    %199 = arith.addf %197, %198 : vector<8x96xf32>
    %200 = vector.extract_strided_slice %199 {offsets = [0, 0], sizes = [8, 32], strides = [1, 1]} : vector<8x96xf32> to vector<8x32xf32>
    %201 = vector.extract_strided_slice %199 {offsets = [0, 32], sizes = [8, 32], strides = [1, 1]} : vector<8x96xf32> to vector<8x32xf32>
    %202 = vector.extract_strided_slice %199 {offsets = [0, 64], sizes = [8, 32], strides = [1, 1]} : vector<8x96xf32> to vector<8x32xf32>
    %203 = vector.extract_strided_slice %200 {offsets = [0, 0], sizes = [8, 8], strides = [1, 1]} : vector<8x32xf32> to vector<8x8xf32>
    %204 = vector.extract_strided_slice %201 {offsets = [0, 0], sizes = [8, 8], strides = [1, 1]} : vector<8x32xf32> to vector<8x8xf32>
    %205 = vector.extract_strided_slice %202 {offsets = [0, 0], sizes = [8, 8], strides = [1, 1]} : vector<8x32xf32> to vector<8x8xf32>
    %cst_104 = arith.constant dense<0.000000e+00> : vector<8x8xf32>
    %206 = tpu.matmul %203, %204, %cst_104 {dimension_numbers = #tpu.dot_dimension_numbers<[1], [1], [0], [0], [0, 0, 1, 0], [], []>} : vector<8x8xf32>, vector<8x8xf32>, vector<8x8xf32> -> vector<8x8xf32>
    %cst_105 = arith.constant 0.353553385 : f32
    %207 = vector.broadcast %cst_105 : f32 to vector<8x8xf32>
    %208 = arith.mulf %206, %207 : vector<8x8xf32>
    %cst_106 = arith.constant dense<0xFF800000> : vector<8xf32>
    %209 = vector.multi_reduction <maximumf>, %208, %cst_106 [1] : vector<8x8xf32> to vector<8xf32>
    %210 = vector.shape_cast %209 : vector<8xf32> to vector<8x1xf32>
    %211 = vector.broadcast %210 : vector<8x1xf32> to vector<8x8xf32>
    %212 = arith.subf %208, %211 : vector<8x8xf32>
    %213 = math.exp %212 : vector<8x8xf32>
    %cst_107 = arith.constant dense<0.000000e+00> : vector<8xf32>
    %214 = vector.multi_reduction <add>, %213, %cst_107 [1] : vector<8x8xf32> to vector<8xf32>
    %215 = vector.shape_cast %214 : vector<8xf32> to vector<8x1xf32>
    %216 = tpu.reciprocal %215 {approx = true} : vector<8x1xf32> -> vector<8x1xf32>
    %217 = vector.broadcast %216 : vector<8x1xf32> to vector<8x8xf32>
    %218 = arith.mulf %213, %217 : vector<8x8xf32>
    %cst_108 = arith.constant dense<0.000000e+00> : vector<8x8xf32>
    %219 = tpu.matmul %218, %205, %cst_108 {dimension_numbers = #tpu.dot_dimension_numbers<[1], [0], [0], [1], [0, 0, 1, 1], [], []>} : vector<8x8xf32>, vector<8x8xf32>, vector<8x8xf32> -> vector<8x8xf32>
    %c0_109 = arith.constant 0 : index
    %c0_110 = arith.constant 0 : index
    %220 = vector.load %arg42[%c0_109, %c0_110] : memref<8x32xf32, #tpu.memory_space<vmem>>, vector<8x8xf32>
    tpu.vector_store %arg42[%c0_109, %c0_110], %219 {strides = array<i32>} : memref<8x32xf32, #tpu.memory_space<vmem>>, vector<8x8xf32>,
    %c0_111 = arith.constant 0 : index
    %c0_112 = arith.constant 0 : index
    %c0_113 = arith.constant 0 : index
    %c0_114 = arith.constant 0 : index
    %221 = vector.load %arg40[%c0_111, %c0_112, %c0_113, %c0_114] : memref<1x4x8x8xf32, #tpu.memory_space<vmem>>, vector<1x1x8x8xf32>
    %222 = vector.shape_cast %221 : vector<1x1x8x8xf32> to vector<8x8xf32>
    %223 = vector.shape_cast %218 : vector<8x8xf32> to vector<1x1x8x8xf32>
    tpu.vector_store %arg40[%c0_111, %c0_112, %c0_113, %c0_114], %223 {strides = array<i32>} : memref<1x4x8x8xf32, #tpu.memory_space<vmem>>, vector<1x1x8x8xf32>,
    %224 = vector.extract_strided_slice %200 {offsets = [0, 8], sizes = [8, 8], strides = [1, 1]} : vector<8x32xf32> to vector<8x8xf32>
    %225 = vector.extract_strided_slice %201 {offsets = [0, 8], sizes = [8, 8], strides = [1, 1]} : vector<8x32xf32> to vector<8x8xf32>
    %226 = vector.extract_strided_slice %202 {offsets = [0, 8], sizes = [8, 8], strides = [1, 1]} : vector<8x32xf32> to vector<8x8xf32>
    %cst_115 = arith.constant dense<0.000000e+00> : vector<8x8xf32>
    %227 = tpu.matmul %224, %225, %cst_115 {dimension_numbers = #tpu.dot_dimension_numbers<[1], [1], [0], [0], [0, 0, 1, 0], [], []>} : vector<8x8xf32>, vector<8x8xf32>, vector<8x8xf32> -> vector<8x8xf32>
    %cst_116 = arith.constant 0.353553385 : f32
    %228 = vector.broadcast %cst_116 : f32 to vector<8x8xf32>
    %229 = arith.mulf %227, %228 : vector<8x8xf32>
    %cst_117 = arith.constant dense<0xFF800000> : vector<8xf32>
    %230 = vector.multi_reduction <maximumf>, %229, %cst_117 [1] : vector<8x8xf32> to vector<8xf32>
    %231 = vector.shape_cast %230 : vector<8xf32> to vector<8x1xf32>
    %232 = vector.broadcast %231 : vector<8x1xf32> to vector<8x8xf32>
    %233 = arith.subf %229, %232 : vector<8x8xf32>
    %234 = math.exp %233 : vector<8x8xf32>
    %cst_118 = arith.constant dense<0.000000e+00> : vector<8xf32>
    %235 = vector.multi_reduction <add>, %234, %cst_118 [1] : vector<8x8xf32> to vector<8xf32>
    %236 = vector.shape_cast %235 : vector<8xf32> to vector<8x1xf32>
    %237 = tpu.reciprocal %236 {approx = true} : vector<8x1xf32> -> vector<8x1xf32>
    %238 = vector.broadcast %237 : vector<8x1xf32> to vector<8x8xf32>
    %239 = arith.mulf %234, %238 : vector<8x8xf32>
    %cst_119 = arith.constant dense<0.000000e+00> : vector<8x8xf32>
    %240 = tpu.matmul %239, %226, %cst_119 {dimension_numbers = #tpu.dot_dimension_numbers<[1], [0], [0], [1], [0, 0, 1, 1], [], []>} : vector<8x8xf32>, vector<8x8xf32>, vector<8x8xf32> -> vector<8x8xf32>
    %c0_120 = arith.constant 0 : index
    %c8_121 = arith.constant 8 : index
    %241 = vector.load %arg42[%c0_120, %c8_121] : memref<8x32xf32, #tpu.memory_space<vmem>>, vector<8x8xf32>
    tpu.vector_store %arg42[%c0_120, %c8_121], %240 {strides = array<i32>} : memref<8x32xf32, #tpu.memory_space<vmem>>, vector<8x8xf32>,
    %c0_122 = arith.constant 0 : index
    %c1_123 = arith.constant 1 : index
    %c0_124 = arith.constant 0 : index
    %c0_125 = arith.constant 0 : index
    %242 = vector.load %arg40[%c0_122, %c1_123, %c0_124, %c0_125] : memref<1x4x8x8xf32, #tpu.memory_space<vmem>>, vector<1x1x8x8xf32>
    %243 = vector.shape_cast %242 : vector<1x1x8x8xf32> to vector<8x8xf32>
    %244 = vector.shape_cast %239 : vector<8x8xf32> to vector<1x1x8x8xf32>
    tpu.vector_store %arg40[%c0_122, %c1_123, %c0_124, %c0_125], %244 {strides = array<i32>} : memref<1x4x8x8xf32, #tpu.memory_space<vmem>>, vector<1x1x8x8xf32>,
    %245 = vector.extract_strided_slice %200 {offsets = [0, 16], sizes = [8, 8], strides = [1, 1]} : vector<8x32xf32> to vector<8x8xf32>
    %246 = vector.extract_strided_slice %201 {offsets = [0, 16], sizes = [8, 8], strides = [1, 1]} : vector<8x32xf32> to vector<8x8xf32>
    %247 = vector.extract_strided_slice %202 {offsets = [0, 16], sizes = [8, 8], strides = [1, 1]} : vector<8x32xf32> to vector<8x8xf32>
    %cst_126 = arith.constant dense<0.000000e+00> : vector<8x8xf32>
    %248 = tpu.matmul %245, %246, %cst_126 {dimension_numbers = #tpu.dot_dimension_numbers<[1], [1], [0], [0], [0, 0, 1, 0], [], []>} : vector<8x8xf32>, vector<8x8xf32>, vector<8x8xf32> -> vector<8x8xf32>
    %cst_127 = arith.constant 0.353553385 : f32
    %249 = vector.broadcast %cst_127 : f32 to vector<8x8xf32>
    %250 = arith.mulf %248, %249 : vector<8x8xf32>
    %cst_128 = arith.constant dense<0xFF800000> : vector<8xf32>
    %251 = vector.multi_reduction <maximumf>, %250, %cst_128 [1] : vector<8x8xf32> to vector<8xf32>
    %252 = vector.shape_cast %251 : vector<8xf32> to vector<8x1xf32>
    %253 = vector.broadcast %252 : vector<8x1xf32> to vector<8x8xf32>
    %254 = arith.subf %250, %253 : vector<8x8xf32>
    %255 = math.exp %254 : vector<8x8xf32>
    %cst_129 = arith.constant dense<0.000000e+00> : vector<8xf32>
    %256 = vector.multi_reduction <add>, %255, %cst_129 [1] : vector<8x8xf32> to vector<8xf32>
    %257 = vector.shape_cast %256 : vector<8xf32> to vector<8x1xf32>
    %258 = tpu.reciprocal %257 {approx = true} : vector<8x1xf32> -> vector<8x1xf32>
    %259 = vector.broadcast %258 : vector<8x1xf32> to vector<8x8xf32>
    %260 = arith.mulf %255, %259 : vector<8x8xf32>
    %cst_130 = arith.constant dense<0.000000e+00> : vector<8x8xf32>
    %261 = tpu.matmul %260, %247, %cst_130 {dimension_numbers = #tpu.dot_dimension_numbers<[1], [0], [0], [1], [0, 0, 1, 1], [], []>} : vector<8x8xf32>, vector<8x8xf32>, vector<8x8xf32> -> vector<8x8xf32>
    %c0_131 = arith.constant 0 : index
    %c16_132 = arith.constant 16 : index
    %262 = vector.load %arg42[%c0_131, %c16_132] : memref<8x32xf32, #tpu.memory_space<vmem>>, vector<8x8xf32>
    tpu.vector_store %arg42[%c0_131, %c16_132], %261 {strides = array<i32>} : memref<8x32xf32, #tpu.memory_space<vmem>>, vector<8x8xf32>,
    %c0_133 = arith.constant 0 : index
    %c2 = arith.constant 2 : index
    %c0_134 = arith.constant 0 : index
    %c0_135 = arith.constant 0 : index
    %263 = vector.load %arg40[%c0_133, %c2, %c0_134, %c0_135] : memref<1x4x8x8xf32, #tpu.memory_space<vmem>>, vector<1x1x8x8xf32>
    %264 = vector.shape_cast %263 : vector<1x1x8x8xf32> to vector<8x8xf32>
    %265 = vector.shape_cast %260 : vector<8x8xf32> to vector<1x1x8x8xf32>
    tpu.vector_store %arg40[%c0_133, %c2, %c0_134, %c0_135], %265 {strides = array<i32>} : memref<1x4x8x8xf32, #tpu.memory_space<vmem>>, vector<1x1x8x8xf32>,
    %266 = vector.extract_strided_slice %200 {offsets = [0, 24], sizes = [8, 8], strides = [1, 1]} : vector<8x32xf32> to vector<8x8xf32>
    %267 = vector.extract_strided_slice %201 {offsets = [0, 24], sizes = [8, 8], strides = [1, 1]} : vector<8x32xf32> to vector<8x8xf32>
    %268 = vector.extract_strided_slice %202 {offsets = [0, 24], sizes = [8, 8], strides = [1, 1]} : vector<8x32xf32> to vector<8x8xf32>
    %cst_136 = arith.constant dense<0.000000e+00> : vector<8x8xf32>
    %269 = tpu.matmul %266, %267, %cst_136 {dimension_numbers = #tpu.dot_dimension_numbers<[1], [1], [0], [0], [0, 0, 1, 0], [], []>} : vector<8x8xf32>, vector<8x8xf32>, vector<8x8xf32> -> vector<8x8xf32>
    %cst_137 = arith.constant 0.353553385 : f32
    %270 = vector.broadcast %cst_137 : f32 to vector<8x8xf32>
    %271 = arith.mulf %269, %270 : vector<8x8xf32>
    %cst_138 = arith.constant dense<0xFF800000> : vector<8xf32>
    %272 = vector.multi_reduction <maximumf>, %271, %cst_138 [1] : vector<8x8xf32> to vector<8xf32>
    %273 = vector.shape_cast %272 : vector<8xf32> to vector<8x1xf32>
    %274 = vector.broadcast %273 : vector<8x1xf32> to vector<8x8xf32>
    %275 = arith.subf %271, %274 : vector<8x8xf32>
    %276 = math.exp %275 : vector<8x8xf32>
    %cst_139 = arith.constant dense<0.000000e+00> : vector<8xf32>
    %277 = vector.multi_reduction <add>, %276, %cst_139 [1] : vector<8x8xf32> to vector<8xf32>
    %278 = vector.shape_cast %277 : vector<8xf32> to vector<8x1xf32>
    %279 = tpu.reciprocal %278 {approx = true} : vector<8x1xf32> -> vector<8x1xf32>
    %280 = vector.broadcast %279 : vector<8x1xf32> to vector<8x8xf32>
    %281 = arith.mulf %276, %280 : vector<8x8xf32>
    %cst_140 = arith.constant dense<0.000000e+00> : vector<8x8xf32>
    %282 = tpu.matmul %281, %268, %cst_140 {dimension_numbers = #tpu.dot_dimension_numbers<[1], [0], [0], [1], [0, 0, 1, 1], [], []>} : vector<8x8xf32>, vector<8x8xf32>, vector<8x8xf32> -> vector<8x8xf32>
    %c0_141 = arith.constant 0 : index
    %c24_142 = arith.constant 24 : index
    %283 = vector.load %arg42[%c0_141, %c24_142] : memref<8x32xf32, #tpu.memory_space<vmem>>, vector<8x8xf32>
    tpu.vector_store %arg42[%c0_141, %c24_142], %282 {strides = array<i32>} : memref<8x32xf32, #tpu.memory_space<vmem>>, vector<8x8xf32>,
    %c0_143 = arith.constant 0 : index
    %c3 = arith.constant 3 : index
    %c0_144 = arith.constant 0 : index
    %c0_145 = arith.constant 0 : index
    %284 = vector.load %arg40[%c0_143, %c3, %c0_144, %c0_145] : memref<1x4x8x8xf32, #tpu.memory_space<vmem>>, vector<1x1x8x8xf32>
    %285 = vector.shape_cast %284 : vector<1x1x8x8xf32> to vector<8x8xf32>
    %286 = vector.shape_cast %281 : vector<8x8xf32> to vector<1x1x8x8xf32>
    tpu.vector_store %arg40[%c0_143, %c3, %c0_144, %c0_145], %286 {strides = array<i32>} : memref<1x4x8x8xf32, #tpu.memory_space<vmem>>, vector<1x1x8x8xf32>,
    %c0_146 = arith.constant 0 : index
    %c0_147 = arith.constant 0 : index
    %287 = vector.load %arg42[%c0_146, %c0_147] : memref<8x32xf32, #tpu.memory_space<vmem>>, vector<8x32xf32>
    %c1_148 = arith.constant 1 : index
    %c0_149 = arith.constant 0 : index
    %c0_150 = arith.constant 0 : index
    %288 = vector.load %arg7[%c1_148, %c0_149, %c0_150] : memref<2x32x32xbf16, #tpu.memory_space<vmem>>, vector<1x32x32xbf16>
    %289 = vector.shape_cast %288 : vector<1x32x32xbf16> to vector<32x32xbf16>
    %c1_151 = arith.constant 1 : index
    %c0_152 = arith.constant 0 : index
    %c0_153 = arith.constant 0 : index
    %290 = vector.load %arg8[%c1_151, %c0_152, %c0_153] : memref<2x1x32xf32, #tpu.memory_space<vmem>>, vector<1x1x32xf32>
    %291 = vector.shape_cast %290 : vector<1x1x32xf32> to vector<1x32xf32>
    %292 = arith.truncf %287 : vector<8x32xf32> to vector<8x32xbf16>
    %cst_154 = arith.constant dense<0.000000e+00> : vector<8x32xf32>
    %293 = tpu.matmul %292, %289, %cst_154 {dimension_numbers = #tpu.dot_dimension_numbers<[1], [0], [0], [1], [0, 0, 1, 1], [], []>} : vector<8x32xbf16>, vector<32x32xbf16>, vector<8x32xf32> -> vector<8x32xf32>
    %294 = vector.broadcast %291 : vector<1x32xf32> to vector<8x32xf32>
    %295 = arith.addf %293, %294 : vector<8x32xf32>
    %296 = arith.addf %191, %295 : vector<8x32xf32>
    %c1_155 = arith.constant 1 : index
    %c0_156 = arith.constant 0 : index
    %c0_157 = arith.constant 0 : index
    %297 = vector.load %arg9[%c1_155, %c0_156, %c0_157] : memref<2x1x32xf32, #tpu.memory_space<vmem>>, vector<1x1x32xf32>
    %298 = vector.shape_cast %297 : vector<1x1x32xf32> to vector<1x32xf32>
    %c1_158 = arith.constant 1 : index
    %c0_159 = arith.constant 0 : index
    %c0_160 = arith.constant 0 : index
    %299 = vector.load %arg10[%c1_158, %c0_159, %c0_160] : memref<2x1x32xf32, #tpu.memory_space<vmem>>, vector<1x1x32xf32>
    %300 = vector.shape_cast %299 : vector<1x1x32xf32> to vector<1x32xf32>
    %cst_161 = arith.constant dense<0.000000e+00> : vector<8xf32>
    %301 = vector.multi_reduction <add>, %296, %cst_161 [1] : vector<8x32xf32> to vector<8xf32>
    %302 = vector.shape_cast %301 : vector<8xf32> to vector<8x1xf32>
    %cst_162 = arith.constant 3.200000e+01 : f32
    %303 = vector.broadcast %cst_162 : f32 to vector<8x1xf32>
    %304 = arith.divf %302, %303 : vector<8x1xf32>
    %305 = vector.broadcast %304 : vector<8x1xf32> to vector<8x32xf32>
    %306 = arith.subf %296, %305 : vector<8x32xf32>
    %307 = arith.mulf %306, %306 : vector<8x32xf32>
    %cst_163 = arith.constant dense<0.000000e+00> : vector<8xf32>
    %308 = vector.multi_reduction <add>, %307, %cst_163 [1] : vector<8x32xf32> to vector<8xf32>
    %309 = vector.shape_cast %308 : vector<8xf32> to vector<8x1xf32>
    %cst_164 = arith.constant 3.200000e+01 : f32
    %310 = vector.broadcast %cst_164 : f32 to vector<8x1xf32>
    %311 = arith.divf %309, %310 : vector<8x1xf32>
    %312 = vector.broadcast %304 : vector<8x1xf32> to vector<8x32xf32>
    %313 = arith.subf %296, %312 : vector<8x32xf32>
    %cst_165 = arith.constant 9.99999974E-6 : f32
    %314 = vector.broadcast %cst_165 : f32 to vector<8x1xf32>
    %315 = arith.addf %311, %314 : vector<8x1xf32>
    %316 = math.rsqrt %315 : vector<8x1xf32>
    %317 = vector.broadcast %316 : vector<8x1xf32> to vector<8x32xf32>
    %318 = arith.mulf %313, %317 : vector<8x32xf32>
    %319 = vector.broadcast %298 : vector<1x32xf32> to vector<8x32xf32>
    %320 = arith.mulf %318, %319 : vector<8x32xf32>
    %321 = vector.broadcast %300 : vector<1x32xf32> to vector<8x32xf32>
    %322 = arith.addf %320, %321 : vector<8x32xf32>
    %c1_166 = arith.constant 1 : index
    %c0_167 = arith.constant 0 : index
    %c0_168 = arith.constant 0 : index
    %323 = vector.load %arg11[%c1_166, %c0_167, %c0_168] : memref<2x32x64xbf16, #tpu.memory_space<vmem>>, vector<1x32x64xbf16>
    %324 = vector.shape_cast %323 : vector<1x32x64xbf16> to vector<32x64xbf16>
    %c1_169 = arith.constant 1 : index
    %c0_170 = arith.constant 0 : index
    %c0_171 = arith.constant 0 : index
    %325 = vector.load %arg12[%c1_169, %c0_170, %c0_171] : memref<2x1x64xf32, #tpu.memory_space<vmem>>, vector<1x1x64xf32>
    %326 = vector.shape_cast %325 : vector<1x1x64xf32> to vector<1x64xf32>
    %327 = arith.truncf %322 : vector<8x32xf32> to vector<8x32xbf16>
    %cst_172 = arith.constant dense<0.000000e+00> : vector<8x64xf32>
    %328 = tpu.matmul %327, %324, %cst_172 {dimension_numbers = #tpu.dot_dimension_numbers<[1], [0], [0], [1], [0, 0, 1, 1], [], []>} : vector<8x32xbf16>, vector<32x64xbf16>, vector<8x64xf32> -> vector<8x64xf32>
    %329 = vector.broadcast %326 : vector<1x64xf32> to vector<8x64xf32>
    %330 = arith.addf %328, %329 : vector<8x64xf32>
    %cst_173 = arith.constant 0.000000e+00 : f32
    %331 = vector.broadcast %cst_173 : f32 to vector<8x64xf32>
    %332 = arith.maximumf %330, %331 : vector<8x64xf32>
    %c1_174 = arith.constant 1 : index
    %c0_175 = arith.constant 0 : index
    %c0_176 = arith.constant 0 : index
    %333 = vector.load %arg13[%c1_174, %c0_175, %c0_176] : memref<2x64x32xbf16, #tpu.memory_space<vmem>>, vector<1x64x32xbf16>
    %334 = vector.shape_cast %333 : vector<1x64x32xbf16> to vector<64x32xbf16>
    %c1_177 = arith.constant 1 : index
    %c0_178 = arith.constant 0 : index
    %c0_179 = arith.constant 0 : index
    %335 = vector.load %arg14[%c1_177, %c0_178, %c0_179] : memref<2x1x32xf32, #tpu.memory_space<vmem>>, vector<1x1x32xf32>
    %336 = vector.shape_cast %335 : vector<1x1x32xf32> to vector<1x32xf32>
    %337 = arith.truncf %332 : vector<8x64xf32> to vector<8x64xbf16>
    %cst_180 = arith.constant dense<0.000000e+00> : vector<8x32xf32>
    %338 = tpu.matmul %337, %334, %cst_180 {dimension_numbers = #tpu.dot_dimension_numbers<[1], [0], [0], [1], [0, 0, 1, 1], [], []>} : vector<8x64xbf16>, vector<64x32xbf16>, vector<8x32xf32> -> vector<8x32xf32>
    %339 = vector.broadcast %336 : vector<1x32xf32> to vector<8x32xf32>
    %340 = arith.addf %338, %339 : vector<8x32xf32>
    %341 = arith.addf %322, %340 : vector<8x32xf32>
    %c1_181 = arith.constant 1 : index
    %c0_182 = arith.constant 0 : index
    %c0_183 = arith.constant 0 : index
    %342 = vector.load %arg15[%c1_181, %c0_182, %c0_183] : memref<2x1x32xf32, #tpu.memory_space<vmem>>, vector<1x1x32xf32>
    %343 = vector.shape_cast %342 : vector<1x1x32xf32> to vector<1x32xf32>
    %c1_184 = arith.constant 1 : index
    %c0_185 = arith.constant 0 : index
    %c0_186 = arith.constant 0 : index
    %344 = vector.load %arg16[%c1_184, %c0_185, %c0_186] : memref<2x1x32xf32, #tpu.memory_space<vmem>>, vector<1x1x32xf32>
    %345 = vector.shape_cast %344 : vector<1x1x32xf32> to vector<1x32xf32>
    %cst_187 = arith.constant dense<0.000000e+00> : vector<8xf32>
    %346 = vector.multi_reduction <add>, %341, %cst_187 [1] : vector<8x32xf32> to vector<8xf32>
    %347 = vector.shape_cast %346 : vector<8xf32> to vector<8x1xf32>
    %cst_188 = arith.constant 3.200000e+01 : f32
    %348 = vector.broadcast %cst_188 : f32 to vector<8x1xf32>
    %349 = arith.divf %347, %348 : vector<8x1xf32>
    %350 = vector.broadcast %349 : vector<8x1xf32> to vector<8x32xf32>
    %351 = arith.subf %341, %350 : vector<8x32xf32>
    %352 = arith.mulf %351, %351 : vector<8x32xf32>
    %cst_189 = arith.constant dense<0.000000e+00> : vector<8xf32>
    %353 = vector.multi_reduction <add>, %352, %cst_189 [1] : vector<8x32xf32> to vector<8xf32>
    %354 = vector.shape_cast %353 : vector<8xf32> to vector<8x1xf32>
    %cst_190 = arith.constant 3.200000e+01 : f32
    %355 = vector.broadcast %cst_190 : f32 to vector<8x1xf32>
    %356 = arith.divf %354, %355 : vector<8x1xf32>
    %357 = vector.broadcast %349 : vector<8x1xf32> to vector<8x32xf32>
    %358 = arith.subf %341, %357 : vector<8x32xf32>
    %cst_191 = arith.constant 9.99999974E-6 : f32
    %359 = vector.broadcast %cst_191 : f32 to vector<8x1xf32>
    %360 = arith.addf %356, %359 : vector<8x1xf32>
    %361 = math.rsqrt %360 : vector<8x1xf32>
    %362 = vector.broadcast %361 : vector<8x1xf32> to vector<8x32xf32>
    %363 = arith.mulf %358, %362 : vector<8x32xf32>
    %364 = vector.broadcast %343 : vector<1x32xf32> to vector<8x32xf32>
    %365 = arith.mulf %363, %364 : vector<8x32xf32>
    %366 = vector.broadcast %345 : vector<1x32xf32> to vector<8x32xf32>
    %367 = arith.addf %365, %366 : vector<8x32xf32>
    %c0_192 = arith.constant 0 : index
    %c0_193 = arith.constant 0 : index
    %c0_194 = arith.constant 0 : index
    %368 = vector.load %arg17[%c0_192, %c0_193, %c0_194] : memref<2x32x96xbf16, #tpu.memory_space<vmem>>, vector<1x32x96xbf16>
    %369 = vector.shape_cast %368 : vector<1x32x96xbf16> to vector<32x96xbf16>
    %c0_195 = arith.constant 0 : index
    %c0_196 = arith.constant 0 : index
    %c0_197 = arith.constant 0 : index
    %370 = vector.load %arg18[%c0_195, %c0_196, %c0_197] : memref<2x1x96xf32, #tpu.memory_space<vmem>>, vector<1x1x96xf32>
    %371 = vector.shape_cast %370 : vector<1x1x96xf32> to vector<1x96xf32>
    %372 = arith.truncf %27 : vector<8x32xf32> to vector<8x32xbf16>
    %cst_198 = arith.constant dense<0.000000e+00> : vector<8x96xf32>
    %373 = tpu.matmul %372, %369, %cst_198 {dimension_numbers = #tpu.dot_dimension_numbers<[1], [0], [0], [1], [0, 0, 1, 1], [], []>} : vector<8x32xbf16>, vector<32x96xbf16>, vector<8x96xf32> -> vector<8x96xf32>
    %374 = vector.broadcast %371 : vector<1x96xf32> to vector<8x96xf32>
    %375 = arith.addf %373, %374 : vector<8x96xf32>
    %376 = vector.extract_strided_slice %375 {offsets = [0, 0], sizes = [8, 32], strides = [1, 1]} : vector<8x96xf32> to vector<8x32xf32>
    %377 = vector.extract_strided_slice %375 {offsets = [0, 32], sizes = [8, 32], strides = [1, 1]} : vector<8x96xf32> to vector<8x32xf32>
    %378 = vector.extract_strided_slice %375 {offsets = [0, 64], sizes = [8, 32], strides = [1, 1]} : vector<8x96xf32> to vector<8x32xf32>
    %379 = tpu.iota {dimensions = array<i32: 0>} : vector<8x8xi32>
    %380 = tpu.iota {dimensions = array<i32: 1>} : vector<8x8xi32>
    %381 = arith.cmpi sle, %380, %379 : vector<8x8xi32>
    %382 = vector.extract_strided_slice %376 {offsets = [0, 0], sizes = [8, 8], strides = [1, 1]} : vector<8x32xf32> to vector<8x8xf32>
    %383 = vector.extract_strided_slice %377 {offsets = [0, 0], sizes = [8, 8], strides = [1, 1]} : vector<8x32xf32> to vector<8x8xf32>
    %384 = vector.extract_strided_slice %378 {offsets = [0, 0], sizes = [8, 8], strides = [1, 1]} : vector<8x32xf32> to vector<8x8xf32>
    %cst_199 = arith.constant dense<0.000000e+00> : vector<8x8xf32>
    %385 = tpu.matmul %382, %383, %cst_199 {dimension_numbers = #tpu.dot_dimension_numbers<[1], [1], [0], [0], [0, 0, 1, 0], [], []>} : vector<8x8xf32>, vector<8x8xf32>, vector<8x8xf32> -> vector<8x8xf32>
    %cst_200 = arith.constant 0.353553385 : f32
    %386 = vector.broadcast %cst_200 : f32 to vector<8x8xf32>
    %387 = arith.mulf %385, %386 : vector<8x8xf32>
    %cst_201 = arith.constant -1.000000e+30 : f32
    %388 = vector.broadcast %cst_201 : f32 to vector<8x8xf32>
    %389 = arith.select %381, %387, %388 : vector<8x8xi1>, vector<8x8xf32>
    %cst_202 = arith.constant dense<0xFF800000> : vector<8xf32>
    %390 = vector.multi_reduction <maximumf>, %389, %cst_202 [1] : vector<8x8xf32> to vector<8xf32>
    %391 = vector.shape_cast %390 : vector<8xf32> to vector<8x1xf32>
    %392 = vector.broadcast %391 : vector<8x1xf32> to vector<8x8xf32>
    %393 = arith.subf %389, %392 : vector<8x8xf32>
    %394 = math.exp %393 : vector<8x8xf32>
    %cst_203 = arith.constant dense<0.000000e+00> : vector<8xf32>
    %395 = vector.multi_reduction <add>, %394, %cst_203 [1] : vector<8x8xf32> to vector<8xf32>
    %396 = vector.shape_cast %395 : vector<8xf32> to vector<8x1xf32>
    %397 = tpu.reciprocal %396 {approx = true} : vector<8x1xf32> -> vector<8x1xf32>
    %398 = vector.broadcast %397 : vector<8x1xf32> to vector<8x8xf32>
    %399 = arith.mulf %394, %398 : vector<8x8xf32>
    %cst_204 = arith.constant dense<0.000000e+00> : vector<8x8xf32>
    %400 = tpu.matmul %399, %384, %cst_204 {dimension_numbers = #tpu.dot_dimension_numbers<[1], [0], [0], [1], [0, 0, 1, 1], [], []>} : vector<8x8xf32>, vector<8x8xf32>, vector<8x8xf32> -> vector<8x8xf32>
    %c0_205 = arith.constant 0 : index
    %c0_206 = arith.constant 0 : index
    %401 = vector.load %arg42[%c0_205, %c0_206] : memref<8x32xf32, #tpu.memory_space<vmem>>, vector<8x8xf32>
    tpu.vector_store %arg42[%c0_205, %c0_206], %400 {strides = array<i32>} : memref<8x32xf32, #tpu.memory_space<vmem>>, vector<8x8xf32>,
    %402 = vector.extract_strided_slice %376 {offsets = [0, 8], sizes = [8, 8], strides = [1, 1]} : vector<8x32xf32> to vector<8x8xf32>
    %403 = vector.extract_strided_slice %377 {offsets = [0, 8], sizes = [8, 8], strides = [1, 1]} : vector<8x32xf32> to vector<8x8xf32>
    %404 = vector.extract_strided_slice %378 {offsets = [0, 8], sizes = [8, 8], strides = [1, 1]} : vector<8x32xf32> to vector<8x8xf32>
    %cst_207 = arith.constant dense<0.000000e+00> : vector<8x8xf32>
    %405 = tpu.matmul %402, %403, %cst_207 {dimension_numbers = #tpu.dot_dimension_numbers<[1], [1], [0], [0], [0, 0, 1, 0], [], []>} : vector<8x8xf32>, vector<8x8xf32>, vector<8x8xf32> -> vector<8x8xf32>
    %cst_208 = arith.constant 0.353553385 : f32
    %406 = vector.broadcast %cst_208 : f32 to vector<8x8xf32>
    %407 = arith.mulf %405, %406 : vector<8x8xf32>
    %cst_209 = arith.constant -1.000000e+30 : f32
    %408 = vector.broadcast %cst_209 : f32 to vector<8x8xf32>
    %409 = arith.select %381, %407, %408 : vector<8x8xi1>, vector<8x8xf32>
    %cst_210 = arith.constant dense<0xFF800000> : vector<8xf32>
    %410 = vector.multi_reduction <maximumf>, %409, %cst_210 [1] : vector<8x8xf32> to vector<8xf32>
    %411 = vector.shape_cast %410 : vector<8xf32> to vector<8x1xf32>
    %412 = vector.broadcast %411 : vector<8x1xf32> to vector<8x8xf32>
    %413 = arith.subf %409, %412 : vector<8x8xf32>
    %414 = math.exp %413 : vector<8x8xf32>
    %cst_211 = arith.constant dense<0.000000e+00> : vector<8xf32>
    %415 = vector.multi_reduction <add>, %414, %cst_211 [1] : vector<8x8xf32> to vector<8xf32>
    %416 = vector.shape_cast %415 : vector<8xf32> to vector<8x1xf32>
    %417 = tpu.reciprocal %416 {approx = true} : vector<8x1xf32> -> vector<8x1xf32>
    %418 = vector.broadcast %417 : vector<8x1xf32> to vector<8x8xf32>
    %419 = arith.mulf %414, %418 : vector<8x8xf32>
    %cst_212 = arith.constant dense<0.000000e+00> : vector<8x8xf32>
    %420 = tpu.matmul %419, %404, %cst_212 {dimension_numbers = #tpu.dot_dimension_numbers<[1], [0], [0], [1], [0, 0, 1, 1], [], []>} : vector<8x8xf32>, vector<8x8xf32>, vector<8x8xf32> -> vector<8x8xf32>
    %c0_213 = arith.constant 0 : index
    %c8_214 = arith.constant 8 : index
    %421 = vector.load %arg42[%c0_213, %c8_214] : memref<8x32xf32, #tpu.memory_space<vmem>>, vector<8x8xf32>
    tpu.vector_store %arg42[%c0_213, %c8_214], %420 {strides = array<i32>} : memref<8x32xf32, #tpu.memory_space<vmem>>, vector<8x8xf32>,
    %422 = vector.extract_strided_slice %376 {offsets = [0, 16], sizes = [8, 8], strides = [1, 1]} : vector<8x32xf32> to vector<8x8xf32>
    %423 = vector.extract_strided_slice %377 {offsets = [0, 16], sizes = [8, 8], strides = [1, 1]} : vector<8x32xf32> to vector<8x8xf32>
    %424 = vector.extract_strided_slice %378 {offsets = [0, 16], sizes = [8, 8], strides = [1, 1]} : vector<8x32xf32> to vector<8x8xf32>
    %cst_215 = arith.constant dense<0.000000e+00> : vector<8x8xf32>
    %425 = tpu.matmul %422, %423, %cst_215 {dimension_numbers = #tpu.dot_dimension_numbers<[1], [1], [0], [0], [0, 0, 1, 0], [], []>} : vector<8x8xf32>, vector<8x8xf32>, vector<8x8xf32> -> vector<8x8xf32>
    %cst_216 = arith.constant 0.353553385 : f32
    %426 = vector.broadcast %cst_216 : f32 to vector<8x8xf32>
    %427 = arith.mulf %425, %426 : vector<8x8xf32>
    %cst_217 = arith.constant -1.000000e+30 : f32
    %428 = vector.broadcast %cst_217 : f32 to vector<8x8xf32>
    %429 = arith.select %381, %427, %428 : vector<8x8xi1>, vector<8x8xf32>
    %cst_218 = arith.constant dense<0xFF800000> : vector<8xf32>
    %430 = vector.multi_reduction <maximumf>, %429, %cst_218 [1] : vector<8x8xf32> to vector<8xf32>
    %431 = vector.shape_cast %430 : vector<8xf32> to vector<8x1xf32>
    %432 = vector.broadcast %431 : vector<8x1xf32> to vector<8x8xf32>
    %433 = arith.subf %429, %432 : vector<8x8xf32>
    %434 = math.exp %433 : vector<8x8xf32>
    %cst_219 = arith.constant dense<0.000000e+00> : vector<8xf32>
    %435 = vector.multi_reduction <add>, %434, %cst_219 [1] : vector<8x8xf32> to vector<8xf32>
    %436 = vector.shape_cast %435 : vector<8xf32> to vector<8x1xf32>
    %437 = tpu.reciprocal %436 {approx = true} : vector<8x1xf32> -> vector<8x1xf32>
    %438 = vector.broadcast %437 : vector<8x1xf32> to vector<8x8xf32>
    %439 = arith.mulf %434, %438 : vector<8x8xf32>
    %cst_220 = arith.constant dense<0.000000e+00> : vector<8x8xf32>
    %440 = tpu.matmul %439, %424, %cst_220 {dimension_numbers = #tpu.dot_dimension_numbers<[1], [0], [0], [1], [0, 0, 1, 1], [], []>} : vector<8x8xf32>, vector<8x8xf32>, vector<8x8xf32> -> vector<8x8xf32>
    %c0_221 = arith.constant 0 : index
    %c16_222 = arith.constant 16 : index
    %441 = vector.load %arg42[%c0_221, %c16_222] : memref<8x32xf32, #tpu.memory_space<vmem>>, vector<8x8xf32>
    tpu.vector_store %arg42[%c0_221, %c16_222], %440 {strides = array<i32>} : memref<8x32xf32, #tpu.memory_space<vmem>>, vector<8x8xf32>,
    %442 = vector.extract_strided_slice %376 {offsets = [0, 24], sizes = [8, 8], strides = [1, 1]} : vector<8x32xf32> to vector<8x8xf32>
    %443 = vector.extract_strided_slice %377 {offsets = [0, 24], sizes = [8, 8], strides = [1, 1]} : vector<8x32xf32> to vector<8x8xf32>
    %444 = vector.extract_strided_slice %378 {offsets = [0, 24], sizes = [8, 8], strides = [1, 1]} : vector<8x32xf32> to vector<8x8xf32>
    %cst_223 = arith.constant dense<0.000000e+00> : vector<8x8xf32>
    %445 = tpu.matmul %442, %443, %cst_223 {dimension_numbers = #tpu.dot_dimension_numbers<[1], [1], [0], [0], [0, 0, 1, 0], [], []>} : vector<8x8xf32>, vector<8x8xf32>, vector<8x8xf32> -> vector<8x8xf32>
    %cst_224 = arith.constant 0.353553385 : f32
    %446 = vector.broadcast %cst_224 : f32 to vector<8x8xf32>
    %447 = arith.mulf %445, %446 : vector<8x8xf32>
    %cst_225 = arith.constant -1.000000e+30 : f32
    %448 = vector.broadcast %cst_225 : f32 to vector<8x8xf32>
    %449 = arith.select %381, %447, %448 : vector<8x8xi1>, vector<8x8xf32>
    %cst_226 = arith.constant dense<0xFF800000> : vector<8xf32>
    %450 = vector.multi_reduction <maximumf>, %449, %cst_226 [1] : vector<8x8xf32> to vector<8xf32>
    %451 = vector.shape_cast %450 : vector<8xf32> to vector<8x1xf32>
    %452 = vector.broadcast %451 : vector<8x1xf32> to vector<8x8xf32>
    %453 = arith.subf %449, %452 : vector<8x8xf32>
    %454 = math.exp %453 : vector<8x8xf32>
    %cst_227 = arith.constant dense<0.000000e+00> : vector<8xf32>
    %455 = vector.multi_reduction <add>, %454, %cst_227 [1] : vector<8x8xf32> to vector<8xf32>
    %456 = vector.shape_cast %455 : vector<8xf32> to vector<8x1xf32>
    %457 = tpu.reciprocal %456 {approx = true} : vector<8x1xf32> -> vector<8x1xf32>
    %458 = vector.broadcast %457 : vector<8x1xf32> to vector<8x8xf32>
    %459 = arith.mulf %454, %458 : vector<8x8xf32>
    %cst_228 = arith.constant dense<0.000000e+00> : vector<8x8xf32>
    %460 = tpu.matmul %459, %444, %cst_228 {dimension_numbers = #tpu.dot_dimension_numbers<[1], [0], [0], [1], [0, 0, 1, 1], [], []>} : vector<8x8xf32>, vector<8x8xf32>, vector<8x8xf32> -> vector<8x8xf32>
    %c0_229 = arith.constant 0 : index
    %c24_230 = arith.constant 24 : index
    %461 = vector.load %arg42[%c0_229, %c24_230] : memref<8x32xf32, #tpu.memory_space<vmem>>, vector<8x8xf32>
    tpu.vector_store %arg42[%c0_229, %c24_230], %460 {strides = array<i32>} : memref<8x32xf32, #tpu.memory_space<vmem>>, vector<8x8xf32>,
    %c0_231 = arith.constant 0 : index
    %c0_232 = arith.constant 0 : index
    %462 = vector.load %arg42[%c0_231, %c0_232] : memref<8x32xf32, #tpu.memory_space<vmem>>, vector<8x32xf32>
    %c0_233 = arith.constant 0 : index
    %c0_234 = arith.constant 0 : index
    %c0_235 = arith.constant 0 : index
    %463 = vector.load %arg19[%c0_233, %c0_234, %c0_235] : memref<2x32x32xbf16, #tpu.memory_space<vmem>>, vector<1x32x32xbf16>
    %464 = vector.shape_cast %463 : vector<1x32x32xbf16> to vector<32x32xbf16>
    %c0_236 = arith.constant 0 : index
    %c0_237 = arith.constant 0 : index
    %c0_238 = arith.constant 0 : index
    %465 = vector.load %arg20[%c0_236, %c0_237, %c0_238] : memref<2x1x32xf32, #tpu.memory_space<vmem>>, vector<1x1x32xf32>
    %466 = vector.shape_cast %465 : vector<1x1x32xf32> to vector<1x32xf32>
    %467 = arith.truncf %462 : vector<8x32xf32> to vector<8x32xbf16>
    %cst_239 = arith.constant dense<0.000000e+00> : vector<8x32xf32>
    %468 = tpu.matmul %467, %464, %cst_239 {dimension_numbers = #tpu.dot_dimension_numbers<[1], [0], [0], [1], [0, 0, 1, 1], [], []>} : vector<8x32xbf16>, vector<32x32xbf16>, vector<8x32xf32> -> vector<8x32xf32>
    %469 = vector.broadcast %466 : vector<1x32xf32> to vector<8x32xf32>
    %470 = arith.addf %468, %469 : vector<8x32xf32>
    %471 = arith.addf %27, %470 : vector<8x32xf32>
    %c0_240 = arith.constant 0 : index
    %c0_241 = arith.constant 0 : index
    %c0_242 = arith.constant 0 : index
    %472 = vector.load %arg21[%c0_240, %c0_241, %c0_242] : memref<2x1x32xf32, #tpu.memory_space<vmem>>, vector<1x1x32xf32>
    %473 = vector.shape_cast %472 : vector<1x1x32xf32> to vector<1x32xf32>
    %c0_243 = arith.constant 0 : index
    %c0_244 = arith.constant 0 : index
    %c0_245 = arith.constant 0 : index
    %474 = vector.load %arg22[%c0_243, %c0_244, %c0_245] : memref<2x1x32xf32, #tpu.memory_space<vmem>>, vector<1x1x32xf32>
    %475 = vector.shape_cast %474 : vector<1x1x32xf32> to vector<1x32xf32>
    %cst_246 = arith.constant dense<0.000000e+00> : vector<8xf32>
    %476 = vector.multi_reduction <add>, %471, %cst_246 [1] : vector<8x32xf32> to vector<8xf32>
    %477 = vector.shape_cast %476 : vector<8xf32> to vector<8x1xf32>
    %cst_247 = arith.constant 3.200000e+01 : f32
    %478 = vector.broadcast %cst_247 : f32 to vector<8x1xf32>
    %479 = arith.divf %477, %478 : vector<8x1xf32>
    %480 = vector.broadcast %479 : vector<8x1xf32> to vector<8x32xf32>
    %481 = arith.subf %471, %480 : vector<8x32xf32>
    %482 = arith.mulf %481, %481 : vector<8x32xf32>
    %cst_248 = arith.constant dense<0.000000e+00> : vector<8xf32>
    %483 = vector.multi_reduction <add>, %482, %cst_248 [1] : vector<8x32xf32> to vector<8xf32>
    %484 = vector.shape_cast %483 : vector<8xf32> to vector<8x1xf32>
    %cst_249 = arith.constant 3.200000e+01 : f32
    %485 = vector.broadcast %cst_249 : f32 to vector<8x1xf32>
    %486 = arith.divf %484, %485 : vector<8x1xf32>
    %487 = vector.broadcast %479 : vector<8x1xf32> to vector<8x32xf32>
    %488 = arith.subf %471, %487 : vector<8x32xf32>
    %cst_250 = arith.constant 9.99999974E-6 : f32
    %489 = vector.broadcast %cst_250 : f32 to vector<8x1xf32>
    %490 = arith.addf %486, %489 : vector<8x1xf32>
    %491 = math.rsqrt %490 : vector<8x1xf32>
    %492 = vector.broadcast %491 : vector<8x1xf32> to vector<8x32xf32>
    %493 = arith.mulf %488, %492 : vector<8x32xf32>
    %494 = vector.broadcast %473 : vector<1x32xf32> to vector<8x32xf32>
    %495 = arith.mulf %493, %494 : vector<8x32xf32>
    %496 = vector.broadcast %475 : vector<1x32xf32> to vector<8x32xf32>
    %497 = arith.addf %495, %496 : vector<8x32xf32>
    %c0_251 = arith.constant 0 : index
    %c0_252 = arith.constant 0 : index
    %c0_253 = arith.constant 0 : index
    %498 = vector.load %arg23[%c0_251, %c0_252, %c0_253] : memref<2x32x32xbf16, #tpu.memory_space<vmem>>, vector<1x32x32xbf16>
    %499 = vector.shape_cast %498 : vector<1x32x32xbf16> to vector<32x32xbf16>
    %c0_254 = arith.constant 0 : index
    %c0_255 = arith.constant 0 : index
    %c0_256 = arith.constant 0 : index
    %500 = vector.load %arg24[%c0_254, %c0_255, %c0_256] : memref<2x1x32xf32, #tpu.memory_space<vmem>>, vector<1x1x32xf32>
    %501 = vector.shape_cast %500 : vector<1x1x32xf32> to vector<1x32xf32>
    %502 = arith.truncf %497 : vector<8x32xf32> to vector<8x32xbf16>
    %cst_257 = arith.constant dense<0.000000e+00> : vector<8x32xf32>
    %503 = tpu.matmul %502, %499, %cst_257 {dimension_numbers = #tpu.dot_dimension_numbers<[1], [0], [0], [1], [0, 0, 1, 1], [], []>} : vector<8x32xbf16>, vector<32x32xbf16>, vector<8x32xf32> -> vector<8x32xf32>
    %504 = vector.broadcast %501 : vector<1x32xf32> to vector<8x32xf32>
    %505 = arith.addf %503, %504 : vector<8x32xf32>
    %c0_258 = arith.constant 0 : index
    %c0_259 = arith.constant 0 : index
    %c0_260 = arith.constant 0 : index
    %506 = vector.load %arg25[%c0_258, %c0_259, %c0_260] : memref<2x32x64xbf16, #tpu.memory_space<vmem>>, vector<1x32x64xbf16>
    %507 = vector.shape_cast %506 : vector<1x32x64xbf16> to vector<32x64xbf16>
    %c0_261 = arith.constant 0 : index
    %c0_262 = arith.constant 0 : index
    %c0_263 = arith.constant 0 : index
    %508 = vector.load %arg26[%c0_261, %c0_262, %c0_263] : memref<2x1x64xf32, #tpu.memory_space<vmem>>, vector<1x1x64xf32>
    %509 = vector.shape_cast %508 : vector<1x1x64xf32> to vector<1x64xf32>
    %510 = arith.truncf %367 : vector<8x32xf32> to vector<8x32xbf16>
    %cst_264 = arith.constant dense<0.000000e+00> : vector<8x64xf32>
    %511 = tpu.matmul %510, %507, %cst_264 {dimension_numbers = #tpu.dot_dimension_numbers<[1], [0], [0], [1], [0, 0, 1, 1], [], []>} : vector<8x32xbf16>, vector<32x64xbf16>, vector<8x64xf32> -> vector<8x64xf32>
    %512 = vector.broadcast %509 : vector<1x64xf32> to vector<8x64xf32>
    %513 = arith.addf %511, %512 : vector<8x64xf32>
    %514 = vector.extract_strided_slice %513 {offsets = [0, 0], sizes = [8, 32], strides = [1, 1]} : vector<8x64xf32> to vector<8x32xf32>
    %515 = vector.extract_strided_slice %513 {offsets = [0, 32], sizes = [8, 32], strides = [1, 1]} : vector<8x64xf32> to vector<8x32xf32>
    %516 = vector.extract_strided_slice %505 {offsets = [0, 0], sizes = [8, 8], strides = [1, 1]} : vector<8x32xf32> to vector<8x8xf32>
    %517 = vector.extract_strided_slice %514 {offsets = [0, 0], sizes = [8, 8], strides = [1, 1]} : vector<8x32xf32> to vector<8x8xf32>
    %518 = vector.extract_strided_slice %515 {offsets = [0, 0], sizes = [8, 8], strides = [1, 1]} : vector<8x32xf32> to vector<8x8xf32>
    %cst_265 = arith.constant dense<0.000000e+00> : vector<8x8xf32>
    %519 = tpu.matmul %516, %517, %cst_265 {dimension_numbers = #tpu.dot_dimension_numbers<[1], [1], [0], [0], [0, 0, 1, 0], [], []>} : vector<8x8xf32>, vector<8x8xf32>, vector<8x8xf32> -> vector<8x8xf32>
    %cst_266 = arith.constant 0.353553385 : f32
    %520 = vector.broadcast %cst_266 : f32 to vector<8x8xf32>
    %521 = arith.mulf %519, %520 : vector<8x8xf32>
    %cst_267 = arith.constant dense<0xFF800000> : vector<8xf32>
    %522 = vector.multi_reduction <maximumf>, %521, %cst_267 [1] : vector<8x8xf32> to vector<8xf32>
    %523 = vector.shape_cast %522 : vector<8xf32> to vector<8x1xf32>
    %524 = vector.broadcast %523 : vector<8x1xf32> to vector<8x8xf32>
    %525 = arith.subf %521, %524 : vector<8x8xf32>
    %526 = math.exp %525 : vector<8x8xf32>
    %cst_268 = arith.constant dense<0.000000e+00> : vector<8xf32>
    %527 = vector.multi_reduction <add>, %526, %cst_268 [1] : vector<8x8xf32> to vector<8xf32>
    %528 = vector.shape_cast %527 : vector<8xf32> to vector<8x1xf32>
    %529 = tpu.reciprocal %528 {approx = true} : vector<8x1xf32> -> vector<8x1xf32>
    %530 = vector.broadcast %529 : vector<8x1xf32> to vector<8x8xf32>
    %531 = arith.mulf %526, %530 : vector<8x8xf32>
    %cst_269 = arith.constant dense<0.000000e+00> : vector<8x8xf32>
    %532 = tpu.matmul %531, %518, %cst_269 {dimension_numbers = #tpu.dot_dimension_numbers<[1], [0], [0], [1], [0, 0, 1, 1], [], []>} : vector<8x8xf32>, vector<8x8xf32>, vector<8x8xf32> -> vector<8x8xf32>
    %c0_270 = arith.constant 0 : index
    %c0_271 = arith.constant 0 : index
    %533 = vector.load %arg42[%c0_270, %c0_271] : memref<8x32xf32, #tpu.memory_space<vmem>>, vector<8x8xf32>
    tpu.vector_store %arg42[%c0_270, %c0_271], %532 {strides = array<i32>} : memref<8x32xf32, #tpu.memory_space<vmem>>, vector<8x8xf32>,
    %534 = vector.extract_strided_slice %505 {offsets = [0, 8], sizes = [8, 8], strides = [1, 1]} : vector<8x32xf32> to vector<8x8xf32>
    %535 = vector.extract_strided_slice %514 {offsets = [0, 8], sizes = [8, 8], strides = [1, 1]} : vector<8x32xf32> to vector<8x8xf32>
    %536 = vector.extract_strided_slice %515 {offsets = [0, 8], sizes = [8, 8], strides = [1, 1]} : vector<8x32xf32> to vector<8x8xf32>
    %cst_272 = arith.constant dense<0.000000e+00> : vector<8x8xf32>
    %537 = tpu.matmul %534, %535, %cst_272 {dimension_numbers = #tpu.dot_dimension_numbers<[1], [1], [0], [0], [0, 0, 1, 0], [], []>} : vector<8x8xf32>, vector<8x8xf32>, vector<8x8xf32> -> vector<8x8xf32>
    %cst_273 = arith.constant 0.353553385 : f32
    %538 = vector.broadcast %cst_273 : f32 to vector<8x8xf32>
    %539 = arith.mulf %537, %538 : vector<8x8xf32>
    %cst_274 = arith.constant dense<0xFF800000> : vector<8xf32>
    %540 = vector.multi_reduction <maximumf>, %539, %cst_274 [1] : vector<8x8xf32> to vector<8xf32>
    %541 = vector.shape_cast %540 : vector<8xf32> to vector<8x1xf32>
    %542 = vector.broadcast %541 : vector<8x1xf32> to vector<8x8xf32>
    %543 = arith.subf %539, %542 : vector<8x8xf32>
    %544 = math.exp %543 : vector<8x8xf32>
    %cst_275 = arith.constant dense<0.000000e+00> : vector<8xf32>
    %545 = vector.multi_reduction <add>, %544, %cst_275 [1] : vector<8x8xf32> to vector<8xf32>
    %546 = vector.shape_cast %545 : vector<8xf32> to vector<8x1xf32>
    %547 = tpu.reciprocal %546 {approx = true} : vector<8x1xf32> -> vector<8x1xf32>
    %548 = vector.broadcast %547 : vector<8x1xf32> to vector<8x8xf32>
    %549 = arith.mulf %544, %548 : vector<8x8xf32>
    %cst_276 = arith.constant dense<0.000000e+00> : vector<8x8xf32>
    %550 = tpu.matmul %549, %536, %cst_276 {dimension_numbers = #tpu.dot_dimension_numbers<[1], [0], [0], [1], [0, 0, 1, 1], [], []>} : vector<8x8xf32>, vector<8x8xf32>, vector<8x8xf32> -> vector<8x8xf32>
    %c0_277 = arith.constant 0 : index
    %c8_278 = arith.constant 8 : index
    %551 = vector.load %arg42[%c0_277, %c8_278] : memref<8x32xf32, #tpu.memory_space<vmem>>, vector<8x8xf32>
    tpu.vector_store %arg42[%c0_277, %c8_278], %550 {strides = array<i32>} : memref<8x32xf32, #tpu.memory_space<vmem>>, vector<8x8xf32>,
    %552 = vector.extract_strided_slice %505 {offsets = [0, 16], sizes = [8, 8], strides = [1, 1]} : vector<8x32xf32> to vector<8x8xf32>
    %553 = vector.extract_strided_slice %514 {offsets = [0, 16], sizes = [8, 8], strides = [1, 1]} : vector<8x32xf32> to vector<8x8xf32>
    %554 = vector.extract_strided_slice %515 {offsets = [0, 16], sizes = [8, 8], strides = [1, 1]} : vector<8x32xf32> to vector<8x8xf32>
    %cst_279 = arith.constant dense<0.000000e+00> : vector<8x8xf32>
    %555 = tpu.matmul %552, %553, %cst_279 {dimension_numbers = #tpu.dot_dimension_numbers<[1], [1], [0], [0], [0, 0, 1, 0], [], []>} : vector<8x8xf32>, vector<8x8xf32>, vector<8x8xf32> -> vector<8x8xf32>
    %cst_280 = arith.constant 0.353553385 : f32
    %556 = vector.broadcast %cst_280 : f32 to vector<8x8xf32>
    %557 = arith.mulf %555, %556 : vector<8x8xf32>
    %cst_281 = arith.constant dense<0xFF800000> : vector<8xf32>
    %558 = vector.multi_reduction <maximumf>, %557, %cst_281 [1] : vector<8x8xf32> to vector<8xf32>
    %559 = vector.shape_cast %558 : vector<8xf32> to vector<8x1xf32>
    %560 = vector.broadcast %559 : vector<8x1xf32> to vector<8x8xf32>
    %561 = arith.subf %557, %560 : vector<8x8xf32>
    %562 = math.exp %561 : vector<8x8xf32>
    %cst_282 = arith.constant dense<0.000000e+00> : vector<8xf32>
    %563 = vector.multi_reduction <add>, %562, %cst_282 [1] : vector<8x8xf32> to vector<8xf32>
    %564 = vector.shape_cast %563 : vector<8xf32> to vector<8x1xf32>
    %565 = tpu.reciprocal %564 {approx = true} : vector<8x1xf32> -> vector<8x1xf32>
    %566 = vector.broadcast %565 : vector<8x1xf32> to vector<8x8xf32>
    %567 = arith.mulf %562, %566 : vector<8x8xf32>
    %cst_283 = arith.constant dense<0.000000e+00> : vector<8x8xf32>
    %568 = tpu.matmul %567, %554, %cst_283 {dimension_numbers = #tpu.dot_dimension_numbers<[1], [0], [0], [1], [0, 0, 1, 1], [], []>} : vector<8x8xf32>, vector<8x8xf32>, vector<8x8xf32> -> vector<8x8xf32>
    %c0_284 = arith.constant 0 : index
    %c16_285 = arith.constant 16 : index
    %569 = vector.load %arg42[%c0_284, %c16_285] : memref<8x32xf32, #tpu.memory_space<vmem>>, vector<8x8xf32>
    tpu.vector_store %arg42[%c0_284, %c16_285], %568 {strides = array<i32>} : memref<8x32xf32, #tpu.memory_space<vmem>>, vector<8x8xf32>,
    %570 = vector.extract_strided_slice %505 {offsets = [0, 24], sizes = [8, 8], strides = [1, 1]} : vector<8x32xf32> to vector<8x8xf32>
    %571 = vector.extract_strided_slice %514 {offsets = [0, 24], sizes = [8, 8], strides = [1, 1]} : vector<8x32xf32> to vector<8x8xf32>
    %572 = vector.extract_strided_slice %515 {offsets = [0, 24], sizes = [8, 8], strides = [1, 1]} : vector<8x32xf32> to vector<8x8xf32>
    %cst_286 = arith.constant dense<0.000000e+00> : vector<8x8xf32>
    %573 = tpu.matmul %570, %571, %cst_286 {dimension_numbers = #tpu.dot_dimension_numbers<[1], [1], [0], [0], [0, 0, 1, 0], [], []>} : vector<8x8xf32>, vector<8x8xf32>, vector<8x8xf32> -> vector<8x8xf32>
    %cst_287 = arith.constant 0.353553385 : f32
    %574 = vector.broadcast %cst_287 : f32 to vector<8x8xf32>
    %575 = arith.mulf %573, %574 : vector<8x8xf32>
    %cst_288 = arith.constant dense<0xFF800000> : vector<8xf32>
    %576 = vector.multi_reduction <maximumf>, %575, %cst_288 [1] : vector<8x8xf32> to vector<8xf32>
    %577 = vector.shape_cast %576 : vector<8xf32> to vector<8x1xf32>
    %578 = vector.broadcast %577 : vector<8x1xf32> to vector<8x8xf32>
    %579 = arith.subf %575, %578 : vector<8x8xf32>
    %580 = math.exp %579 : vector<8x8xf32>
    %cst_289 = arith.constant dense<0.000000e+00> : vector<8xf32>
    %581 = vector.multi_reduction <add>, %580, %cst_289 [1] : vector<8x8xf32> to vector<8xf32>
    %582 = vector.shape_cast %581 : vector<8xf32> to vector<8x1xf32>
    %583 = tpu.reciprocal %582 {approx = true} : vector<8x1xf32> -> vector<8x1xf32>
    %584 = vector.broadcast %583 : vector<8x1xf32> to vector<8x8xf32>
    %585 = arith.mulf %580, %584 : vector<8x8xf32>
    %cst_290 = arith.constant dense<0.000000e+00> : vector<8x8xf32>
    %586 = tpu.matmul %585, %572, %cst_290 {dimension_numbers = #tpu.dot_dimension_numbers<[1], [0], [0], [1], [0, 0, 1, 1], [], []>} : vector<8x8xf32>, vector<8x8xf32>, vector<8x8xf32> -> vector<8x8xf32>
    %c0_291 = arith.constant 0 : index
    %c24_292 = arith.constant 24 : index
    %587 = vector.load %arg42[%c0_291, %c24_292] : memref<8x32xf32, #tpu.memory_space<vmem>>, vector<8x8xf32>
    tpu.vector_store %arg42[%c0_291, %c24_292], %586 {strides = array<i32>} : memref<8x32xf32, #tpu.memory_space<vmem>>, vector<8x8xf32>,
    %c0_293 = arith.constant 0 : index
    %c0_294 = arith.constant 0 : index
    %588 = vector.load %arg42[%c0_293, %c0_294] : memref<8x32xf32, #tpu.memory_space<vmem>>, vector<8x32xf32>
    %c0_295 = arith.constant 0 : index
    %c0_296 = arith.constant 0 : index
    %c0_297 = arith.constant 0 : index
    %589 = vector.load %arg27[%c0_295, %c0_296, %c0_297] : memref<2x32x32xbf16, #tpu.memory_space<vmem>>, vector<1x32x32xbf16>
    %590 = vector.shape_cast %589 : vector<1x32x32xbf16> to vector<32x32xbf16>
    %c0_298 = arith.constant 0 : index
    %c0_299 = arith.constant 0 : index
    %c0_300 = arith.constant 0 : index
    %591 = vector.load %arg28[%c0_298, %c0_299, %c0_300] : memref<2x1x32xf32, #tpu.memory_space<vmem>>, vector<1x1x32xf32>
    %592 = vector.shape_cast %591 : vector<1x1x32xf32> to vector<1x32xf32>
    %593 = arith.truncf %588 : vector<8x32xf32> to vector<8x32xbf16>
    %cst_301 = arith.constant dense<0.000000e+00> : vector<8x32xf32>
    %594 = tpu.matmul %593, %590, %cst_301 {dimension_numbers = #tpu.dot_dimension_numbers<[1], [0], [0], [1], [0, 0, 1, 1], [], []>} : vector<8x32xbf16>, vector<32x32xbf16>, vector<8x32xf32> -> vector<8x32xf32>
    %595 = vector.broadcast %592 : vector<1x32xf32> to vector<8x32xf32>
    %596 = arith.addf %594, %595 : vector<8x32xf32>
    %597 = arith.addf %497, %596 : vector<8x32xf32>
    %c0_302 = arith.constant 0 : index
    %c0_303 = arith.constant 0 : index
    %c0_304 = arith.constant 0 : index
    %598 = vector.load %arg29[%c0_302, %c0_303, %c0_304] : memref<2x1x32xf32, #tpu.memory_space<vmem>>, vector<1x1x32xf32>
    %599 = vector.shape_cast %598 : vector<1x1x32xf32> to vector<1x32xf32>
    %c0_305 = arith.constant 0 : index
    %c0_306 = arith.constant 0 : index
    %c0_307 = arith.constant 0 : index
    %600 = vector.load %arg30[%c0_305, %c0_306, %c0_307] : memref<2x1x32xf32, #tpu.memory_space<vmem>>, vector<1x1x32xf32>
    %601 = vector.shape_cast %600 : vector<1x1x32xf32> to vector<1x32xf32>
    %cst_308 = arith.constant dense<0.000000e+00> : vector<8xf32>
    %602 = vector.multi_reduction <add>, %597, %cst_308 [1] : vector<8x32xf32> to vector<8xf32>
    %603 = vector.shape_cast %602 : vector<8xf32> to vector<8x1xf32>
    %cst_309 = arith.constant 3.200000e+01 : f32
    %604 = vector.broadcast %cst_309 : f32 to vector<8x1xf32>
    %605 = arith.divf %603, %604 : vector<8x1xf32>
    %606 = vector.broadcast %605 : vector<8x1xf32> to vector<8x32xf32>
    %607 = arith.subf %597, %606 : vector<8x32xf32>
    %608 = arith.mulf %607, %607 : vector<8x32xf32>
    %cst_310 = arith.constant dense<0.000000e+00> : vector<8xf32>
    %609 = vector.multi_reduction <add>, %608, %cst_310 [1] : vector<8x32xf32> to vector<8xf32>
    %610 = vector.shape_cast %609 : vector<8xf32> to vector<8x1xf32>
    %cst_311 = arith.constant 3.200000e+01 : f32
    %611 = vector.broadcast %cst_311 : f32 to vector<8x1xf32>
    %612 = arith.divf %610, %611 : vector<8x1xf32>
    %613 = vector.broadcast %605 : vector<8x1xf32> to vector<8x32xf32>
    %614 = arith.subf %597, %613 : vector<8x32xf32>
    %cst_312 = arith.constant 9.99999974E-6 : f32
    %615 = vector.broadcast %cst_312 : f32 to vector<8x1xf32>
    %616 = arith.addf %612, %615 : vector<8x1xf32>
    %617 = math.rsqrt %616 : vector<8x1xf32>
    %618 = vector.broadcast %617 : vector<8x1xf32> to vector<8x32xf32>
    %619 = arith.mulf %614, %618 : vector<8x32xf32>
    %620 = vector.broadcast %599 : vector<1x32xf32> to vector<8x32xf32>
    %621 = arith.mulf %619, %620 : vector<8x32xf32>
    %622 = vector.broadcast %601 : vector<1x32xf32> to vector<8x32xf32>
    %623 = arith.addf %621, %622 : vector<8x32xf32>
    %c0_313 = arith.constant 0 : index
    %c0_314 = arith.constant 0 : index
    %c0_315 = arith.constant 0 : index
    %624 = vector.load %arg31[%c0_313, %c0_314, %c0_315] : memref<2x32x64xbf16, #tpu.memory_space<vmem>>, vector<1x32x64xbf16>
    %625 = vector.shape_cast %624 : vector<1x32x64xbf16> to vector<32x64xbf16>
    %c0_316 = arith.constant 0 : index
    %c0_317 = arith.constant 0 : index
    %c0_318 = arith.constant 0 : index
    %626 = vector.load %arg32[%c0_316, %c0_317, %c0_318] : memref<2x1x64xf32, #tpu.memory_space<vmem>>, vector<1x1x64xf32>
    %627 = vector.shape_cast %626 : vector<1x1x64xf32> to vector<1x64xf32>
    %628 = arith.truncf %623 : vector<8x32xf32> to vector<8x32xbf16>
    %cst_319 = arith.constant dense<0.000000e+00> : vector<8x64xf32>
    %629 = tpu.matmul %628, %625, %cst_319 {dimension_numbers = #tpu.dot_dimension_numbers<[1], [0], [0], [1], [0, 0, 1, 1], [], []>} : vector<8x32xbf16>, vector<32x64xbf16>, vector<8x64xf32> -> vector<8x64xf32>
    %630 = vector.broadcast %627 : vector<1x64xf32> to vector<8x64xf32>
    %631 = arith.addf %629, %630 : vector<8x64xf32>
    %cst_320 = arith.constant 0.000000e+00 : f32
    %632 = vector.broadcast %cst_320 : f32 to vector<8x64xf32>
    %633 = arith.maximumf %631, %632 : vector<8x64xf32>
    %c0_321 = arith.constant 0 : index
    %c0_322 = arith.constant 0 : index
    %c0_323 = arith.constant 0 : index
    %634 = vector.load %arg33[%c0_321, %c0_322, %c0_323] : memref<2x64x32xbf16, #tpu.memory_space<vmem>>, vector<1x64x32xbf16>
    %635 = vector.shape_cast %634 : vector<1x64x32xbf16> to vector<64x32xbf16>
    %c0_324 = arith.constant 0 : index
    %c0_325 = arith.constant 0 : index
    %c0_326 = arith.constant 0 : index
    %636 = vector.load %arg34[%c0_324, %c0_325, %c0_326] : memref<2x1x32xf32, #tpu.memory_space<vmem>>, vector<1x1x32xf32>
    %637 = vector.shape_cast %636 : vector<1x1x32xf32> to vector<1x32xf32>
    %638 = arith.truncf %633 : vector<8x64xf32> to vector<8x64xbf16>
    %cst_327 = arith.constant dense<0.000000e+00> : vector<8x32xf32>
    %639 = tpu.matmul %638, %635, %cst_327 {dimension_numbers = #tpu.dot_dimension_numbers<[1], [0], [0], [1], [0, 0, 1, 1], [], []>} : vector<8x64xbf16>, vector<64x32xbf16>, vector<8x32xf32> -> vector<8x32xf32>
    %640 = vector.broadcast %637 : vector<1x32xf32> to vector<8x32xf32>
    %641 = arith.addf %639, %640 : vector<8x32xf32>
    %642 = arith.addf %623, %641 : vector<8x32xf32>
    %c0_328 = arith.constant 0 : index
    %c0_329 = arith.constant 0 : index
    %c0_330 = arith.constant 0 : index
    %643 = vector.load %arg35[%c0_328, %c0_329, %c0_330] : memref<2x1x32xf32, #tpu.memory_space<vmem>>, vector<1x1x32xf32>
    %644 = vector.shape_cast %643 : vector<1x1x32xf32> to vector<1x32xf32>
    %c0_331 = arith.constant 0 : index
    %c0_332 = arith.constant 0 : index
    %c0_333 = arith.constant 0 : index
    %645 = vector.load %arg36[%c0_331, %c0_332, %c0_333] : memref<2x1x32xf32, #tpu.memory_space<vmem>>, vector<1x1x32xf32>
    %646 = vector.shape_cast %645 : vector<1x1x32xf32> to vector<1x32xf32>
    %cst_334 = arith.constant dense<0.000000e+00> : vector<8xf32>
    %647 = vector.multi_reduction <add>, %642, %cst_334 [1] : vector<8x32xf32> to vector<8xf32>
    %648 = vector.shape_cast %647 : vector<8xf32> to vector<8x1xf32>
    %cst_335 = arith.constant 3.200000e+01 : f32
    %649 = vector.broadcast %cst_335 : f32 to vector<8x1xf32>
    %650 = arith.divf %648, %649 : vector<8x1xf32>
    %651 = vector.broadcast %650 : vector<8x1xf32> to vector<8x32xf32>
    %652 = arith.subf %642, %651 : vector<8x32xf32>
    %653 = arith.mulf %652, %652 : vector<8x32xf32>
    %cst_336 = arith.constant dense<0.000000e+00> : vector<8xf32>
    %654 = vector.multi_reduction <add>, %653, %cst_336 [1] : vector<8x32xf32> to vector<8xf32>
    %655 = vector.shape_cast %654 : vector<8xf32> to vector<8x1xf32>
    %cst_337 = arith.constant 3.200000e+01 : f32
    %656 = vector.broadcast %cst_337 : f32 to vector<8x1xf32>
    %657 = arith.divf %655, %656 : vector<8x1xf32>
    %658 = vector.broadcast %650 : vector<8x1xf32> to vector<8x32xf32>
    %659 = arith.subf %642, %658 : vector<8x32xf32>
    %cst_338 = arith.constant 9.99999974E-6 : f32
    %660 = vector.broadcast %cst_338 : f32 to vector<8x1xf32>
    %661 = arith.addf %657, %660 : vector<8x1xf32>
    %662 = math.rsqrt %661 : vector<8x1xf32>
    %663 = vector.broadcast %662 : vector<8x1xf32> to vector<8x32xf32>
    %664 = arith.mulf %659, %663 : vector<8x32xf32>
    %665 = vector.broadcast %644 : vector<1x32xf32> to vector<8x32xf32>
    %666 = arith.mulf %664, %665 : vector<8x32xf32>
    %667 = vector.broadcast %646 : vector<1x32xf32> to vector<8x32xf32>
    %668 = arith.addf %666, %667 : vector<8x32xf32>
    %c1_339 = arith.constant 1 : index
    %c0_340 = arith.constant 0 : index
    %c0_341 = arith.constant 0 : index
    %669 = vector.load %arg17[%c1_339, %c0_340, %c0_341] : memref<2x32x96xbf16, #tpu.memory_space<vmem>>, vector<1x32x96xbf16>
    %670 = vector.shape_cast %669 : vector<1x32x96xbf16> to vector<32x96xbf16>
    %c1_342 = arith.constant 1 : index
    %c0_343 = arith.constant 0 : index
    %c0_344 = arith.constant 0 : index
    %671 = vector.load %arg18[%c1_342, %c0_343, %c0_344] : memref<2x1x96xf32, #tpu.memory_space<vmem>>, vector<1x1x96xf32>
    %672 = vector.shape_cast %671 : vector<1x1x96xf32> to vector<1x96xf32>
    %673 = arith.truncf %668 : vector<8x32xf32> to vector<8x32xbf16>
    %cst_345 = arith.constant dense<0.000000e+00> : vector<8x96xf32>
    %674 = tpu.matmul %673, %670, %cst_345 {dimension_numbers = #tpu.dot_dimension_numbers<[1], [0], [0], [1], [0, 0, 1, 1], [], []>} : vector<8x32xbf16>, vector<32x96xbf16>, vector<8x96xf32> -> vector<8x96xf32>
    %675 = vector.broadcast %672 : vector<1x96xf32> to vector<8x96xf32>
    %676 = arith.addf %674, %675 : vector<8x96xf32>
    %677 = vector.extract_strided_slice %676 {offsets = [0, 0], sizes = [8, 32], strides = [1, 1]} : vector<8x96xf32> to vector<8x32xf32>
    %678 = vector.extract_strided_slice %676 {offsets = [0, 32], sizes = [8, 32], strides = [1, 1]} : vector<8x96xf32> to vector<8x32xf32>
    %679 = vector.extract_strided_slice %676 {offsets = [0, 64], sizes = [8, 32], strides = [1, 1]} : vector<8x96xf32> to vector<8x32xf32>
    %680 = tpu.iota {dimensions = array<i32: 0>} : vector<8x8xi32>
    %681 = tpu.iota {dimensions = array<i32: 1>} : vector<8x8xi32>
    %682 = arith.cmpi sle, %681, %680 : vector<8x8xi32>
    %683 = vector.extract_strided_slice %677 {offsets = [0, 0], sizes = [8, 8], strides = [1, 1]} : vector<8x32xf32> to vector<8x8xf32>
    %684 = vector.extract_strided_slice %678 {offsets = [0, 0], sizes = [8, 8], strides = [1, 1]} : vector<8x32xf32> to vector<8x8xf32>
    %685 = vector.extract_strided_slice %679 {offsets = [0, 0], sizes = [8, 8], strides = [1, 1]} : vector<8x32xf32> to vector<8x8xf32>
    %cst_346 = arith.constant dense<0.000000e+00> : vector<8x8xf32>
    %686 = tpu.matmul %683, %684, %cst_346 {dimension_numbers = #tpu.dot_dimension_numbers<[1], [1], [0], [0], [0, 0, 1, 0], [], []>} : vector<8x8xf32>, vector<8x8xf32>, vector<8x8xf32> -> vector<8x8xf32>
    %cst_347 = arith.constant 0.353553385 : f32
    %687 = vector.broadcast %cst_347 : f32 to vector<8x8xf32>
    %688 = arith.mulf %686, %687 : vector<8x8xf32>
    %cst_348 = arith.constant -1.000000e+30 : f32
    %689 = vector.broadcast %cst_348 : f32 to vector<8x8xf32>
    %690 = arith.select %682, %688, %689 : vector<8x8xi1>, vector<8x8xf32>
    %cst_349 = arith.constant dense<0xFF800000> : vector<8xf32>
    %691 = vector.multi_reduction <maximumf>, %690, %cst_349 [1] : vector<8x8xf32> to vector<8xf32>
    %692 = vector.shape_cast %691 : vector<8xf32> to vector<8x1xf32>
    %693 = vector.broadcast %692 : vector<8x1xf32> to vector<8x8xf32>
    %694 = arith.subf %690, %693 : vector<8x8xf32>
    %695 = math.exp %694 : vector<8x8xf32>
    %cst_350 = arith.constant dense<0.000000e+00> : vector<8xf32>
    %696 = vector.multi_reduction <add>, %695, %cst_350 [1] : vector<8x8xf32> to vector<8xf32>
    %697 = vector.shape_cast %696 : vector<8xf32> to vector<8x1xf32>
    %698 = tpu.reciprocal %697 {approx = true} : vector<8x1xf32> -> vector<8x1xf32>
    %699 = vector.broadcast %698 : vector<8x1xf32> to vector<8x8xf32>
    %700 = arith.mulf %695, %699 : vector<8x8xf32>
    %cst_351 = arith.constant dense<0.000000e+00> : vector<8x8xf32>
    %701 = tpu.matmul %700, %685, %cst_351 {dimension_numbers = #tpu.dot_dimension_numbers<[1], [0], [0], [1], [0, 0, 1, 1], [], []>} : vector<8x8xf32>, vector<8x8xf32>, vector<8x8xf32> -> vector<8x8xf32>
    %c0_352 = arith.constant 0 : index
    %c0_353 = arith.constant 0 : index
    %702 = vector.load %arg42[%c0_352, %c0_353] : memref<8x32xf32, #tpu.memory_space<vmem>>, vector<8x8xf32>
    tpu.vector_store %arg42[%c0_352, %c0_353], %701 {strides = array<i32>} : memref<8x32xf32, #tpu.memory_space<vmem>>, vector<8x8xf32>,
    %703 = vector.extract_strided_slice %677 {offsets = [0, 8], sizes = [8, 8], strides = [1, 1]} : vector<8x32xf32> to vector<8x8xf32>
    %704 = vector.extract_strided_slice %678 {offsets = [0, 8], sizes = [8, 8], strides = [1, 1]} : vector<8x32xf32> to vector<8x8xf32>
    %705 = vector.extract_strided_slice %679 {offsets = [0, 8], sizes = [8, 8], strides = [1, 1]} : vector<8x32xf32> to vector<8x8xf32>
    %cst_354 = arith.constant dense<0.000000e+00> : vector<8x8xf32>
    %706 = tpu.matmul %703, %704, %cst_354 {dimension_numbers = #tpu.dot_dimension_numbers<[1], [1], [0], [0], [0, 0, 1, 0], [], []>} : vector<8x8xf32>, vector<8x8xf32>, vector<8x8xf32> -> vector<8x8xf32>
    %cst_355 = arith.constant 0.353553385 : f32
    %707 = vector.broadcast %cst_355 : f32 to vector<8x8xf32>
    %708 = arith.mulf %706, %707 : vector<8x8xf32>
    %cst_356 = arith.constant -1.000000e+30 : f32
    %709 = vector.broadcast %cst_356 : f32 to vector<8x8xf32>
    %710 = arith.select %682, %708, %709 : vector<8x8xi1>, vector<8x8xf32>
    %cst_357 = arith.constant dense<0xFF800000> : vector<8xf32>
    %711 = vector.multi_reduction <maximumf>, %710, %cst_357 [1] : vector<8x8xf32> to vector<8xf32>
    %712 = vector.shape_cast %711 : vector<8xf32> to vector<8x1xf32>
    %713 = vector.broadcast %712 : vector<8x1xf32> to vector<8x8xf32>
    %714 = arith.subf %710, %713 : vector<8x8xf32>
    %715 = math.exp %714 : vector<8x8xf32>
    %cst_358 = arith.constant dense<0.000000e+00> : vector<8xf32>
    %716 = vector.multi_reduction <add>, %715, %cst_358 [1] : vector<8x8xf32> to vector<8xf32>
    %717 = vector.shape_cast %716 : vector<8xf32> to vector<8x1xf32>
    %718 = tpu.reciprocal %717 {approx = true} : vector<8x1xf32> -> vector<8x1xf32>
    %719 = vector.broadcast %718 : vector<8x1xf32> to vector<8x8xf32>
    %720 = arith.mulf %715, %719 : vector<8x8xf32>
    %cst_359 = arith.constant dense<0.000000e+00> : vector<8x8xf32>
    %721 = tpu.matmul %720, %705, %cst_359 {dimension_numbers = #tpu.dot_dimension_numbers<[1], [0], [0], [1], [0, 0, 1, 1], [], []>} : vector<8x8xf32>, vector<8x8xf32>, vector<8x8xf32> -> vector<8x8xf32>
    %c0_360 = arith.constant 0 : index
    %c8_361 = arith.constant 8 : index
    %722 = vector.load %arg42[%c0_360, %c8_361] : memref<8x32xf32, #tpu.memory_space<vmem>>, vector<8x8xf32>
    tpu.vector_store %arg42[%c0_360, %c8_361], %721 {strides = array<i32>} : memref<8x32xf32, #tpu.memory_space<vmem>>, vector<8x8xf32>,
    %723 = vector.extract_strided_slice %677 {offsets = [0, 16], sizes = [8, 8], strides = [1, 1]} : vector<8x32xf32> to vector<8x8xf32>
    %724 = vector.extract_strided_slice %678 {offsets = [0, 16], sizes = [8, 8], strides = [1, 1]} : vector<8x32xf32> to vector<8x8xf32>
    %725 = vector.extract_strided_slice %679 {offsets = [0, 16], sizes = [8, 8], strides = [1, 1]} : vector<8x32xf32> to vector<8x8xf32>
    %cst_362 = arith.constant dense<0.000000e+00> : vector<8x8xf32>
    %726 = tpu.matmul %723, %724, %cst_362 {dimension_numbers = #tpu.dot_dimension_numbers<[1], [1], [0], [0], [0, 0, 1, 0], [], []>} : vector<8x8xf32>, vector<8x8xf32>, vector<8x8xf32> -> vector<8x8xf32>
    %cst_363 = arith.constant 0.353553385 : f32
    %727 = vector.broadcast %cst_363 : f32 to vector<8x8xf32>
    %728 = arith.mulf %726, %727 : vector<8x8xf32>
    %cst_364 = arith.constant -1.000000e+30 : f32
    %729 = vector.broadcast %cst_364 : f32 to vector<8x8xf32>
    %730 = arith.select %682, %728, %729 : vector<8x8xi1>, vector<8x8xf32>
    %cst_365 = arith.constant dense<0xFF800000> : vector<8xf32>
    %731 = vector.multi_reduction <maximumf>, %730, %cst_365 [1] : vector<8x8xf32> to vector<8xf32>
    %732 = vector.shape_cast %731 : vector<8xf32> to vector<8x1xf32>
    %733 = vector.broadcast %732 : vector<8x1xf32> to vector<8x8xf32>
    %734 = arith.subf %730, %733 : vector<8x8xf32>
    %735 = math.exp %734 : vector<8x8xf32>
    %cst_366 = arith.constant dense<0.000000e+00> : vector<8xf32>
    %736 = vector.multi_reduction <add>, %735, %cst_366 [1] : vector<8x8xf32> to vector<8xf32>
    %737 = vector.shape_cast %736 : vector<8xf32> to vector<8x1xf32>
    %738 = tpu.reciprocal %737 {approx = true} : vector<8x1xf32> -> vector<8x1xf32>
    %739 = vector.broadcast %738 : vector<8x1xf32> to vector<8x8xf32>
    %740 = arith.mulf %735, %739 : vector<8x8xf32>
    %cst_367 = arith.constant dense<0.000000e+00> : vector<8x8xf32>
    %741 = tpu.matmul %740, %725, %cst_367 {dimension_numbers = #tpu.dot_dimension_numbers<[1], [0], [0], [1], [0, 0, 1, 1], [], []>} : vector<8x8xf32>, vector<8x8xf32>, vector<8x8xf32> -> vector<8x8xf32>
    %c0_368 = arith.constant 0 : index
    %c16_369 = arith.constant 16 : index
    %742 = vector.load %arg42[%c0_368, %c16_369] : memref<8x32xf32, #tpu.memory_space<vmem>>, vector<8x8xf32>
    tpu.vector_store %arg42[%c0_368, %c16_369], %741 {strides = array<i32>} : memref<8x32xf32, #tpu.memory_space<vmem>>, vector<8x8xf32>,
    %743 = vector.extract_strided_slice %677 {offsets = [0, 24], sizes = [8, 8], strides = [1, 1]} : vector<8x32xf32> to vector<8x8xf32>
    %744 = vector.extract_strided_slice %678 {offsets = [0, 24], sizes = [8, 8], strides = [1, 1]} : vector<8x32xf32> to vector<8x8xf32>
    %745 = vector.extract_strided_slice %679 {offsets = [0, 24], sizes = [8, 8], strides = [1, 1]} : vector<8x32xf32> to vector<8x8xf32>
    %cst_370 = arith.constant dense<0.000000e+00> : vector<8x8xf32>
    %746 = tpu.matmul %743, %744, %cst_370 {dimension_numbers = #tpu.dot_dimension_numbers<[1], [1], [0], [0], [0, 0, 1, 0], [], []>} : vector<8x8xf32>, vector<8x8xf32>, vector<8x8xf32> -> vector<8x8xf32>
    %cst_371 = arith.constant 0.353553385 : f32
    %747 = vector.broadcast %cst_371 : f32 to vector<8x8xf32>
    %748 = arith.mulf %746, %747 : vector<8x8xf32>
    %cst_372 = arith.constant -1.000000e+30 : f32
    %749 = vector.broadcast %cst_372 : f32 to vector<8x8xf32>
    %750 = arith.select %682, %748, %749 : vector<8x8xi1>, vector<8x8xf32>
    %cst_373 = arith.constant dense<0xFF800000> : vector<8xf32>
    %751 = vector.multi_reduction <maximumf>, %750, %cst_373 [1] : vector<8x8xf32> to vector<8xf32>
    %752 = vector.shape_cast %751 : vector<8xf32> to vector<8x1xf32>
    %753 = vector.broadcast %752 : vector<8x1xf32> to vector<8x8xf32>
    %754 = arith.subf %750, %753 : vector<8x8xf32>
    %755 = math.exp %754 : vector<8x8xf32>
    %cst_374 = arith.constant dense<0.000000e+00> : vector<8xf32>
    %756 = vector.multi_reduction <add>, %755, %cst_374 [1] : vector<8x8xf32> to vector<8xf32>
    %757 = vector.shape_cast %756 : vector<8xf32> to vector<8x1xf32>
    %758 = tpu.reciprocal %757 {approx = true} : vector<8x1xf32> -> vector<8x1xf32>
    %759 = vector.broadcast %758 : vector<8x1xf32> to vector<8x8xf32>
    %760 = arith.mulf %755, %759 : vector<8x8xf32>
    %cst_375 = arith.constant dense<0.000000e+00> : vector<8x8xf32>
    %761 = tpu.matmul %760, %745, %cst_375 {dimension_numbers = #tpu.dot_dimension_numbers<[1], [0], [0], [1], [0, 0, 1, 1], [], []>} : vector<8x8xf32>, vector<8x8xf32>, vector<8x8xf32> -> vector<8x8xf32>
    %c0_376 = arith.constant 0 : index
    %c24_377 = arith.constant 24 : index
    %762 = vector.load %arg42[%c0_376, %c24_377] : memref<8x32xf32, #tpu.memory_space<vmem>>, vector<8x8xf32>
    tpu.vector_store %arg42[%c0_376, %c24_377], %761 {strides = array<i32>} : memref<8x32xf32, #tpu.memory_space<vmem>>, vector<8x8xf32>,
    %c0_378 = arith.constant 0 : index
    %c0_379 = arith.constant 0 : index
    %763 = vector.load %arg42[%c0_378, %c0_379] : memref<8x32xf32, #tpu.memory_space<vmem>>, vector<8x32xf32>
    %c1_380 = arith.constant 1 : index
    %c0_381 = arith.constant 0 : index
    %c0_382 = arith.constant 0 : index
    %764 = vector.load %arg19[%c1_380, %c0_381, %c0_382] : memref<2x32x32xbf16, #tpu.memory_space<vmem>>, vector<1x32x32xbf16>
    %765 = vector.shape_cast %764 : vector<1x32x32xbf16> to vector<32x32xbf16>
    %c1_383 = arith.constant 1 : index
    %c0_384 = arith.constant 0 : index
    %c0_385 = arith.constant 0 : index
    %766 = vector.load %arg20[%c1_383, %c0_384, %c0_385] : memref<2x1x32xf32, #tpu.memory_space<vmem>>, vector<1x1x32xf32>
    %767 = vector.shape_cast %766 : vector<1x1x32xf32> to vector<1x32xf32>
    %768 = arith.truncf %763 : vector<8x32xf32> to vector<8x32xbf16>
    %cst_386 = arith.constant dense<0.000000e+00> : vector<8x32xf32>
    %769 = tpu.matmul %768, %765, %cst_386 {dimension_numbers = #tpu.dot_dimension_numbers<[1], [0], [0], [1], [0, 0, 1, 1], [], []>} : vector<8x32xbf16>, vector<32x32xbf16>, vector<8x32xf32> -> vector<8x32xf32>
    %770 = vector.broadcast %767 : vector<1x32xf32> to vector<8x32xf32>
    %771 = arith.addf %769, %770 : vector<8x32xf32>
    %772 = arith.addf %668, %771 : vector<8x32xf32>
    %c1_387 = arith.constant 1 : index
    %c0_388 = arith.constant 0 : index
    %c0_389 = arith.constant 0 : index
    %773 = vector.load %arg21[%c1_387, %c0_388, %c0_389] : memref<2x1x32xf32, #tpu.memory_space<vmem>>, vector<1x1x32xf32>
    %774 = vector.shape_cast %773 : vector<1x1x32xf32> to vector<1x32xf32>
    %c1_390 = arith.constant 1 : index
    %c0_391 = arith.constant 0 : index
    %c0_392 = arith.constant 0 : index
    %775 = vector.load %arg22[%c1_390, %c0_391, %c0_392] : memref<2x1x32xf32, #tpu.memory_space<vmem>>, vector<1x1x32xf32>
    %776 = vector.shape_cast %775 : vector<1x1x32xf32> to vector<1x32xf32>
    %cst_393 = arith.constant dense<0.000000e+00> : vector<8xf32>
    %777 = vector.multi_reduction <add>, %772, %cst_393 [1] : vector<8x32xf32> to vector<8xf32>
    %778 = vector.shape_cast %777 : vector<8xf32> to vector<8x1xf32>
    %cst_394 = arith.constant 3.200000e+01 : f32
    %779 = vector.broadcast %cst_394 : f32 to vector<8x1xf32>
    %780 = arith.divf %778, %779 : vector<8x1xf32>
    %781 = vector.broadcast %780 : vector<8x1xf32> to vector<8x32xf32>
    %782 = arith.subf %772, %781 : vector<8x32xf32>
    %783 = arith.mulf %782, %782 : vector<8x32xf32>
    %cst_395 = arith.constant dense<0.000000e+00> : vector<8xf32>
    %784 = vector.multi_reduction <add>, %783, %cst_395 [1] : vector<8x32xf32> to vector<8xf32>
    %785 = vector.shape_cast %784 : vector<8xf32> to vector<8x1xf32>
    %cst_396 = arith.constant 3.200000e+01 : f32
    %786 = vector.broadcast %cst_396 : f32 to vector<8x1xf32>
    %787 = arith.divf %785, %786 : vector<8x1xf32>
    %788 = vector.broadcast %780 : vector<8x1xf32> to vector<8x32xf32>
    %789 = arith.subf %772, %788 : vector<8x32xf32>
    %cst_397 = arith.constant 9.99999974E-6 : f32
    %790 = vector.broadcast %cst_397 : f32 to vector<8x1xf32>
    %791 = arith.addf %787, %790 : vector<8x1xf32>
    %792 = math.rsqrt %791 : vector<8x1xf32>
    %793 = vector.broadcast %792 : vector<8x1xf32> to vector<8x32xf32>
    %794 = arith.mulf %789, %793 : vector<8x32xf32>
    %795 = vector.broadcast %774 : vector<1x32xf32> to vector<8x32xf32>
    %796 = arith.mulf %794, %795 : vector<8x32xf32>
    %797 = vector.broadcast %776 : vector<1x32xf32> to vector<8x32xf32>
    %798 = arith.addf %796, %797 : vector<8x32xf32>
    %c1_398 = arith.constant 1 : index
    %c0_399 = arith.constant 0 : index
    %c0_400 = arith.constant 0 : index
    %799 = vector.load %arg23[%c1_398, %c0_399, %c0_400] : memref<2x32x32xbf16, #tpu.memory_space<vmem>>, vector<1x32x32xbf16>
    %800 = vector.shape_cast %799 : vector<1x32x32xbf16> to vector<32x32xbf16>
    %c1_401 = arith.constant 1 : index
    %c0_402 = arith.constant 0 : index
    %c0_403 = arith.constant 0 : index
    %801 = vector.load %arg24[%c1_401, %c0_402, %c0_403] : memref<2x1x32xf32, #tpu.memory_space<vmem>>, vector<1x1x32xf32>
    %802 = vector.shape_cast %801 : vector<1x1x32xf32> to vector<1x32xf32>
    %803 = arith.truncf %798 : vector<8x32xf32> to vector<8x32xbf16>
    %cst_404 = arith.constant dense<0.000000e+00> : vector<8x32xf32>
    %804 = tpu.matmul %803, %800, %cst_404 {dimension_numbers = #tpu.dot_dimension_numbers<[1], [0], [0], [1], [0, 0, 1, 1], [], []>} : vector<8x32xbf16>, vector<32x32xbf16>, vector<8x32xf32> -> vector<8x32xf32>
    %805 = vector.broadcast %802 : vector<1x32xf32> to vector<8x32xf32>
    %806 = arith.addf %804, %805 : vector<8x32xf32>
    %c1_405 = arith.constant 1 : index
    %c0_406 = arith.constant 0 : index
    %c0_407 = arith.constant 0 : index
    %807 = vector.load %arg25[%c1_405, %c0_406, %c0_407] : memref<2x32x64xbf16, #tpu.memory_space<vmem>>, vector<1x32x64xbf16>
    %808 = vector.shape_cast %807 : vector<1x32x64xbf16> to vector<32x64xbf16>
    %c1_408 = arith.constant 1 : index
    %c0_409 = arith.constant 0 : index
    %c0_410 = arith.constant 0 : index
    %809 = vector.load %arg26[%c1_408, %c0_409, %c0_410] : memref<2x1x64xf32, #tpu.memory_space<vmem>>, vector<1x1x64xf32>
    %810 = vector.shape_cast %809 : vector<1x1x64xf32> to vector<1x64xf32>
    %811 = arith.truncf %367 : vector<8x32xf32> to vector<8x32xbf16>
    %cst_411 = arith.constant dense<0.000000e+00> : vector<8x64xf32>
    %812 = tpu.matmul %811, %808, %cst_411 {dimension_numbers = #tpu.dot_dimension_numbers<[1], [0], [0], [1], [0, 0, 1, 1], [], []>} : vector<8x32xbf16>, vector<32x64xbf16>, vector<8x64xf32> -> vector<8x64xf32>
    %813 = vector.broadcast %810 : vector<1x64xf32> to vector<8x64xf32>
    %814 = arith.addf %812, %813 : vector<8x64xf32>
    %815 = vector.extract_strided_slice %814 {offsets = [0, 0], sizes = [8, 32], strides = [1, 1]} : vector<8x64xf32> to vector<8x32xf32>
    %816 = vector.extract_strided_slice %814 {offsets = [0, 32], sizes = [8, 32], strides = [1, 1]} : vector<8x64xf32> to vector<8x32xf32>
    %817 = vector.extract_strided_slice %806 {offsets = [0, 0], sizes = [8, 8], strides = [1, 1]} : vector<8x32xf32> to vector<8x8xf32>
    %818 = vector.extract_strided_slice %815 {offsets = [0, 0], sizes = [8, 8], strides = [1, 1]} : vector<8x32xf32> to vector<8x8xf32>
    %819 = vector.extract_strided_slice %816 {offsets = [0, 0], sizes = [8, 8], strides = [1, 1]} : vector<8x32xf32> to vector<8x8xf32>
    %cst_412 = arith.constant dense<0.000000e+00> : vector<8x8xf32>
    %820 = tpu.matmul %817, %818, %cst_412 {dimension_numbers = #tpu.dot_dimension_numbers<[1], [1], [0], [0], [0, 0, 1, 0], [], []>} : vector<8x8xf32>, vector<8x8xf32>, vector<8x8xf32> -> vector<8x8xf32>
    %cst_413 = arith.constant 0.353553385 : f32
    %821 = vector.broadcast %cst_413 : f32 to vector<8x8xf32>
    %822 = arith.mulf %820, %821 : vector<8x8xf32>
    %cst_414 = arith.constant dense<0xFF800000> : vector<8xf32>
    %823 = vector.multi_reduction <maximumf>, %822, %cst_414 [1] : vector<8x8xf32> to vector<8xf32>
    %824 = vector.shape_cast %823 : vector<8xf32> to vector<8x1xf32>
    %825 = vector.broadcast %824 : vector<8x1xf32> to vector<8x8xf32>
    %826 = arith.subf %822, %825 : vector<8x8xf32>
    %827 = math.exp %826 : vector<8x8xf32>
    %cst_415 = arith.constant dense<0.000000e+00> : vector<8xf32>
    %828 = vector.multi_reduction <add>, %827, %cst_415 [1] : vector<8x8xf32> to vector<8xf32>
    %829 = vector.shape_cast %828 : vector<8xf32> to vector<8x1xf32>
    %830 = tpu.reciprocal %829 {approx = true} : vector<8x1xf32> -> vector<8x1xf32>
    %831 = vector.broadcast %830 : vector<8x1xf32> to vector<8x8xf32>
    %832 = arith.mulf %827, %831 : vector<8x8xf32>
    %cst_416 = arith.constant dense<0.000000e+00> : vector<8x8xf32>
    %833 = tpu.matmul %832, %819, %cst_416 {dimension_numbers = #tpu.dot_dimension_numbers<[1], [0], [0], [1], [0, 0, 1, 1], [], []>} : vector<8x8xf32>, vector<8x8xf32>, vector<8x8xf32> -> vector<8x8xf32>
    %c0_417 = arith.constant 0 : index
    %c0_418 = arith.constant 0 : index
    %834 = vector.load %arg42[%c0_417, %c0_418] : memref<8x32xf32, #tpu.memory_space<vmem>>, vector<8x8xf32>
    tpu.vector_store %arg42[%c0_417, %c0_418], %833 {strides = array<i32>} : memref<8x32xf32, #tpu.memory_space<vmem>>, vector<8x8xf32>,
    %c0_419 = arith.constant 0 : index
    %c0_420 = arith.constant 0 : index
    %c0_421 = arith.constant 0 : index
    %c0_422 = arith.constant 0 : index
    %835 = vector.load %arg41[%c0_419, %c0_420, %c0_421, %c0_422] : memref<1x4x8x8xf32, #tpu.memory_space<vmem>>, vector<1x1x8x8xf32>
    %836 = vector.shape_cast %835 : vector<1x1x8x8xf32> to vector<8x8xf32>
    %837 = vector.shape_cast %832 : vector<8x8xf32> to vector<1x1x8x8xf32>
    tpu.vector_store %arg41[%c0_419, %c0_420, %c0_421, %c0_422], %837 {strides = array<i32>} : memref<1x4x8x8xf32, #tpu.memory_space<vmem>>, vector<1x1x8x8xf32>,
    %838 = vector.extract_strided_slice %806 {offsets = [0, 8], sizes = [8, 8], strides = [1, 1]} : vector<8x32xf32> to vector<8x8xf32>
    %839 = vector.extract_strided_slice %815 {offsets = [0, 8], sizes = [8, 8], strides = [1, 1]} : vector<8x32xf32> to vector<8x8xf32>
    %840 = vector.extract_strided_slice %816 {offsets = [0, 8], sizes = [8, 8], strides = [1, 1]} : vector<8x32xf32> to vector<8x8xf32>
    %cst_423 = arith.constant dense<0.000000e+00> : vector<8x8xf32>
    %841 = tpu.matmul %838, %839, %cst_423 {dimension_numbers = #tpu.dot_dimension_numbers<[1], [1], [0], [0], [0, 0, 1, 0], [], []>} : vector<8x8xf32>, vector<8x8xf32>, vector<8x8xf32> -> vector<8x8xf32>
    %cst_424 = arith.constant 0.353553385 : f32
    %842 = vector.broadcast %cst_424 : f32 to vector<8x8xf32>
    %843 = arith.mulf %841, %842 : vector<8x8xf32>
    %cst_425 = arith.constant dense<0xFF800000> : vector<8xf32>
    %844 = vector.multi_reduction <maximumf>, %843, %cst_425 [1] : vector<8x8xf32> to vector<8xf32>
    %845 = vector.shape_cast %844 : vector<8xf32> to vector<8x1xf32>
    %846 = vector.broadcast %845 : vector<8x1xf32> to vector<8x8xf32>
    %847 = arith.subf %843, %846 : vector<8x8xf32>
    %848 = math.exp %847 : vector<8x8xf32>
    %cst_426 = arith.constant dense<0.000000e+00> : vector<8xf32>
    %849 = vector.multi_reduction <add>, %848, %cst_426 [1] : vector<8x8xf32> to vector<8xf32>
    %850 = vector.shape_cast %849 : vector<8xf32> to vector<8x1xf32>
    %851 = tpu.reciprocal %850 {approx = true} : vector<8x1xf32> -> vector<8x1xf32>
    %852 = vector.broadcast %851 : vector<8x1xf32> to vector<8x8xf32>
    %853 = arith.mulf %848, %852 : vector<8x8xf32>
    %cst_427 = arith.constant dense<0.000000e+00> : vector<8x8xf32>
    %854 = tpu.matmul %853, %840, %cst_427 {dimension_numbers = #tpu.dot_dimension_numbers<[1], [0], [0], [1], [0, 0, 1, 1], [], []>} : vector<8x8xf32>, vector<8x8xf32>, vector<8x8xf32> -> vector<8x8xf32>
    %c0_428 = arith.constant 0 : index
    %c8_429 = arith.constant 8 : index
    %855 = vector.load %arg42[%c0_428, %c8_429] : memref<8x32xf32, #tpu.memory_space<vmem>>, vector<8x8xf32>
    tpu.vector_store %arg42[%c0_428, %c8_429], %854 {strides = array<i32>} : memref<8x32xf32, #tpu.memory_space<vmem>>, vector<8x8xf32>,
    %c0_430 = arith.constant 0 : index
    %c1_431 = arith.constant 1 : index
    %c0_432 = arith.constant 0 : index
    %c0_433 = arith.constant 0 : index
    %856 = vector.load %arg41[%c0_430, %c1_431, %c0_432, %c0_433] : memref<1x4x8x8xf32, #tpu.memory_space<vmem>>, vector<1x1x8x8xf32>
    %857 = vector.shape_cast %856 : vector<1x1x8x8xf32> to vector<8x8xf32>
    %858 = vector.shape_cast %853 : vector<8x8xf32> to vector<1x1x8x8xf32>
    tpu.vector_store %arg41[%c0_430, %c1_431, %c0_432, %c0_433], %858 {strides = array<i32>} : memref<1x4x8x8xf32, #tpu.memory_space<vmem>>, vector<1x1x8x8xf32>,
    %859 = vector.extract_strided_slice %806 {offsets = [0, 16], sizes = [8, 8], strides = [1, 1]} : vector<8x32xf32> to vector<8x8xf32>
    %860 = vector.extract_strided_slice %815 {offsets = [0, 16], sizes = [8, 8], strides = [1, 1]} : vector<8x32xf32> to vector<8x8xf32>
    %861 = vector.extract_strided_slice %816 {offsets = [0, 16], sizes = [8, 8], strides = [1, 1]} : vector<8x32xf32> to vector<8x8xf32>
    %cst_434 = arith.constant dense<0.000000e+00> : vector<8x8xf32>
    %862 = tpu.matmul %859, %860, %cst_434 {dimension_numbers = #tpu.dot_dimension_numbers<[1], [1], [0], [0], [0, 0, 1, 0], [], []>} : vector<8x8xf32>, vector<8x8xf32>, vector<8x8xf32> -> vector<8x8xf32>
    %cst_435 = arith.constant 0.353553385 : f32
    %863 = vector.broadcast %cst_435 : f32 to vector<8x8xf32>
    %864 = arith.mulf %862, %863 : vector<8x8xf32>
    %cst_436 = arith.constant dense<0xFF800000> : vector<8xf32>
    %865 = vector.multi_reduction <maximumf>, %864, %cst_436 [1] : vector<8x8xf32> to vector<8xf32>
    %866 = vector.shape_cast %865 : vector<8xf32> to vector<8x1xf32>
    %867 = vector.broadcast %866 : vector<8x1xf32> to vector<8x8xf32>
    %868 = arith.subf %864, %867 : vector<8x8xf32>
    %869 = math.exp %868 : vector<8x8xf32>
    %cst_437 = arith.constant dense<0.000000e+00> : vector<8xf32>
    %870 = vector.multi_reduction <add>, %869, %cst_437 [1] : vector<8x8xf32> to vector<8xf32>
    %871 = vector.shape_cast %870 : vector<8xf32> to vector<8x1xf32>
    %872 = tpu.reciprocal %871 {approx = true} : vector<8x1xf32> -> vector<8x1xf32>
    %873 = vector.broadcast %872 : vector<8x1xf32> to vector<8x8xf32>
    %874 = arith.mulf %869, %873 : vector<8x8xf32>
    %cst_438 = arith.constant dense<0.000000e+00> : vector<8x8xf32>
    %875 = tpu.matmul %874, %861, %cst_438 {dimension_numbers = #tpu.dot_dimension_numbers<[1], [0], [0], [1], [0, 0, 1, 1], [], []>} : vector<8x8xf32>, vector<8x8xf32>, vector<8x8xf32> -> vector<8x8xf32>
    %c0_439 = arith.constant 0 : index
    %c16_440 = arith.constant 16 : index
    %876 = vector.load %arg42[%c0_439, %c16_440] : memref<8x32xf32, #tpu.memory_space<vmem>>, vector<8x8xf32>
    tpu.vector_store %arg42[%c0_439, %c16_440], %875 {strides = array<i32>} : memref<8x32xf32, #tpu.memory_space<vmem>>, vector<8x8xf32>,
    %c0_441 = arith.constant 0 : index
    %c2_442 = arith.constant 2 : index
    %c0_443 = arith.constant 0 : index
    %c0_444 = arith.constant 0 : index
    %877 = vector.load %arg41[%c0_441, %c2_442, %c0_443, %c0_444] : memref<1x4x8x8xf32, #tpu.memory_space<vmem>>, vector<1x1x8x8xf32>
    %878 = vector.shape_cast %877 : vector<1x1x8x8xf32> to vector<8x8xf32>
    %879 = vector.shape_cast %874 : vector<8x8xf32> to vector<1x1x8x8xf32>
    tpu.vector_store %arg41[%c0_441, %c2_442, %c0_443, %c0_444], %879 {strides = array<i32>} : memref<1x4x8x8xf32, #tpu.memory_space<vmem>>, vector<1x1x8x8xf32>,
    %880 = vector.extract_strided_slice %806 {offsets = [0, 24], sizes = [8, 8], strides = [1, 1]} : vector<8x32xf32> to vector<8x8xf32>
    %881 = vector.extract_strided_slice %815 {offsets = [0, 24], sizes = [8, 8], strides = [1, 1]} : vector<8x32xf32> to vector<8x8xf32>
    %882 = vector.extract_strided_slice %816 {offsets = [0, 24], sizes = [8, 8], strides = [1, 1]} : vector<8x32xf32> to vector<8x8xf32>
    %cst_445 = arith.constant dense<0.000000e+00> : vector<8x8xf32>
    %883 = tpu.matmul %880, %881, %cst_445 {dimension_numbers = #tpu.dot_dimension_numbers<[1], [1], [0], [0], [0, 0, 1, 0], [], []>} : vector<8x8xf32>, vector<8x8xf32>, vector<8x8xf32> -> vector<8x8xf32>
    %cst_446 = arith.constant 0.353553385 : f32
    %884 = vector.broadcast %cst_446 : f32 to vector<8x8xf32>
    %885 = arith.mulf %883, %884 : vector<8x8xf32>
    %cst_447 = arith.constant dense<0xFF800000> : vector<8xf32>
    %886 = vector.multi_reduction <maximumf>, %885, %cst_447 [1] : vector<8x8xf32> to vector<8xf32>
    %887 = vector.shape_cast %886 : vector<8xf32> to vector<8x1xf32>
    %888 = vector.broadcast %887 : vector<8x1xf32> to vector<8x8xf32>
    %889 = arith.subf %885, %888 : vector<8x8xf32>
    %890 = math.exp %889 : vector<8x8xf32>
    %cst_448 = arith.constant dense<0.000000e+00> : vector<8xf32>
    %891 = vector.multi_reduction <add>, %890, %cst_448 [1] : vector<8x8xf32> to vector<8xf32>
    %892 = vector.shape_cast %891 : vector<8xf32> to vector<8x1xf32>
    %893 = tpu.reciprocal %892 {approx = true} : vector<8x1xf32> -> vector<8x1xf32>
    %894 = vector.broadcast %893 : vector<8x1xf32> to vector<8x8xf32>
    %895 = arith.mulf %890, %894 : vector<8x8xf32>
    %cst_449 = arith.constant dense<0.000000e+00> : vector<8x8xf32>
    %896 = tpu.matmul %895, %882, %cst_449 {dimension_numbers = #tpu.dot_dimension_numbers<[1], [0], [0], [1], [0, 0, 1, 1], [], []>} : vector<8x8xf32>, vector<8x8xf32>, vector<8x8xf32> -> vector<8x8xf32>
    %c0_450 = arith.constant 0 : index
    %c24_451 = arith.constant 24 : index
    %897 = vector.load %arg42[%c0_450, %c24_451] : memref<8x32xf32, #tpu.memory_space<vmem>>, vector<8x8xf32>
    tpu.vector_store %arg42[%c0_450, %c24_451], %896 {strides = array<i32>} : memref<8x32xf32, #tpu.memory_space<vmem>>, vector<8x8xf32>,
    %c0_452 = arith.constant 0 : index
    %c3_453 = arith.constant 3 : index
    %c0_454 = arith.constant 0 : index
    %c0_455 = arith.constant 0 : index
    %898 = vector.load %arg41[%c0_452, %c3_453, %c0_454, %c0_455] : memref<1x4x8x8xf32, #tpu.memory_space<vmem>>, vector<1x1x8x8xf32>
    %899 = vector.shape_cast %898 : vector<1x1x8x8xf32> to vector<8x8xf32>
    %900 = vector.shape_cast %895 : vector<8x8xf32> to vector<1x1x8x8xf32>
    tpu.vector_store %arg41[%c0_452, %c3_453, %c0_454, %c0_455], %900 {strides = array<i32>} : memref<1x4x8x8xf32, #tpu.memory_space<vmem>>, vector<1x1x8x8xf32>,
    %c0_456 = arith.constant 0 : index
    %c0_457 = arith.constant 0 : index
    %901 = vector.load %arg42[%c0_456, %c0_457] : memref<8x32xf32, #tpu.memory_space<vmem>>, vector<8x32xf32>
    %c1_458 = arith.constant 1 : index
    %c0_459 = arith.constant 0 : index
    %c0_460 = arith.constant 0 : index
    %902 = vector.load %arg27[%c1_458, %c0_459, %c0_460] : memref<2x32x32xbf16, #tpu.memory_space<vmem>>, vector<1x32x32xbf16>
    %903 = vector.shape_cast %902 : vector<1x32x32xbf16> to vector<32x32xbf16>
    %c1_461 = arith.constant 1 : index
    %c0_462 = arith.constant 0 : index
    %c0_463 = arith.constant 0 : index
    %904 = vector.load %arg28[%c1_461, %c0_462, %c0_463] : memref<2x1x32xf32, #tpu.memory_space<vmem>>, vector<1x1x32xf32>
    %905 = vector.shape_cast %904 : vector<1x1x32xf32> to vector<1x32xf32>
    %906 = arith.truncf %901 : vector<8x32xf32> to vector<8x32xbf16>
    %cst_464 = arith.constant dense<0.000000e+00> : vector<8x32xf32>
    %907 = tpu.matmul %906, %903, %cst_464 {dimension_numbers = #tpu.dot_dimension_numbers<[1], [0], [0], [1], [0, 0, 1, 1], [], []>} : vector<8x32xbf16>, vector<32x32xbf16>, vector<8x32xf32> -> vector<8x32xf32>
    %908 = vector.broadcast %905 : vector<1x32xf32> to vector<8x32xf32>
    %909 = arith.addf %907, %908 : vector<8x32xf32>
    %910 = arith.addf %798, %909 : vector<8x32xf32>
    %c1_465 = arith.constant 1 : index
    %c0_466 = arith.constant 0 : index
    %c0_467 = arith.constant 0 : index
    %911 = vector.load %arg29[%c1_465, %c0_466, %c0_467] : memref<2x1x32xf32, #tpu.memory_space<vmem>>, vector<1x1x32xf32>
    %912 = vector.shape_cast %911 : vector<1x1x32xf32> to vector<1x32xf32>
    %c1_468 = arith.constant 1 : index
    %c0_469 = arith.constant 0 : index
    %c0_470 = arith.constant 0 : index
    %913 = vector.load %arg30[%c1_468, %c0_469, %c0_470] : memref<2x1x32xf32, #tpu.memory_space<vmem>>, vector<1x1x32xf32>
    %914 = vector.shape_cast %913 : vector<1x1x32xf32> to vector<1x32xf32>
    %cst_471 = arith.constant dense<0.000000e+00> : vector<8xf32>
    %915 = vector.multi_reduction <add>, %910, %cst_471 [1] : vector<8x32xf32> to vector<8xf32>
    %916 = vector.shape_cast %915 : vector<8xf32> to vector<8x1xf32>
    %cst_472 = arith.constant 3.200000e+01 : f32
    %917 = vector.broadcast %cst_472 : f32 to vector<8x1xf32>
    %918 = arith.divf %916, %917 : vector<8x1xf32>
    %919 = vector.broadcast %918 : vector<8x1xf32> to vector<8x32xf32>
    %920 = arith.subf %910, %919 : vector<8x32xf32>
    %921 = arith.mulf %920, %920 : vector<8x32xf32>
    %cst_473 = arith.constant dense<0.000000e+00> : vector<8xf32>
    %922 = vector.multi_reduction <add>, %921, %cst_473 [1] : vector<8x32xf32> to vector<8xf32>
    %923 = vector.shape_cast %922 : vector<8xf32> to vector<8x1xf32>
    %cst_474 = arith.constant 3.200000e+01 : f32
    %924 = vector.broadcast %cst_474 : f32 to vector<8x1xf32>
    %925 = arith.divf %923, %924 : vector<8x1xf32>
    %926 = vector.broadcast %918 : vector<8x1xf32> to vector<8x32xf32>
    %927 = arith.subf %910, %926 : vector<8x32xf32>
    %cst_475 = arith.constant 9.99999974E-6 : f32
    %928 = vector.broadcast %cst_475 : f32 to vector<8x1xf32>
    %929 = arith.addf %925, %928 : vector<8x1xf32>
    %930 = math.rsqrt %929 : vector<8x1xf32>
    %931 = vector.broadcast %930 : vector<8x1xf32> to vector<8x32xf32>
    %932 = arith.mulf %927, %931 : vector<8x32xf32>
    %933 = vector.broadcast %912 : vector<1x32xf32> to vector<8x32xf32>
    %934 = arith.mulf %932, %933 : vector<8x32xf32>
    %935 = vector.broadcast %914 : vector<1x32xf32> to vector<8x32xf32>
    %936 = arith.addf %934, %935 : vector<8x32xf32>
    %c1_476 = arith.constant 1 : index
    %c0_477 = arith.constant 0 : index
    %c0_478 = arith.constant 0 : index
    %937 = vector.load %arg31[%c1_476, %c0_477, %c0_478] : memref<2x32x64xbf16, #tpu.memory_space<vmem>>, vector<1x32x64xbf16>
    %938 = vector.shape_cast %937 : vector<1x32x64xbf16> to vector<32x64xbf16>
    %c1_479 = arith.constant 1 : index
    %c0_480 = arith.constant 0 : index
    %c0_481 = arith.constant 0 : index
    %939 = vector.load %arg32[%c1_479, %c0_480, %c0_481] : memref<2x1x64xf32, #tpu.memory_space<vmem>>, vector<1x1x64xf32>
    %940 = vector.shape_cast %939 : vector<1x1x64xf32> to vector<1x64xf32>
    %941 = arith.truncf %936 : vector<8x32xf32> to vector<8x32xbf16>
    %cst_482 = arith.constant dense<0.000000e+00> : vector<8x64xf32>
    %942 = tpu.matmul %941, %938, %cst_482 {dimension_numbers = #tpu.dot_dimension_numbers<[1], [0], [0], [1], [0, 0, 1, 1], [], []>} : vector<8x32xbf16>, vector<32x64xbf16>, vector<8x64xf32> -> vector<8x64xf32>
    %943 = vector.broadcast %940 : vector<1x64xf32> to vector<8x64xf32>
    %944 = arith.addf %942, %943 : vector<8x64xf32>
    %cst_483 = arith.constant 0.000000e+00 : f32
    %945 = vector.broadcast %cst_483 : f32 to vector<8x64xf32>
    %946 = arith.maximumf %944, %945 : vector<8x64xf32>
    %c1_484 = arith.constant 1 : index
    %c0_485 = arith.constant 0 : index
    %c0_486 = arith.constant 0 : index
    %947 = vector.load %arg33[%c1_484, %c0_485, %c0_486] : memref<2x64x32xbf16, #tpu.memory_space<vmem>>, vector<1x64x32xbf16>
    %948 = vector.shape_cast %947 : vector<1x64x32xbf16> to vector<64x32xbf16>
    %c1_487 = arith.constant 1 : index
    %c0_488 = arith.constant 0 : index
    %c0_489 = arith.constant 0 : index
    %949 = vector.load %arg34[%c1_487, %c0_488, %c0_489] : memref<2x1x32xf32, #tpu.memory_space<vmem>>, vector<1x1x32xf32>
    %950 = vector.shape_cast %949 : vector<1x1x32xf32> to vector<1x32xf32>
    %951 = arith.truncf %946 : vector<8x64xf32> to vector<8x64xbf16>
    %cst_490 = arith.constant dense<0.000000e+00> : vector<8x32xf32>
    %952 = tpu.matmul %951, %948, %cst_490 {dimension_numbers = #tpu.dot_dimension_numbers<[1], [0], [0], [1], [0, 0, 1, 1], [], []>} : vector<8x64xbf16>, vector<64x32xbf16>, vector<8x32xf32> -> vector<8x32xf32>
    %953 = vector.broadcast %950 : vector<1x32xf32> to vector<8x32xf32>
    %954 = arith.addf %952, %953 : vector<8x32xf32>
    %955 = arith.addf %936, %954 : vector<8x32xf32>
    %c1_491 = arith.constant 1 : index
    %c0_492 = arith.constant 0 : index
    %c0_493 = arith.constant 0 : index
    %956 = vector.load %arg35[%c1_491, %c0_492, %c0_493] : memref<2x1x32xf32, #tpu.memory_space<vmem>>, vector<1x1x32xf32>
    %957 = vector.shape_cast %956 : vector<1x1x32xf32> to vector<1x32xf32>
    %c1_494 = arith.constant 1 : index
    %c0_495 = arith.constant 0 : index
    %c0_496 = arith.constant 0 : index
    %958 = vector.load %arg36[%c1_494, %c0_495, %c0_496] : memref<2x1x32xf32, #tpu.memory_space<vmem>>, vector<1x1x32xf32>
    %959 = vector.shape_cast %958 : vector<1x1x32xf32> to vector<1x32xf32>
    %cst_497 = arith.constant dense<0.000000e+00> : vector<8xf32>
    %960 = vector.multi_reduction <add>, %955, %cst_497 [1] : vector<8x32xf32> to vector<8xf32>
    %961 = vector.shape_cast %960 : vector<8xf32> to vector<8x1xf32>
    %cst_498 = arith.constant 3.200000e+01 : f32
    %962 = vector.broadcast %cst_498 : f32 to vector<8x1xf32>
    %963 = arith.divf %961, %962 : vector<8x1xf32>
    %964 = vector.broadcast %963 : vector<8x1xf32> to vector<8x32xf32>
    %965 = arith.subf %955, %964 : vector<8x32xf32>
    %966 = arith.mulf %965, %965 : vector<8x32xf32>
    %cst_499 = arith.constant dense<0.000000e+00> : vector<8xf32>
    %967 = vector.multi_reduction <add>, %966, %cst_499 [1] : vector<8x32xf32> to vector<8xf32>
    %968 = vector.shape_cast %967 : vector<8xf32> to vector<8x1xf32>
    %cst_500 = arith.constant 3.200000e+01 : f32
    %969 = vector.broadcast %cst_500 : f32 to vector<8x1xf32>
    %970 = arith.divf %968, %969 : vector<8x1xf32>
    %971 = vector.broadcast %963 : vector<8x1xf32> to vector<8x32xf32>
    %972 = arith.subf %955, %971 : vector<8x32xf32>
    %cst_501 = arith.constant 9.99999974E-6 : f32
    %973 = vector.broadcast %cst_501 : f32 to vector<8x1xf32>
    %974 = arith.addf %970, %973 : vector<8x1xf32>
    %975 = math.rsqrt %974 : vector<8x1xf32>
    %976 = vector.broadcast %975 : vector<8x1xf32> to vector<8x32xf32>
    %977 = arith.mulf %972, %976 : vector<8x32xf32>
    %978 = vector.broadcast %957 : vector<1x32xf32> to vector<8x32xf32>
    %979 = arith.mulf %977, %978 : vector<8x32xf32>
    %980 = vector.broadcast %959 : vector<1x32xf32> to vector<8x32xf32>
    %981 = arith.addf %979, %980 : vector<8x32xf32>
    %c0_502 = arith.constant 0 : index
    %c0_503 = arith.constant 0 : index
    %982 = vector.load %arg37[%c0_502, %c0_503] : memref<32x128xbf16, #tpu.memory_space<vmem>>, vector<32x128xbf16>
    %c0_504 = arith.constant 0 : index
    %c0_505 = arith.constant 0 : index
    %983 = vector.load %arg38[%c0_504, %c0_505] : memref<1x128xf32, #tpu.memory_space<vmem>>, vector<1x128xf32>
    %984 = arith.truncf %981 : vector<8x32xf32> to vector<8x32xbf16>
    %cst_506 = arith.constant dense<0.000000e+00> : vector<8x128xf32>
    %985 = tpu.matmul %984, %982, %cst_506 {dimension_numbers = #tpu.dot_dimension_numbers<[1], [0], [0], [1], [0, 0, 1, 1], [], []>} : vector<8x32xbf16>, vector<32x128xbf16>, vector<8x128xf32> -> vector<8x128xf32>
    %986 = vector.broadcast %983 : vector<1x128xf32> to vector<8x128xf32>
    %987 = arith.addf %985, %986 : vector<8x128xf32>
    %c0_507 = arith.constant 0 : index
    %c0_508 = arith.constant 0 : index
    %c0_509 = arith.constant 0 : index
    %988 = vector.load %arg39[%c0_507, %c0_508, %c0_509] : memref<1x8x128xf32, #tpu.memory_space<vmem>>, vector<1x8x128xf32>
    %989 = vector.shape_cast %988 : vector<1x8x128xf32> to vector<8x128xf32>
    %990 = vector.shape_cast %987 : vector<8x128xf32> to vector<1x8x128xf32>
    tpu.vector_store %arg39[%c0_507, %c0_508, %c0_509], %990 {strides = array<i32>} : memref<1x8x128xf32, #tpu.memory_space<vmem>>, vector<1x8x128xf32>,
    return
  }
  func.func @transform_0(%arg0: i32) -> (i32, i32, i32) {
    %c0_i32 = arith.constant 0 : i32
    %c0_i32_0 = arith.constant 0 : i32
    %c0_i32_1 = arith.constant 0 : i32
    return %arg0, %c0_i32, %c0_i32_0 : i32, i32, i32
  }
  func.func @transform_1(%arg0: i32) -> (i32, i32, i32) {
    %c0_i32 = arith.constant 0 : i32
    %c0_i32_0 = arith.constant 0 : i32
    %c0_i32_1 = arith.constant 0 : i32
    return %arg0, %c0_i32, %c0_i32_0 : i32, i32, i32
  }
  func.func @transform_2(%arg0: i32) -> (i32, i32) {
    %c0_i32 = arith.constant 0 : i32
    %c0_i32_0 = arith.constant 0 : i32
    %c0_i32_1 = arith.constant 0 : i32
    return %c0_i32, %c0_i32_0 : i32, i32
  }
  func.func @transform_3(%arg0: i32) -> (i32, i32) {
    %c0_i32 = arith.constant 0 : i32
    %c0_i32_0 = arith.constant 0 : i32
    %c0_i32_1 = arith.constant 0 : i32
    return %c0_i32, %c0_i32_0 : i32, i32
  }
  func.func @transform_4(%arg0: i32) -> (i32, i32, i32) {
    %c0_i32 = arith.constant 0 : i32
    %c0_i32_0 = arith.constant 0 : i32
    %c0_i32_1 = arith.constant 0 : i32
    %c0_i32_2 = arith.constant 0 : i32
    return %c0_i32, %c0_i32_0, %c0_i32_1 : i32, i32, i32
  }
  func.func @transform_5(%arg0: i32) -> (i32, i32, i32) {
    %c0_i32 = arith.constant 0 : i32
    %c0_i32_0 = arith.constant 0 : i32
    %c0_i32_1 = arith.constant 0 : i32
    %c0_i32_2 = arith.constant 0 : i32
    return %c0_i32, %c0_i32_0, %c0_i32_1 : i32, i32, i32
  }
  func.func @transform_6(%arg0: i32) -> (i32, i32, i32) {
    %c0_i32 = arith.constant 0 : i32
    %c0_i32_0 = arith.constant 0 : i32
    %c0_i32_1 = arith.constant 0 : i32
    %c0_i32_2 = arith.constant 0 : i32
    return %c0_i32, %c0_i32_0, %c0_i32_1 : i32, i32, i32
  }
  func.func @transform_7(%arg0: i32) -> (i32, i32, i32) {
    %c0_i32 = arith.constant 0 : i32
    %c0_i32_0 = arith.constant 0 : i32
    %c0_i32_1 = arith.constant 0 : i32
    %c0_i32_2 = arith.constant 0 : i32
    return %c0_i32, %c0_i32_0, %c0_i32_1 : i32, i32, i32
  }
  func.func @transform_8(%arg0: i32) -> (i32, i32, i32) {
    %c0_i32 = arith.constant 0 : i32
    %c0_i32_0 = arith.constant 0 : i32
    %c0_i32_1 = arith.constant 0 : i32
    %c0_i32_2 = arith.constant 0 : i32
    return %c0_i32, %c0_i32_0, %c0_i32_1 : i32, i32, i32
  }
  func.func @transform_9(%arg0: i32) -> (i32, i32, i32) {
    %c0_i32 = arith.constant 0 : i32
    %c0_i32_0 = arith.constant 0 : i32
    %c0_i32_1 = arith.constant 0 : i32
    %c0_i32_2 = arith.constant 0 : i32
    return %c0_i32, %c0_i32_0, %c0_i32_1 : i32, i32, i32
  }
  func.func @transform_10(%arg0: i32) -> (i32, i32, i32) {
    %c0_i32 = arith.constant 0 : i32
    %c0_i32_0 = arith.constant 0 : i32
    %c0_i32_1 = arith.constant 0 : i32
    %c0_i32_2 = arith.constant 0 : i32
    return %c0_i32, %c0_i32_0, %c0_i32_1 : i32, i32, i32
  }
  func.func @transform_11(%arg0: i32) -> (i32, i32, i32) {
    %c0_i32 = arith.constant 0 : i32
    %c0_i32_0 = arith.constant 0 : i32
    %c0_i32_1 = arith.constant 0 : i32
    %c0_i32_2 = arith.constant 0 : i32
    return %c0_i32, %c0_i32_0, %c0_i32_1 : i32, i32, i32
  }
  func.func @transform_12(%arg0: i32) -> (i32, i32, i32) {
    %c0_i32 = arith.constant 0 : i32
    %c0_i32_0 = arith.constant 0 : i32
    %c0_i32_1 = arith.constant 0 : i32
    %c0_i32_2 = arith.constant 0 : i32
    return %c0_i32, %c0_i32_0, %c0_i32_1 : i32, i32, i32
  }
  func.func @transform_13(%arg0: i32) -> (i32, i32, i32) {
    %c0_i32 = arith.constant 0 : i32
    %c0_i32_0 = arith.constant 0 : i32
    %c0_i32_1 = arith.constant 0 : i32
    %c0_i32_2 = arith.constant 0 : i32
    return %c0_i32, %c0_i32_0, %c0_i32_1 : i32, i32, i32
  }
  func.func @transform_14(%arg0: i32) -> (i32, i32, i32) {
    %c0_i32 = arith.constant 0 : i32
    %c0_i32_0 = arith.constant 0 : i32
    %c0_i32_1 = arith.constant 0 : i32
    %c0_i32_2 = arith.constant 0 : i32
    return %c0_i32, %c0_i32_0, %c0_i32_1 : i32, i32, i32
  }
  func.func @transform_15(%arg0: i32) -> (i32, i32, i32) {
    %c0_i32 = arith.constant 0 : i32
    %c0_i32_0 = arith.constant 0 : i32
    %c0_i32_1 = arith.constant 0 : i32
    %c0_i32_2 = arith.constant 0 : i32
    return %c0_i32, %c0_i32_0, %c0_i32_1 : i32, i32, i32
  }
  func.func @transform_16(%arg0: i32) -> (i32, i32, i32) {
    %c0_i32 = arith.constant 0 : i32
    %c0_i32_0 = arith.constant 0 : i32
    %c0_i32_1 = arith.constant 0 : i32
    %c0_i32_2 = arith.constant 0 : i32
    return %c0_i32, %c0_i32_0, %c0_i32_1 : i32, i32, i32
  }
  func.func @transform_17(%arg0: i32) -> (i32, i32, i32) {
    %c0_i32 = arith.constant 0 : i32
    %c0_i32_0 = arith.constant 0 : i32
    %c0_i32_1 = arith.constant 0 : i32
    %c0_i32_2 = arith.constant 0 : i32
    return %c0_i32, %c0_i32_0, %c0_i32_1 : i32, i32, i32
  }
  func.func @transform_18(%arg0: i32) -> (i32, i32, i32) {
    %c0_i32 = arith.constant 0 : i32
    %c0_i32_0 = arith.constant 0 : i32
    %c0_i32_1 = arith.constant 0 : i32
    %c0_i32_2 = arith.constant 0 : i32
    return %c0_i32, %c0_i32_0, %c0_i32_1 : i32, i32, i32
  }
  func.func @transform_19(%arg0: i32) -> (i32, i32, i32) {
    %c0_i32 = arith.constant 0 : i32
    %c0_i32_0 = arith.constant 0 : i32
    %c0_i32_1 = arith.constant 0 : i32
    %c0_i32_2 = arith.constant 0 : i32
    return %c0_i32, %c0_i32_0, %c0_i32_1 : i32, i32, i32
  }
  func.func @transform_20(%arg0: i32) -> (i32, i32, i32) {
    %c0_i32 = arith.constant 0 : i32
    %c0_i32_0 = arith.constant 0 : i32
    %c0_i32_1 = arith.constant 0 : i32
    %c0_i32_2 = arith.constant 0 : i32
    return %c0_i32, %c0_i32_0, %c0_i32_1 : i32, i32, i32
  }
  func.func @transform_21(%arg0: i32) -> (i32, i32, i32) {
    %c0_i32 = arith.constant 0 : i32
    %c0_i32_0 = arith.constant 0 : i32
    %c0_i32_1 = arith.constant 0 : i32
    %c0_i32_2 = arith.constant 0 : i32
    return %c0_i32, %c0_i32_0, %c0_i32_1 : i32, i32, i32
  }
  func.func @transform_22(%arg0: i32) -> (i32, i32, i32) {
    %c0_i32 = arith.constant 0 : i32
    %c0_i32_0 = arith.constant 0 : i32
    %c0_i32_1 = arith.constant 0 : i32
    %c0_i32_2 = arith.constant 0 : i32
    return %c0_i32, %c0_i32_0, %c0_i32_1 : i32, i32, i32
  }
  func.func @transform_23(%arg0: i32) -> (i32, i32, i32) {
    %c0_i32 = arith.constant 0 : i32
    %c0_i32_0 = arith.constant 0 : i32
    %c0_i32_1 = arith.constant 0 : i32
    %c0_i32_2 = arith.constant 0 : i32
    return %c0_i32, %c0_i32_0, %c0_i32_1 : i32, i32, i32
  }
  func.func @transform_24(%arg0: i32) -> (i32, i32, i32) {
    %c0_i32 = arith.constant 0 : i32
    %c0_i32_0 = arith.constant 0 : i32
    %c0_i32_1 = arith.constant 0 : i32
    %c0_i32_2 = arith.constant 0 : i32
    return %c0_i32, %c0_i32_0, %c0_i32_1 : i32, i32, i32
  }
  func.func @transform_25(%arg0: i32) -> (i32, i32, i32) {
    %c0_i32 = arith.constant 0 : i32
    %c0_i32_0 = arith.constant 0 : i32
    %c0_i32_1 = arith.constant 0 : i32
    %c0_i32_2 = arith.constant 0 : i32
    return %c0_i32, %c0_i32_0, %c0_i32_1 : i32, i32, i32
  }
  func.func @transform_26(%arg0: i32) -> (i32, i32, i32) {
    %c0_i32 = arith.constant 0 : i32
    %c0_i32_0 = arith.constant 0 : i32
    %c0_i32_1 = arith.constant 0 : i32
    %c0_i32_2 = arith.constant 0 : i32
    return %c0_i32, %c0_i32_0, %c0_i32_1 : i32, i32, i32
  }
  func.func @transform_27(%arg0: i32) -> (i32, i32, i32) {
    %c0_i32 = arith.constant 0 : i32
    %c0_i32_0 = arith.constant 0 : i32
    %c0_i32_1 = arith.constant 0 : i32
    %c0_i32_2 = arith.constant 0 : i32
    return %c0_i32, %c0_i32_0, %c0_i32_1 : i32, i32, i32
  }
  func.func @transform_28(%arg0: i32) -> (i32, i32, i32) {
    %c0_i32 = arith.constant 0 : i32
    %c0_i32_0 = arith.constant 0 : i32
    %c0_i32_1 = arith.constant 0 : i32
    %c0_i32_2 = arith.constant 0 : i32
    return %c0_i32, %c0_i32_0, %c0_i32_1 : i32, i32, i32
  }
  func.func @transform_29(%arg0: i32) -> (i32, i32, i32) {
    %c0_i32 = arith.constant 0 : i32
    %c0_i32_0 = arith.constant 0 : i32
    %c0_i32_1 = arith.constant 0 : i32
    %c0_i32_2 = arith.constant 0 : i32
    return %c0_i32, %c0_i32_0, %c0_i32_1 : i32, i32, i32
  }
  func.func @transform_30(%arg0: i32) -> (i32, i32, i32) {
    %c0_i32 = arith.constant 0 : i32
    %c0_i32_0 = arith.constant 0 : i32
    %c0_i32_1 = arith.constant 0 : i32
    %c0_i32_2 = arith.constant 0 : i32
    return %c0_i32, %c0_i32_0, %c0_i32_1 : i32, i32, i32
  }
  func.func @transform_31(%arg0: i32) -> (i32, i32, i32) {
    %c0_i32 = arith.constant 0 : i32
    %c0_i32_0 = arith.constant 0 : i32
    %c0_i32_1 = arith.constant 0 : i32
    %c0_i32_2 = arith.constant 0 : i32
    return %c0_i32, %c0_i32_0, %c0_i32_1 : i32, i32, i32
  }
  func.func @transform_32(%arg0: i32) -> (i32, i32, i32) {
    %c0_i32 = arith.constant 0 : i32
    %c0_i32_0 = arith.constant 0 : i32
    %c0_i32_1 = arith.constant 0 : i32
    %c0_i32_2 = arith.constant 0 : i32
    return %c0_i32, %c0_i32_0, %c0_i32_1 : i32, i32, i32
  }
  func.func @transform_33(%arg0: i32) -> (i32, i32, i32) {
    %c0_i32 = arith.constant 0 : i32
    %c0_i32_0 = arith.constant 0 : i32
    %c0_i32_1 = arith.constant 0 : i32
    %c0_i32_2 = arith.constant 0 : i32
    return %c0_i32, %c0_i32_0, %c0_i32_1 : i32, i32, i32
  }
  func.func @transform_34(%arg0: i32) -> (i32, i32, i32) {
    %c0_i32 = arith.constant 0 : i32
    %c0_i32_0 = arith.constant 0 : i32
    %c0_i32_1 = arith.constant 0 : i32
    %c0_i32_2 = arith.constant 0 : i32
    return %c0_i32, %c0_i32_0, %c0_i32_1 : i32, i32, i32
  }
  func.func @transform_35(%arg0: i32) -> (i32, i32, i32) {
    %c0_i32 = arith.constant 0 : i32
    %c0_i32_0 = arith.constant 0 : i32
    %c0_i32_1 = arith.constant 0 : i32
    %c0_i32_2 = arith.constant 0 : i32
    return %c0_i32, %c0_i32_0, %c0_i32_1 : i32, i32, i32
  }
  func.func @transform_36(%arg0: i32) -> (i32, i32) {
    %c0_i32 = arith.constant 0 : i32
    %c0_i32_0 = arith.constant 0 : i32
    %c0_i32_1 = arith.constant 0 : i32
    return %c0_i32, %c0_i32_0 : i32, i32
  }
  func.func @transform_37(%arg0: i32) -> (i32, i32) {
    %c0_i32 = arith.constant 0 : i32
    %c0_i32_0 = arith.constant 0 : i32
    %c0_i32_1 = arith.constant 0 : i32
    return %c0_i32, %c0_i32_0 : i32, i32
  }
  func.func @transform_38(%arg0: i32) -> (i32, i32, i32) {
    %c0_i32 = arith.constant 0 : i32
    %c0_i32_0 = arith.constant 0 : i32
    %c0_i32_1 = arith.constant 0 : i32
    return %arg0, %c0_i32, %c0_i32_0 : i32, i32, i32
  }
  func.func @transform_39(%arg0: i32) -> (i32, i32, i32, i32) {
    %c0_i32 = arith.constant 0 : i32
    %c0_i32_0 = arith.constant 0 : i32
    %c0_i32_1 = arith.constant 0 : i32
    %c0_i32_2 = arith.constant 0 : i32
    return %arg0, %c0_i32, %c0_i32_0, %c0_i32_1 : i32, i32, i32, i32
  }
  func.func @transform_40(%arg0: i32) -> (i32, i32, i32, i32) {
    %c0_i32 = arith.constant 0 : i32
    %c0_i32_0 = arith.constant 0 : i32
    %c0_i32_1 = arith.constant 0 : i32
    %c0_i32_2 = arith.constant 0 : i32
    return %arg0, %c0_i32, %c0_i32_0, %c0_i32_1 : i32, i32, i32, i32
  }
}

</mosaic_0001>

<llo_original>
// kernel: _lambda_.1
$region0: #{_lambda_.1}
  #allocation0 [shape = 'u32[]', space=smem, size = 0x4, offset = 0x4, fixed_abs, tag = 'smem constant byte address 0x4 - core index']
  #allocation1 [shape = 'u32[144,128]{1,0:T(1,128)}', space=vmem, size = 0x12000, scoped, tag = 'internal scratch']
  #allocation2 [shape = 'f32[8,32]{1,0:T(8,128)}', space=vmem, size = 0x1000, scoped, tag = 'scratch operand']
  %s0 = inlined_call_operand.smem [shape: u32[41], index: -1, kind: input, shape index: {}]
  %s1 = sld [smem:[%s0]]
  %s2 = scalar_lea.smem %s0, 1
  %s3 = sld [smem:[%s2]]
  %s4 = scalar_lea.smem %s0, 2
  %s5 = sld [smem:[%s4]]
  %s6 = scalar_lea.smem %s0, 3
  %s7 = sld [smem:[%s6]]
  %s8 = scalar_lea.smem %s0, 4
  %s9 = sld [smem:[%s8]]
  %s10 = scalar_lea.smem %s0, 5
  %s11 = sld [smem:[%s10]]
  %s12 = scalar_lea.smem %s0, 6
  %s13 = sld [smem:[%s12]]
  %s14 = scalar_lea.smem %s0, 7
  %s15 = sld [smem:[%s14]]
  %s16 = scalar_lea.smem %s0, 8
  %s17 = sld [smem:[%s16]]
  %s18 = scalar_lea.smem %s0, 9
  %s19 = sld [smem:[%s18]]
  %s20 = scalar_lea.smem %s0, 10
  %s21 = sld [smem:[%s20]]
  %s22 = scalar_lea.smem %s0, 11
  %s23 = sld [smem:[%s22]]
  %s24 = scalar_lea.smem %s0, 12
  %s25 = sld [smem:[%s24]]
  %s26 = scalar_lea.smem %s0, 13
  %s27 = sld [smem:[%s26]]
  %s28 = scalar_lea.smem %s0, 14
  %s29 = sld [smem:[%s28]]
  %s30 = scalar_lea.smem %s0, 15
  %s31 = sld [smem:[%s30]]
  %s32 = scalar_lea.smem %s0, 16
  %s33 = sld [smem:[%s32]]
  %s34 = scalar_lea.smem %s0, 17
  %s35 = sld [smem:[%s34]]
  %s36 = scalar_lea.smem %s0, 18
  %s37 = sld [smem:[%s36]]
  %s38 = scalar_lea.smem %s0, 19
  %s39 = sld [smem:[%s38]]
  %s40 = scalar_lea.smem %s0, 20
  %s41 = sld [smem:[%s40]]
  %s42 = scalar_lea.smem %s0, 21
  %s43 = sld [smem:[%s42]]
  %s44 = scalar_lea.smem %s0, 22
  %s45 = sld [smem:[%s44]]
  %s46 = scalar_lea.smem %s0, 23
  %s47 = sld [smem:[%s46]]
  %s48 = scalar_lea.smem %s0, 24
  %s49 = sld [smem:[%s48]]
  %s50 = scalar_lea.smem %s0, 25
  %s51 = sld [smem:[%s50]]
  %s52 = scalar_lea.smem %s0, 26
  %s53 = sld [smem:[%s52]]
  %s54 = scalar_lea.smem %s0, 27
  %s55 = sld [smem:[%s54]]
  %s56 = scalar_lea.smem %s0, 28
  %s57 = sld [smem:[%s56]]
  %s58 = scalar_lea.smem %s0, 29
  %s59 = sld [smem:[%s58]]
  %s60 = scalar_lea.smem %s0, 30
  %s61 = sld [smem:[%s60]]
  %s62 = scalar_lea.smem %s0, 31
  %s63 = sld [smem:[%s62]]
  %s64 = scalar_lea.smem %s0, 32
  %s65 = sld [smem:[%s64]]
  %s66 = scalar_lea.smem %s0, 33
  %s67 = sld [smem:[%s66]]
  %s68 = scalar_lea.smem %s0, 34
  %s69 = sld [smem:[%s68]]
  %s70 = scalar_lea.smem %s0, 35
  %s71 = sld [smem:[%s70]]
  %s72 = scalar_lea.smem %s0, 36
  %s73 = sld [smem:[%s72]]
  %s74 = scalar_lea.smem %s0, 37
  %s75 = sld [smem:[%s74]]
  %s76 = scalar_lea.smem %s0, 38
  %s77 = sld [smem:[%s76]]
  %s78 = scalar_lea.smem %s0, 39
  %s79 = sld [smem:[%s78]]
  %s80 = scalar_lea.smem %s0, 40
  %s81 = sld [smem:[%s80]]
  %82 = xla_tuple %s77, %s79, %s81
  %s83 = sld [smem:[#allocation0]]
  $region257: #{_lambda_.1} parent=0
    _
  %s85 = ssub.s32 1, %s83
  %s86 = scalar_select 0, %s85, %s83
  $region1: #{_lambda_.1} parent=0
    #allocation3 [shape = 'u8[1024]{0}', space=vmem, size = 0x400, scoped, tag = 'input window, operand 11, single buffered']
    #allocation4 [shape = 's32[2]{0}', space=sflag, size = 0x8, scoped, tag = 'scoped memory for _lambda_.1']
    #allocation5 [shape = 's32[2]{0}', space=sflag, size = 0x8, scoped, tag = 'scoped memory for _lambda_.1']
    #allocation6 [shape = 'u8[1024]{0}', space=vmem, size = 0x400, scoped, tag = 'input window, operand 17, single buffered']
    #allocation7 [shape = 's32[1]{0}', space=sflag, size = 0x4, scoped, tag = 'scoped memory for _lambda_.1']
    #allocation8 [shape = 'u8[1024]{0}', space=vmem, size = 0x400, scoped, tag = 'input window, operand 19, single buffered']
    #allocation9 [shape = 'u8[1024]{0}', space=vmem, size = 0x400, scoped, tag = 'input window, operand 20, single buffered']
    #allocation10 [shape = 's32[1]{0}', space=sflag, size = 0x4, scoped, tag = 'scoped memory for _lambda_.1']
    #allocation11 [shape = 'u8[1024]{0}', space=vmem, size = 0x400, scoped, tag = 'input window, operand 21, single buffered']
    #allocation12 [shape = 'u8[1024]{0}', space=vmem, size = 0x400, scoped, tag = 'input window, operand 23, single buffered']
    #allocation13 [shape = 's32[1]{0}', space=sflag, size = 0x4, scoped, tag = 'scoped memory for _lambda_.1']
    #allocation14 [shape = 'u8[1024]{0}', space=vmem, size = 0x400, scoped, tag = 'input window, operand 25, single buffered']
    #allocation15 [shape = 'u8[1024]{0}', space=vmem, size = 0x400, scoped, tag = 'input window, operand 27, single buffered']
    #allocation16 [shape = 's32[1]{0}', space=sflag, size = 0x4, scoped, tag = 'scoped memory for _lambda_.1']
    #allocation17 [shape = 'u8[1024]{0}', space=vmem, size = 0x400, scoped, tag = 'input window, operand 28, single buffered']
    #allocation18 [shape = 'u8[1024]{0}', space=vmem, size = 0x400, scoped, tag = 'input window, operand 29, single buffered']
    #allocation19 [shape = 's32[1]{0}', space=sflag, size = 0x4, scoped, tag = 'scoped memory for _lambda_.1']
    #allocation20 [shape = 'u8[1024]{0}', space=vmem, size = 0x400, scoped, tag = 'input window, operand 31, single buffered']
    #allocation21 [shape = 'u8[1024]{0}', space=vmem, size = 0x400, scoped, tag = 'input window, operand 33, single buffered']
    #allocation22 [shape = 's32[1]{0}', space=sflag, size = 0x4, scoped, tag = 'scoped memory for _lambda_.1']
    #allocation23 [shape = 'u8[1024]{0}', space=vmem, size = 0x400, scoped, tag = 'input window, operand 34, single buffered']
    #allocation24 [shape = 'u8[1024]{0}', space=vmem, size = 0x400, scoped, tag = 'input window, operand 35, single buffered']
    #allocation25 [shape = 's32[1]{0}', space=sflag, size = 0x4, scoped, tag = 'scoped memory for _lambda_.1']
    #allocation26 [shape = 'u8[8192]{0}', space=vmem, size = 0x2000, scoped, tag = 'output window, operand 0']
    #allocation27 [shape = 'u8[32768]{0}', space=vmem, size = 0x8000, scoped, tag = 'output window, operand 1']
    #allocation28 [shape = 's32[2]{0}', space=sflag, size = 0x8, scoped, tag = 'scoped memory for _lambda_.1']
    #allocation29 [shape = 'u8[32768]{0}', space=vmem, size = 0x8000, scoped, tag = 'output window, operand 2']
    %87 = vsyncpa [#allocation4], 0
    %88 = vsyncpa [#allocation7], 0
    %89 = vsyncpa [#allocation10], 0
    %90 = vsyncpa [#allocation13], 0
    %91 = vsyncpa [#allocation16], 0
    %92 = vsyncpa [#allocation19], 0
    %93 = vsyncpa [#allocation22], 0
    %94 = vsyncpa [#allocation25], 0
    %95 = vsyncpa [#allocation5], 0
    %s96 = scalar_lea.sflag [#allocation5], 1
    %97 = vsyncpa %s96, 0
    %98 = vsyncpa [#allocation28], 0
    %s99 = scalar_lea.sflag [#allocation28], 1
    %100 = vsyncpa %s99, 0
    loop: start=0, step=1, limit=4
    $region2: #{_lambda_.1} parent=1 // loop_pre_header
      _
    $region3: #{_lambda_.1} parent=1 // loop_header
      %s102 = sphi 0, %s106
      %p103 = scmp.ge.s32.totalorder %s102, 4
      %s112 = sphi 0, %s114
      %s115 = sphi 0, %s112
      %s116 = sphi 0, %s115
      %s132 = sphi 0, %s116
      %s138 = sphi 0, %s140
      %s141 = sphi 0, %s138
      %s142 = sphi 0, %s141
      %s158 = sphi 0, %s142
      %s162 = sphi 0, %s162
      %s164 = sphi 0, %s162
      %s165 = sphi 0, %s164
      %s179 = sphi 0, %s165
      %s183 = sphi 0, %s183
      %s185 = sphi 0, %s183
      %s186 = sphi 0, %s185
      %s200 = sphi 0, %s186
      %s204 = sphi 0, %s204
      %s206 = sphi 0, %s204
      %s207 = sphi 0, %s206
      %s221 = sphi 0, %s207
      %s225 = sphi 0, %s225
      %s227 = sphi 0, %s225
      %s228 = sphi 0, %s227
      %s242 = sphi 0, %s228
      %s246 = sphi 0, %s246
      %s248 = sphi 0, %s246
      %s249 = sphi 0, %s248
      %s263 = sphi 0, %s249
      %s267 = sphi 0, %s267
      %s269 = sphi 0, %s267
      %s270 = sphi 0, %s269
      %s284 = sphi 0, %s270
      %s288 = sphi 0, %s288
      %s290 = sphi 0, %s288
      %s291 = sphi 0, %s290
      %s305 = sphi 0, %s291
      %s309 = sphi 0, %s309
      %s311 = sphi 0, %s309
      %s312 = sphi 0, %s311
      %s326 = sphi 0, %s312
      %s330 = sphi 0, %s330
      %s332 = sphi 0, %s330
      %s333 = sphi 0, %s332
      %s347 = sphi 0, %s333
      %s351 = sphi 0, %s351
      %s353 = sphi 0, %s351
      %s354 = sphi 0, %s353
      %s368 = sphi 0, %s354
      %s372 = sphi 0, %s372
      %s374 = sphi 0, %s372
      %s375 = sphi 0, %s374
      %s389 = sphi 0, %s375
      %s393 = sphi 0, %s393
      %s395 = sphi 0, %s393
      %s396 = sphi 0, %s395
      %s410 = sphi 0, %s396
      %s414 = sphi 0, %s414
      %s416 = sphi 0, %s414
      %s417 = sphi 0, %s416
      %s431 = sphi 0, %s417
      %s435 = sphi 0, %s435
      %s437 = sphi 0, %s435
      %s438 = sphi 0, %s437
      %s452 = sphi 0, %s438
      %s456 = sphi 0, %s456
      %s458 = sphi 0, %s456
      %s459 = sphi 0, %s458
      %s473 = sphi 0, %s459
      %s477 = sphi 0, %s477
      %s479 = sphi 0, %s477
      %s480 = sphi 0, %s479
      %s494 = sphi 0, %s480
      %s498 = sphi 0, %s498
      %s500 = sphi 0, %s498
      %s501 = sphi 0, %s500
      %s515 = sphi 0, %s501
      %s519 = sphi 0, %s519
      %s521 = sphi 0, %s519
      %s522 = sphi 0, %s521
      %s536 = sphi 0, %s522
      %s540 = sphi 0, %s540
      %s542 = sphi 0, %s540
      %s543 = sphi 0, %s542
      %s557 = sphi 0, %s543
      %s561 = sphi 0, %s561
      %s563 = sphi 0, %s561
      %s564 = sphi 0, %s563
      %s578 = sphi 0, %s564
      %s582 = sphi 0, %s582
      %s584 = sphi 0, %s582
      %s585 = sphi 0, %s584
      %s599 = sphi 0, %s585
      %s603 = sphi 0, %s603
      %s605 = sphi 0, %s603
      %s606 = sphi 0, %s605
      %s620 = sphi 0, %s606
      %s624 = sphi 0, %s624
      %s626 = sphi 0, %s624
      %s627 = sphi 0, %s626
      %s641 = sphi 0, %s627
      %s645 = sphi 0, %s645
      %s647 = sphi 0, %s645
      %s648 = sphi 0, %s647
      %s662 = sphi 0, %s648
      %s666 = sphi 0, %s666
      %s668 = sphi 0, %s666
      %s669 = sphi 0, %s668
      %s683 = sphi 0, %s669
      %s687 = sphi 0, %s687
      %s689 = sphi 0, %s687
      %s690 = sphi 0, %s689
      %s704 = sphi 0, %s690
      %s708 = sphi 0, %s708
      %s710 = sphi 0, %s708
      %s711 = sphi 0, %s710
      %s725 = sphi 0, %s711
      %s729 = sphi 0, %s729
      %s731 = sphi 0, %s729
      %s732 = sphi 0, %s731
      %s746 = sphi 0, %s732
      %s750 = sphi 0, %s750
      %s752 = sphi 0, %s750
      %s753 = sphi 0, %s752
      %s767 = sphi 0, %s753
      %s771 = sphi 0, %s771
      %s773 = sphi 0, %s771
      %s774 = sphi 0, %s773
      %s788 = sphi 0, %s774
      %s792 = sphi 0, %s792
      %s794 = sphi 0, %s792
      %s795 = sphi 0, %s794
      %s809 = sphi 0, %s795
      %s813 = sphi 0, %s813
      %s815 = sphi 0, %s813
      %s816 = sphi 0, %s815
      %s830 = sphi 0, %s816
      %s834 = sphi 0, %s834
      %s836 = sphi 0, %s834
      %s837 = sphi 0, %s836
      %s851 = sphi 0, %s837
      %s855 = sphi 0, %s855
      %s857 = sphi 0, %s855
      %s858 = sphi 0, %s857
      %s872 = sphi 0, %s858
      %s876 = sphi 0, %s876
      %s878 = sphi 0, %s876
      %s879 = sphi 0, %s878
      %s893 = sphi 0, %s879
      %s897 = sphi 0, %s897
      %s899 = sphi 0, %s897
      %s900 = sphi 0, %s899
      %s914 = sphi 0, %s900
      %s920 = sphi 0, %s922
      %s923 = sphi 0, %s920
      %s924 = sphi 0, %s923
      %s940 = sphi 0, %s924
      %s946 = sphi 0, %s948
      %s949 = sphi 0, %s946
      %s950 = sphi 0, %s949
      %s966 = sphi 0, %s950
      %s972 = sphi 0, %s974
      %s975 = sphi 0, %s972
      %s976 = sphi 0, %s975
      %s992 = sphi 0, %s976
    $region4: #{_lambda_.1} parent=1 // loop_header_branch
      %105 = sbr.rel (%p103) target = $region8
    $region5: #{_lambda_.1} parent=1 // loop_body
      %s107 = ssub.s32 %s102, 1
      %s108 = ssub.s32 %s102, 2
      %s109 = sadd.s32 %s102, 1
      %s110 = ssub.s32 %s102, %s109
      %p111 = scmp.eq.s32.totalorder %s110, 0
      %s113 = sadd.s32 %s112, 1
      %s114 = scalar_select %p111, %s112, %s113
      %p117 = pneg %p111
      %p118 = scmp.eq.s32.totalorder %s102, 1
      %p119 = por %p117, %p118
      %p120 = scmp.ne.s32.totalorder %s112, %s115
      %p121 = scmp.eq.s32.totalorder %s102, 0
      %p122 = por %p120, %p121
      %p123 = scmp.ne.s32.totalorder %s112, %s115
      %p124 = scmp.eq.s32.totalorder %s107, 1
      %p125 = por %p123, %p124
      %p126 = scmp.ne.s32.totalorder %s115, %s116
      %p127 = scmp.eq.s32.totalorder %s107, 0
      %p128 = por %p126, %p127
      %p129 = scmp.ne.s32.totalorder %s115, %s116
      %p130 = scmp.eq.s32.totalorder %s108, 1
      %p131 = por %p129, %p130
      %p133 = scmp.ne.s32.totalorder %s116, %s132
      %p134 = scmp.eq.s32.totalorder %s108, 0
      %p135 = por %p133, %p134
      %s136 = ssub.s32 %s102, %s109
      %p137 = scmp.eq.s32.totalorder %s136, 0
      %s139 = sadd.s32 %s138, 1
      %s140 = scalar_select %p137, %s138, %s139
      %p143 = pneg %p137
      %p144 = scmp.eq.s32.totalorder %s102, 1
      %p145 = por %p143, %p144
      %p146 = scmp.ne.s32.totalorder %s138, %s141
      %p147 = scmp.eq.s32.totalorder %s102, 0
      %p148 = por %p146, %p147
      %p149 = scmp.ne.s32.totalorder %s138, %s141
      %p150 = scmp.eq.s32.totalorder %s107, 1
      %p151 = por %p149, %p150
      %p152 = scmp.ne.s32.totalorder %s141, %s142
      %p153 = scmp.eq.s32.totalorder %s107, 0
      %p154 = por %p152, %p153
      %p155 = scmp.ne.s32.totalorder %s141, %s142
      %p156 = scmp.eq.s32.totalorder %s108, 1
      %p157 = por %p155, %p156
      %p159 = scmp.ne.s32.totalorder %s142, %s158
      %p160 = scmp.eq.s32.totalorder %s108, 0
      %p161 = por %p159, %p160
      %s163 = sadd.s32 %s162, 1
      %p166 = scmp.eq.s32.totalorder %s102, 1
      %p167 = scmp.ne.s32.totalorder %s162, %s164
      %p168 = scmp.eq.s32.totalorder %s102, 0
      %p169 = por %p167, %p168
      %p170 = scmp.ne.s32.totalorder %s162, %s164
      %p171 = scmp.eq.s32.totalorder %s107, 1
      %p172 = por %p170, %p171
      %p173 = scmp.ne.s32.totalorder %s164, %s165
      %p174 = scmp.eq.s32.totalorder %s107, 0
      %p175 = por %p173, %p174
      %p176 = scmp.ne.s32.totalorder %s164, %s165
      %p177 = scmp.eq.s32.totalorder %s108, 1
      %p178 = por %p176, %p177
      %p180 = scmp.ne.s32.totalorder %s165, %s179
      %p181 = scmp.eq.s32.totalorder %s108, 0
      %p182 = por %p180, %p181
      %s184 = sadd.s32 %s183, 1
      %p187 = scmp.eq.s32.totalorder %s102, 1
      %p188 = scmp.ne.s32.totalorder %s183, %s185
      %p189 = scmp.eq.s32.totalorder %s102, 0
      %p190 = por %p188, %p189
      %p191 = scmp.ne.s32.totalorder %s183, %s185
      %p192 = scmp.eq.s32.totalorder %s107, 1
      %p193 = por %p191, %p192
      %p194 = scmp.ne.s32.totalorder %s185, %s186
      %p195 = scmp.eq.s32.totalorder %s107, 0
      %p196 = por %p194, %p195
      %p197 = scmp.ne.s32.totalorder %s185, %s186
      %p198 = scmp.eq.s32.totalorder %s108, 1
      %p199 = por %p197, %p198
      %p201 = scmp.ne.s32.totalorder %s186, %s200
      %p202 = scmp.eq.s32.totalorder %s108, 0
      %p203 = por %p201, %p202
      %s205 = sadd.s32 %s204, 1
      %p208 = scmp.eq.s32.totalorder %s102, 1
      %p209 = scmp.ne.s32.totalorder %s204, %s206
      %p210 = scmp.eq.s32.totalorder %s102, 0
      %p211 = por %p209, %p210
      %p212 = scmp.ne.s32.totalorder %s204, %s206
      %p213 = scmp.eq.s32.totalorder %s107, 1
      %p214 = por %p212, %p213
      %p215 = scmp.ne.s32.totalorder %s206, %s207
      %p216 = scmp.eq.s32.totalorder %s107, 0
      %p217 = por %p215, %p216
      %p218 = scmp.ne.s32.totalorder %s206, %s207
      %p219 = scmp.eq.s32.totalorder %s108, 1
      %p220 = por %p218, %p219
      %p222 = scmp.ne.s32.totalorder %s207, %s221
      %p223 = scmp.eq.s32.totalorder %s108, 0
      %p224 = por %p222, %p223
      %s226 = sadd.s32 %s225, 1
      %p229 = scmp.eq.s32.totalorder %s102, 1
      %p230 = scmp.ne.s32.totalorder %s225, %s227
      %p231 = scmp.eq.s32.totalorder %s102, 0
      %p232 = por %p230, %p231
      %p233 = scmp.ne.s32.totalorder %s225, %s227
      %p234 = scmp.eq.s32.totalorder %s107, 1
      %p235 = por %p233, %p234
      %p236 = scmp.ne.s32.totalorder %s227, %s228
      %p237 = scmp.eq.s32.totalorder %s107, 0
      %p238 = por %p236, %p237
      %p239 = scmp.ne.s32.totalorder %s227, %s228
      %p240 = scmp.eq.s32.totalorder %s108, 1
      %p241 = por %p239, %p240
      %p243 = scmp.ne.s32.totalorder %s228, %s242
      %p244 = scmp.eq.s32.totalorder %s108, 0
      %p245 = por %p243, %p244
      %s247 = sadd.s32 %s246, 1
      %p250 = scmp.eq.s32.totalorder %s102, 1
      %p251 = scmp.ne.s32.totalorder %s246, %s248
      %p252 = scmp.eq.s32.totalorder %s102, 0
      %p253 = por %p251, %p252
      %p254 = scmp.ne.s32.totalorder %s246, %s248
      %p255 = scmp.eq.s32.totalorder %s107, 1
      %p256 = por %p254, %p255
      %p257 = scmp.ne.s32.totalorder %s248, %s249
      %p258 = scmp.eq.s32.totalorder %s107, 0
      %p259 = por %p257, %p258
      %p260 = scmp.ne.s32.totalorder %s248, %s249
      %p261 = scmp.eq.s32.totalorder %s108, 1
      %p262 = por %p260, %p261
      %p264 = scmp.ne.s32.totalorder %s249, %s263
      %p265 = scmp.eq.s32.totalorder %s108, 0
      %p266 = por %p264, %p265
      %s268 = sadd.s32 %s267, 1
      %p271 = scmp.eq.s32.totalorder %s102, 1
      %p272 = scmp.ne.s32.totalorder %s267, %s269
      %p273 = scmp.eq.s32.totalorder %s102, 0
      %p274 = por %p272, %p273
      %p275 = scmp.ne.s32.totalorder %s267, %s269
      %p276 = scmp.eq.s32.totalorder %s107, 1
      %p277 = por %p275, %p276
      %p278 = scmp.ne.s32.totalorder %s269, %s270
      %p279 = scmp.eq.s32.totalorder %s107, 0
      %p280 = por %p278, %p279
      %p281 = scmp.ne.s32.totalorder %s269, %s270
      %p282 = scmp.eq.s32.totalorder %s108, 1
      %p283 = por %p281, %p282
      %p285 = scmp.ne.s32.totalorder %s270, %s284
      %p286 = scmp.eq.s32.totalorder %s108, 0
      %p287 = por %p285, %p286
      %s289 = sadd.s32 %s288, 1
      %p292 = scmp.eq.s32.totalorder %s102, 1
      %p293 = scmp.ne.s32.totalorder %s288, %s290
      %p294 = scmp.eq.s32.totalorder %s102, 0
      %p295 = por %p293, %p294
      %p296 = scmp.ne.s32.totalorder %s288, %s290
      %p297 = scmp.eq.s32.totalorder %s107, 1
      %p298 = por %p296, %p297
      %p299 = scmp.ne.s32.totalorder %s290, %s291
      %p300 = scmp.eq.s32.totalorder %s107, 0
      %p301 = por %p299, %p300
      %p302 = scmp.ne.s32.totalorder %s290, %s291
      %p303 = scmp.eq.s32.totalorder %s108, 1
      %p304 = por %p302, %p303
      %p306 = scmp.ne.s32.totalorder %s291, %s305
      %p307 = scmp.eq.s32.totalorder %s108, 0
      %p308 = por %p306, %p307
      %s310 = sadd.s32 %s309, 1
      %p313 = scmp.eq.s32.totalorder %s102, 1
      %p314 = scmp.ne.s32.totalorder %s309, %s311
      %p315 = scmp.eq.s32.totalorder %s102, 0
      %p316 = por %p314, %p315
      %p317 = scmp.ne.s32.totalorder %s309, %s311
      %p318 = scmp.eq.s32.totalorder %s107, 1
      %p319 = por %p317, %p318
      %p320 = scmp.ne.s32.totalorder %s311, %s312
      %p321 = scmp.eq.s32.totalorder %s107, 0
      %p322 = por %p320, %p321
      %p323 = scmp.ne.s32.totalorder %s311, %s312
      %p324 = scmp.eq.s32.totalorder %s108, 1
      %p325 = por %p323, %p324
      %p327 = scmp.ne.s32.totalorder %s312, %s326
      %p328 = scmp.eq.s32.totalorder %s108, 0
      %p329 = por %p327, %p328
      %s331 = sadd.s32 %s330, 1
      %p334 = scmp.eq.s32.totalorder %s102, 1
      %p335 = scmp.ne.s32.totalorder %s330, %s332
      %p336 = scmp.eq.s32.totalorder %s102, 0
      %p337 = por %p335, %p336
      %p338 = scmp.ne.s32.totalorder %s330, %s332
      %p339 = scmp.eq.s32.totalorder %s107, 1
      %p340 = por %p338, %p339
      %p341 = scmp.ne.s32.totalorder %s332, %s333
      %p342 = scmp.eq.s32.totalorder %s107, 0
      %p343 = por %p341, %p342
      %p344 = scmp.ne.s32.totalorder %s332, %s333
      %p345 = scmp.eq.s32.totalorder %s108, 1
      %p346 = por %p344, %p345
      %p348 = scmp.ne.s32.totalorder %s333, %s347
      %p349 = scmp.eq.s32.totalorder %s108, 0
      %p350 = por %p348, %p349
      %s352 = sadd.s32 %s351, 1
      %p355 = scmp.eq.s32.totalorder %s102, 1
      %p356 = scmp.ne.s32.totalorder %s351, %s353
      %p357 = scmp.eq.s32.totalorder %s102, 0
      %p358 = por %p356, %p357
      %p359 = scmp.ne.s32.totalorder %s351, %s353
      %p360 = scmp.eq.s32.totalorder %s107, 1
      %p361 = por %p359, %p360
      %p362 = scmp.ne.s32.totalorder %s353, %s354
      %p363 = scmp.eq.s32.totalorder %s107, 0
      %p364 = por %p362, %p363
      %p365 = scmp.ne.s32.totalorder %s353, %s354
      %p366 = scmp.eq.s32.totalorder %s108, 1
      %p367 = por %p365, %p366
      %p369 = scmp.ne.s32.totalorder %s354, %s368
      %p370 = scmp.eq.s32.totalorder %s108, 0
      %p371 = por %p369, %p370
      %s373 = sadd.s32 %s372, 1
      %p376 = scmp.eq.s32.totalorder %s102, 1
      %p377 = scmp.ne.s32.totalorder %s372, %s374
      %p378 = scmp.eq.s32.totalorder %s102, 0
      %p379 = por %p377, %p378
      %p380 = scmp.ne.s32.totalorder %s372, %s374
      %p381 = scmp.eq.s32.totalorder %s107, 1
      %p382 = por %p380, %p381
      %p383 = scmp.ne.s32.totalorder %s374, %s375
      %p384 = scmp.eq.s32.totalorder %s107, 0
      %p385 = por %p383, %p384
      %p386 = scmp.ne.s32.totalorder %s374, %s375
      %p387 = scmp.eq.s32.totalorder %s108, 1
      %p388 = por %p386, %p387
      %p390 = scmp.ne.s32.totalorder %s375, %s389
      %p391 = scmp.eq.s32.totalorder %s108, 0
      %p392 = por %p390, %p391
      %s394 = sadd.s32 %s393, 1
      %p397 = scmp.eq.s32.totalorder %s102, 1
      %p398 = scmp.ne.s32.totalorder %s393, %s395
      %p399 = scmp.eq.s32.totalorder %s102, 0
      %p400 = por %p398, %p399
      %p401 = scmp.ne.s32.totalorder %s393, %s395
      %p402 = scmp.eq.s32.totalorder %s107, 1
      %p403 = por %p401, %p402
      %p404 = scmp.ne.s32.totalorder %s395, %s396
      %p405 = scmp.eq.s32.totalorder %s107, 0
      %p406 = por %p404, %p405
      %p407 = scmp.ne.s32.totalorder %s395, %s396
      %p408 = scmp.eq.s32.totalorder %s108, 1
      %p409 = por %p407, %p408
      %p411 = scmp.ne.s32.totalorder %s396, %s410
      %p412 = scmp.eq.s32.totalorder %s108, 0
      %p413 = por %p411, %p412
      %s415 = sadd.s32 %s414, 1
      %p418 = scmp.eq.s32.totalorder %s102, 1
      %p419 = scmp.ne.s32.totalorder %s414, %s416
      %p420 = scmp.eq.s32.totalorder %s102, 0
      %p421 = por %p419, %p420
      %p422 = scmp.ne.s32.totalorder %s414, %s416
      %p423 = scmp.eq.s32.totalorder %s107, 1
      %p424 = por %p422, %p423
      %p425 = scmp.ne.s32.totalorder %s416, %s417
      %p426 = scmp.eq.s32.totalorder %s107, 0
      %p427 = por %p425, %p426
      %p428 = scmp.ne.s32.totalorder %s416, %s417
      %p429 = scmp.eq.s32.totalorder %s108, 1
      %p430 = por %p428, %p429
      %p432 = scmp.ne.s32.totalorder %s417, %s431
      %p433 = scmp.eq.s32.totalorder %s108, 0
      %p434 = por %p432, %p433
      %s436 = sadd.s32 %s435, 1
      %p439 = scmp.eq.s32.totalorder %s102, 1
      %p440 = scmp.ne.s32.totalorder %s435, %s437
      %p441 = scmp.eq.s32.totalorder %s102, 0
      %p442 = por %p440, %p441
      %p443 = scmp.ne.s32.totalorder %s435, %s437
      %p444 = scmp.eq.s32.totalorder %s107, 1
      %p445 = por %p443, %p444
      %p446 = scmp.ne.s32.totalorder %s437, %s438
      %p447 = scmp.eq.s32.totalorder %s107, 0
      %p448 = por %p446, %p447
      %p449 = scmp.ne.s32.totalorder %s437, %s438
      %p450 = scmp.eq.s32.totalorder %s108, 1
      %p451 = por %p449, %p450
      %p453 = scmp.ne.s32.totalorder %s438, %s452
      %p454 = scmp.eq.s32.totalorder %s108, 0
      %p455 = por %p453, %p454
      %s457 = sadd.s32 %s456, 1
      %p460 = scmp.eq.s32.totalorder %s102, 1
      %p461 = scmp.ne.s32.totalorder %s456, %s458
      %p462 = scmp.eq.s32.totalorder %s102, 0
      %p463 = por %p461, %p462
      %p464 = scmp.ne.s32.totalorder %s456, %s458
      %p465 = scmp.eq.s32.totalorder %s107, 1
      %p466 = por %p464, %p465
      %p467 = scmp.ne.s32.totalorder %s458, %s459
      %p468 = scmp.eq.s32.totalorder %s107, 0
      %p469 = por %p467, %p468
      %p470 = scmp.ne.s32.totalorder %s458, %s459
      %p471 = scmp.eq.s32.totalorder %s108, 1
      %p472 = por %p470, %p471
      %p474 = scmp.ne.s32.totalorder %s459, %s473
      %p475 = scmp.eq.s32.totalorder %s108, 0
      %p476 = por %p474, %p475
      %s478 = sadd.s32 %s477, 1
      %p481 = scmp.eq.s32.totalorder %s102, 1
      %p482 = scmp.ne.s32.totalorder %s477, %s479
      %p483 = scmp.eq.s32.totalorder %s102, 0
      %p484 = por %p482, %p483
      %p485 = scmp.ne.s32.totalorder %s477, %s479
      %p486 = scmp.eq.s32.totalorder %s107, 1
      %p487 = por %p485, %p486
      %p488 = scmp.ne.s32.totalorder %s479, %s480
      %p489 = scmp.eq.s32.totalorder %s107, 0
      %p490 = por %p488, %p489
      %p491 = scmp.ne.s32.totalorder %s479, %s480
      %p492 = scmp.eq.s32.totalorder %s108, 1
      %p493 = por %p491, %p492
      %p495 = scmp.ne.s32.totalorder %s480, %s494
      %p496 = scmp.eq.s32.totalorder %s108, 0
      %p497 = por %p495, %p496
      %s499 = sadd.s32 %s498, 1
      %p502 = scmp.eq.s32.totalorder %s102, 1
      %p503 = scmp.ne.s32.totalorder %s498, %s500
      %p504 = scmp.eq.s32.totalorder %s102, 0
      %p505 = por %p503, %p504
      %p506 = scmp.ne.s32.totalorder %s498, %s500
      %p507 = scmp.eq.s32.totalorder %s107, 1
      %p508 = por %p506, %p507
      %p509 = scmp.ne.s32.totalorder %s500, %s501
      %p510 = scmp.eq.s32.totalorder %s107, 0
      %p511 = por %p509, %p510
      %p512 = scmp.ne.s32.totalorder %s500, %s501
      %p513 = scmp.eq.s32.totalorder %s108, 1
      %p514 = por %p512, %p513
      %p516 = scmp.ne.s32.totalorder %s501, %s515
      %p517 = scmp.eq.s32.totalorder %s108, 0
      %p518 = por %p516, %p517
      %s520 = sadd.s32 %s519, 1
      %p523 = scmp.eq.s32.totalorder %s102, 1
      %p524 = scmp.ne.s32.totalorder %s519, %s521
      %p525 = scmp.eq.s32.totalorder %s102, 0
      %p526 = por %p524, %p525
      %p527 = scmp.ne.s32.totalorder %s519, %s521
      %p528 = scmp.eq.s32.totalorder %s107, 1
      %p529 = por %p527, %p528
      %p530 = scmp.ne.s32.totalorder %s521, %s522
      %p531 = scmp.eq.s32.totalorder %s107, 0
      %p532 = por %p530, %p531
      %p533 = scmp.ne.s32.totalorder %s521, %s522
      %p534 = scmp.eq.s32.totalorder %s108, 1
      %p535 = por %p533, %p534
      %p537 = scmp.ne.s32.totalorder %s522, %s536
      %p538 = scmp.eq.s32.totalorder %s108, 0
      %p539 = por %p537, %p538
      %s541 = sadd.s32 %s540, 1
      %p544 = scmp.eq.s32.totalorder %s102, 1
      %p545 = scmp.ne.s32.totalorder %s540, %s542
      %p546 = scmp.eq.s32.totalorder %s102, 0
      %p547 = por %p545, %p546
      %p548 = scmp.ne.s32.totalorder %s540, %s542
      %p549 = scmp.eq.s32.totalorder %s107, 1
      %p550 = por %p548, %p549
      %p551 = scmp.ne.s32.totalorder %s542, %s543
      %p552 = scmp.eq.s32.totalorder %s107, 0
      %p553 = por %p551, %p552
      %p554 = scmp.ne.s32.totalorder %s542, %s543
      %p555 = scmp.eq.s32.totalorder %s108, 1
      %p556 = por %p554, %p555
      %p558 = scmp.ne.s32.totalorder %s543, %s557
      %p559 = scmp.eq.s32.totalorder %s108, 0
      %p560 = por %p558, %p559
      %s562 = sadd.s32 %s561, 1
      %p565 = scmp.eq.s32.totalorder %s102, 1
      %p566 = scmp.ne.s32.totalorder %s561, %s563
      %p567 = scmp.eq.s32.totalorder %s102, 0
      %p568 = por %p566, %p567
      %p569 = scmp.ne.s32.totalorder %s561, %s563
      %p570 = scmp.eq.s32.totalorder %s107, 1
      %p571 = por %p569, %p570
      %p572 = scmp.ne.s32.totalorder %s563, %s564
      %p573 = scmp.eq.s32.totalorder %s107, 0
      %p574 = por %p572, %p573
      %p575 = scmp.ne.s32.totalorder %s563, %s564
      %p576 = scmp.eq.s32.totalorder %s108, 1
      %p577 = por %p575, %p576
      %p579 = scmp.ne.s32.totalorder %s564, %s578
      %p580 = scmp.eq.s32.totalorder %s108, 0
      %p581 = por %p579, %p580
      %s583 = sadd.s32 %s582, 1
      %p586 = scmp.eq.s32.totalorder %s102, 1
      %p587 = scmp.ne.s32.totalorder %s582, %s584
      %p588 = scmp.eq.s32.totalorder %s102, 0
      %p589 = por %p587, %p588
      %p590 = scmp.ne.s32.totalorder %s582, %s584
      %p591 = scmp.eq.s32.totalorder %s107, 1
      %p592 = por %p590, %p591
      %p593 = scmp.ne.s32.totalorder %s584, %s585
      %p594 = scmp.eq.s32.totalorder %s107, 0
      %p595 = por %p593, %p594
      %p596 = scmp.ne.s32.totalorder %s584, %s585
      %p597 = scmp.eq.s32.totalorder %s108, 1
      %p598 = por %p596, %p597
      %p600 = scmp.ne.s32.totalorder %s585, %s599
      %p601 = scmp.eq.s32.totalorder %s108, 0
      %p602 = por %p600, %p601
      %s604 = sadd.s32 %s603, 1
      %p607 = scmp.eq.s32.totalorder %s102, 1
      %p608 = scmp.ne.s32.totalorder %s603, %s605
      %p609 = scmp.eq.s32.totalorder %s102, 0
      %p610 = por %p608, %p609
      %p611 = scmp.ne.s32.totalorder %s603, %s605
      %p612 = scmp.eq.s32.totalorder %s107, 1
      %p613 = por %p611, %p612
      %p614 = scmp.ne.s32.totalorder %s605, %s606
      %p615 = scmp.eq.s32.totalorder %s107, 0
      %p616 = por %p614, %p615
      %p617 = scmp.ne.s32.totalorder %s605, %s606
      %p618 = scmp.eq.s32.totalorder %s108, 1
      %p619 = por %p617, %p618
      %p621 = scmp.ne.s32.totalorder %s606, %s620
      %p622 = scmp.eq.s32.totalorder %s108, 0
      %p623 = por %p621, %p622
      %s625 = sadd.s32 %s624, 1
      %p628 = scmp.eq.s32.totalorder %s102, 1
      %p629 = scmp.ne.s32.totalorder %s624, %s626
      %p630 = scmp.eq.s32.totalorder %s102, 0
      %p631 = por %p629, %p630
      %p632 = scmp.ne.s32.totalorder %s624, %s626
      %p633 = scmp.eq.s32.totalorder %s107, 1
      %p634 = por %p632, %p633
      %p635 = scmp.ne.s32.totalorder %s626, %s627
      %p636 = scmp.eq.s32.totalorder %s107, 0
      %p637 = por %p635, %p636
      %p638 = scmp.ne.s32.totalorder %s626, %s627
      %p639 = scmp.eq.s32.totalorder %s108, 1
      %p640 = por %p638, %p639
      %p642 = scmp.ne.s32.totalorder %s627, %s641
      %p643 = scmp.eq.s32.totalorder %s108, 0
      %p644 = por %p642, %p643
      %s646 = sadd.s32 %s645, 1
      %p649 = scmp.eq.s32.totalorder %s102, 1
      %p650 = scmp.ne.s32.totalorder %s645, %s647
      %p651 = scmp.eq.s32.totalorder %s102, 0
      %p652 = por %p650, %p651
      %p653 = scmp.ne.s32.totalorder %s645, %s647
      %p654 = scmp.eq.s32.totalorder %s107, 1
      %p655 = por %p653, %p654
      %p656 = scmp.ne.s32.totalorder %s647, %s648
      %p657 = scmp.eq.s32.totalorder %s107, 0
      %p658 = por %p656, %p657
      %p659 = scmp.ne.s32.totalorder %s647, %s648
      %p660 = scmp.eq.s32.totalorder %s108, 1
      %p661 = por %p659, %p660
      %p663 = scmp.ne.s32.totalorder %s648, %s662
      %p664 = scmp.eq.s32.totalorder %s108, 0
      %p665 = por %p663, %p664
      %s667 = sadd.s32 %s666, 1
      %p670 = scmp.eq.s32.totalorder %s102, 1
      %p671 = scmp.ne.s32.totalorder %s666, %s668
      %p672 = scmp.eq.s32.totalorder %s102, 0
      %p673 = por %p671, %p672
      %p674 = scmp.ne.s32.totalorder %s666, %s668
      %p675 = scmp.eq.s32.totalorder %s107, 1
      %p676 = por %p674, %p675
      %p677 = scmp.ne.s32.totalorder %s668, %s669
      %p678 = scmp.eq.s32.totalorder %s107, 0
      %p679 = por %p677, %p678
      %p680 = scmp.ne.s32.totalorder %s668, %s669
      %p681 = scmp.eq.s32.totalorder %s108, 1
      %p682 = por %p680, %p681
      %p684 = scmp.ne.s32.totalorder %s669, %s683
      %p685 = scmp.eq.s32.totalorder %s108, 0
      %p686 = por %p684, %p685
      %s688 = sadd.s32 %s687, 1
      %p691 = scmp.eq.s32.totalorder %s102, 1
      %p692 = scmp.ne.s32.totalorder %s687, %s689
      %p693 = scmp.eq.s32.totalorder %s102, 0
      %p694 = por %p692, %p693
      %p695 = scmp.ne.s32.totalorder %s687, %s689
      %p696 = scmp.eq.s32.totalorder %s107, 1
      %p697 = por %p695, %p696
      %p698 = scmp.ne.s32.totalorder %s689, %s690
      %p699 = scmp.eq.s32.totalorder %s107, 0
      %p700 = por %p698, %p699
      %p701 = scmp.ne.s32.totalorder %s689, %s690
      %p702 = scmp.eq.s32.totalorder %s108, 1
      %p703 = por %p701, %p702
      %p705 = scmp.ne.s32.totalorder %s690, %s704
      %p706 = scmp.eq.s32.totalorder %s108, 0
      %p707 = por %p705, %p706
      %s709 = sadd.s32 %s708, 1
      %p712 = scmp.eq.s32.totalorder %s102, 1
      %p713 = scmp.ne.s32.totalorder %s708, %s710
      %p714 = scmp.eq.s32.totalorder %s102, 0
      %p715 = por %p713, %p714
      %p716 = scmp.ne.s32.totalorder %s708, %s710
      %p717 = scmp.eq.s32.totalorder %s107, 1
      %p718 = por %p716, %p717
      %p719 = scmp.ne.s32.totalorder %s710, %s711
      %p720 = scmp.eq.s32.totalorder %s107, 0
      %p721 = por %p719, %p720
      %p722 = scmp.ne.s32.totalorder %s710, %s711
      %p723 = scmp.eq.s32.totalorder %s108, 1
      %p724 = por %p722, %p723
      %p726 = scmp.ne.s32.totalorder %s711, %s725
      %p727 = scmp.eq.s32.totalorder %s108, 0
      %p728 = por %p726, %p727
      %s730 = sadd.s32 %s729, 1
      %p733 = scmp.eq.s32.totalorder %s102, 1
      %p734 = scmp.ne.s32.totalorder %s729, %s731
      %p735 = scmp.eq.s32.totalorder %s102, 0
      %p736 = por %p734, %p735
      %p737 = scmp.ne.s32.totalorder %s729, %s731
      %p738 = scmp.eq.s32.totalorder %s107, 1
      %p739 = por %p737, %p738
      %p740 = scmp.ne.s32.totalorder %s731, %s732
      %p741 = scmp.eq.s32.totalorder %s107, 0
      %p742 = por %p740, %p741
      %p743 = scmp.ne.s32.totalorder %s731, %s732
      %p744 = scmp.eq.s32.totalorder %s108, 1
      %p745 = por %p743, %p744
      %p747 = scmp.ne.s32.totalorder %s732, %s746
      %p748 = scmp.eq.s32.totalorder %s108, 0
      %p749 = por %p747, %p748
      %s751 = sadd.s32 %s750, 1
      %p754 = scmp.eq.s32.totalorder %s102, 1
      %p755 = scmp.ne.s32.totalorder %s750, %s752
      %p756 = scmp.eq.s32.totalorder %s102, 0
      %p757 = por %p755, %p756
      %p758 = scmp.ne.s32.totalorder %s750, %s752
      %p759 = scmp.eq.s32.totalorder %s107, 1
      %p760 = por %p758, %p759
      %p761 = scmp.ne.s32.totalorder %s752, %s753
      %p762 = scmp.eq.s32.totalorder %s107, 0
      %p763 = por %p761, %p762
      %p764 = scmp.ne.s32.totalorder %s752, %s753
      %p765 = scmp.eq.s32.totalorder %s108, 1
      %p766 = por %p764, %p765
      %p768 = scmp.ne.s32.totalorder %s753, %s767
      %p769 = scmp.eq.s32.totalorder %s108, 0
      %p770 = por %p768, %p769
      %s772 = sadd.s32 %s771, 1
      %p775 = scmp.eq.s32.totalorder %s102, 1
      %p776 = scmp.ne.s32.totalorder %s771, %s773
      %p777 = scmp.eq.s32.totalorder %s102, 0
      %p778 = por %p776, %p777
      %p779 = scmp.ne.s32.totalorder %s771, %s773
      %p780 = scmp.eq.s32.totalorder %s107, 1
      %p781 = por %p779, %p780
      %p782 = scmp.ne.s32.totalorder %s773, %s774
      %p783 = scmp.eq.s32.totalorder %s107, 0
      %p784 = por %p782, %p783
      %p785 = scmp.ne.s32.totalorder %s773, %s774
      %p786 = scmp.eq.s32.totalorder %s108, 1
      %p787 = por %p785, %p786
      %p789 = scmp.ne.s32.totalorder %s774, %s788
      %p790 = scmp.eq.s32.totalorder %s108, 0
      %p791 = por %p789, %p790
      %s793 = sadd.s32 %s792, 1
      %p796 = scmp.eq.s32.totalorder %s102, 1
      %p797 = scmp.ne.s32.totalorder %s792, %s794
      %p798 = scmp.eq.s32.totalorder %s102, 0
      %p799 = por %p797, %p798
      %p800 = scmp.ne.s32.totalorder %s792, %s794
      %p801 = scmp.eq.s32.totalorder %s107, 1
      %p802 = por %p800, %p801
      %p803 = scmp.ne.s32.totalorder %s794, %s795
      %p804 = scmp.eq.s32.totalorder %s107, 0
      %p805 = por %p803, %p804
      %p806 = scmp.ne.s32.totalorder %s794, %s795
      %p807 = scmp.eq.s32.totalorder %s108, 1
      %p808 = por %p806, %p807
      %p810 = scmp.ne.s32.totalorder %s795, %s809
      %p811 = scmp.eq.s32.totalorder %s108, 0
      %p812 = por %p810, %p811
      %s814 = sadd.s32 %s813, 1
      %p817 = scmp.eq.s32.totalorder %s102, 1
      %p818 = scmp.ne.s32.totalorder %s813, %s815
      %p819 = scmp.eq.s32.totalorder %s102, 0
      %p820 = por %p818, %p819
      %p821 = scmp.ne.s32.totalorder %s813, %s815
      %p822 = scmp.eq.s32.totalorder %s107, 1
      %p823 = por %p821, %p822
      %p824 = scmp.ne.s32.totalorder %s815, %s816
      %p825 = scmp.eq.s32.totalorder %s107, 0
      %p826 = por %p824, %p825
      %p827 = scmp.ne.s32.totalorder %s815, %s816
      %p828 = scmp.eq.s32.totalorder %s108, 1
      %p829 = por %p827, %p828
      %p831 = scmp.ne.s32.totalorder %s816, %s830
      %p832 = scmp.eq.s32.totalorder %s108, 0
      %p833 = por %p831, %p832
      %s835 = sadd.s32 %s834, 1
      %p838 = scmp.eq.s32.totalorder %s102, 1
      %p839 = scmp.ne.s32.totalorder %s834, %s836
      %p840 = scmp.eq.s32.totalorder %s102, 0
      %p841 = por %p839, %p840
      %p842 = scmp.ne.s32.totalorder %s834, %s836
      %p843 = scmp.eq.s32.totalorder %s107, 1
      %p844 = por %p842, %p843
      %p845 = scmp.ne.s32.totalorder %s836, %s837
      %p846 = scmp.eq.s32.totalorder %s107, 0
      %p847 = por %p845, %p846
      %p848 = scmp.ne.s32.totalorder %s836, %s837
      %p849 = scmp.eq.s32.totalorder %s108, 1
      %p850 = por %p848, %p849
      %p852 = scmp.ne.s32.totalorder %s837, %s851
      %p853 = scmp.eq.s32.totalorder %s108, 0
      %p854 = por %p852, %p853
      %s856 = sadd.s32 %s855, 1
      %p859 = scmp.eq.s32.totalorder %s102, 1
      %p860 = scmp.ne.s32.totalorder %s855, %s857
      %p861 = scmp.eq.s32.totalorder %s102, 0
      %p862 = por %p860, %p861
      %p863 = scmp.ne.s32.totalorder %s855, %s857
      %p864 = scmp.eq.s32.totalorder %s107, 1
      %p865 = por %p863, %p864
      %p866 = scmp.ne.s32.totalorder %s857, %s858
      %p867 = scmp.eq.s32.totalorder %s107, 0
      %p868 = por %p866, %p867
      %p869 = scmp.ne.s32.totalorder %s857, %s858
      %p870 = scmp.eq.s32.totalorder %s108, 1
      %p871 = por %p869, %p870
      %p873 = scmp.ne.s32.totalorder %s858, %s872
      %p874 = scmp.eq.s32.totalorder %s108, 0
      %p875 = por %p873, %p874
      %s877 = sadd.s32 %s876, 1
      %p880 = scmp.eq.s32.totalorder %s102, 1
      %p881 = scmp.ne.s32.totalorder %s876, %s878
      %p882 = scmp.eq.s32.totalorder %s102, 0
      %p883 = por %p881, %p882
      %p884 = scmp.ne.s32.totalorder %s876, %s878
      %p885 = scmp.eq.s32.totalorder %s107, 1
      %p886 = por %p884, %p885
      %p887 = scmp.ne.s32.totalorder %s878, %s879
      %p888 = scmp.eq.s32.totalorder %s107, 0
      %p889 = por %p887, %p888
      %p890 = scmp.ne.s32.totalorder %s878, %s879
      %p891 = scmp.eq.s32.totalorder %s108, 1
      %p892 = por %p890, %p891
      %p894 = scmp.ne.s32.totalorder %s879, %s893
      %p895 = scmp.eq.s32.totalorder %s108, 0
      %p896 = por %p894, %p895
      %s898 = sadd.s32 %s897, 1
      %p901 = scmp.eq.s32.totalorder %s102, 1
      %p902 = scmp.ne.s32.totalorder %s897, %s899
      %p903 = scmp.eq.s32.totalorder %s102, 0
      %p904 = por %p902, %p903
      %p905 = scmp.ne.s32.totalorder %s897, %s899
      %p906 = scmp.eq.s32.totalorder %s107, 1
      %p907 = por %p905, %p906
      %p908 = scmp.ne.s32.totalorder %s899, %s900
      %p909 = scmp.eq.s32.totalorder %s107, 0
      %p910 = por %p908, %p909
      %p911 = scmp.ne.s32.totalorder %s899, %s900
      %p912 = scmp.eq.s32.totalorder %s108, 1
      %p913 = por %p911, %p912
      %p915 = scmp.ne.s32.totalorder %s900, %s914
      %p916 = scmp.eq.s32.totalorder %s108, 0
      %p917 = por %p915, %p916
      %s918 = ssub.s32 %s102, %s109
      %p919 = scmp.eq.s32.totalorder %s918, 0
      %s921 = sadd.s32 %s920, 1
      %s922 = scalar_select %p919, %s920, %s921
      %p925 = pneg %p919
      %p926 = scmp.eq.s32.totalorder %s102, 1
      %p927 = por %p925, %p926
      %p928 = scmp.ne.s32.totalorder %s920, %s923
      %p929 = scmp.eq.s32.totalorder %s102, 0
      %p930 = por %p928, %p929
      %p931 = scmp.ne.s32.totalorder %s920, %s923
      %p932 = scmp.eq.s32.totalorder %s107, 1
      %p933 = por %p931, %p932
      %p934 = scmp.ne.s32.totalorder %s923, %s924
      %p935 = scmp.eq.s32.totalorder %s107, 0
      %p936 = por %p934, %p935
      %p937 = scmp.ne.s32.totalorder %s923, %s924
      %p938 = scmp.eq.s32.totalorder %s108, 1
      %p939 = por %p937, %p938
      %p941 = scmp.ne.s32.totalorder %s924, %s940
      %p942 = scmp.eq.s32.totalorder %s108, 0
      %p943 = por %p941, %p942
      %s944 = ssub.s32 %s102, %s109
      %p945 = scmp.eq.s32.totalorder %s944, 0
      %s947 = sadd.s32 %s946, 1
      %s948 = scalar_select %p945, %s946, %s947
      %p951 = pneg %p945
      %p952 = scmp.eq.s32.totalorder %s102, 1
      %p953 = por %p951, %p952
      %p954 = scmp.ne.s32.totalorder %s946, %s949
      %p955 = scmp.eq.s32.totalorder %s102, 0
      %p956 = por %p954, %p955
      %p957 = scmp.ne.s32.totalorder %s946, %s949
      %p958 = scmp.eq.s32.totalorder %s107, 1
      %p959 = por %p957, %p958
      %p960 = scmp.ne.s32.totalorder %s949, %s950
      %p961 = scmp.eq.s32.totalorder %s107, 0
      %p962 = por %p960, %p961
      %p963 = scmp.ne.s32.totalorder %s949, %s950
      %p964 = scmp.eq.s32.totalorder %s108, 1
      %p965 = por %p963, %p964
      %p967 = scmp.ne.s32.totalorder %s950, %s966
      %p968 = scmp.eq.s32.totalorder %s108, 0
      %p969 = por %p967, %p968
      %s970 = ssub.s32 %s102, %s109
      %p971 = scmp.eq.s32.totalorder %s970, 0
      %s973 = sadd.s32 %s972, 1
      %s974 = scalar_select %p971, %s972, %s973
      %p977 = pneg %p971
      %p978 = scmp.eq.s32.totalorder %s102, 1
      %p979 = por %p977, %p978
      %p980 = scmp.ne.s32.totalorder %s972, %s975
      %p981 = scmp.eq.s32.totalorder %s102, 0
      %p982 = por %p980, %p981
      %p983 = scmp.ne.s32.totalorder %s972, %s975
      %p984 = scmp.eq.s32.totalorder %s107, 1
      %p985 = por %p983, %p984
      %p986 = scmp.ne.s32.totalorder %s975, %s976
      %p987 = scmp.eq.s32.totalorder %s107, 0
      %p988 = por %p986, %p987
      %p989 = scmp.ne.s32.totalorder %s975, %s976
      %p990 = scmp.eq.s32.totalorder %s108, 1
      %p991 = por %p989, %p990
      %p993 = scmp.ne.s32.totalorder %s976, %s992
      %p994 = scmp.eq.s32.totalorder %s108, 0
      %p995 = por %p993, %p994
      %p996 = scmp.le.s32.totalorder 1, %s102
      %p997 = scmp.lt.s32.totalorder %s102, 3
      %p998 = pnand %p996, %p997
      %p999 = pneg %p998
      // Predicated region
      $region9: #{_lambda_.1} parent=5 // pred_check
        _
      $region10: #{_lambda_.1} parent=5 // pred_check_branch
        %1001 = sbr.rel (%p998) target = $region12
      $region11: #{_lambda_.1} parent=5 // pred_region
        %s1002 = ssub.s32 %s102, 1
        // Predicated region
        $region13: #{_lambda_.1} parent=11 // pred_check
          %p1003 = pneg %p175
        $region14: #{_lambda_.1} parent=11 // pred_check_branch
          %1005 = sbr.rel (%p1003) target = $region16
        $region15: #{_lambda_.1} parent=11 // pred_region
          _
        $region16: #{_lambda_.1} parent=11 // pred_fallthru
          _
        // Predicated region
        $region17: #{_lambda_.1} parent=11 // pred_check
          %p1006 = pneg %p196
        $region18: #{_lambda_.1} parent=11 // pred_check_branch
          %1008 = sbr.rel (%p1006) target = $region20
        $region19: #{_lambda_.1} parent=11 // pred_region
          _
        $region20: #{_lambda_.1} parent=11 // pred_fallthru
          _
        // Predicated region
        $region21: #{_lambda_.1} parent=11 // pred_check
          %p1009 = pneg %p217
        $region22: #{_lambda_.1} parent=11 // pred_check_branch
          %1011 = sbr.rel (%p1009) target = $region24
        $region23: #{_lambda_.1} parent=11 // pred_region
          _
        $region24: #{_lambda_.1} parent=11 // pred_fallthru
          _
        // Predicated region
        $region25: #{_lambda_.1} parent=11 // pred_check
          %p1012 = pneg %p238
        $region26: #{_lambda_.1} parent=11 // pred_check_branch
          %1014 = sbr.rel (%p1012) target = $region28
        $region27: #{_lambda_.1} parent=11 // pred_region
          _
        $region28: #{_lambda_.1} parent=11 // pred_fallthru
          _
        // Predicated region
        $region29: #{_lambda_.1} parent=11 // pred_check
          %p1015 = pneg %p259
        $region30: #{_lambda_.1} parent=11 // pred_check_branch
          %1017 = sbr.rel (%p1015) target = $region32
        $region31: #{_lambda_.1} parent=11 // pred_region
          _
        $region32: #{_lambda_.1} parent=11 // pred_fallthru
          _
        // Predicated region
        $region33: #{_lambda_.1} parent=11 // pred_check
          %p1018 = pneg %p280
        $region34: #{_lambda_.1} parent=11 // pred_check_branch
          %1020 = sbr.rel (%p1018) target = $region36
        $region35: #{_lambda_.1} parent=11 // pred_region
          _
        $region36: #{_lambda_.1} parent=11 // pred_fallthru
          _
        // Predicated region
        $region37: #{_lambda_.1} parent=11 // pred_check
          %p1021 = pneg %p301
        $region38: #{_lambda_.1} parent=11 // pred_check_branch
          %1023 = sbr.rel (%p1021) target = $region40
        $region39: #{_lambda_.1} parent=11 // pred_region
          _
        $region40: #{_lambda_.1} parent=11 // pred_fallthru
          _
        // Predicated region
        $region41: #{_lambda_.1} parent=11 // pred_check
          %p1024 = pneg %p322
        $region42: #{_lambda_.1} parent=11 // pred_check_branch
          %1026 = sbr.rel (%p1024) target = $region44
        $region43: #{_lambda_.1} parent=11 // pred_region
          _
        $region44: #{_lambda_.1} parent=11 // pred_fallthru
          _
        // Predicated region
        $region45: #{_lambda_.1} parent=11 // pred_check
          %p1027 = pneg %p343
        $region46: #{_lambda_.1} parent=11 // pred_check_branch
          %1029 = sbr.rel (%p1027) target = $region48
        $region47: #{_lambda_.1} parent=11 // pred_region
          _
        $region48: #{_lambda_.1} parent=11 // pred_fallthru
          _
        // Predicated region
        $region49: #{_lambda_.1} parent=11 // pred_check
          %p1030 = pneg %p364
        $region50: #{_lambda_.1} parent=11 // pred_check_branch
          %1032 = sbr.rel (%p1030) target = $region52
        $region51: #{_lambda_.1} parent=11 // pred_region
          %s1034 = ssub.s32 32, 32
          %1035 = vsyncadd [#allocation4], %s1034
          %s1036 = sshll.u32 [#allocation3], 4
          %s1037 = int_to_ptr.vmem [resolvable:$true] %s1036
          %1042 = dma.hbm_to_vmem [thread:$0]  %s23, 32, %s1037, [#allocation4], 16, 16, 1
        $region52: #{_lambda_.1} parent=11 // pred_fallthru
          _
        // Predicated region
        $region53: #{_lambda_.1} parent=11 // pred_check
          %p1043 = pneg %p385
        $region54: #{_lambda_.1} parent=11 // pred_check_branch
          %1045 = sbr.rel (%p1043) target = $region56
        $region55: #{_lambda_.1} parent=11 // pred_region
          _
        $region56: #{_lambda_.1} parent=11 // pred_fallthru
          _
        // Predicated region
        $region57: #{_lambda_.1} parent=11 // pred_check
          %p1046 = pneg %p406
        $region58: #{_lambda_.1} parent=11 // pred_check_branch
          %1048 = sbr.rel (%p1046) target = $region60
        $region59: #{_lambda_.1} parent=11 // pred_region
          _
        $region60: #{_lambda_.1} parent=11 // pred_fallthru
          _
        // Predicated region
        $region61: #{_lambda_.1} parent=11 // pred_check
          %p1049 = pneg %p427
        $region62: #{_lambda_.1} parent=11 // pred_check_branch
          %1051 = sbr.rel (%p1049) target = $region64
        $region63: #{_lambda_.1} parent=11 // pred_region
          _
        $region64: #{_lambda_.1} parent=11 // pred_fallthru
          _
        // Predicated region
        $region65: #{_lambda_.1} parent=11 // pred_check
          %p1052 = pneg %p448
        $region66: #{_lambda_.1} parent=11 // pred_check_branch
          %1054 = sbr.rel (%p1052) target = $region68
        $region67: #{_lambda_.1} parent=11 // pred_region
          _
        $region68: #{_lambda_.1} parent=11 // pred_fallthru
          _
        // Predicated region
        $region69: #{_lambda_.1} parent=11 // pred_check
          %p1055 = pneg %p469
        $region70: #{_lambda_.1} parent=11 // pred_check_branch
          %1057 = sbr.rel (%p1055) target = $region72
        $region71: #{_lambda_.1} parent=11 // pred_region
          _
        $region72: #{_lambda_.1} parent=11 // pred_fallthru
          _
        // Predicated region
        $region73: #{_lambda_.1} parent=11 // pred_check
          %p1058 = pneg %p490
        $region74: #{_lambda_.1} parent=11 // pred_check_branch
          %1060 = sbr.rel (%p1058) target = $region76
        $region75: #{_lambda_.1} parent=11 // pred_region
          %s1062 = ssub.s32 32, 32
          %1063 = vsyncadd [#allocation7], %s1062
          %s1064 = sshll.u32 [#allocation6], 4
          %s1065 = int_to_ptr.vmem [resolvable:$true] %s1064
          %1070 = dma.hbm_to_vmem [thread:$0]  %s35, 32, %s1065, [#allocation7], 16, 16, 1
        $region76: #{_lambda_.1} parent=11 // pred_fallthru
          _
        // Predicated region
        $region77: #{_lambda_.1} parent=11 // pred_check
          %p1071 = pneg %p511
        $region78: #{_lambda_.1} parent=11 // pred_check_branch
          %1073 = sbr.rel (%p1071) target = $region80
        $region79: #{_lambda_.1} parent=11 // pred_region
          _
        $region80: #{_lambda_.1} parent=11 // pred_fallthru
          _
        // Predicated region
        $region81: #{_lambda_.1} parent=11 // pred_check
          %p1074 = pneg %p532
        $region82: #{_lambda_.1} parent=11 // pred_check_branch
          %1076 = sbr.rel (%p1074) target = $region84
        $region83: #{_lambda_.1} parent=11 // pred_region
          %s1078 = ssub.s32 32, 32
          %1079 = vsyncadd [#allocation7], %s1078
          %s1080 = sshll.u32 [#allocation8], 4
          %s1081 = int_to_ptr.vmem [resolvable:$true] %s1080
          %1086 = dma.hbm_to_vmem [thread:$0]  %s39, 32, %s1081, [#allocation7], 16, 16, 1
        $region84: #{_lambda_.1} parent=11 // pred_fallthru
          _
        // Predicated region
        $region85: #{_lambda_.1} parent=11 // pred_check
          %p1087 = pneg %p553
        $region86: #{_lambda_.1} parent=11 // pred_check_branch
          %1089 = sbr.rel (%p1087) target = $region88
        $region87: #{_lambda_.1} parent=11 // pred_region
          %s1091 = ssub.s32 32, 32
          %1092 = vsyncadd [#allocation10], %s1091
          %s1093 = sshll.u32 [#allocation9], 4
          %s1094 = int_to_ptr.vmem [resolvable:$true] %s1093
          %1099 = dma.hbm_to_vmem [thread:$0]  %s41, 32, %s1094, [#allocation10], 16, 16, 1
        $region88: #{_lambda_.1} parent=11 // pred_fallthru
          _
        // Predicated region
        $region89: #{_lambda_.1} parent=11 // pred_check
          %p1100 = pneg %p574
        $region90: #{_lambda_.1} parent=11 // pred_check_branch
          %1102 = sbr.rel (%p1100) target = $region92
        $region91: #{_lambda_.1} parent=11 // pred_region
          %s1104 = ssub.s32 32, 32
          %1105 = vsyncadd [#allocation10], %s1104
          %s1106 = sshll.u32 [#allocation11], 4
          %s1107 = int_to_ptr.vmem [resolvable:$true] %s1106
          %1112 = dma.hbm_to_vmem [thread:$0]  %s43, 32, %s1107, [#allocation10], 16, 16, 1
        $region92: #{_lambda_.1} parent=11 // pred_fallthru
          _
        // Predicated region
        $region93: #{_lambda_.1} parent=11 // pred_check
          %p1113 = pneg %p595
        $region94: #{_lambda_.1} parent=11 // pred_check_branch
          %1115 = sbr.rel (%p1113) target = $region96
        $region95: #{_lambda_.1} parent=11 // pred_region
          _
        $region96: #{_lambda_.1} parent=11 // pred_fallthru
          _
        // Predicated region
        $region97: #{_lambda_.1} parent=11 // pred_check
          %p1116 = pneg %p616
        $region98: #{_lambda_.1} parent=11 // pred_check_branch
          %1118 = sbr.rel (%p1116) target = $region100
        $region99: #{_lambda_.1} parent=11 // pred_region
          %s1120 = ssub.s32 32, 32
          %1121 = vsyncadd [#allocation13], %s1120
          %s1122 = sshll.u32 [#allocation12], 4
          %s1123 = int_to_ptr.vmem [resolvable:$true] %s1122
          %1128 = dma.hbm_to_vmem [thread:$0]  %s47, 32, %s1123, [#allocation13], 16, 16, 1
        $region100: #{_lambda_.1} parent=11 // pred_fallthru
          _
        // Predicated region
        $region101: #{_lambda_.1} parent=11 // pred_check
          %p1129 = pneg %p637
        $region102: #{_lambda_.1} parent=11 // pred_check_branch
          %1131 = sbr.rel (%p1129) target = $region104
        $region103: #{_lambda_.1} parent=11 // pred_region
          _
        $region104: #{_lambda_.1} parent=11 // pred_fallthru
          _
        // Predicated region
        $region105: #{_lambda_.1} parent=11 // pred_check
          %p1132 = pneg %p658
        $region106: #{_lambda_.1} parent=11 // pred_check_branch
          %1134 = sbr.rel (%p1132) target = $region108
        $region107: #{_lambda_.1} parent=11 // pred_region
          %s1136 = ssub.s32 32, 32
          %1137 = vsyncadd [#allocation13], %s1136
          %s1138 = sshll.u32 [#allocation14], 4
          %s1139 = int_to_ptr.vmem [resolvable:$true] %s1138
          %1144 = dma.hbm_to_vmem [thread:$0]  %s51, 32, %s1139, [#allocation13], 16, 16, 1
        $region108: #{_lambda_.1} parent=11 // pred_fallthru
          _
        // Predicated region
        $region109: #{_lambda_.1} parent=11 // pred_check
          %p1145 = pneg %p679
        $region110: #{_lambda_.1} parent=11 // pred_check_branch
          %1147 = sbr.rel (%p1145) target = $region112
        $region111: #{_lambda_.1} parent=11 // pred_region
          _
        $region112: #{_lambda_.1} parent=11 // pred_fallthru
          _
        // Predicated region
        $region113: #{_lambda_.1} parent=11 // pred_check
          %p1148 = pneg %p700
        $region114: #{_lambda_.1} parent=11 // pred_check_branch
          %1150 = sbr.rel (%p1148) target = $region116
        $region115: #{_lambda_.1} parent=11 // pred_region
          %s1152 = ssub.s32 32, 32
          %1153 = vsyncadd [#allocation16], %s1152
          %s1154 = sshll.u32 [#allocation15], 4
          %s1155 = int_to_ptr.vmem [resolvable:$true] %s1154
          %1160 = dma.hbm_to_vmem [thread:$0]  %s55, 32, %s1155, [#allocation16], 16, 16, 1
        $region116: #{_lambda_.1} parent=11 // pred_fallthru
          _
        // Predicated region
        $region117: #{_lambda_.1} parent=11 // pred_check
          %p1161 = pneg %p721
        $region118: #{_lambda_.1} parent=11 // pred_check_branch
          %1163 = sbr.rel (%p1161) target = $region120
        $region119: #{_lambda_.1} parent=11 // pred_region
          %s1165 = ssub.s32 32, 32
          %1166 = vsyncadd [#allocation16], %s1165
          %s1167 = sshll.u32 [#allocation17], 4
          %s1168 = int_to_ptr.vmem [resolvable:$true] %s1167
          %1173 = dma.hbm_to_vmem [thread:$0]  %s57, 32, %s1168, [#allocation16], 16, 16, 1
        $region120: #{_lambda_.1} parent=11 // pred_fallthru
          _
        // Predicated region
        $region121: #{_lambda_.1} parent=11 // pred_check
          %p1174 = pneg %p742
        $region122: #{_lambda_.1} parent=11 // pred_check_branch
          %1176 = sbr.rel (%p1174) target = $region124
        $region123: #{_lambda_.1} parent=11 // pred_region
          %s1178 = ssub.s32 32, 32
          %1179 = vsyncadd [#allocation19], %s1178
          %s1180 = sshll.u32 [#allocation18], 4
          %s1181 = int_to_ptr.vmem [resolvable:$true] %s1180
          %1186 = dma.hbm_to_vmem [thread:$0]  %s59, 32, %s1181, [#allocation19], 16, 16, 1
        $region124: #{_lambda_.1} parent=11 // pred_fallthru
          _
        // Predicated region
        $region125: #{_lambda_.1} parent=11 // pred_check
          %p1187 = pneg %p763
        $region126: #{_lambda_.1} parent=11 // pred_check_branch
          %1189 = sbr.rel (%p1187) target = $region128
        $region127: #{_lambda_.1} parent=11 // pred_region
          _
        $region128: #{_lambda_.1} parent=11 // pred_fallthru
          _
        // Predicated region
        $region129: #{_lambda_.1} parent=11 // pred_check
          %p1190 = pneg %p784
        $region130: #{_lambda_.1} parent=11 // pred_check_branch
          %1192 = sbr.rel (%p1190) target = $region132
        $region131: #{_lambda_.1} parent=11 // pred_region
          %s1194 = ssub.s32 32, 32
          %1195 = vsyncadd [#allocation19], %s1194
          %s1196 = sshll.u32 [#allocation20], 4
          %s1197 = int_to_ptr.vmem [resolvable:$true] %s1196
          %1202 = dma.hbm_to_vmem [thread:$0]  %s63, 32, %s1197, [#allocation19], 16, 16, 1
        $region132: #{_lambda_.1} parent=11 // pred_fallthru
          _
        // Predicated region
        $region133: #{_lambda_.1} parent=11 // pred_check
          %p1203 = pneg %p805
        $region134: #{_lambda_.1} parent=11 // pred_check_branch
          %1205 = sbr.rel (%p1203) target = $region136
        $region135: #{_lambda_.1} parent=11 // pred_region
          _
        $region136: #{_lambda_.1} parent=11 // pred_fallthru
          _
        // Predicated region
        $region137: #{_lambda_.1} parent=11 // pred_check
          %p1206 = pneg %p826
        $region138: #{_lambda_.1} parent=11 // pred_check_branch
          %1208 = sbr.rel (%p1206) target = $region140
        $region139: #{_lambda_.1} parent=11 // pred_region
          %s1210 = ssub.s32 32, 32
          %1211 = vsyncadd [#allocation22], %s1210
          %s1212 = sshll.u32 [#allocation21], 4
          %s1213 = int_to_ptr.vmem [resolvable:$true] %s1212
          %1218 = dma.hbm_to_vmem [thread:$0]  %s67, 32, %s1213, [#allocation22], 16, 16, 1
        $region140: #{_lambda_.1} parent=11 // pred_fallthru
          _
        // Predicated region
        $region141: #{_lambda_.1} parent=11 // pred_check
          %p1219 = pneg %p847
        $region142: #{_lambda_.1} parent=11 // pred_check_branch
          %1221 = sbr.rel (%p1219) target = $region144
        $region143: #{_lambda_.1} parent=11 // pred_region
          %s1223 = ssub.s32 32, 32
          %1224 = vsyncadd [#allocation22], %s1223
          %s1225 = sshll.u32 [#allocation23], 4
          %s1226 = int_to_ptr.vmem [resolvable:$true] %s1225
          %1231 = dma.hbm_to_vmem [thread:$0]  %s69, 32, %s1226, [#allocation22], 16, 16, 1
        $region144: #{_lambda_.1} parent=11 // pred_fallthru
          _
        // Predicated region
        $region145: #{_lambda_.1} parent=11 // pred_check
          %p1232 = pneg %p868
        $region146: #{_lambda_.1} parent=11 // pred_check_branch
          %1234 = sbr.rel (%p1232) target = $region148
        $region147: #{_lambda_.1} parent=11 // pred_region
          %s1236 = ssub.s32 32, 32
          %1237 = vsyncadd [#allocation25], %s1236
          %s1238 = sshll.u32 [#allocation24], 4
          %s1239 = int_to_ptr.vmem [resolvable:$true] %s1238
          %1244 = dma.hbm_to_vmem [thread:$0]  %s71, 32, %s1239, [#allocation25], 16, 16, 1
        $region148: #{_lambda_.1} parent=11 // pred_fallthru
          _
        // Predicated region
        $region149: #{_lambda_.1} parent=11 // pred_check
          %p1245 = pneg %p889
        $region150: #{_lambda_.1} parent=11 // pred_check_branch
          %1247 = sbr.rel (%p1245) target = $region152
        $region151: #{_lambda_.1} parent=11 // pred_region
          _
        $region152: #{_lambda_.1} parent=11 // pred_fallthru
          _
        // Predicated region
        $region153: #{_lambda_.1} parent=11 // pred_check
          %p1248 = pneg %p910
        $region154: #{_lambda_.1} parent=11 // pred_check_branch
          %1250 = sbr.rel (%p1248) target = $region156
        $region155: #{_lambda_.1} parent=11 // pred_region
          _
        $region156: #{_lambda_.1} parent=11 // pred_fallthru
          _
      $region12: #{_lambda_.1} parent=5 // pred_fallthru
        _
      %p1251 = scmp.lt.s32.totalorder %s102, 2
      // Predicated region
      $region157: #{_lambda_.1} parent=5 // pred_check
        %p1252 = pneg %p1251
      $region158: #{_lambda_.1} parent=5 // pred_check_branch
        %1254 = sbr.rel (%p1252) target = $region160
      $region159: #{_lambda_.1} parent=5 // pred_region
        // Predicated region
        $region161: #{_lambda_.1} parent=159 // pred_check
          %p1255 = pneg %p122
        $region162: #{_lambda_.1} parent=159 // pred_check_branch
          %1257 = sbr.rel (%p1255) target = $region164
        $region163: #{_lambda_.1} parent=159 // pred_region
          %p1258 = scmp.lt.s32.totalorder %s102, 1
          %s1259 = scalar_select %p1258, %s102, 1
          %s1260 = smul.addr %s1259, 8
          %s1261 = scalar_lea.vmem %s1, %s1260
        $region164: #{_lambda_.1} parent=159 // pred_fallthru
          _
        // Predicated region
        $region165: #{_lambda_.1} parent=159 // pred_check
          %p1262 = pneg %p148
        $region166: #{_lambda_.1} parent=159 // pred_check_branch
          %1264 = sbr.rel (%p1262) target = $region168
        $region167: #{_lambda_.1} parent=159 // pred_region
          %p1265 = scmp.lt.s32.totalorder %s102, 1
          %s1266 = scalar_select %p1265, %s102, 1
          %s1267 = smul.addr %s1266, 8
          %s1268 = scalar_lea.vmem %s3, %s1267
        $region168: #{_lambda_.1} parent=159 // pred_fallthru
          _
      $region160: #{_lambda_.1} parent=5 // pred_fallthru
        _
      %p1269 = scmp.le.s32.totalorder 1, %s102
      %p1270 = scmp.lt.s32.totalorder %s102, 3
      %p1271 = pnand %p1269, %p1270
      %p1272 = pneg %p1271
      // Predicated region
      $region169: #{_lambda_.1} parent=5 // pred_check
        _
      $region170: #{_lambda_.1} parent=5 // pred_check_branch
        %1274 = sbr.rel (%p1271) target = $region172
      $region171: #{_lambda_.1} parent=5 // pred_region
        %s1275 = ssub.s32 %s102, 1
        // Predicated region
        $region173: #{_lambda_.1} parent=171 // pred_check
          %p1276 = pneg %p364
        $region174: #{_lambda_.1} parent=171 // pred_check_branch
          %1278 = sbr.rel (%p1276) target = $region176
        $region175: #{_lambda_.1} parent=171 // pred_region
          %1279 = dma.done [#allocation4], 32
        $region176: #{_lambda_.1} parent=171 // pred_fallthru
          _
        // Predicated region
        $region177: #{_lambda_.1} parent=171 // pred_check
          %p1280 = pneg %p490
        $region178: #{_lambda_.1} parent=171 // pred_check_branch
          %1282 = sbr.rel (%p1280) target = $region180
        $region179: #{_lambda_.1} parent=171 // pred_region
          %1283 = dma.done [#allocation7], 32
        $region180: #{_lambda_.1} parent=171 // pred_fallthru
          _
        // Predicated region
        $region181: #{_lambda_.1} parent=171 // pred_check
          %p1284 = pneg %p532
        $region182: #{_lambda_.1} parent=171 // pred_check_branch
          %1286 = sbr.rel (%p1284) target = $region184
        $region183: #{_lambda_.1} parent=171 // pred_region
          %1287 = dma.done [#allocation7], 32
        $region184: #{_lambda_.1} parent=171 // pred_fallthru
          _
        // Predicated region
        $region185: #{_lambda_.1} parent=171 // pred_check
          %p1288 = pneg %p553
        $region186: #{_lambda_.1} parent=171 // pred_check_branch
          %1290 = sbr.rel (%p1288) target = $region188
        $region187: #{_lambda_.1} parent=171 // pred_region
          %1291 = dma.done [#allocation10], 32
        $region188: #{_lambda_.1} parent=171 // pred_fallthru
          _
        // Predicated region
        $region189: #{_lambda_.1} parent=171 // pred_check
          %p1292 = pneg %p574
        $region190: #{_lambda_.1} parent=171 // pred_check_branch
          %1294 = sbr.rel (%p1292) target = $region192
        $region191: #{_lambda_.1} parent=171 // pred_region
          %1295 = dma.done [#allocation10], 32
        $region192: #{_lambda_.1} parent=171 // pred_fallthru
          _
        // Predicated region
        $region193: #{_lambda_.1} parent=171 // pred_check
          %p1296 = pneg %p616
        $region194: #{_lambda_.1} parent=171 // pred_check_branch
          %1298 = sbr.rel (%p1296) target = $region196
        $region195: #{_lambda_.1} parent=171 // pred_region
          %1299 = dma.done [#allocation13], 32
        $region196: #{_lambda_.1} parent=171 // pred_fallthru
          _
        // Predicated region
        $region197: #{_lambda_.1} parent=171 // pred_check
          %p1300 = pneg %p658
        $region198: #{_lambda_.1} parent=171 // pred_check_branch
          %1302 = sbr.rel (%p1300) target = $region200
        $region199: #{_lambda_.1} parent=171 // pred_region
          %1303 = dma.done [#allocation13], 32
        $region200: #{_lambda_.1} parent=171 // pred_fallthru
          _
        // Predicated region
        $region201: #{_lambda_.1} parent=171 // pred_check
          %p1304 = pneg %p700
        $region202: #{_lambda_.1} parent=171 // pred_check_branch
          %1306 = sbr.rel (%p1304) target = $region204
        $region203: #{_lambda_.1} parent=171 // pred_region
          %1307 = dma.done [#allocation16], 32
        $region204: #{_lambda_.1} parent=171 // pred_fallthru
          _
        // Predicated region
        $region205: #{_lambda_.1} parent=171 // pred_check
          %p1308 = pneg %p721
        $region206: #{_lambda_.1} parent=171 // pred_check_branch
          %1310 = sbr.rel (%p1308) target = $region208
        $region207: #{_lambda_.1} parent=171 // pred_region
          %1311 = dma.done [#allocation16], 32
        $region208: #{_lambda_.1} parent=171 // pred_fallthru
          _
        // Predicated region
        $region209: #{_lambda_.1} parent=171 // pred_check
          %p1312 = pneg %p742
        $region210: #{_lambda_.1} parent=171 // pred_check_branch
          %1314 = sbr.rel (%p1312) target = $region212
        $region211: #{_lambda_.1} parent=171 // pred_region
          %1315 = dma.done [#allocation19], 32
        $region212: #{_lambda_.1} parent=171 // pred_fallthru
          _
        // Predicated region
        $region213: #{_lambda_.1} parent=171 // pred_check
          %p1316 = pneg %p784
        $region214: #{_lambda_.1} parent=171 // pred_check_branch
          %1318 = sbr.rel (%p1316) target = $region216
        $region215: #{_lambda_.1} parent=171 // pred_region
          %1319 = dma.done [#allocation19], 32
        $region216: #{_lambda_.1} parent=171 // pred_fallthru
          _
        // Predicated region
        $region217: #{_lambda_.1} parent=171 // pred_check
          %p1320 = pneg %p826
        $region218: #{_lambda_.1} parent=171 // pred_check_branch
          %1322 = sbr.rel (%p1320) target = $region220
        $region219: #{_lambda_.1} parent=171 // pred_region
          %1323 = dma.done [#allocation22], 32
        $region220: #{_lambda_.1} parent=171 // pred_fallthru
          _
        // Predicated region
        $region221: #{_lambda_.1} parent=171 // pred_check
          %p1324 = pneg %p847
        $region222: #{_lambda_.1} parent=171 // pred_check_branch
          %1326 = sbr.rel (%p1324) target = $region224
        $region223: #{_lambda_.1} parent=171 // pred_region
          %1327 = dma.done [#allocation22], 32
        $region224: #{_lambda_.1} parent=171 // pred_fallthru
          _
        // Predicated region
        $region225: #{_lambda_.1} parent=171 // pred_check
          %p1328 = pneg %p868
        $region226: #{_lambda_.1} parent=171 // pred_check_branch
          %1330 = sbr.rel (%p1328) target = $region228
        $region227: #{_lambda_.1} parent=171 // pred_region
          %1331 = dma.done [#allocation25], 32
        $region228: #{_lambda_.1} parent=171 // pred_fallthru
          _
        %p1332 = scmp.lt.s32.totalorder %s107, 1
        %s1333 = scalar_select %p1332, %s107, 1
        %s1334 = smul.addr %s1333, 8
        %s1335 = scalar_lea.vmem %s1, %s1334
        %p1336 = pneg %p128
        %p1337 = pneg %p125
        %p1338 = scmp.lt.s32.totalorder %s107, 1
        %s1339 = scalar_select %p1338, %s107, 1
        %s1340 = smul.addr %s1339, 8
        %s1341 = scalar_lea.vmem %s3, %s1340
        %p1342 = pneg %p154
        %p1343 = pneg %p151
        %p1344 = pneg %p175
        %p1345 = pneg %p172
        %p1346 = pneg %p196
        %p1347 = pneg %p193
        %p1348 = pneg %p217
        %p1349 = pneg %p214
        %p1350 = pneg %p238
        %p1351 = pneg %p235
        %p1352 = pneg %p259
        %p1353 = pneg %p256
        %p1354 = pneg %p280
        %p1355 = pneg %p277
        %p1356 = pneg %p301
        %p1357 = pneg %p298
        %p1358 = pneg %p322
        %p1359 = pneg %p319
        %p1360 = pneg %p343
        %p1361 = pneg %p340
        %p1362 = pneg %p364
        %p1363 = pneg %p361
        %p1364 = pneg %p385
        %p1365 = pneg %p382
        %p1366 = pneg %p406
        %p1367 = pneg %p403
        %p1368 = pneg %p427
        %p1369 = pneg %p424
        %p1370 = pneg %p448
        %p1371 = pneg %p445
        %p1372 = pneg %p469
        %p1373 = pneg %p466
        %p1374 = pneg %p490
        %p1375 = pneg %p487
        %p1376 = pneg %p511
        %p1377 = pneg %p508
        %p1378 = pneg %p532
        %p1379 = pneg %p529
        %p1380 = pneg %p553
        %p1381 = pneg %p550
        %p1382 = pneg %p574
        %p1383 = pneg %p571
        %p1384 = pneg %p595
        %p1385 = pneg %p592
        %p1386 = pneg %p616
        %p1387 = pneg %p613
        %p1388 = pneg %p637
        %p1389 = pneg %p634
        %p1390 = pneg %p658
        %p1391 = pneg %p655
        %p1392 = pneg %p679
        %p1393 = pneg %p676
        %p1394 = pneg %p700
        %p1395 = pneg %p697
        %p1396 = pneg %p721
        %p1397 = pneg %p718
        %p1398 = pneg %p742
        %p1399 = pneg %p739
        %p1400 = pneg %p763
        %p1401 = pneg %p760
        %p1402 = pneg %p784
        %p1403 = pneg %p781
        %p1404 = pneg %p805
        %p1405 = pneg %p802
        %p1406 = pneg %p826
        %p1407 = pneg %p823
        %p1408 = pneg %p847
        %p1409 = pneg %p844
        %p1410 = pneg %p868
        %p1411 = pneg %p865
        %p1412 = pneg %p889
        %p1413 = pneg %p886
        %p1414 = pneg %p910
        %p1415 = pneg %p907
        %p1416 = pneg %p936
        %p1417 = pneg %p933
        %s1418 = sand.u32 %s923, 1
        %s1419 = scalar_lea.sflag [#allocation5], %s1418
        %s1420 = sand.u32 %s923, 1
        %s1421 = smul.addr %s1420, 8
        %s1422 = scalar_lea.vmem [#allocation26], %s1421
        %p1423 = pneg %p962
        %p1424 = pneg %p959
        %s1425 = sand.u32 %s107, 1
        %s1426 = scalar_lea.sflag [#allocation28], %s1425
        %s1427 = sand.u32 %s949, 1
        %s1428 = smul.addr %s1427, 32
        %s1429 = scalar_lea.vmem [#allocation27], %s1428
        %p1430 = pneg %p988
        %p1431 = pneg %p985
        %s1432 = sand.u32 %s107, 1
        %s1433 = scalar_lea.sflag [#allocation28], %s1432
        %s1434 = sand.u32 %s975, 1
        %s1435 = smul.addr %s1434, 32
        %s1436 = scalar_lea.vmem [#allocation29], %s1435
        %p1437 = scmp.lt.s32.totalorder %s107, 1
        %s1438 = scalar_select %p1437, %s107, 1
        %s1439 = smul.addr %s1438, 8
        %s1440 = scalar_lea.vmem %s1, %s1439
        %p1441 = scmp.lt.s32.totalorder %s107, 1
        %s1442 = scalar_select %p1441, %s107, 1
        %s1443 = smul.addr %s1442, 8
        %s1444 = scalar_lea.vmem %s3, %s1443
        %v1446 = vld [vmem:[%s1440] sm:$0xff]
        %v1447 = vlaneseq
        %v1448 = vand.u32 %v1447, 127
        %1449 = vset.pattern.permute.xlu0 0
        %1450 = vperm.xlu0 %1449, %v1446
        %v1451 = vpop.permute.xlu0 %1450
        %vm1452 = vcmp.eq.s32.totalorder %v1451, %v1448
        %v1453 = vsel %vm1452, 1.0, 0.0
        %v1454 = vld [vmem:[%s5] sm:$0xff]
        %v1455 = vld [vmem:[%s5 + $0x8] sm:$0xff]
        %v1456 = vld [vmem:[%s5 + $0x10] sm:$0xff]
        %v1457 = vld [vmem:[%s5 + $0x18] sm:$0xff]
        %v1458 = vld [vmem:[%s5 + $0x20] sm:$0xff]
        %v1459 = vld [vmem:[%s5 + $0x28] sm:$0xff]
        %v1460 = vld [vmem:[%s5 + $0x30] sm:$0xff]
        %vm1461 = vcmask 457728
        %v1463 = vsel %vm1461, %v1453, 0
        %1465 = vmatprep.subr.mxu0 0.0
        %1466 = vmatpush1.msra.mxu0 %v1454
        %1467 = vmatprep.subr.mxu0 0.0
        %1468 = vmatpush1.msra.mxu0 %v1455
        %1469 = vmatprep.subr.mxu0 0.0
        %1470 = vmatpush1.msra.mxu0 %v1456
        %1471 = vmatprep.subr.mxu0 0.0
        %1472 = vmatpush1.msra.mxu0 %v1457
        %1473 = vmatprep.subr.mxu0 0.0
        %1474 = vmatpush1.msra.mxu0 %v1458
        %1475 = vmatprep.subr.mxu0 0.0
        %1476 = vmatpush1.msra.mxu0 %v1459
        %1477 = vmatprep.subr.mxu0 0.0
        %1478 = vmatpush1.msra.mxu0 %v1460
        %1479 = vmatprep.subr.mxu0 0.0
        %1480 = vmatpush1.msra.mxu0 0.0
        %1481 = vmatprep.subr.mxu0 0.0
        %1482 = vmatpush1.msra.mxu0 0.0
        %1483 = vmatprep.subr.mxu0 0.0
        %1484 = vmatpush1.msra.mxu0 0.0
        %1485 = vmatprep.subr.mxu0 0.0
        %1486 = vmatpush1.msra.mxu0 0.0
        %1487 = vmatprep.subr.mxu0 0.0
        %1488 = vmatpush1.msra.mxu0 0.0
        %1489 = vmatprep.subr.mxu0 0.0
        %1490 = vmatpush1.msra.mxu0 0.0
        %1491 = vmatprep.subr.mxu0 0.0
        %1492 = vmatpush1.msra.mxu0 0.0
        %1493 = vmatprep.subr.mxu0 0.0
        %1494 = vmatpush1.msra.mxu0 0.0
        %1495 = vmatprep.subr.mxu0 0.0
        %1496 = vmatpush1.msra.mxu0 0.0
        %1497 = vmatprep.subr.mxu0 0.0
        %1498 = vmatpush1.msra.mxu0 0.0
        %1499 = vmatprep.subr.mxu0 0.0
        %1500 = vmatpush1.msra.mxu0 0.0
        %1501 = vmatprep.subr.mxu0 0.0
        %1502 = vmatpush1.msra.mxu0 0.0
        %1503 = vmatprep.subr.mxu0 0.0
        %1504 = vmatpush1.msra.mxu0 0.0
        %1505 = vmatprep.subr.mxu0 0.0
        %1506 = vmatpush1.msra.mxu0 0.0
        %1507 = vmatprep.subr.mxu0 0.0
        %1508 = vmatpush1.msra.mxu0 0.0
        %1509 = vmatprep.subr.mxu0 0.0
        %1510 = vmatpush1.msra.mxu0 0.0
        %1511 = vmatprep.subr.mxu0 0.0
        %1512 = vmatpush1.msra.mxu0 0.0
        %1513 = vmatprep.subr.mxu0 0.0
        %1514 = vmatpush1.msra.mxu0 0.0
        %1515 = vmatprep.subr.mxu0 0.0
        %1516 = vmatpush1.msra.mxu0 0.0
        %1517 = vmatprep.subr.mxu0 0.0
        %1518 = vmatpush1.msra.mxu0 0.0
        %1519 = vmatprep.subr.mxu0 0.0
        %1520 = vmatpush1.msra.mxu0 0.0
        %1521 = vmatprep.subr.mxu0 0.0
        %1522 = vmatpush1.msra.mxu0 0.0
        %1523 = vmatprep.subr.mxu0 0.0
        %1524 = vmatpush1.msra.mxu0 0.0
        %1525 = vmatprep.subr.mxu0 0.0
        %1526 = vmatpush1.msra.mxu0 0.0
        %1527 = vmatprep.subr.mxu0 0.0
        %1528 = vmatpush1.msra.mxu0 0.0
        %1529 = vmatprep.mubr.f32.mxu0 0.0
        %1530 = vmatmul.mubr.f32.gmra.mrb[0].mxu0 %v1463
        %v1531 = vpop.f32.mrb[0].mxu0
        %v1532 = vadd.f32 0.0, %v1531
        %v1533 = vpop.f32.mrb[0].mxu0
        %1534 = vdwg.mxu0
        %v1535 = vmul.f32 %v1532, 5.656854
        %v1536 = vld [vmem:[%s7] sm:$0xff]
        %v1537 = vadd.f32 %v1535, %v1536
        %v1538 = vld [vmem:[%s1444] sm:$0xff]
        %1539 = vset.pattern.permute.xlu0 0
        %1540 = vperm.xlu0 %1539, %v1538
        %v1541 = vpop.permute.xlu0 %1540
        %vm1542 = vcmp.eq.s32.totalorder %v1541, %v1448
        %v1543 = vsel %vm1542, 1.0, 0.0
        %v1545 = vsel %vm1461, %v1543, 0
        %1547 = vmatprep.subr.mxu0 0.0
        %1548 = vmatpush1.msra.mxu0 %v1454
        %1549 = vmatprep.subr.mxu0 0.0
        %1550 = vmatpush1.msra.mxu0 %v1455
        %1551 = vmatprep.subr.mxu0 0.0
        %1552 = vmatpush1.msra.mxu0 %v1456
        %1553 = vmatprep.subr.mxu0 0.0
        %1554 = vmatpush1.msra.mxu0 %v1457
        %1555 = vmatprep.subr.mxu0 0.0
        %1556 = vmatpush1.msra.mxu0 %v1458
        %1557 = vmatprep.subr.mxu0 0.0
        %1558 = vmatpush1.msra.mxu0 %v1459
        %1559 = vmatprep.subr.mxu0 0.0
        %1560 = vmatpush1.msra.mxu0 %v1460
        %1561 = vmatprep.subr.mxu0 0.0
        %1562 = vmatpush1.msra.mxu0 0.0
        %1563 = vmatprep.subr.mxu0 0.0
        %1564 = vmatpush1.msra.mxu0 0.0
        %1565 = vmatprep.subr.mxu0 0.0
        %1566 = vmatpush1.msra.mxu0 0.0
        %1567 = vmatprep.subr.mxu0 0.0
        %1568 = vmatpush1.msra.mxu0 0.0
        %1569 = vmatprep.subr.mxu0 0.0
        %1570 = vmatpush1.msra.mxu0 0.0
        %1571 = vmatprep.subr.mxu0 0.0
        %1572 = vmatpush1.msra.mxu0 0.0
        %1573 = vmatprep.subr.mxu0 0.0
        %1574 = vmatpush1.msra.mxu0 0.0
        %1575 = vmatprep.subr.mxu0 0.0
        %1576 = vmatpush1.msra.mxu0 0.0
        %1577 = vmatprep.subr.mxu0 0.0
        %1578 = vmatpush1.msra.mxu0 0.0
        %1579 = vmatprep.subr.mxu0 0.0
        %1580 = vmatpush1.msra.mxu0 0.0
        %1581 = vmatprep.subr.mxu0 0.0
        %1582 = vmatpush1.msra.mxu0 0.0
        %1583 = vmatprep.subr.mxu0 0.0
        %1584 = vmatpush1.msra.mxu0 0.0
        %1585 = vmatprep.subr.mxu0 0.0
        %1586 = vmatpush1.msra.mxu0 0.0
        %1587 = vmatprep.subr.mxu0 0.0
        %1588 = vmatpush1.msra.mxu0 0.0
        %1589 = vmatprep.subr.mxu0 0.0
        %1590 = vmatpush1.msra.mxu0 0.0
        %1591 = vmatprep.subr.mxu0 0.0
        %1592 = vmatpush1.msra.mxu0 0.0
        %1593 = vmatprep.subr.mxu0 0.0
        %1594 = vmatpush1.msra.mxu0 0.0
        %1595 = vmatprep.subr.mxu0 0.0
        %1596 = vmatpush1.msra.mxu0 0.0
        %1597 = vmatprep.subr.mxu0 0.0
        %1598 = vmatpush1.msra.mxu0 0.0
        %1599 = vmatprep.subr.mxu0 0.0
        %1600 = vmatpush1.msra.mxu0 0.0
        %1601 = vmatprep.subr.mxu0 0.0
        %1602 = vmatpush1.msra.mxu0 0.0
        %1603 = vmatprep.subr.mxu0 0.0
        %1604 = vmatpush1.msra.mxu0 0.0
        %1605 = vmatprep.subr.mxu0 0.0
        %1606 = vmatpush1.msra.mxu0 0.0
        %1607 = vmatprep.subr.mxu0 0.0
        %1608 = vmatpush1.msra.mxu0 0.0
        %1609 = vmatprep.subr.mxu0 0.0
        %1610 = vmatpush1.msra.mxu0 0.0
        %1611 = vmatprep.mubr.f32.mxu0 0.0
        %1612 = vmatmul.mubr.f32.gmra.mrb[0].mxu0 %v1545
        %v1613 = vpop.f32.mrb[0].mxu0
        %v1614 = vadd.f32 0.0, %v1613
        %v1615 = vpop.f32.mrb[0].mxu0
        %1616 = vdwg.mxu0
        %v1617 = vmul.f32 %v1614, 5.656854
        %v1618 = vadd.f32 %v1617, %v1536
        %v1619 = vld [vmem:[%s9] sm:$0xf]
        %v1620 = vld [vmem:[%s9 + $0x4] sm:$0xf]
        %v1621 = vld [vmem:[%s9 + $0x8] sm:$0xf]
        %v1622 = vld [vmem:[%s9 + $0xc] sm:$0xf]
        %v1623 = vld [vmem:[%s11] sm:$0x1]
        %v1624 = vpack.c.bf16 %v1537, %v1537
        %v1626 = vlaneseq
        %v1627 = vshrl.u32 %v1626, 7
        %v1628 = vsub.s32 0, %v1627
        %v1629 = vrot.slane %v1623, %v1628
        %v1635 = vunpack.c.l.b16 %v1619
        %v1636 = vunpack.c.l.b16 %v1620
        %v1637 = vunpack.c.l.b16 %v1621
        %v1638 = vunpack.c.l.b16 %v1622
        %v1639 = vpack.c.b16 %v1636, %v1635
        %v1640 = vpack.c.b16 %v1638, %v1637
        %vm1643 = vcmask 261120
        %v1645 = vsel %vm1643, %v1624, 0
        %1647 = vmatprep.subr.bf16.mxu0 0
        %1648 = vmatpush1.bf16.msra.mxu0 %v1639
        %1649 = vmatprep.subr.bf16.mxu0 0
        %1650 = vmatpush1.bf16.msra.mxu0 %v1640
        %1651 = vmatprep.subr.bf16.mxu0 0
        %1652 = vmatpush1.bf16.msra.mxu0 0
        %1653 = vmatprep.subr.bf16.mxu0 0
        %1654 = vmatpush1.bf16.msra.mxu0 0
        %1655 = vmatprep.subr.bf16.mxu0 0
        %1656 = vmatpush1.bf16.msra.mxu0 0
        %1657 = vmatprep.subr.bf16.mxu0 0
        %1658 = vmatpush1.bf16.msra.mxu0 0
        %1659 = vmatprep.subr.bf16.mxu0 0
        %1660 = vmatpush1.bf16.msra.mxu0 0
        %1661 = vmatprep.subr.bf16.mxu0 0
        %1662 = vmatpush1.bf16.msra.mxu0 0
        %1663 = vmatprep.subr.bf16.mxu0 0
        %1664 = vmatpush1.bf16.msra.mxu0 0
        %1665 = vmatprep.subr.bf16.mxu0 0
        %1666 = vmatpush1.bf16.msra.mxu0 0
        %1667 = vmatprep.subr.bf16.mxu0 0
        %1668 = vmatpush1.bf16.msra.mxu0 0
        %1669 = vmatprep.subr.bf16.mxu0 0
        %1670 = vmatpush1.bf16.msra.mxu0 0
        %1671 = vmatprep.subr.bf16.mxu0 0
        %1672 = vmatpush1.bf16.msra.mxu0 0
        %1673 = vmatprep.subr.bf16.mxu0 0
        %1674 = vmatpush1.bf16.msra.mxu0 0
        %1675 = vmatprep.subr.bf16.mxu0 0
        %1676 = vmatpush1.bf16.msra.mxu0 0
        %1677 = vmatprep.subr.bf16.mxu0 0
        %1678 = vmatpush1.bf16.msra.mxu0 0
        %1679 = vmatprep.mubr.bf16.mxu0 0
        %1680 = vmatmul.mubr.bf16.gmra.mrb[0].mxu0 %v1645
        %v1681 = vpop.f32.mrb[0].mxu0
        %v1682 = vadd.f32 %v1629, %v1681
        %v1683 = vpop.f32.mrb[0].mxu0
        %v1684 = vpop.f32.mrb[0].mxu0
        %v1685 = vpop.f32.mrb[0].mxu0
        %1686 = vdwg.mxu0
        %1688 = vrot.lane.b32.xlu0 %v1682, 96
        %v1689 = vpop.permute.xlu0 %1688
        %vm1690 = vcmask 64512
        %v1691 = vsel %vm1690, %v1682, 0
        %v1693 = vsel %vm1690, %v1689, 0
        %1695 = vmatprep.subr.mxu0 0.0
        %1696 = vmatpush1.xpose.msra.mxu0 %v1693
        %1697 = vmatprep.subr.mxu0 0.0
        %1698 = vmatpush1.xpose.msra.mxu0 0.0
        %1699 = vmatprep.subr.mxu0 0.0
        %1700 = vmatpush1.xpose.msra.mxu0 0.0
        %1701 = vmatprep.subr.mxu0 0.0
        %1702 = vmatpush1.xpose.msra.mxu0 0.0
        %1703 = vmatprep.subr.mxu0 0.0
        %1704 = vmatpush1.xpose.msra.mxu0 0.0
        %1705 = vmatprep.subr.mxu0 0.0
        %1706 = vmatpush1.xpose.msra.mxu0 0.0
        %1707 = vmatprep.subr.mxu0 0.0
        %1708 = vmatpush1.xpose.msra.mxu0 0.0
        %1709 = vmatprep.subr.mxu0 0.0
        %1710 = vmatpush1.xpose.msra.mxu0 0.0
        %1711 = vmatprep.subr.mxu0 0.0
        %1712 = vmatpush1.xpose.msra.mxu0 0.0
        %1713 = vmatprep.subr.mxu0 0.0
        %1714 = vmatpush1.xpose.msra.mxu0 0.0
        %1715 = vmatprep.subr.mxu0 0.0
        %1716 = vmatpush1.xpose.msra.mxu0 0.0
        %1717 = vmatprep.subr.mxu0 0.0
        %1718 = vmatpush1.xpose.msra.mxu0 0.0
        %1719 = vmatprep.subr.mxu0 0.0
        %1720 = vmatpush1.xpose.msra.mxu0 0.0
        %1721 = vmatprep.subr.mxu0 0.0
        %1722 = vmatpush1.xpose.msra.mxu0 0.0
        %1723 = vmatprep.subr.mxu0 0.0
        %1724 = vmatpush1.xpose.msra.mxu0 0.0
        %1725 = vmatprep.subr.mxu0 0.0
        %1726 = vmatpush1.xpose.msra.mxu0 0.0
        %1727 = vmatprep.subr.mxu0 0.0
        %1728 = vmatpush1.xpose.msra.mxu0 0.0
        %1729 = vmatprep.subr.mxu0 0.0
        %1730 = vmatpush1.xpose.msra.mxu0 0.0
        %1731 = vmatprep.subr.mxu0 0.0
        %1732 = vmatpush1.xpose.msra.mxu0 0.0
        %1733 = vmatprep.subr.mxu0 0.0
        %1734 = vmatpush1.xpose.msra.mxu0 0.0
        %1735 = vmatprep.subr.mxu0 0.0
        %1736 = vmatpush1.xpose.msra.mxu0 0.0
        %1737 = vmatprep.subr.mxu0 0.0
        %1738 = vmatpush1.xpose.msra.mxu0 0.0
        %1739 = vmatprep.subr.mxu0 0.0
        %1740 = vmatpush1.xpose.msra.mxu0 0.0
        %1741 = vmatprep.subr.mxu0 0.0
        %1742 = vmatpush1.xpose.msra.mxu0 0.0
        %1743 = vmatprep.subr.mxu0 0.0
        %1744 = vmatpush1.xpose.msra.mxu0 0.0
        %1745 = vmatprep.subr.mxu0 0.0
        %1746 = vmatpush1.xpose.msra.mxu0 0.0
        %1747 = vmatprep.subr.mxu0 0.0
        %1748 = vmatpush1.xpose.msra.mxu0 0.0
        %1749 = vmatprep.subr.mxu0 0.0
        %1750 = vmatpush1.xpose.msra.mxu0 0.0
        %1751 = vmatprep.subr.mxu0 0.0
        %1752 = vmatpush1.xpose.msra.mxu0 0.0
        %1753 = vmatprep.subr.mxu0 0.0
        %1754 = vmatpush1.xpose.msra.mxu0 0.0
        %1755 = vmatprep.subr.mxu0 0.0
        %1756 = vmatpush1.xpose.msra.mxu0 0.0
        %1757 = vmatprep.subr.mxu0 0.0
        %1758 = vmatpush1.xpose.msra.mxu0 0.0
        %1759 = vmatprep.mubr.f32.mxu0 0.0
        %1760 = vmatmul.mubr.f32.gmra.mrb[0].mxu0 %v1691
        %v1761 = vpop.f32.mrb[0].mxu0
        %v1762 = vadd.f32 0.0, %v1761
        %v1763 = vpop.f32.mrb[0].mxu0
        %1764 = vdwg.mxu0
        %v1765 = vmul.f32 %v1762, 0.35355338
        %v1766 = vsel %vm1690, %v1765, -inf
        %1767 = vmax.xlane.f32.xlu0 %v1766
        %v1768 = vpop.xlane.xlu0 %1767
        %v1769 = vsub.f32 %v1765, %v1768
        %v1770 = vmul.f32 %v1769, 1.442695
        %v1771 = vpow.pop %v1770
        %v1772 = vsel %vm1690, %v1771, 0.0
        %1773 = vadd.xlane.f32.xlu0 %v1772
        %v1774 = vpop.xlane.xlu0 %1773
        %v1775 = vrcp.pop %v1774
        %v1776 = vmul.f32 %v1771, %v1775
        %1777 = vrot.lane.b32.xlu0 %v1682, 64
        %v1778 = vpop.permute.xlu0 %1777
        %v1781 = vsel %vm1690, %v1776, 0
        %1783 = vmatprep.subr.mxu0 0.0
        %1784 = vmatpush1.msra.mxu0 %v1778
        %1785 = vmatprep.subr.mxu0 0.0
        %1786 = vmatpush1.msra.mxu0 0.0
        %1787 = vmatprep.subr.mxu0 0.0
        %1788 = vmatpush1.msra.mxu0 0.0
        %1789 = vmatprep.subr.mxu0 0.0
        %1790 = vmatpush1.msra.mxu0 0.0
        %1791 = vmatprep.subr.mxu0 0.0
        %1792 = vmatpush1.msra.mxu0 0.0
        %1793 = vmatprep.subr.mxu0 0.0
        %1794 = vmatpush1.msra.mxu0 0.0
        %1795 = vmatprep.subr.mxu0 0.0
        %1796 = vmatpush1.msra.mxu0 0.0
        %1797 = vmatprep.subr.mxu0 0.0
        %1798 = vmatpush1.msra.mxu0 0.0
        %1799 = vmatprep.subr.mxu0 0.0
        %1800 = vmatpush1.msra.mxu0 0.0
        %1801 = vmatprep.subr.mxu0 0.0
        %1802 = vmatpush1.msra.mxu0 0.0
        %1803 = vmatprep.subr.mxu0 0.0
        %1804 = vmatpush1.msra.mxu0 0.0
        %1805 = vmatprep.subr.mxu0 0.0
        %1806 = vmatpush1.msra.mxu0 0.0
        %1807 = vmatprep.subr.mxu0 0.0
        %1808 = vmatpush1.msra.mxu0 0.0
        %1809 = vmatprep.subr.mxu0 0.0
        %1810 = vmatpush1.msra.mxu0 0.0
        %1811 = vmatprep.subr.mxu0 0.0
        %1812 = vmatpush1.msra.mxu0 0.0
        %1813 = vmatprep.subr.mxu0 0.0
        %1814 = vmatpush1.msra.mxu0 0.0
        %1815 = vmatprep.subr.mxu0 0.0
        %1816 = vmatpush1.msra.mxu0 0.0
        %1817 = vmatprep.subr.mxu0 0.0
        %1818 = vmatpush1.msra.mxu0 0.0
        %1819 = vmatprep.subr.mxu0 0.0
        %1820 = vmatpush1.msra.mxu0 0.0
        %1821 = vmatprep.subr.mxu0 0.0
        %1822 = vmatpush1.msra.mxu0 0.0
        %1823 = vmatprep.subr.mxu0 0.0
        %1824 = vmatpush1.msra.mxu0 0.0
        %1825 = vmatprep.subr.mxu0 0.0
        %1826 = vmatpush1.msra.mxu0 0.0
        %1827 = vmatprep.subr.mxu0 0.0
        %1828 = vmatpush1.msra.mxu0 0.0
        %1829 = vmatprep.subr.mxu0 0.0
        %1830 = vmatpush1.msra.mxu0 0.0
        %1831 = vmatprep.subr.mxu0 0.0
        %1832 = vmatpush1.msra.mxu0 0.0
        %1833 = vmatprep.subr.mxu0 0.0
        %1834 = vmatpush1.msra.mxu0 0.0
        %1835 = vmatprep.subr.mxu0 0.0
        %1836 = vmatpush1.msra.mxu0 0.0
        %1837 = vmatprep.subr.mxu0 0.0
        %1838 = vmatpush1.msra.mxu0 0.0
        %1839 = vmatprep.subr.mxu0 0.0
        %1840 = vmatpush1.msra.mxu0 0.0
        %1841 = vmatprep.subr.mxu0 0.0
        %1842 = vmatpush1.msra.mxu0 0.0
        %1843 = vmatprep.subr.mxu0 0.0
        %1844 = vmatpush1.msra.mxu0 0.0
        %1845 = vmatprep.subr.mxu0 0.0
        %1846 = vmatpush1.msra.mxu0 0.0
        %1847 = vmatprep.mubr.f32.mxu0 0.0
        %1848 = vmatmul.mubr.f32.gmra.mrb[0].mxu0 %v1781
        %v1849 = vpop.f32.mrb[0].mxu0
        %v1850 = vadd.f32 0.0, %v1849
        %v1851 = vpop.f32.mrb[0].mxu0
        %1852 = vdwg.mxu0
        %1853 = vst.msk [vmem:[#allocation2] sm:$0xff] %vm1690, %v1850
        %1854 = vrot.lane.b32.xlu0 %v1682, 120
        %v1855 = vpop.permute.xlu0 %1854
        %1856 = vrot.lane.b32.xlu0 %v1682, 88
        %v1857 = vpop.permute.xlu0 %1856
        %v1858 = vsel %vm1690, %v1855, 0
        %v1860 = vsel %vm1690, %v1857, 0
        %1862 = vmatprep.subr.mxu0 0.0
        %1863 = vmatpush1.xpose.msra.mxu0 %v1860
        %1864 = vmatprep.subr.mxu0 0.0
        %1865 = vmatpush1.xpose.msra.mxu0 0.0
        %1866 = vmatprep.subr.mxu0 0.0
        %1867 = vmatpush1.xpose.msra.mxu0 0.0
        %1868 = vmatprep.subr.mxu0 0.0
        %1869 = vmatpush1.xpose.msra.mxu0 0.0
        %1870 = vmatprep.subr.mxu0 0.0
        %1871 = vmatpush1.xpose.msra.mxu0 0.0
        %1872 = vmatprep.subr.mxu0 0.0
        %1873 = vmatpush1.xpose.msra.mxu0 0.0
        %1874 = vmatprep.subr.mxu0 0.0
        %1875 = vmatpush1.xpose.msra.mxu0 0.0
        %1876 = vmatprep.subr.mxu0 0.0
        %1877 = vmatpush1.xpose.msra.mxu0 0.0
        %1878 = vmatprep.subr.mxu0 0.0
        %1879 = vmatpush1.xpose.msra.mxu0 0.0
        %1880 = vmatprep.subr.mxu0 0.0
        %1881 = vmatpush1.xpose.msra.mxu0 0.0
        %1882 = vmatprep.subr.mxu0 0.0
        %1883 = vmatpush1.xpose.msra.mxu0 0.0
        %1884 = vmatprep.subr.mxu0 0.0
        %1885 = vmatpush1.xpose.msra.mxu0 0.0
        %1886 = vmatprep.subr.mxu0 0.0
        %1887 = vmatpush1.xpose.msra.mxu0 0.0
        %1888 = vmatprep.subr.mxu0 0.0
        %1889 = vmatpush1.xpose.msra.mxu0 0.0
        %1890 = vmatprep.subr.mxu0 0.0
        %1891 = vmatpush1.xpose.msra.mxu0 0.0
        %1892 = vmatprep.subr.mxu0 0.0
        %1893 = vmatpush1.xpose.msra.mxu0 0.0
        %1894 = vmatprep.subr.mxu0 0.0
        %1895 = vmatpush1.xpose.msra.mxu0 0.0
        %1896 = vmatprep.subr.mxu0 0.0
        %1897 = vmatpush1.xpose.msra.mxu0 0.0
        %1898 = vmatprep.subr.mxu0 0.0
        %1899 = vmatpush1.xpose.msra.mxu0 0.0
        %1900 = vmatprep.subr.mxu0 0.0
        %1901 = vmatpush1.xpose.msra.mxu0 0.0
        %1902 = vmatprep.subr.mxu0 0.0
        %1903 = vmatpush1.xpose.msra.mxu0 0.0
        %1904 = vmatprep.subr.mxu0 0.0
        %1905 = vmatpush1.xpose.msra.mxu0 0.0
        %1906 = vmatprep.subr.mxu0 0.0
        %1907 = vmatpush1.xpose.msra.mxu0 0.0
        %1908 = vmatprep.subr.mxu0 0.0
        %1909 = vmatpush1.xpose.msra.mxu0 0.0
        %1910 = vmatprep.subr.mxu0 0.0
        %1911 = vmatpush1.xpose.msra.mxu0 0.0
        %1912 = vmatprep.subr.mxu0 0.0
        %1913 = vmatpush1.xpose.msra.mxu0 0.0
        %1914 = vmatprep.subr.mxu0 0.0
        %1915 = vmatpush1.xpose.msra.mxu0 0.0
        %1916 = vmatprep.subr.mxu0 0.0
        %1917 = vmatpush1.xpose.msra.mxu0 0.0
        %1918 = vmatprep.subr.mxu0 0.0
        %1919 = vmatpush1.xpose.msra.mxu0 0.0
        %1920 = vmatprep.subr.mxu0 0.0
        %1921 = vmatpush1.xpose.msra.mxu0 0.0
        %1922 = vmatprep.subr.mxu0 0.0
        %1923 = vmatpush1.xpose.msra.mxu0 0.0
        %1924 = vmatprep.subr.mxu0 0.0
        %1925 = vmatpush1.xpose.msra.mxu0 0.0
        %1926 = vmatprep.mubr.f32.mxu0 0.0
        %1927 = vmatmul.mubr.f32.gmra.mrb[0].mxu0 %v1858
        %v1928 = vpop.f32.mrb[0].mxu0
        %v1929 = vadd.f32 0.0, %v1928
        %v1930 = vpop.f32.mrb[0].mxu0
        %1931 = vdwg.mxu0
        %v1932 = vmul.f32 %v1929, 0.35355338
        %v1933 = vsel %vm1690, %v1932, -inf
        %1934 = vmax.xlane.f32.xlu0 %v1933
        %v1935 = vpop.xlane.xlu0 %1934
        %v1936 = vsub.f32 %v1932, %v1935
        %v1937 = vmul.f32 %v1936, 1.442695
        %v1938 = vpow.pop %v1937
        %v1939 = vsel %vm1690, %v1938, 0.0
        %1940 = vadd.xlane.f32.xlu0 %v1939
        %v1941 = vpop.xlane.xlu0 %1940
        %v1942 = vrcp.pop %v1941
        %v1943 = vmul.f32 %v1938, %v1942
        %1944 = vrot.lane.b32.xlu0 %v1682, 56
        %v1945 = vpop.permute.xlu0 %1944
        %v1948 = vsel %vm1690, %v1943, 0
        %1950 = vmatprep.subr.mxu0 0.0
        %1951 = vmatpush1.msra.mxu0 %v1945
        %1952 = vmatprep.subr.mxu0 0.0
        %1953 = vmatpush1.msra.mxu0 0.0
        %1954 = vmatprep.subr.mxu0 0.0
        %1955 = vmatpush1.msra.mxu0 0.0
        %1956 = vmatprep.subr.mxu0 0.0
        %1957 = vmatpush1.msra.mxu0 0.0
        %1958 = vmatprep.subr.mxu0 0.0
        %1959 = vmatpush1.msra.mxu0 0.0
        %1960 = vmatprep.subr.mxu0 0.0
        %1961 = vmatpush1.msra.mxu0 0.0
        %1962 = vmatprep.subr.mxu0 0.0
        %1963 = vmatpush1.msra.mxu0 0.0
        %1964 = vmatprep.subr.mxu0 0.0
        %1965 = vmatpush1.msra.mxu0 0.0
        %1966 = vmatprep.subr.mxu0 0.0
        %1967 = vmatpush1.msra.mxu0 0.0
        %1968 = vmatprep.subr.mxu0 0.0
        %1969 = vmatpush1.msra.mxu0 0.0
        %1970 = vmatprep.subr.mxu0 0.0
        %1971 = vmatpush1.msra.mxu0 0.0
        %1972 = vmatprep.subr.mxu0 0.0
        %1973 = vmatpush1.msra.mxu0 0.0
        %1974 = vmatprep.subr.mxu0 0.0
        %1975 = vmatpush1.msra.mxu0 0.0
        %1976 = vmatprep.subr.mxu0 0.0
        %1977 = vmatpush1.msra.mxu0 0.0
        %1978 = vmatprep.subr.mxu0 0.0
        %1979 = vmatpush1.msra.mxu0 0.0
        %1980 = vmatprep.subr.mxu0 0.0
        %1981 = vmatpush1.msra.mxu0 0.0
        %1982 = vmatprep.subr.mxu0 0.0
        %1983 = vmatpush1.msra.mxu0 0.0
        %1984 = vmatprep.subr.mxu0 0.0
        %1985 = vmatpush1.msra.mxu0 0.0
        %1986 = vmatprep.subr.mxu0 0.0
        %1987 = vmatpush1.msra.mxu0 0.0
        %1988 = vmatprep.subr.mxu0 0.0
        %1989 = vmatpush1.msra.mxu0 0.0
        %1990 = vmatprep.subr.mxu0 0.0
        %1991 = vmatpush1.msra.mxu0 0.0
        %1992 = vmatprep.subr.mxu0 0.0
        %1993 = vmatpush1.msra.mxu0 0.0
        %1994 = vmatprep.subr.mxu0 0.0
        %1995 = vmatpush1.msra.mxu0 0.0
        %1996 = vmatprep.subr.mxu0 0.0
        %1997 = vmatpush1.msra.mxu0 0.0
        %1998 = vmatprep.subr.mxu0 0.0
        %1999 = vmatpush1.msra.mxu0 0.0
        %2000 = vmatprep.subr.mxu0 0.0
        %2001 = vmatpush1.msra.mxu0 0.0
        %2002 = vmatprep.subr.mxu0 0.0
        %2003 = vmatpush1.msra.mxu0 0.0
        %2004 = vmatprep.subr.mxu0 0.0
        %2005 = vmatpush1.msra.mxu0 0.0
        %2006 = vmatprep.subr.mxu0 0.0
        %2007 = vmatpush1.msra.mxu0 0.0
        %2008 = vmatprep.subr.mxu0 0.0
        %2009 = vmatpush1.msra.mxu0 0.0
        %2010 = vmatprep.subr.mxu0 0.0
        %2011 = vmatpush1.msra.mxu0 0.0
        %2012 = vmatprep.subr.mxu0 0.0
        %2013 = vmatpush1.msra.mxu0 0.0
        %2014 = vmatprep.mubr.f32.mxu0 0.0
        %2015 = vmatmul.mubr.f32.gmra.mrb[0].mxu0 %v1948
        %v2016 = vpop.f32.mrb[0].mxu0
        %v2017 = vadd.f32 0.0, %v2016
        %v2018 = vpop.f32.mrb[0].mxu0
        %2019 = vdwg.mxu0
        %2021 = vrot.lane.b32.xlu0 %v2017, 8
        %v2022 = vpop.permute.xlu0 %2021
        %vm2024 = vcmask 130112
        %2025 = vst.msk [vmem:[#allocation2] sm:$0xff] %vm2024, %v2022
        %2026 = vrot.lane.b32.xlu0 %v1682, 112
        %v2027 = vpop.permute.xlu0 %2026
        %2028 = vrot.lane.b32.xlu0 %v1682, 80
        %v2029 = vpop.permute.xlu0 %2028
        %v2030 = vsel %vm1690, %v2027, 0
        %v2032 = vsel %vm1690, %v2029, 0
        %2034 = vmatprep.subr.mxu0 0.0
        %2035 = vmatpush1.xpose.msra.mxu0 %v2032
        %2036 = vmatprep.subr.mxu0 0.0
        %2037 = vmatpush1.xpose.msra.mxu0 0.0
        %2038 = vmatprep.subr.mxu0 0.0
        %2039 = vmatpush1.xpose.msra.mxu0 0.0
        %2040 = vmatprep.subr.mxu0 0.0
        %2041 = vmatpush1.xpose.msra.mxu0 0.0
        %2042 = vmatprep.subr.mxu0 0.0
        %2043 = vmatpush1.xpose.msra.mxu0 0.0
        %2044 = vmatprep.subr.mxu0 0.0
        %2045 = vmatpush1.xpose.msra.mxu0 0.0
        %2046 = vmatprep.subr.mxu0 0.0
        %2047 = vmatpush1.xpose.msra.mxu0 0.0
        %2048 = vmatprep.subr.mxu0 0.0
        %2049 = vmatpush1.xpose.msra.mxu0 0.0
        %2050 = vmatprep.subr.mxu0 0.0
        %2051 = vmatpush1.xpose.msra.mxu0 0.0
        %2052 = vmatprep.subr.mxu0 0.0
        %2053 = vmatpush1.xpose.msra.mxu0 0.0
        %2054 = vmatprep.subr.mxu0 0.0
        %2055 = vmatpush1.xpose.msra.mxu0 0.0
        %2056 = vmatprep.subr.mxu0 0.0
        %2057 = vmatpush1.xpose.msra.mxu0 0.0
        %2058 = vmatprep.subr.mxu0 0.0
        %2059 = vmatpush1.xpose.msra.mxu0 0.0
        %2060 = vmatprep.subr.mxu0 0.0
        %2061 = vmatpush1.xpose.msra.mxu0 0.0
        %2062 = vmatprep.subr.mxu0 0.0
        %2063 = vmatpush1.xpose.msra.mxu0 0.0
        %2064 = vmatprep.subr.mxu0 0.0
        %2065 = vmatpush1.xpose.msra.mxu0 0.0
        %2066 = vmatprep.subr.mxu0 0.0
        %2067 = vmatpush1.xpose.msra.mxu0 0.0
        %2068 = vmatprep.subr.mxu0 0.0
        %2069 = vmatpush1.xpose.msra.mxu0 0.0
        %2070 = vmatprep.subr.mxu0 0.0
        %2071 = vmatpush1.xpose.msra.mxu0 0.0
        %2072 = vmatprep.subr.mxu0 0.0
        %2073 = vmatpush1.xpose.msra.mxu0 0.0
        %2074 = vmatprep.subr.mxu0 0.0
        %2075 = vmatpush1.xpose.msra.mxu0 0.0
        %2076 = vmatprep.subr.mxu0 0.0
        %2077 = vmatpush1.xpose.msra.mxu0 0.0
        %2078 = vmatprep.subr.mxu0 0.0
        %2079 = vmatpush1.xpose.msra.mxu0 0.0
        %2080 = vmatprep.subr.mxu0 0.0
        %2081 = vmatpush1.xpose.msra.mxu0 0.0
        %2082 = vmatprep.subr.mxu0 0.0
        %2083 = vmatpush1.xpose.msra.mxu0 0.0
        %2084 = vmatprep.subr.mxu0 0.0
        %2085 = vmatpush1.xpose.msra.mxu0 0.0
        %2086 = vmatprep.subr.mxu0 0.0
        %2087 = vmatpush1.xpose.msra.mxu0 0.0
        %2088 = vmatprep.subr.mxu0 0.0
        %2089 = vmatpush1.xpose.msra.mxu0 0.0
        %2090 = vmatprep.subr.mxu0 0.0
        %2091 = vmatpush1.xpose.msra.mxu0 0.0
        %2092 = vmatprep.subr.mxu0 0.0
        %2093 = vmatpush1.xpose.msra.mxu0 0.0
        %2094 = vmatprep.subr.mxu0 0.0
        %2095 = vmatpush1.xpose.msra.mxu0 0.0
        %2096 = vmatprep.subr.mxu0 0.0
        %2097 = vmatpush1.xpose.msra.mxu0 0.0
        %2098 = vmatprep.mubr.f32.mxu0 0.0
        %2099 = vmatmul.mubr.f32.gmra.mrb[0].mxu0 %v2030
        %v2100 = vpop.f32.mrb[0].mxu0
        %v2101 = vadd.f32 0.0, %v2100
        %v2102 = vpop.f32.mrb[0].mxu0
        %2103 = vdwg.mxu0
        %v2104 = vmul.f32 %v2101, 0.35355338
        %v2105 = vsel %vm1690, %v2104, -inf
        %2106 = vmax.xlane.f32.xlu0 %v2105
        %v2107 = vpop.xlane.xlu0 %2106
        %v2108 = vsub.f32 %v2104, %v2107
        %v2109 = vmul.f32 %v2108, 1.442695
        %v2110 = vpow.pop %v2109
        %v2111 = vsel %vm1690, %v2110, 0.0
        %2112 = vadd.xlane.f32.xlu0 %v2111
        %v2113 = vpop.xlane.xlu0 %2112
        %v2114 = vrcp.pop %v2113
        %v2115 = vmul.f32 %v2110, %v2114
        %2116 = vrot.lane.b32.xlu0 %v1682, 48
        %v2117 = vpop.permute.xlu0 %2116
        %v2120 = vsel %vm1690, %v2115, 0
        %2122 = vmatprep.subr.mxu0 0.0
        %2123 = vmatpush1.msra.mxu0 %v2117
        %2124 = vmatprep.subr.mxu0 0.0
        %2125 = vmatpush1.msra.mxu0 0.0
        %2126 = vmatprep.subr.mxu0 0.0
        %2127 = vmatpush1.msra.mxu0 0.0
        %2128 = vmatprep.subr.mxu0 0.0
        %2129 = vmatpush1.msra.mxu0 0.0
        %2130 = vmatprep.subr.mxu0 0.0
        %2131 = vmatpush1.msra.mxu0 0.0
        %2132 = vmatprep.subr.mxu0 0.0
        %2133 = vmatpush1.msra.mxu0 0.0
        %2134 = vmatprep.subr.mxu0 0.0
        %2135 = vmatpush1.msra.mxu0 0.0
        %2136 = vmatprep.subr.mxu0 0.0
        %2137 = vmatpush1.msra.mxu0 0.0
        %2138 = vmatprep.subr.mxu0 0.0
        %2139 = vmatpush1.msra.mxu0 0.0
        %2140 = vmatprep.subr.mxu0 0.0
        %2141 = vmatpush1.msra.mxu0 0.0
        %2142 = vmatprep.subr.mxu0 0.0
        %2143 = vmatpush1.msra.mxu0 0.0
        %2144 = vmatprep.subr.mxu0 0.0
        %2145 = vmatpush1.msra.mxu0 0.0
        %2146 = vmatprep.subr.mxu0 0.0
        %2147 = vmatpush1.msra.mxu0 0.0
        %2148 = vmatprep.subr.mxu0 0.0
        %2149 = vmatpush1.msra.mxu0 0.0
        %2150 = vmatprep.subr.mxu0 0.0
        %2151 = vmatpush1.msra.mxu0 0.0
        %2152 = vmatprep.subr.mxu0 0.0
        %2153 = vmatpush1.msra.mxu0 0.0
        %2154 = vmatprep.subr.mxu0 0.0
        %2155 = vmatpush1.msra.mxu0 0.0
        %2156 = vmatprep.subr.mxu0 0.0
        %2157 = vmatpush1.msra.mxu0 0.0
        %2158 = vmatprep.subr.mxu0 0.0
        %2159 = vmatpush1.msra.mxu0 0.0
        %2160 = vmatprep.subr.mxu0 0.0
        %2161 = vmatpush1.msra.mxu0 0.0
        %2162 = vmatprep.subr.mxu0 0.0
        %2163 = vmatpush1.msra.mxu0 0.0
        %2164 = vmatprep.subr.mxu0 0.0
        %2165 = vmatpush1.msra.mxu0 0.0
        %2166 = vmatprep.subr.mxu0 0.0
        %2167 = vmatpush1.msra.mxu0 0.0
        %2168 = vmatprep.subr.mxu0 0.0
        %2169 = vmatpush1.msra.mxu0 0.0
        %2170 = vmatprep.subr.mxu0 0.0
        %2171 = vmatpush1.msra.mxu0 0.0
        %2172 = vmatprep.subr.mxu0 0.0
        %2173 = vmatpush1.msra.mxu0 0.0
        %2174 = vmatprep.subr.mxu0 0.0
        %2175 = vmatpush1.msra.mxu0 0.0
        %2176 = vmatprep.subr.mxu0 0.0
        %2177 = vmatpush1.msra.mxu0 0.0
        %2178 = vmatprep.subr.mxu0 0.0
        %2179 = vmatpush1.msra.mxu0 0.0
        %2180 = vmatprep.subr.mxu0 0.0
        %2181 = vmatpush1.msra.mxu0 0.0
        %2182 = vmatprep.subr.mxu0 0.0
        %2183 = vmatpush1.msra.mxu0 0.0
        %2184 = vmatprep.subr.mxu0 0.0
        %2185 = vmatpush1.msra.mxu0 0.0
        %2186 = vmatprep.mubr.f32.mxu0 0.0
        %2187 = vmatmul.mubr.f32.gmra.mrb[0].mxu0 %v2120
        %v2188 = vpop.f32.mrb[0].mxu0
        %v2189 = vadd.f32 0.0, %v2188
        %v2190 = vpop.f32.mrb[0].mxu0
        %2191 = vdwg.mxu0
        %2193 = vrot.lane.b32.xlu0 %v2189, 16
        %v2194 = vpop.permute.xlu0 %2193
        %vm2196 = vcmask 195712
        %2197 = vst.msk [vmem:[#allocation2] sm:$0xff] %vm2196, %v2194
        %2198 = vrot.lane.b32.xlu0 %v1682, 104
        %v2199 = vpop.permute.xlu0 %2198
        %2200 = vrot.lane.b32.xlu0 %v1682, 72
        %v2201 = vpop.permute.xlu0 %2200
        %v2202 = vsel %vm1690, %v2199, 0
        %v2204 = vsel %vm1690, %v2201, 0
        %2206 = vmatprep.subr.mxu0 0.0
        %2207 = vmatpush1.xpose.msra.mxu0 %v2204
        %2208 = vmatprep.subr.mxu0 0.0
        %2209 = vmatpush1.xpose.msra.mxu0 0.0
        %2210 = vmatprep.subr.mxu0 0.0
        %2211 = vmatpush1.xpose.msra.mxu0 0.0
        %2212 = vmatprep.subr.mxu0 0.0
        %2213 = vmatpush1.xpose.msra.mxu0 0.0
        %2214 = vmatprep.subr.mxu0 0.0
        %2215 = vmatpush1.xpose.msra.mxu0 0.0
        %2216 = vmatprep.subr.mxu0 0.0
        %2217 = vmatpush1.xpose.msra.mxu0 0.0
        %2218 = vmatprep.subr.mxu0 0.0
        %2219 = vmatpush1.xpose.msra.mxu0 0.0
        %2220 = vmatprep.subr.mxu0 0.0
        %2221 = vmatpush1.xpose.msra.mxu0 0.0
        %2222 = vmatprep.subr.mxu0 0.0
        %2223 = vmatpush1.xpose.msra.mxu0 0.0
        %2224 = vmatprep.subr.mxu0 0.0
        %2225 = vmatpush1.xpose.msra.mxu0 0.0
        %2226 = vmatprep.subr.mxu0 0.0
        %2227 = vmatpush1.xpose.msra.mxu0 0.0
        %2228 = vmatprep.subr.mxu0 0.0
        %2229 = vmatpush1.xpose.msra.mxu0 0.0
        %2230 = vmatprep.subr.mxu0 0.0
        %2231 = vmatpush1.xpose.msra.mxu0 0.0
        %2232 = vmatprep.subr.mxu0 0.0
        %2233 = vmatpush1.xpose.msra.mxu0 0.0
        %2234 = vmatprep.subr.mxu0 0.0
        %2235 = vmatpush1.xpose.msra.mxu0 0.0
        %2236 = vmatprep.subr.mxu0 0.0
        %2237 = vmatpush1.xpose.msra.mxu0 0.0
        %2238 = vmatprep.subr.mxu0 0.0
        %2239 = vmatpush1.xpose.msra.mxu0 0.0
        %2240 = vmatprep.subr.mxu0 0.0
        %2241 = vmatpush1.xpose.msra.mxu0 0.0
        %2242 = vmatprep.subr.mxu0 0.0
        %2243 = vmatpush1.xpose.msra.mxu0 0.0
        %2244 = vmatprep.subr.mxu0 0.0
        %2245 = vmatpush1.xpose.msra.mxu0 0.0
        %2246 = vmatprep.subr.mxu0 0.0
        %2247 = vmatpush1.xpose.msra.mxu0 0.0
        %2248 = vmatprep.subr.mxu0 0.0
        %2249 = vmatpush1.xpose.msra.mxu0 0.0
        %2250 = vmatprep.subr.mxu0 0.0
        %2251 = vmatpush1.xpose.msra.mxu0 0.0
        %2252 = vmatprep.subr.mxu0 0.0
        %2253 = vmatpush1.xpose.msra.mxu0 0.0
        %2254 = vmatprep.subr.mxu0 0.0
        %2255 = vmatpush1.xpose.msra.mxu0 0.0
        %2256 = vmatprep.subr.mxu0 0.0
        %2257 = vmatpush1.xpose.msra.mxu0 0.0
        %2258 = vmatprep.subr.mxu0 0.0
        %2259 = vmatpush1.xpose.msra.mxu0 0.0
        %2260 = vmatprep.subr.mxu0 0.0
        %2261 = vmatpush1.xpose.msra.mxu0 0.0
        %2262 = vmatprep.subr.mxu0 0.0
        %2263 = vmatpush1.xpose.msra.mxu0 0.0
        %2264 = vmatprep.subr.mxu0 0.0
        %2265 = vmatpush1.xpose.msra.mxu0 0.0
        %2266 = vmatprep.subr.mxu0 0.0
        %2267 = vmatpush1.xpose.msra.mxu0 0.0
        %2268 = vmatprep.subr.mxu0 0.0
        %2269 = vmatpush1.xpose.msra.mxu0 0.0
        %2270 = vmatprep.mubr.f32.mxu0 0.0
        %2271 = vmatmul.mubr.f32.gmra.mrb[0].mxu0 %v2202
        %v2272 = vpop.f32.mrb[0].mxu0
        %v2273 = vadd.f32 0.0, %v2272
        %v2274 = vpop.f32.mrb[0].mxu0
        %2275 = vdwg.mxu0
        %v2276 = vmul.f32 %v2273, 0.35355338
        %v2277 = vsel %vm1690, %v2276, -inf
        %2278 = vmax.xlane.f32.xlu0 %v2277
        %v2279 = vpop.xlane.xlu0 %2278
        %v2280 = vsub.f32 %v2276, %v2279
        %v2281 = vmul.f32 %v2280, 1.442695
        %v2282 = vpow.pop %v2281
        %v2283 = vsel %vm1690, %v2282, 0.0
        %2284 = vadd.xlane.f32.xlu0 %v2283
        %v2285 = vpop.xlane.xlu0 %2284
        %v2286 = vrcp.pop %v2285
        %v2287 = vmul.f32 %v2282, %v2286
        %2288 = vrot.lane.b32.xlu0 %v1682, 40
        %v2289 = vpop.permute.xlu0 %2288
        %v2292 = vsel %vm1690, %v2287, 0
        %2294 = vmatprep.subr.mxu0 0.0
        %2295 = vmatpush1.msra.mxu0 %v2289
        %2296 = vmatprep.subr.mxu0 0.0
        %2297 = vmatpush1.msra.mxu0 0.0
        %2298 = vmatprep.subr.mxu0 0.0
        %2299 = vmatpush1.msra.mxu0 0.0
        %2300 = vmatprep.subr.mxu0 0.0
        %2301 = vmatpush1.msra.mxu0 0.0
        %2302 = vmatprep.subr.mxu0 0.0
        %2303 = vmatpush1.msra.mxu0 0.0
        %2304 = vmatprep.subr.mxu0 0.0
        %2305 = vmatpush1.msra.mxu0 0.0
        %2306 = vmatprep.subr.mxu0 0.0
        %2307 = vmatpush1.msra.mxu0 0.0
        %2308 = vmatprep.subr.mxu0 0.0
        %2309 = vmatpush1.msra.mxu0 0.0
        %2310 = vmatprep.subr.mxu0 0.0
        %2311 = vmatpush1.msra.mxu0 0.0
        %2312 = vmatprep.subr.mxu0 0.0
        %2313 = vmatpush1.msra.mxu0 0.0
        %2314 = vmatprep.subr.mxu0 0.0
        %2315 = vmatpush1.msra.mxu0 0.0
        %2316 = vmatprep.subr.mxu0 0.0
        %2317 = vmatpush1.msra.mxu0 0.0
        %2318 = vmatprep.subr.mxu0 0.0
        %2319 = vmatpush1.msra.mxu0 0.0
        %2320 = vmatprep.subr.mxu0 0.0
        %2321 = vmatpush1.msra.mxu0 0.0
        %2322 = vmatprep.subr.mxu0 0.0
        %2323 = vmatpush1.msra.mxu0 0.0
        %2324 = vmatprep.subr.mxu0 0.0
        %2325 = vmatpush1.msra.mxu0 0.0
        %2326 = vmatprep.subr.mxu0 0.0
        %2327 = vmatpush1.msra.mxu0 0.0
        %2328 = vmatprep.subr.mxu0 0.0
        %2329 = vmatpush1.msra.mxu0 0.0
        %2330 = vmatprep.subr.mxu0 0.0
        %2331 = vmatpush1.msra.mxu0 0.0
        %2332 = vmatprep.subr.mxu0 0.0
        %2333 = vmatpush1.msra.mxu0 0.0
        %2334 = vmatprep.subr.mxu0 0.0
        %2335 = vmatpush1.msra.mxu0 0.0
        %2336 = vmatprep.subr.mxu0 0.0
        %2337 = vmatpush1.msra.mxu0 0.0
        %2338 = vmatprep.subr.mxu0 0.0
        %2339 = vmatpush1.msra.mxu0 0.0
        %2340 = vmatprep.subr.mxu0 0.0
        %2341 = vmatpush1.msra.mxu0 0.0
        %2342 = vmatprep.subr.mxu0 0.0
        %2343 = vmatpush1.msra.mxu0 0.0
        %2344 = vmatprep.subr.mxu0 0.0
        %2345 = vmatpush1.msra.mxu0 0.0
        %2346 = vmatprep.subr.mxu0 0.0
        %2347 = vmatpush1.msra.mxu0 0.0
        %2348 = vmatprep.subr.mxu0 0.0
        %2349 = vmatpush1.msra.mxu0 0.0
        %2350 = vmatprep.subr.mxu0 0.0
        %2351 = vmatpush1.msra.mxu0 0.0
        %2352 = vmatprep.subr.mxu0 0.0
        %2353 = vmatpush1.msra.mxu0 0.0
        %2354 = vmatprep.subr.mxu0 0.0
        %2355 = vmatpush1.msra.mxu0 0.0
        %2356 = vmatprep.subr.mxu0 0.0
        %2357 = vmatpush1.msra.mxu0 0.0
        %2358 = vmatprep.mubr.f32.mxu0 0.0
        %2359 = vmatmul.mubr.f32.gmra.mrb[0].mxu0 %v2292
        %v2360 = vpop.f32.mrb[0].mxu0
        %v2361 = vadd.f32 0.0, %v2360
        %v2362 = vpop.f32.mrb[0].mxu0
        %2363 = vdwg.mxu0
        %2365 = vrot.lane.b32.xlu0 %v2361, 24
        %v2366 = vpop.permute.xlu0 %2365
        %vm2368 = vcmask 261312
        %2369 = vst.msk [vmem:[#allocation2] sm:$0xff] %vm2368, %v2366
        %v2370 = vld [vmem:[#allocation2] sm:$0xff]
        %v2371 = vld [vmem:[%s13] sm:$0xf]
        %v2372 = vld [vmem:[%s13 + $0x4] sm:$0xf]
        %v2373 = vld [vmem:[%s13 + $0x8] sm:$0xf]
        %v2374 = vld [vmem:[%s13 + $0xc] sm:$0xf]
        %v2375 = vld [vmem:[%s15] sm:$0x1]
        %v2376 = vpack.c.bf16 %v2370, %v2370
        %v2378 = vlaneseq
        %v2379 = vshrl.u32 %v2378, 7
        %v2380 = vsub.s32 0, %v2379
        %v2381 = vrot.slane %v2375, %v2380
        %v2387 = vunpack.c.l.b16 %v2371
        %v2388 = vunpack.c.l.b16 %v2372
        %v2389 = vunpack.c.l.b16 %v2373
        %v2390 = vunpack.c.l.b16 %v2374
        %v2391 = vpack.c.b16 %v2388, %v2387
        %v2392 = vpack.c.b16 %v2390, %v2389
        %v2396 = vsel %vm1643, %v2376, 0
        %2398 = vmatprep.subr.bf16.mxu0 0
        %2399 = vmatpush1.bf16.msra.mxu0 %v2391
        %2400 = vmatprep.subr.bf16.mxu0 0
        %2401 = vmatpush1.bf16.msra.mxu0 %v2392
        %2402 = vmatprep.subr.bf16.mxu0 0
        %2403 = vmatpush1.bf16.msra.mxu0 0
        %2404 = vmatprep.subr.bf16.mxu0 0
        %2405 = vmatpush1.bf16.msra.mxu0 0
        %2406 = vmatprep.subr.bf16.mxu0 0
        %2407 = vmatpush1.bf16.msra.mxu0 0
        %2408 = vmatprep.subr.bf16.mxu0 0
        %2409 = vmatpush1.bf16.msra.mxu0 0
        %2410 = vmatprep.subr.bf16.mxu0 0
        %2411 = vmatpush1.bf16.msra.mxu0 0
        %2412 = vmatprep.subr.bf16.mxu0 0
        %2413 = vmatpush1.bf16.msra.mxu0 0
        %2414 = vmatprep.subr.bf16.mxu0 0
        %2415 = vmatpush1.bf16.msra.mxu0 0
        %2416 = vmatprep.subr.bf16.mxu0 0
        %2417 = vmatpush1.bf16.msra.mxu0 0
        %2418 = vmatprep.subr.bf16.mxu0 0
        %2419 = vmatpush1.bf16.msra.mxu0 0
        %2420 = vmatprep.subr.bf16.mxu0 0
        %2421 = vmatpush1.bf16.msra.mxu0 0
        %2422 = vmatprep.subr.bf16.mxu0 0
        %2423 = vmatpush1.bf16.msra.mxu0 0
        %2424 = vmatprep.subr.bf16.mxu0 0
        %2425 = vmatpush1.bf16.msra.mxu0 0
        %2426 = vmatprep.subr.bf16.mxu0 0
        %2427 = vmatpush1.bf16.msra.mxu0 0
        %2428 = vmatprep.subr.bf16.mxu0 0
        %2429 = vmatpush1.bf16.msra.mxu0 0
        %2430 = vmatprep.mubr.bf16.mxu0 0
        %2431 = vmatmul.mubr.bf16.gmra.mrb[0].mxu0 %v2396
        %v2432 = vpop.f32.mrb[0].mxu0
        %v2433 = vadd.f32 %v2381, %v2432
        %v2434 = vpop.f32.mrb[0].mxu0
        %v2435 = vpop.f32.mrb[0].mxu0
        %v2436 = vpop.f32.mrb[0].mxu0
        %2437 = vdwg.mxu0
        %v2438 = vadd.f32 %v1537, %v2433
        %v2439 = vld [vmem:[%s17] sm:$0x1]
        %v2440 = vld [vmem:[%s19] sm:$0x1]
        %v2441 = vsel %vm1643, %v2438, 0.0
        %2442 = vadd.xlane.f32.xlu0 %v2441
        %v2443 = vpop.xlane.xlu0 %2442
        %v2444 = vrcp.pop 32.0
        %v2445 = vmul.f32 %v2443, %v2444
        %v2446 = vsub.f32 %v2438, %v2445
        %v2447 = vmul.f32 %v2446, %v2446
        %v2448 = vsel %vm1643, %v2447, 0.0
        %2449 = vadd.xlane.f32.xlu0 %v2448
        %v2450 = vpop.xlane.xlu0 %2449
        %v2451 = vmul.f32 %v2450, %v2444
        %v2452 = vadd.f32 %v2451, 1e-05
        %v2453 = vrsqrt.pop %v2452
        %v2454 = vmul.f32 %v2446, %v2453
        %v2456 = vlaneseq
        %v2457 = vshrl.u32 %v2456, 7
        %v2458 = vsub.s32 0, %v2457
        %v2459 = vrot.slane %v2439, %v2458
        %v2461 = vmul.f32 %v2454, %v2459
        %v2463 = vlaneseq
        %v2464 = vshrl.u32 %v2463, 7
        %v2465 = vsub.s32 0, %v2464
        %v2466 = vrot.slane %v2440, %v2465
        %v2468 = vadd.f32 %v2461, %v2466
        %v2469 = vld [vmem:[%s21] sm:$0xf]
        %v2470 = vld [vmem:[%s21 + $0x4] sm:$0xf]
        %v2471 = vld [vmem:[%s21 + $0x8] sm:$0xf]
        %v2472 = vld [vmem:[%s21 + $0xc] sm:$0xf]
        %v2473 = vld [vmem:[#allocation3] sm:$0x1]
        %v2474 = vpack.c.bf16 %v2468, %v2468
        %v2476 = vlaneseq
        %v2477 = vshrl.u32 %v2476, 7
        %v2478 = vsub.s32 0, %v2477
        %v2479 = vrot.slane %v2473, %v2478
        %v2485 = vunpack.c.l.b16 %v2469
        %v2486 = vunpack.c.l.b16 %v2470
        %v2487 = vunpack.c.l.b16 %v2471
        %v2488 = vunpack.c.l.b16 %v2472
        %v2489 = vpack.c.b16 %v2486, %v2485
        %v2490 = vpack.c.b16 %v2488, %v2487
        %v2494 = vsel %vm1643, %v2474, 0
        %2496 = vmatprep.subr.bf16.mxu0 0
        %2497 = vmatpush1.bf16.msra.mxu0 %v2489
        %2498 = vmatprep.subr.bf16.mxu0 0
        %2499 = vmatpush1.bf16.msra.mxu0 %v2490
        %2500 = vmatprep.subr.bf16.mxu0 0
        %2501 = vmatpush1.bf16.msra.mxu0 0
        %2502 = vmatprep.subr.bf16.mxu0 0
        %2503 = vmatpush1.bf16.msra.mxu0 0
        %2504 = vmatprep.subr.bf16.mxu0 0
        %2505 = vmatpush1.bf16.msra.mxu0 0
        %2506 = vmatprep.subr.bf16.mxu0 0
        %2507 = vmatpush1.bf16.msra.mxu0 0
        %2508 = vmatprep.subr.bf16.mxu0 0
        %2509 = vmatpush1.bf16.msra.mxu0 0
        %2510 = vmatprep.subr.bf16.mxu0 0
        %2511 = vmatpush1.bf16.msra.mxu0 0
        %2512 = vmatprep.subr.bf16.mxu0 0
        %2513 = vmatpush1.bf16.msra.mxu0 0
        %2514 = vmatprep.subr.bf16.mxu0 0
        %2515 = vmatpush1.bf16.msra.mxu0 0
        %2516 = vmatprep.subr.bf16.mxu0 0
        %2517 = vmatpush1.bf16.msra.mxu0 0
        %2518 = vmatprep.subr.bf16.mxu0 0
        %2519 = vmatpush1.bf16.msra.mxu0 0
        %2520 = vmatprep.subr.bf16.mxu0 0
        %2521 = vmatpush1.bf16.msra.mxu0 0
        %2522 = vmatprep.subr.bf16.mxu0 0
        %2523 = vmatpush1.bf16.msra.mxu0 0
        %2524 = vmatprep.subr.bf16.mxu0 0
        %2525 = vmatpush1.bf16.msra.mxu0 0
        %2526 = vmatprep.subr.bf16.mxu0 0
        %2527 = vmatpush1.bf16.msra.mxu0 0
        %2528 = vmatprep.mubr.bf16.mxu0 0
        %2529 = vmatmul.mubr.bf16.gmra.mrb[0].mxu0 %v2494
        %v2530 = vpop.f32.mrb[0].mxu0
        %v2531 = vadd.f32 %v2479, %v2530
        %v2532 = vpop.f32.mrb[0].mxu0
        %v2533 = vpop.f32.mrb[0].mxu0
        %v2534 = vpop.f32.mrb[0].mxu0
        %2535 = vdwg.mxu0
        %v2536 = vmax.f32 %v2531, 0.0
        %v2537 = vld [vmem:[%s25] sm:$0xf]
        %v2538 = vld [vmem:[%s25 + $0x4] sm:$0xf]
        %v2539 = vld [vmem:[%s25 + $0x8] sm:$0xf]
        %v2540 = vld [vmem:[%s25 + $0xc] sm:$0xf]
        %v2541 = vld [vmem:[%s25 + $0x10] sm:$0xf]
        %v2542 = vld [vmem:[%s25 + $0x14] sm:$0xf]
        %v2543 = vld [vmem:[%s25 + $0x18] sm:$0xf]
        %v2544 = vld [vmem:[%s25 + $0x1c] sm:$0xf]
        %v2545 = vld [vmem:[%s27] sm:$0x1]
        %v2546 = vpack.c.bf16 %v2536, %v2536
        %v2548 = vlaneseq
        %v2549 = vshrl.u32 %v2548, 7
        %v2550 = vsub.s32 0, %v2549
        %v2551 = vrot.slane %v2545, %v2550
        %v2561 = vunpack.c.l.b16 %v2537
        %v2562 = vunpack.c.l.b16 %v2538
        %v2563 = vunpack.c.l.b16 %v2539
        %v2564 = vunpack.c.l.b16 %v2540
        %v2565 = vunpack.c.l.b16 %v2541
        %v2566 = vunpack.c.l.b16 %v2542
        %v2567 = vunpack.c.l.b16 %v2543
        %v2568 = vunpack.c.l.b16 %v2544
        %v2569 = vpack.c.b16 %v2562, %v2561
        %v2570 = vpack.c.b16 %v2564, %v2563
        %v2571 = vpack.c.b16 %v2566, %v2565
        %v2572 = vpack.c.b16 %v2568, %v2567
        %vm2577 = vcmask 523264
        %v2579 = vsel %vm2577, %v2546, 0
        %2581 = vmatprep.subr.bf16.mxu0 0
        %2582 = vmatpush1.bf16.msra.mxu0 %v2569
        %2583 = vmatprep.subr.bf16.mxu0 0
        %2584 = vmatpush1.bf16.msra.mxu0 %v2570
        %2585 = vmatprep.subr.bf16.mxu0 0
        %2586 = vmatpush1.bf16.msra.mxu0 %v2571
        %2587 = vmatprep.subr.bf16.mxu0 0
        %2588 = vmatpush1.bf16.msra.mxu0 %v2572
        %2589 = vmatprep.subr.bf16.mxu0 0
        %2590 = vmatpush1.bf16.msra.mxu0 0
        %2591 = vmatprep.subr.bf16.mxu0 0
        %2592 = vmatpush1.bf16.msra.mxu0 0
        %2593 = vmatprep.subr.bf16.mxu0 0
        %2594 = vmatpush1.bf16.msra.mxu0 0
        %2595 = vmatprep.subr.bf16.mxu0 0
        %2596 = vmatpush1.bf16.msra.mxu0 0
        %2597 = vmatprep.subr.bf16.mxu0 0
        %2598 = vmatpush1.bf16.msra.mxu0 0
        %2599 = vmatprep.subr.bf16.mxu0 0
        %2600 = vmatpush1.bf16.msra.mxu0 0
        %2601 = vmatprep.subr.bf16.mxu0 0
        %2602 = vmatpush1.bf16.msra.mxu0 0
        %2603 = vmatprep.subr.bf16.mxu0 0
        %2604 = vmatpush1.bf16.msra.mxu0 0
        %2605 = vmatprep.subr.bf16.mxu0 0
        %2606 = vmatpush1.bf16.msra.mxu0 0
        %2607 = vmatprep.subr.bf16.mxu0 0
        %2608 = vmatpush1.bf16.msra.mxu0 0
        %2609 = vmatprep.subr.bf16.mxu0 0
        %2610 = vmatpush1.bf16.msra.mxu0 0
        %2611 = vmatprep.subr.bf16.mxu0 0
        %2612 = vmatpush1.bf16.msra.mxu0 0
        %2613 = vmatprep.mubr.bf16.mxu0 0
        %2614 = vmatmul.mubr.bf16.gmra.mrb[0].mxu0 %v2579
        %v2615 = vpop.f32.mrb[0].mxu0
        %v2616 = vadd.f32 %v2551, %v2615
        %v2617 = vpop.f32.mrb[0].mxu0
        %v2618 = vpop.f32.mrb[0].mxu0
        %v2619 = vpop.f32.mrb[0].mxu0
        %2620 = vdwg.mxu0
        %v2621 = vadd.f32 %v2468, %v2616
        %v2622 = vld [vmem:[%s29] sm:$0x1]
        %v2623 = vld [vmem:[%s31] sm:$0x1]
        %v2624 = vsel %vm1643, %v2621, 0.0
        %2625 = vadd.xlane.f32.xlu0 %v2624
        %v2626 = vpop.xlane.xlu0 %2625
        %v2627 = vmul.f32 %v2626, %v2444
        %v2628 = vsub.f32 %v2621, %v2627
        %v2629 = vmul.f32 %v2628, %v2628
        %v2630 = vsel %vm1643, %v2629, 0.0
        %2631 = vadd.xlane.f32.xlu0 %v2630
        %v2632 = vpop.xlane.xlu0 %2631
        %v2633 = vmul.f32 %v2632, %v2444
        %v2634 = vadd.f32 %v2633, 1e-05
        %v2635 = vrsqrt.pop %v2634
        %v2636 = vmul.f32 %v2628, %v2635
        %v2638 = vlaneseq
        %v2639 = vshrl.u32 %v2638, 7
        %v2640 = vsub.s32 0, %v2639
        %v2641 = vrot.slane %v2622, %v2640
        %v2643 = vmul.f32 %v2636, %v2641
        %v2645 = vlaneseq
        %v2646 = vshrl.u32 %v2645, 7
        %v2647 = vsub.s32 0, %v2646
        %v2648 = vrot.slane %v2623, %v2647
        %v2650 = vadd.f32 %v2643, %v2648
        %s2651 = scalar_lea.vmem %s9, 16
        %v2652 = vld [vmem:[%s2651] sm:$0xf]
        %v2653 = vld [vmem:[%s2651 + $0x4] sm:$0xf]
        %v2654 = vld [vmem:[%s2651 + $0x8] sm:$0xf]
        %v2655 = vld [vmem:[%s2651 + $0xc] sm:$0xf]
        %s2656 = scalar_lea.vmem %s11, 1
        %v2657 = vld [vmem:[%s2656] sm:$0x1]
        %v2658 = vpack.c.bf16 %v2650, %v2650
        %v2660 = vlaneseq
        %v2661 = vshrl.u32 %v2660, 7
        %v2662 = vsub.s32 0, %v2661
        %v2663 = vrot.slane %v2657, %v2662
        %v2669 = vunpack.c.l.b16 %v2652
        %v2670 = vunpack.c.l.b16 %v2653
        %v2671 = vunpack.c.l.b16 %v2654
        %v2672 = vunpack.c.l.b16 %v2655
        %v2673 = vpack.c.b16 %v2670, %v2669
        %v2674 = vpack.c.b16 %v2672, %v2671
        %v2678 = vsel %vm1643, %v2658, 0
        %2680 = vmatprep.subr.bf16.mxu0 0
        %2681 = vmatpush1.bf16.msra.mxu0 %v2673
        %2682 = vmatprep.subr.bf16.mxu0 0
        %2683 = vmatpush1.bf16.msra.mxu0 %v2674
        %2684 = vmatprep.subr.bf16.mxu0 0
        %2685 = vmatpush1.bf16.msra.mxu0 0
        %2686 = vmatprep.subr.bf16.mxu0 0
        %2687 = vmatpush1.bf16.msra.mxu0 0
        %2688 = vmatprep.subr.bf16.mxu0 0
        %2689 = vmatpush1.bf16.msra.mxu0 0
        %2690 = vmatprep.subr.bf16.mxu0 0
        %2691 = vmatpush1.bf16.msra.mxu0 0
        %2692 = vmatprep.subr.bf16.mxu0 0
        %2693 = vmatpush1.bf16.msra.mxu0 0
        %2694 = vmatprep.subr.bf16.mxu0 0
        %2695 = vmatpush1.bf16.msra.mxu0 0
        %2696 = vmatprep.subr.bf16.mxu0 0
        %2697 = vmatpush1.bf16.msra.mxu0 0
        %2698 = vmatprep.subr.bf16.mxu0 0
        %2699 = vmatpush1.bf16.msra.mxu0 0
        %2700 = vmatprep.subr.bf16.mxu0 0
        %2701 = vmatpush1.bf16.msra.mxu0 0
        %2702 = vmatprep.subr.bf16.mxu0 0
        %2703 = vmatpush1.bf16.msra.mxu0 0
        %2704 = vmatprep.subr.bf16.mxu0 0
        %2705 = vmatpush1.bf16.msra.mxu0 0
        %2706 = vmatprep.subr.bf16.mxu0 0
        %2707 = vmatpush1.bf16.msra.mxu0 0
        %2708 = vmatprep.subr.bf16.mxu0 0
        %2709 = vmatpush1.bf16.msra.mxu0 0
        %2710 = vmatprep.subr.bf16.mxu0 0
        %2711 = vmatpush1.bf16.msra.mxu0 0
        %2712 = vmatprep.mubr.bf16.mxu0 0
        %2713 = vmatmul.mubr.bf16.gmra.mrb[0].mxu0 %v2678
        %v2714 = vpop.f32.mrb[0].mxu0
        %v2715 = vadd.f32 %v2663, %v2714
        %v2716 = vpop.f32.mrb[0].mxu0
        %v2717 = vpop.f32.mrb[0].mxu0
        %v2718 = vpop.f32.mrb[0].mxu0
        %2719 = vdwg.mxu0
        %2721 = vrot.lane.b32.xlu0 %v2715, 96
        %v2722 = vpop.permute.xlu0 %2721
        %v2723 = vsel %vm1690, %v2715, 0
        %v2725 = vsel %vm1690, %v2722, 0
        %2727 = vmatprep.subr.mxu0 0.0
        %2728 = vmatpush1.xpose.msra.mxu0 %v2725
        %2729 = vmatprep.subr.mxu0 0.0
        %2730 = vmatpush1.xpose.msra.mxu0 0.0
        %2731 = vmatprep.subr.mxu0 0.0
        %2732 = vmatpush1.xpose.msra.mxu0 0.0
        %2733 = vmatprep.subr.mxu0 0.0
        %2734 = vmatpush1.xpose.msra.mxu0 0.0
        %2735 = vmatprep.subr.mxu0 0.0
        %2736 = vmatpush1.xpose.msra.mxu0 0.0
        %2737 = vmatprep.subr.mxu0 0.0
        %2738 = vmatpush1.xpose.msra.mxu0 0.0
        %2739 = vmatprep.subr.mxu0 0.0
        %2740 = vmatpush1.xpose.msra.mxu0 0.0
        %2741 = vmatprep.subr.mxu0 0.0
        %2742 = vmatpush1.xpose.msra.mxu0 0.0
        %2743 = vmatprep.subr.mxu0 0.0
        %2744 = vmatpush1.xpose.msra.mxu0 0.0
        %2745 = vmatprep.subr.mxu0 0.0
        %2746 = vmatpush1.xpose.msra.mxu0 0.0
        %2747 = vmatprep.subr.mxu0 0.0
        %2748 = vmatpush1.xpose.msra.mxu0 0.0
        %2749 = vmatprep.subr.mxu0 0.0
        %2750 = vmatpush1.xpose.msra.mxu0 0.0
        %2751 = vmatprep.subr.mxu0 0.0
        %2752 = vmatpush1.xpose.msra.mxu0 0.0
        %2753 = vmatprep.subr.mxu0 0.0
        %2754 = vmatpush1.xpose.msra.mxu0 0.0
        %2755 = vmatprep.subr.mxu0 0.0
        %2756 = vmatpush1.xpose.msra.mxu0 0.0
        %2757 = vmatprep.subr.mxu0 0.0
        %2758 = vmatpush1.xpose.msra.mxu0 0.0
        %2759 = vmatprep.subr.mxu0 0.0
        %2760 = vmatpush1.xpose.msra.mxu0 0.0
        %2761 = vmatprep.subr.mxu0 0.0
        %2762 = vmatpush1.xpose.msra.mxu0 0.0
        %2763 = vmatprep.subr.mxu0 0.0
        %2764 = vmatpush1.xpose.msra.mxu0 0.0
        %2765 = vmatprep.subr.mxu0 0.0
        %2766 = vmatpush1.xpose.msra.mxu0 0.0
        %2767 = vmatprep.subr.mxu0 0.0
        %2768 = vmatpush1.xpose.msra.mxu0 0.0
        %2769 = vmatprep.subr.mxu0 0.0
        %2770 = vmatpush1.xpose.msra.mxu0 0.0
        %2771 = vmatprep.subr.mxu0 0.0
        %2772 = vmatpush1.xpose.msra.mxu0 0.0
        %2773 = vmatprep.subr.mxu0 0.0
        %2774 = vmatpush1.xpose.msra.mxu0 0.0
        %2775 = vmatprep.subr.mxu0 0.0
        %2776 = vmatpush1.xpose.msra.mxu0 0.0
        %2777 = vmatprep.subr.mxu0 0.0
        %2778 = vmatpush1.xpose.msra.mxu0 0.0
        %2779 = vmatprep.subr.mxu0 0.0
        %2780 = vmatpush1.xpose.msra.mxu0 0.0
        %2781 = vmatprep.subr.mxu0 0.0
        %2782 = vmatpush1.xpose.msra.mxu0 0.0
        %2783 = vmatprep.subr.mxu0 0.0
        %2784 = vmatpush1.xpose.msra.mxu0 0.0
        %2785 = vmatprep.subr.mxu0 0.0
        %2786 = vmatpush1.xpose.msra.mxu0 0.0
        %2787 = vmatprep.subr.mxu0 0.0
        %2788 = vmatpush1.xpose.msra.mxu0 0.0
        %2789 = vmatprep.subr.mxu0 0.0
        %2790 = vmatpush1.xpose.msra.mxu0 0.0
        %2791 = vmatprep.mubr.f32.mxu0 0.0
        %2792 = vmatmul.mubr.f32.gmra.mrb[0].mxu0 %v2723
        %v2793 = vpop.f32.mrb[0].mxu0
        %v2794 = vadd.f32 0.0, %v2793
        %v2795 = vpop.f32.mrb[0].mxu0
        %2796 = vdwg.mxu0
        %v2797 = vmul.f32 %v2794, 0.35355338
        %v2798 = vsel %vm1690, %v2797, -inf
        %2799 = vmax.xlane.f32.xlu0 %v2798
        %v2800 = vpop.xlane.xlu0 %2799
        %v2801 = vsub.f32 %v2797, %v2800
        %v2802 = vmul.f32 %v2801, 1.442695
        %v2803 = vpow.pop %v2802
        %v2804 = vsel %vm1690, %v2803, 0.0
        %2805 = vadd.xlane.f32.xlu0 %v2804
        %v2806 = vpop.xlane.xlu0 %2805
        %v2807 = vrcp.pop %v2806
        %v2808 = vmul.f32 %v2803, %v2807
        %2809 = vrot.lane.b32.xlu0 %v2715, 64
        %v2810 = vpop.permute.xlu0 %2809
        %v2813 = vsel %vm1690, %v2808, 0
        %2815 = vmatprep.subr.mxu0 0.0
        %2816 = vmatpush1.msra.mxu0 %v2810
        %2817 = vmatprep.subr.mxu0 0.0
        %2818 = vmatpush1.msra.mxu0 0.0
        %2819 = vmatprep.subr.mxu0 0.0
        %2820 = vmatpush1.msra.mxu0 0.0
        %2821 = vmatprep.subr.mxu0 0.0
        %2822 = vmatpush1.msra.mxu0 0.0
        %2823 = vmatprep.subr.mxu0 0.0
        %2824 = vmatpush1.msra.mxu0 0.0
        %2825 = vmatprep.subr.mxu0 0.0
        %2826 = vmatpush1.msra.mxu0 0.0
        %2827 = vmatprep.subr.mxu0 0.0
        %2828 = vmatpush1.msra.mxu0 0.0
        %2829 = vmatprep.subr.mxu0 0.0
        %2830 = vmatpush1.msra.mxu0 0.0
        %2831 = vmatprep.subr.mxu0 0.0
        %2832 = vmatpush1.msra.mxu0 0.0
        %2833 = vmatprep.subr.mxu0 0.0
        %2834 = vmatpush1.msra.mxu0 0.0
        %2835 = vmatprep.subr.mxu0 0.0
        %2836 = vmatpush1.msra.mxu0 0.0
        %2837 = vmatprep.subr.mxu0 0.0
        %2838 = vmatpush1.msra.mxu0 0.0
        %2839 = vmatprep.subr.mxu0 0.0
        %2840 = vmatpush1.msra.mxu0 0.0
        %2841 = vmatprep.subr.mxu0 0.0
        %2842 = vmatpush1.msra.mxu0 0.0
        %2843 = vmatprep.subr.mxu0 0.0
        %2844 = vmatpush1.msra.mxu0 0.0
        %2845 = vmatprep.subr.mxu0 0.0
        %2846 = vmatpush1.msra.mxu0 0.0
        %2847 = vmatprep.subr.mxu0 0.0
        %2848 = vmatpush1.msra.mxu0 0.0
        %2849 = vmatprep.subr.mxu0 0.0
        %2850 = vmatpush1.msra.mxu0 0.0
        %2851 = vmatprep.subr.mxu0 0.0
        %2852 = vmatpush1.msra.mxu0 0.0
        %2853 = vmatprep.subr.mxu0 0.0
        %2854 = vmatpush1.msra.mxu0 0.0
        %2855 = vmatprep.subr.mxu0 0.0
        %2856 = vmatpush1.msra.mxu0 0.0
        %2857 = vmatprep.subr.mxu0 0.0
        %2858 = vmatpush1.msra.mxu0 0.0
        %2859 = vmatprep.subr.mxu0 0.0
        %2860 = vmatpush1.msra.mxu0 0.0
        %2861 = vmatprep.subr.mxu0 0.0
        %2862 = vmatpush1.msra.mxu0 0.0
        %2863 = vmatprep.subr.mxu0 0.0
        %2864 = vmatpush1.msra.mxu0 0.0
        %2865 = vmatprep.subr.mxu0 0.0
        %2866 = vmatpush1.msra.mxu0 0.0
        %2867 = vmatprep.subr.mxu0 0.0
        %2868 = vmatpush1.msra.mxu0 0.0
        %2869 = vmatprep.subr.mxu0 0.0
        %2870 = vmatpush1.msra.mxu0 0.0
        %2871 = vmatprep.subr.mxu0 0.0
        %2872 = vmatpush1.msra.mxu0 0.0
        %2873 = vmatprep.subr.mxu0 0.0
        %2874 = vmatpush1.msra.mxu0 0.0
        %2875 = vmatprep.subr.mxu0 0.0
        %2876 = vmatpush1.msra.mxu0 0.0
        %2877 = vmatprep.subr.mxu0 0.0
        %2878 = vmatpush1.msra.mxu0 0.0
        %2879 = vmatprep.mubr.f32.mxu0 0.0
        %2880 = vmatmul.mubr.f32.gmra.mrb[0].mxu0 %v2813
        %v2881 = vpop.f32.mrb[0].mxu0
        %v2882 = vadd.f32 0.0, %v2881
        %v2883 = vpop.f32.mrb[0].mxu0
        %2884 = vdwg.mxu0
        %2885 = vst.msk [vmem:[#allocation2] sm:$0xff] %vm1690, %v2882
        %2886 = vst.msk [vmem:[%s1429] sm:$0xff] %vm1690, %v2808
        %2887 = vrot.lane.b32.xlu0 %v2715, 120
        %v2888 = vpop.permute.xlu0 %2887
        %2889 = vrot.lane.b32.xlu0 %v2715, 88
        %v2890 = vpop.permute.xlu0 %2889
        %v2891 = vsel %vm1690, %v2888, 0
        %v2893 = vsel %vm1690, %v2890, 0
        %2895 = vmatprep.subr.mxu0 0.0
        %2896 = vmatpush1.xpose.msra.mxu0 %v2893
        %2897 = vmatprep.subr.mxu0 0.0
        %2898 = vmatpush1.xpose.msra.mxu0 0.0
        %2899 = vmatprep.subr.mxu0 0.0
        %2900 = vmatpush1.xpose.msra.mxu0 0.0
        %2901 = vmatprep.subr.mxu0 0.0
        %2902 = vmatpush1.xpose.msra.mxu0 0.0
        %2903 = vmatprep.subr.mxu0 0.0
        %2904 = vmatpush1.xpose.msra.mxu0 0.0
        %2905 = vmatprep.subr.mxu0 0.0
        %2906 = vmatpush1.xpose.msra.mxu0 0.0
        %2907 = vmatprep.subr.mxu0 0.0
        %2908 = vmatpush1.xpose.msra.mxu0 0.0
        %2909 = vmatprep.subr.mxu0 0.0
        %2910 = vmatpush1.xpose.msra.mxu0 0.0
        %2911 = vmatprep.subr.mxu0 0.0
        %2912 = vmatpush1.xpose.msra.mxu0 0.0
        %2913 = vmatprep.subr.mxu0 0.0
        %2914 = vmatpush1.xpose.msra.mxu0 0.0
        %2915 = vmatprep.subr.mxu0 0.0
        %2916 = vmatpush1.xpose.msra.mxu0 0.0
        %2917 = vmatprep.subr.mxu0 0.0
        %2918 = vmatpush1.xpose.msra.mxu0 0.0
        %2919 = vmatprep.subr.mxu0 0.0
        %2920 = vmatpush1.xpose.msra.mxu0 0.0
        %2921 = vmatprep.subr.mxu0 0.0
        %2922 = vmatpush1.xpose.msra.mxu0 0.0
        %2923 = vmatprep.subr.mxu0 0.0
        %2924 = vmatpush1.xpose.msra.mxu0 0.0
        %2925 = vmatprep.subr.mxu0 0.0
        %2926 = vmatpush1.xpose.msra.mxu0 0.0
        %2927 = vmatprep.subr.mxu0 0.0
        %2928 = vmatpush1.xpose.msra.mxu0 0.0
        %2929 = vmatprep.subr.mxu0 0.0
        %2930 = vmatpush1.xpose.msra.mxu0 0.0
        %2931 = vmatprep.subr.mxu0 0.0
        %2932 = vmatpush1.xpose.msra.mxu0 0.0
        %2933 = vmatprep.subr.mxu0 0.0
        %2934 = vmatpush1.xpose.msra.mxu0 0.0
        %2935 = vmatprep.subr.mxu0 0.0
        %2936 = vmatpush1.xpose.msra.mxu0 0.0
        %2937 = vmatprep.subr.mxu0 0.0
        %2938 = vmatpush1.xpose.msra.mxu0 0.0
        %2939 = vmatprep.subr.mxu0 0.0
        %2940 = vmatpush1.xpose.msra.mxu0 0.0
        %2941 = vmatprep.subr.mxu0 0.0
        %2942 = vmatpush1.xpose.msra.mxu0 0.0
        %2943 = vmatprep.subr.mxu0 0.0
        %2944 = vmatpush1.xpose.msra.mxu0 0.0
        %2945 = vmatprep.subr.mxu0 0.0
        %2946 = vmatpush1.xpose.msra.mxu0 0.0
        %2947 = vmatprep.subr.mxu0 0.0
        %2948 = vmatpush1.xpose.msra.mxu0 0.0
        %2949 = vmatprep.subr.mxu0 0.0
        %2950 = vmatpush1.xpose.msra.mxu0 0.0
        %2951 = vmatprep.subr.mxu0 0.0
        %2952 = vmatpush1.xpose.msra.mxu0 0.0
        %2953 = vmatprep.subr.mxu0 0.0
        %2954 = vmatpush1.xpose.msra.mxu0 0.0
        %2955 = vmatprep.subr.mxu0 0.0
        %2956 = vmatpush1.xpose.msra.mxu0 0.0
        %2957 = vmatprep.subr.mxu0 0.0
        %2958 = vmatpush1.xpose.msra.mxu0 0.0
        %2959 = vmatprep.mubr.f32.mxu0 0.0
        %2960 = vmatmul.mubr.f32.gmra.mrb[0].mxu0 %v2891
        %v2961 = vpop.f32.mrb[0].mxu0
        %v2962 = vadd.f32 0.0, %v2961
        %v2963 = vpop.f32.mrb[0].mxu0
        %2964 = vdwg.mxu0
        %v2965 = vmul.f32 %v2962, 0.35355338
        %v2966 = vsel %vm1690, %v2965, -inf
        %2967 = vmax.xlane.f32.xlu0 %v2966
        %v2968 = vpop.xlane.xlu0 %2967
        %v2969 = vsub.f32 %v2965, %v2968
        %v2970 = vmul.f32 %v2969, 1.442695
        %v2971 = vpow.pop %v2970
        %v2972 = vsel %vm1690, %v2971, 0.0
        %2973 = vadd.xlane.f32.xlu0 %v2972
        %v2974 = vpop.xlane.xlu0 %2973
        %v2975 = vrcp.pop %v2974
        %v2976 = vmul.f32 %v2971, %v2975
        %2977 = vrot.lane.b32.xlu0 %v2715, 56
        %v2978 = vpop.permute.xlu0 %2977
        %v2981 = vsel %vm1690, %v2976, 0
        %2983 = vmatprep.subr.mxu0 0.0
        %2984 = vmatpush1.msra.mxu0 %v2978
        %2985 = vmatprep.subr.mxu0 0.0
        %2986 = vmatpush1.msra.mxu0 0.0
        %2987 = vmatprep.subr.mxu0 0.0
        %2988 = vmatpush1.msra.mxu0 0.0
        %2989 = vmatprep.subr.mxu0 0.0
        %2990 = vmatpush1.msra.mxu0 0.0
        %2991 = vmatprep.subr.mxu0 0.0
        %2992 = vmatpush1.msra.mxu0 0.0
        %2993 = vmatprep.subr.mxu0 0.0
        %2994 = vmatpush1.msra.mxu0 0.0
        %2995 = vmatprep.subr.mxu0 0.0
        %2996 = vmatpush1.msra.mxu0 0.0
        %2997 = vmatprep.subr.mxu0 0.0
        %2998 = vmatpush1.msra.mxu0 0.0
        %2999 = vmatprep.subr.mxu0 0.0
        %3000 = vmatpush1.msra.mxu0 0.0
        %3001 = vmatprep.subr.mxu0 0.0
        %3002 = vmatpush1.msra.mxu0 0.0
        %3003 = vmatprep.subr.mxu0 0.0
        %3004 = vmatpush1.msra.mxu0 0.0
        %3005 = vmatprep.subr.mxu0 0.0
        %3006 = vmatpush1.msra.mxu0 0.0
        %3007 = vmatprep.subr.mxu0 0.0
        %3008 = vmatpush1.msra.mxu0 0.0
        %3009 = vmatprep.subr.mxu0 0.0
        %3010 = vmatpush1.msra.mxu0 0.0
        %3011 = vmatprep.subr.mxu0 0.0
        %3012 = vmatpush1.msra.mxu0 0.0
        %3013 = vmatprep.subr.mxu0 0.0
        %3014 = vmatpush1.msra.mxu0 0.0
        %3015 = vmatprep.subr.mxu0 0.0
        %3016 = vmatpush1.msra.mxu0 0.0
        %3017 = vmatprep.subr.mxu0 0.0
        %3018 = vmatpush1.msra.mxu0 0.0
        %3019 = vmatprep.subr.mxu0 0.0
        %3020 = vmatpush1.msra.mxu0 0.0
        %3021 = vmatprep.subr.mxu0 0.0
        %3022 = vmatpush1.msra.mxu0 0.0
        %3023 = vmatprep.subr.mxu0 0.0
        %3024 = vmatpush1.msra.mxu0 0.0
        %3025 = vmatprep.subr.mxu0 0.0
        %3026 = vmatpush1.msra.mxu0 0.0
        %3027 = vmatprep.subr.mxu0 0.0
        %3028 = vmatpush1.msra.mxu0 0.0
        %3029 = vmatprep.subr.mxu0 0.0
        %3030 = vmatpush1.msra.mxu0 0.0
        %3031 = vmatprep.subr.mxu0 0.0
        %3032 = vmatpush1.msra.mxu0 0.0
        %3033 = vmatprep.subr.mxu0 0.0
        %3034 = vmatpush1.msra.mxu0 0.0
        %3035 = vmatprep.subr.mxu0 0.0
        %3036 = vmatpush1.msra.mxu0 0.0
        %3037 = vmatprep.subr.mxu0 0.0
        %3038 = vmatpush1.msra.mxu0 0.0
        %3039 = vmatprep.subr.mxu0 0.0
        %3040 = vmatpush1.msra.mxu0 0.0
        %3041 = vmatprep.subr.mxu0 0.0
        %3042 = vmatpush1.msra.mxu0 0.0
        %3043 = vmatprep.subr.mxu0 0.0
        %3044 = vmatpush1.msra.mxu0 0.0
        %3045 = vmatprep.subr.mxu0 0.0
        %3046 = vmatpush1.msra.mxu0 0.0
        %3047 = vmatprep.mubr.f32.mxu0 0.0
        %3048 = vmatmul.mubr.f32.gmra.mrb[0].mxu0 %v2981
        %v3049 = vpop.f32.mrb[0].mxu0
        %v3050 = vadd.f32 0.0, %v3049
        %v3051 = vpop.f32.mrb[0].mxu0
        %3052 = vdwg.mxu0
        %3054 = vrot.lane.b32.xlu0 %v3050, 8
        %v3055 = vpop.permute.xlu0 %3054
        %3057 = vst.msk [vmem:[#allocation2] sm:$0xff] %vm2024, %v3055
        %s3058 = scalar_lea.vmem %s1429, 8 [#allocation27]
        %3059 = vst.msk [vmem:[%s3058] sm:$0xff] %vm1690, %v2976
        %3060 = vrot.lane.b32.xlu0 %v2715, 112
        %v3061 = vpop.permute.xlu0 %3060
        %3062 = vrot.lane.b32.xlu0 %v2715, 80
        %v3063 = vpop.permute.xlu0 %3062
        %v3064 = vsel %vm1690, %v3061, 0
        %v3066 = vsel %vm1690, %v3063, 0
        %3068 = vmatprep.subr.mxu0 0.0
        %3069 = vmatpush1.xpose.msra.mxu0 %v3066
        %3070 = vmatprep.subr.mxu0 0.0
        %3071 = vmatpush1.xpose.msra.mxu0 0.0
        %3072 = vmatprep.subr.mxu0 0.0
        %3073 = vmatpush1.xpose.msra.mxu0 0.0
        %3074 = vmatprep.subr.mxu0 0.0
        %3075 = vmatpush1.xpose.msra.mxu0 0.0
        %3076 = vmatprep.subr.mxu0 0.0
        %3077 = vmatpush1.xpose.msra.mxu0 0.0
        %3078 = vmatprep.subr.mxu0 0.0
        %3079 = vmatpush1.xpose.msra.mxu0 0.0
        %3080 = vmatprep.subr.mxu0 0.0
        %3081 = vmatpush1.xpose.msra.mxu0 0.0
        %3082 = vmatprep.subr.mxu0 0.0
        %3083 = vmatpush1.xpose.msra.mxu0 0.0
        %3084 = vmatprep.subr.mxu0 0.0
        %3085 = vmatpush1.xpose.msra.mxu0 0.0
        %3086 = vmatprep.subr.mxu0 0.0
        %3087 = vmatpush1.xpose.msra.mxu0 0.0
        %3088 = vmatprep.subr.mxu0 0.0
        %3089 = vmatpush1.xpose.msra.mxu0 0.0
        %3090 = vmatprep.subr.mxu0 0.0
        %3091 = vmatpush1.xpose.msra.mxu0 0.0
        %3092 = vmatprep.subr.mxu0 0.0
        %3093 = vmatpush1.xpose.msra.mxu0 0.0
        %3094 = vmatprep.subr.mxu0 0.0
        %3095 = vmatpush1.xpose.msra.mxu0 0.0
        %3096 = vmatprep.subr.mxu0 0.0
        %3097 = vmatpush1.xpose.msra.mxu0 0.0
        %3098 = vmatprep.subr.mxu0 0.0
        %3099 = vmatpush1.xpose.msra.mxu0 0.0
        %3100 = vmatprep.subr.mxu0 0.0
        %3101 = vmatpush1.xpose.msra.mxu0 0.0
        %3102 = vmatprep.subr.mxu0 0.0
        %3103 = vmatpush1.xpose.msra.mxu0 0.0
        %3104 = vmatprep.subr.mxu0 0.0
        %3105 = vmatpush1.xpose.msra.mxu0 0.0
        %3106 = vmatprep.subr.mxu0 0.0
        %3107 = vmatpush1.xpose.msra.mxu0 0.0
        %3108 = vmatprep.subr.mxu0 0.0
        %3109 = vmatpush1.xpose.msra.mxu0 0.0
        %3110 = vmatprep.subr.mxu0 0.0
        %3111 = vmatpush1.xpose.msra.mxu0 0.0
        %3112 = vmatprep.subr.mxu0 0.0
        %3113 = vmatpush1.xpose.msra.mxu0 0.0
        %3114 = vmatprep.subr.mxu0 0.0
        %3115 = vmatpush1.xpose.msra.mxu0 0.0
        %3116 = vmatprep.subr.mxu0 0.0
        %3117 = vmatpush1.xpose.msra.mxu0 0.0
        %3118 = vmatprep.subr.mxu0 0.0
        %3119 = vmatpush1.xpose.msra.mxu0 0.0
        %3120 = vmatprep.subr.mxu0 0.0
        %3121 = vmatpush1.xpose.msra.mxu0 0.0
        %3122 = vmatprep.subr.mxu0 0.0
        %3123 = vmatpush1.xpose.msra.mxu0 0.0
        %3124 = vmatprep.subr.mxu0 0.0
        %3125 = vmatpush1.xpose.msra.mxu0 0.0
        %3126 = vmatprep.subr.mxu0 0.0
        %3127 = vmatpush1.xpose.msra.mxu0 0.0
        %3128 = vmatprep.subr.mxu0 0.0
        %3129 = vmatpush1.xpose.msra.mxu0 0.0
        %3130 = vmatprep.subr.mxu0 0.0
        %3131 = vmatpush1.xpose.msra.mxu0 0.0
        %3132 = vmatprep.mubr.f32.mxu0 0.0
        %3133 = vmatmul.mubr.f32.gmra.mrb[0].mxu0 %v3064
        %v3134 = vpop.f32.mrb[0].mxu0
        %v3135 = vadd.f32 0.0, %v3134
        %v3136 = vpop.f32.mrb[0].mxu0
        %3137 = vdwg.mxu0
        %v3138 = vmul.f32 %v3135, 0.35355338
        %v3139 = vsel %vm1690, %v3138, -inf
        %3140 = vmax.xlane.f32.xlu0 %v3139
        %v3141 = vpop.xlane.xlu0 %3140
        %v3142 = vsub.f32 %v3138, %v3141
        %v3143 = vmul.f32 %v3142, 1.442695
        %v3144 = vpow.pop %v3143
        %v3145 = vsel %vm1690, %v3144, 0.0
        %3146 = vadd.xlane.f32.xlu0 %v3145
        %v3147 = vpop.xlane.xlu0 %3146
        %v3148 = vrcp.pop %v3147
        %v3149 = vmul.f32 %v3144, %v3148
        %3150 = vrot.lane.b32.xlu0 %v2715, 48
        %v3151 = vpop.permute.xlu0 %3150
        %v3154 = vsel %vm1690, %v3149, 0
        %3156 = vmatprep.subr.mxu0 0.0
        %3157 = vmatpush1.msra.mxu0 %v3151
        %3158 = vmatprep.subr.mxu0 0.0
        %3159 = vmatpush1.msra.mxu0 0.0
        %3160 = vmatprep.subr.mxu0 0.0
        %3161 = vmatpush1.msra.mxu0 0.0
        %3162 = vmatprep.subr.mxu0 0.0
        %3163 = vmatpush1.msra.mxu0 0.0
        %3164 = vmatprep.subr.mxu0 0.0
        %3165 = vmatpush1.msra.mxu0 0.0
        %3166 = vmatprep.subr.mxu0 0.0
        %3167 = vmatpush1.msra.mxu0 0.0
        %3168 = vmatprep.subr.mxu0 0.0
        %3169 = vmatpush1.msra.mxu0 0.0
        %3170 = vmatprep.subr.mxu0 0.0
        %3171 = vmatpush1.msra.mxu0 0.0
        %3172 = vmatprep.subr.mxu0 0.0
        %3173 = vmatpush1.msra.mxu0 0.0
        %3174 = vmatprep.subr.mxu0 0.0
        %3175 = vmatpush1.msra.mxu0 0.0
        %3176 = vmatprep.subr.mxu0 0.0
        %3177 = vmatpush1.msra.mxu0 0.0
        %3178 = vmatprep.subr.mxu0 0.0
        %3179 = vmatpush1.msra.mxu0 0.0
        %3180 = vmatprep.subr.mxu0 0.0
        %3181 = vmatpush1.msra.mxu0 0.0
        %3182 = vmatprep.subr.mxu0 0.0
        %3183 = vmatpush1.msra.mxu0 0.0
        %3184 = vmatprep.subr.mxu0 0.0
        %3185 = vmatpush1.msra.mxu0 0.0
        %3186 = vmatprep.subr.mxu0 0.0
        %3187 = vmatpush1.msra.mxu0 0.0
        %3188 = vmatprep.subr.mxu0 0.0
        %3189 = vmatpush1.msra.mxu0 0.0
        %3190 = vmatprep.subr.mxu0 0.0
        %3191 = vmatpush1.msra.mxu0 0.0
        %3192 = vmatprep.subr.mxu0 0.0
        %3193 = vmatpush1.msra.mxu0 0.0
        %3194 = vmatprep.subr.mxu0 0.0
        %3195 = vmatpush1.msra.mxu0 0.0
        %3196 = vmatprep.subr.mxu0 0.0
        %3197 = vmatpush1.msra.mxu0 0.0
        %3198 = vmatprep.subr.mxu0 0.0
        %3199 = vmatpush1.msra.mxu0 0.0
        %3200 = vmatprep.subr.mxu0 0.0
        %3201 = vmatpush1.msra.mxu0 0.0
        %3202 = vmatprep.subr.mxu0 0.0
        %3203 = vmatpush1.msra.mxu0 0.0
        %3204 = vmatprep.subr.mxu0 0.0
        %3205 = vmatpush1.msra.mxu0 0.0
        %3206 = vmatprep.subr.mxu0 0.0
        %3207 = vmatpush1.msra.mxu0 0.0
        %3208 = vmatprep.subr.mxu0 0.0
        %3209 = vmatpush1.msra.mxu0 0.0
        %3210 = vmatprep.subr.mxu0 0.0
        %3211 = vmatpush1.msra.mxu0 0.0
        %3212 = vmatprep.subr.mxu0 0.0
        %3213 = vmatpush1.msra.mxu0 0.0
        %3214 = vmatprep.subr.mxu0 0.0
        %3215 = vmatpush1.msra.mxu0 0.0
        %3216 = vmatprep.subr.mxu0 0.0
        %3217 = vmatpush1.msra.mxu0 0.0
        %3218 = vmatprep.subr.mxu0 0.0
        %3219 = vmatpush1.msra.mxu0 0.0
        %3220 = vmatprep.mubr.f32.mxu0 0.0
        %3221 = vmatmul.mubr.f32.gmra.mrb[0].mxu0 %v3154
        %v3222 = vpop.f32.mrb[0].mxu0
        %v3223 = vadd.f32 0.0, %v3222
        %v3224 = vpop.f32.mrb[0].mxu0
        %3225 = vdwg.mxu0
        %3227 = vrot.lane.b32.xlu0 %v3223, 16
        %v3228 = vpop.permute.xlu0 %3227
        %3230 = vst.msk [vmem:[#allocation2] sm:$0xff] %vm2196, %v3228
        %s3231 = scalar_lea.vmem %s1429, 16 [#allocation27]
        %3232 = vst.msk [vmem:[%s3231] sm:$0xff] %vm1690, %v3149
        %3233 = vrot.lane.b32.xlu0 %v2715, 104
        %v3234 = vpop.permute.xlu0 %3233
        %3235 = vrot.lane.b32.xlu0 %v2715, 72
        %v3236 = vpop.permute.xlu0 %3235
        %v3237 = vsel %vm1690, %v3234, 0
        %v3239 = vsel %vm1690, %v3236, 0
        %3241 = vmatprep.subr.mxu0 0.0
        %3242 = vmatpush1.xpose.msra.mxu0 %v3239
        %3243 = vmatprep.subr.mxu0 0.0
        %3244 = vmatpush1.xpose.msra.mxu0 0.0
        %3245 = vmatprep.subr.mxu0 0.0
        %3246 = vmatpush1.xpose.msra.mxu0 0.0
        %3247 = vmatprep.subr.mxu0 0.0
        %3248 = vmatpush1.xpose.msra.mxu0 0.0
        %3249 = vmatprep.subr.mxu0 0.0
        %3250 = vmatpush1.xpose.msra.mxu0 0.0
        %3251 = vmatprep.subr.mxu0 0.0
        %3252 = vmatpush1.xpose.msra.mxu0 0.0
        %3253 = vmatprep.subr.mxu0 0.0
        %3254 = vmatpush1.xpose.msra.mxu0 0.0
        %3255 = vmatprep.subr.mxu0 0.0
        %3256 = vmatpush1.xpose.msra.mxu0 0.0
        %3257 = vmatprep.subr.mxu0 0.0
        %3258 = vmatpush1.xpose.msra.mxu0 0.0
        %3259 = vmatprep.subr.mxu0 0.0
        %3260 = vmatpush1.xpose.msra.mxu0 0.0
        %3261 = vmatprep.subr.mxu0 0.0
        %3262 = vmatpush1.xpose.msra.mxu0 0.0
        %3263 = vmatprep.subr.mxu0 0.0
        %3264 = vmatpush1.xpose.msra.mxu0 0.0
        %3265 = vmatprep.subr.mxu0 0.0
        %3266 = vmatpush1.xpose.msra.mxu0 0.0
        %3267 = vmatprep.subr.mxu0 0.0
        %3268 = vmatpush1.xpose.msra.mxu0 0.0
        %3269 = vmatprep.subr.mxu0 0.0
        %3270 = vmatpush1.xpose.msra.mxu0 0.0
        %3271 = vmatprep.subr.mxu0 0.0
        %3272 = vmatpush1.xpose.msra.mxu0 0.0
        %3273 = vmatprep.subr.mxu0 0.0
        %3274 = vmatpush1.xpose.msra.mxu0 0.0
        %3275 = vmatprep.subr.mxu0 0.0
        %3276 = vmatpush1.xpose.msra.mxu0 0.0
        %3277 = vmatprep.subr.mxu0 0.0
        %3278 = vmatpush1.xpose.msra.mxu0 0.0
        %3279 = vmatprep.subr.mxu0 0.0
        %3280 = vmatpush1.xpose.msra.mxu0 0.0
        %3281 = vmatprep.subr.mxu0 0.0
        %3282 = vmatpush1.xpose.msra.mxu0 0.0
        %3283 = vmatprep.subr.mxu0 0.0
        %3284 = vmatpush1.xpose.msra.mxu0 0.0
        %3285 = vmatprep.subr.mxu0 0.0
        %3286 = vmatpush1.xpose.msra.mxu0 0.0
        %3287 = vmatprep.subr.mxu0 0.0
        %3288 = vmatpush1.xpose.msra.mxu0 0.0
        %3289 = vmatprep.subr.mxu0 0.0
        %3290 = vmatpush1.xpose.msra.mxu0 0.0
        %3291 = vmatprep.subr.mxu0 0.0
        %3292 = vmatpush1.xpose.msra.mxu0 0.0
        %3293 = vmatprep.subr.mxu0 0.0
        %3294 = vmatpush1.xpose.msra.mxu0 0.0
        %3295 = vmatprep.subr.mxu0 0.0
        %3296 = vmatpush1.xpose.msra.mxu0 0.0
        %3297 = vmatprep.subr.mxu0 0.0
        %3298 = vmatpush1.xpose.msra.mxu0 0.0
        %3299 = vmatprep.subr.mxu0 0.0
        %3300 = vmatpush1.xpose.msra.mxu0 0.0
        %3301 = vmatprep.subr.mxu0 0.0
        %3302 = vmatpush1.xpose.msra.mxu0 0.0
        %3303 = vmatprep.subr.mxu0 0.0
        %3304 = vmatpush1.xpose.msra.mxu0 0.0
        %3305 = vmatprep.mubr.f32.mxu0 0.0
        %3306 = vmatmul.mubr.f32.gmra.mrb[0].mxu0 %v3237
        %v3307 = vpop.f32.mrb[0].mxu0
        %v3308 = vadd.f32 0.0, %v3307
        %v3309 = vpop.f32.mrb[0].mxu0
        %3310 = vdwg.mxu0
        %v3311 = vmul.f32 %v3308, 0.35355338
        %v3312 = vsel %vm1690, %v3311, -inf
        %3313 = vmax.xlane.f32.xlu0 %v3312
        %v3314 = vpop.xlane.xlu0 %3313
        %v3315 = vsub.f32 %v3311, %v3314
        %v3316 = vmul.f32 %v3315, 1.442695
        %v3317 = vpow.pop %v3316
        %v3318 = vsel %vm1690, %v3317, 0.0
        %3319 = vadd.xlane.f32.xlu0 %v3318
        %v3320 = vpop.xlane.xlu0 %3319
        %v3321 = vrcp.pop %v3320
        %v3322 = vmul.f32 %v3317, %v3321
        %3323 = vrot.lane.b32.xlu0 %v2715, 40
        %v3324 = vpop.permute.xlu0 %3323
        %v3327 = vsel %vm1690, %v3322, 0
        %3329 = vmatprep.subr.mxu0 0.0
        %3330 = vmatpush1.msra.mxu0 %v3324
        %3331 = vmatprep.subr.mxu0 0.0
        %3332 = vmatpush1.msra.mxu0 0.0
        %3333 = vmatprep.subr.mxu0 0.0
        %3334 = vmatpush1.msra.mxu0 0.0
        %3335 = vmatprep.subr.mxu0 0.0
        %3336 = vmatpush1.msra.mxu0 0.0
        %3337 = vmatprep.subr.mxu0 0.0
        %3338 = vmatpush1.msra.mxu0 0.0
        %3339 = vmatprep.subr.mxu0 0.0
        %3340 = vmatpush1.msra.mxu0 0.0
        %3341 = vmatprep.subr.mxu0 0.0
        %3342 = vmatpush1.msra.mxu0 0.0
        %3343 = vmatprep.subr.mxu0 0.0
        %3344 = vmatpush1.msra.mxu0 0.0
        %3345 = vmatprep.subr.mxu0 0.0
        %3346 = vmatpush1.msra.mxu0 0.0
        %3347 = vmatprep.subr.mxu0 0.0
        %3348 = vmatpush1.msra.mxu0 0.0
        %3349 = vmatprep.subr.mxu0 0.0
        %3350 = vmatpush1.msra.mxu0 0.0
        %3351 = vmatprep.subr.mxu0 0.0
        %3352 = vmatpush1.msra.mxu0 0.0
        %3353 = vmatprep.subr.mxu0 0.0
        %3354 = vmatpush1.msra.mxu0 0.0
        %3355 = vmatprep.subr.mxu0 0.0
        %3356 = vmatpush1.msra.mxu0 0.0
        %3357 = vmatprep.subr.mxu0 0.0
        %3358 = vmatpush1.msra.mxu0 0.0
        %3359 = vmatprep.subr.mxu0 0.0
        %3360 = vmatpush1.msra.mxu0 0.0
        %3361 = vmatprep.subr.mxu0 0.0
        %3362 = vmatpush1.msra.mxu0 0.0
        %3363 = vmatprep.subr.mxu0 0.0
        %3364 = vmatpush1.msra.mxu0 0.0
        %3365 = vmatprep.subr.mxu0 0.0
        %3366 = vmatpush1.msra.mxu0 0.0
        %3367 = vmatprep.subr.mxu0 0.0
        %3368 = vmatpush1.msra.mxu0 0.0
        %3369 = vmatprep.subr.mxu0 0.0
        %3370 = vmatpush1.msra.mxu0 0.0
        %3371 = vmatprep.subr.mxu0 0.0
        %3372 = vmatpush1.msra.mxu0 0.0
        %3373 = vmatprep.subr.mxu0 0.0
        %3374 = vmatpush1.msra.mxu0 0.0
        %3375 = vmatprep.subr.mxu0 0.0
        %3376 = vmatpush1.msra.mxu0 0.0
        %3377 = vmatprep.subr.mxu0 0.0
        %3378 = vmatpush1.msra.mxu0 0.0
        %3379 = vmatprep.subr.mxu0 0.0
        %3380 = vmatpush1.msra.mxu0 0.0
        %3381 = vmatprep.subr.mxu0 0.0
        %3382 = vmatpush1.msra.mxu0 0.0
        %3383 = vmatprep.subr.mxu0 0.0
        %3384 = vmatpush1.msra.mxu0 0.0
        %3385 = vmatprep.subr.mxu0 0.0
        %3386 = vmatpush1.msra.mxu0 0.0
        %3387 = vmatprep.subr.mxu0 0.0
        %3388 = vmatpush1.msra.mxu0 0.0
        %3389 = vmatprep.subr.mxu0 0.0
        %3390 = vmatpush1.msra.mxu0 0.0
        %3391 = vmatprep.subr.mxu0 0.0
        %3392 = vmatpush1.msra.mxu0 0.0
        %3393 = vmatprep.mubr.f32.mxu0 0.0
        %3394 = vmatmul.mubr.f32.gmra.mrb[0].mxu0 %v3327
        %v3395 = vpop.f32.mrb[0].mxu0
        %v3396 = vadd.f32 0.0, %v3395
        %v3397 = vpop.f32.mrb[0].mxu0
        %3398 = vdwg.mxu0
        %3400 = vrot.lane.b32.xlu0 %v3396, 24
        %v3401 = vpop.permute.xlu0 %3400
        %3403 = vst.msk [vmem:[#allocation2] sm:$0xff] %vm2368, %v3401
        %s3404 = scalar_lea.vmem %s1429, 24 [#allocation27]
        %3405 = vst.msk [vmem:[%s3404] sm:$0xff] %vm1690, %v3322
        %v3406 = vld [vmem:[#allocation2] sm:$0xff]
        %s3407 = scalar_lea.vmem %s13, 16
        %v3408 = vld [vmem:[%s3407] sm:$0xf]
        %v3409 = vld [vmem:[%s3407 + $0x4] sm:$0xf]
        %v3410 = vld [vmem:[%s3407 + $0x8] sm:$0xf]
        %v3411 = vld [vmem:[%s3407 + $0xc] sm:$0xf]
        %s3412 = scalar_lea.vmem %s15, 1
        %v3413 = vld [vmem:[%s3412] sm:$0x1]
        %v3414 = vpack.c.bf16 %v3406, %v3406
        %v3416 = vlaneseq
        %v3417 = vshrl.u32 %v3416, 7
        %v3418 = vsub.s32 0, %v3417
        %v3419 = vrot.slane %v3413, %v3418
        %v3425 = vunpack.c.l.b16 %v3408
        %v3426 = vunpack.c.l.b16 %v3409
        %v3427 = vunpack.c.l.b16 %v3410
        %v3428 = vunpack.c.l.b16 %v3411
        %v3429 = vpack.c.b16 %v3426, %v3425
        %v3430 = vpack.c.b16 %v3428, %v3427
        %v3434 = vsel %vm1643, %v3414, 0
        %3436 = vmatprep.subr.bf16.mxu0 0
        %3437 = vmatpush1.bf16.msra.mxu0 %v3429
        %3438 = vmatprep.subr.bf16.mxu0 0
        %3439 = vmatpush1.bf16.msra.mxu0 %v3430
        %3440 = vmatprep.subr.bf16.mxu0 0
        %3441 = vmatpush1.bf16.msra.mxu0 0
        %3442 = vmatprep.subr.bf16.mxu0 0
        %3443 = vmatpush1.bf16.msra.mxu0 0
        %3444 = vmatprep.subr.bf16.mxu0 0
        %3445 = vmatpush1.bf16.msra.mxu0 0
        %3446 = vmatprep.subr.bf16.mxu0 0
        %3447 = vmatpush1.bf16.msra.mxu0 0
        %3448 = vmatprep.subr.bf16.mxu0 0
        %3449 = vmatpush1.bf16.msra.mxu0 0
        %3450 = vmatprep.subr.bf16.mxu0 0
        %3451 = vmatpush1.bf16.msra.mxu0 0
        %3452 = vmatprep.subr.bf16.mxu0 0
        %3453 = vmatpush1.bf16.msra.mxu0 0
        %3454 = vmatprep.subr.bf16.mxu0 0
        %3455 = vmatpush1.bf16.msra.mxu0 0
        %3456 = vmatprep.subr.bf16.mxu0 0
        %3457 = vmatpush1.bf16.msra.mxu0 0
        %3458 = vmatprep.subr.bf16.mxu0 0
        %3459 = vmatpush1.bf16.msra.mxu0 0
        %3460 = vmatprep.subr.bf16.mxu0 0
        %3461 = vmatpush1.bf16.msra.mxu0 0
        %3462 = vmatprep.subr.bf16.mxu0 0
        %3463 = vmatpush1.bf16.msra.mxu0 0
        %3464 = vmatprep.subr.bf16.mxu0 0
        %3465 = vmatpush1.bf16.msra.mxu0 0
        %3466 = vmatprep.subr.bf16.mxu0 0
        %3467 = vmatpush1.bf16.msra.mxu0 0
        %3468 = vmatprep.mubr.bf16.mxu0 0
        %3469 = vmatmul.mubr.bf16.gmra.mrb[0].mxu0 %v3434
        %v3470 = vpop.f32.mrb[0].mxu0
        %v3471 = vadd.f32 %v3419, %v3470
        %v3472 = vpop.f32.mrb[0].mxu0
        %v3473 = vpop.f32.mrb[0].mxu0
        %v3474 = vpop.f32.mrb[0].mxu0
        %3475 = vdwg.mxu0
        %v3476 = vadd.f32 %v2650, %v3471
        %s3477 = scalar_lea.vmem %s17, 1
        %v3478 = vld [vmem:[%s3477] sm:$0x1]
        %s3479 = scalar_lea.vmem %s19, 1
        %v3480 = vld [vmem:[%s3479] sm:$0x1]
        %v3481 = vsel %vm1643, %v3476, 0.0
        %3482 = vadd.xlane.f32.xlu0 %v3481
        %v3483 = vpop.xlane.xlu0 %3482
        %v3484 = vmul.f32 %v3483, %v2444
        %v3485 = vsub.f32 %v3476, %v3484
        %v3486 = vmul.f32 %v3485, %v3485
        %v3487 = vsel %vm1643, %v3486, 0.0
        %3488 = vadd.xlane.f32.xlu0 %v3487
        %v3489 = vpop.xlane.xlu0 %3488
        %v3490 = vmul.f32 %v3489, %v2444
        %v3491 = vadd.f32 %v3490, 1e-05
        %v3492 = vrsqrt.pop %v3491
        %v3493 = vmul.f32 %v3485, %v3492
        %v3495 = vlaneseq
        %v3496 = vshrl.u32 %v3495, 7
        %v3497 = vsub.s32 0, %v3496
        %v3498 = vrot.slane %v3478, %v3497
        %v3500 = vmul.f32 %v3493, %v3498
        %v3502 = vlaneseq
        %v3503 = vshrl.u32 %v3502, 7
        %v3504 = vsub.s32 0, %v3503
        %v3505 = vrot.slane %v3480, %v3504
        %v3507 = vadd.f32 %v3500, %v3505
        %s3508 = scalar_lea.vmem %s21, 16
        %v3509 = vld [vmem:[%s3508] sm:$0xf]
        %v3510 = vld [vmem:[%s3508 + $0x4] sm:$0xf]
        %v3511 = vld [vmem:[%s3508 + $0x8] sm:$0xf]
        %v3512 = vld [vmem:[%s3508 + $0xc] sm:$0xf]
        %s3513 = scalar_lea.vmem [#allocation3], 1
        %v3514 = vld [vmem:[%s3513] sm:$0x1]
        %v3515 = vpack.c.bf16 %v3507, %v3507
        %v3517 = vlaneseq
        %v3518 = vshrl.u32 %v3517, 7
        %v3519 = vsub.s32 0, %v3518
        %v3520 = vrot.slane %v3514, %v3519
        %v3526 = vunpack.c.l.b16 %v3509
        %v3527 = vunpack.c.l.b16 %v3510
        %v3528 = vunpack.c.l.b16 %v3511
        %v3529 = vunpack.c.l.b16 %v3512
        %v3530 = vpack.c.b16 %v3527, %v3526
        %v3531 = vpack.c.b16 %v3529, %v3528
        %v3535 = vsel %vm1643, %v3515, 0
        %3537 = vmatprep.subr.bf16.mxu0 0
        %3538 = vmatpush1.bf16.msra.mxu0 %v3530
        %3539 = vmatprep.subr.bf16.mxu0 0
        %3540 = vmatpush1.bf16.msra.mxu0 %v3531
        %3541 = vmatprep.subr.bf16.mxu0 0
        %3542 = vmatpush1.bf16.msra.mxu0 0
        %3543 = vmatprep.subr.bf16.mxu0 0
        %3544 = vmatpush1.bf16.msra.mxu0 0
        %3545 = vmatprep.subr.bf16.mxu0 0
        %3546 = vmatpush1.bf16.msra.mxu0 0
        %3547 = vmatprep.subr.bf16.mxu0 0
        %3548 = vmatpush1.bf16.msra.mxu0 0
        %3549 = vmatprep.subr.bf16.mxu0 0
        %3550 = vmatpush1.bf16.msra.mxu0 0
        %3551 = vmatprep.subr.bf16.mxu0 0
        %3552 = vmatpush1.bf16.msra.mxu0 0
        %3553 = vmatprep.subr.bf16.mxu0 0
        %3554 = vmatpush1.bf16.msra.mxu0 0
        %3555 = vmatprep.subr.bf16.mxu0 0
        %3556 = vmatpush1.bf16.msra.mxu0 0
        %3557 = vmatprep.subr.bf16.mxu0 0
        %3558 = vmatpush1.bf16.msra.mxu0 0
        %3559 = vmatprep.subr.bf16.mxu0 0
        %3560 = vmatpush1.bf16.msra.mxu0 0
        %3561 = vmatprep.subr.bf16.mxu0 0
        %3562 = vmatpush1.bf16.msra.mxu0 0
        %3563 = vmatprep.subr.bf16.mxu0 0
        %3564 = vmatpush1.bf16.msra.mxu0 0
        %3565 = vmatprep.subr.bf16.mxu0 0
        %3566 = vmatpush1.bf16.msra.mxu0 0
        %3567 = vmatprep.subr.bf16.mxu0 0
        %3568 = vmatpush1.bf16.msra.mxu0 0
        %3569 = vmatprep.mubr.bf16.mxu0 0
        %3570 = vmatmul.mubr.bf16.gmra.mrb[0].mxu0 %v3535
        %v3571 = vpop.f32.mrb[0].mxu0
        %v3572 = vadd.f32 %v3520, %v3571
        %v3573 = vpop.f32.mrb[0].mxu0
        %v3574 = vpop.f32.mrb[0].mxu0
        %v3575 = vpop.f32.mrb[0].mxu0
        %3576 = vdwg.mxu0
        %v3577 = vmax.f32 %v3572, 0.0
        %s3578 = scalar_lea.vmem %s25, 32
        %v3579 = vld [vmem:[%s3578] sm:$0xf]
        %v3580 = vld [vmem:[%s3578 + $0x4] sm:$0xf]
        %v3581 = vld [vmem:[%s3578 + $0x8] sm:$0xf]
        %v3582 = vld [vmem:[%s3578 + $0xc] sm:$0xf]
        %v3583 = vld [vmem:[%s3578 + $0x10] sm:$0xf]
        %v3584 = vld [vmem:[%s3578 + $0x14] sm:$0xf]
        %v3585 = vld [vmem:[%s3578 + $0x18] sm:$0xf]
        %v3586 = vld [vmem:[%s3578 + $0x1c] sm:$0xf]
        %s3587 = scalar_lea.vmem %s27, 1
        %v3588 = vld [vmem:[%s3587] sm:$0x1]
        %v3589 = vpack.c.bf16 %v3577, %v3577
        %v3591 = vlaneseq
        %v3592 = vshrl.u32 %v3591, 7
        %v3593 = vsub.s32 0, %v3592
        %v3594 = vrot.slane %v3588, %v3593
        %v3604 = vunpack.c.l.b16 %v3579
        %v3605 = vunpack.c.l.b16 %v3580
        %v3606 = vunpack.c.l.b16 %v3581
        %v3607 = vunpack.c.l.b16 %v3582
        %v3608 = vunpack.c.l.b16 %v3583
        %v3609 = vunpack.c.l.b16 %v3584
        %v3610 = vunpack.c.l.b16 %v3585
        %v3611 = vunpack.c.l.b16 %v3586
        %v3612 = vpack.c.b16 %v3605, %v3604
        %v3613 = vpack.c.b16 %v3607, %v3606
        %v3614 = vpack.c.b16 %v3609, %v3608
        %v3615 = vpack.c.b16 %v3611, %v3610
        %v3621 = vsel %vm2577, %v3589, 0
        %3623 = vmatprep.subr.bf16.mxu0 0
        %3624 = vmatpush1.bf16.msra.mxu0 %v3612
        %3625 = vmatprep.subr.bf16.mxu0 0
        %3626 = vmatpush1.bf16.msra.mxu0 %v3613
        %3627 = vmatprep.subr.bf16.mxu0 0
        %3628 = vmatpush1.bf16.msra.mxu0 %v3614
        %3629 = vmatprep.subr.bf16.mxu0 0
        %3630 = vmatpush1.bf16.msra.mxu0 %v3615
        %3631 = vmatprep.subr.bf16.mxu0 0
        %3632 = vmatpush1.bf16.msra.mxu0 0
        %3633 = vmatprep.subr.bf16.mxu0 0
        %3634 = vmatpush1.bf16.msra.mxu0 0
        %3635 = vmatprep.subr.bf16.mxu0 0
        %3636 = vmatpush1.bf16.msra.mxu0 0
        %3637 = vmatprep.subr.bf16.mxu0 0
        %3638 = vmatpush1.bf16.msra.mxu0 0
        %3639 = vmatprep.subr.bf16.mxu0 0
        %3640 = vmatpush1.bf16.msra.mxu0 0
        %3641 = vmatprep.subr.bf16.mxu0 0
        %3642 = vmatpush1.bf16.msra.mxu0 0
        %3643 = vmatprep.subr.bf16.mxu0 0
        %3644 = vmatpush1.bf16.msra.mxu0 0
        %3645 = vmatprep.subr.bf16.mxu0 0
        %3646 = vmatpush1.bf16.msra.mxu0 0
        %3647 = vmatprep.subr.bf16.mxu0 0
        %3648 = vmatpush1.bf16.msra.mxu0 0
        %3649 = vmatprep.subr.bf16.mxu0 0
        %3650 = vmatpush1.bf16.msra.mxu0 0
        %3651 = vmatprep.subr.bf16.mxu0 0
        %3652 = vmatpush1.bf16.msra.mxu0 0
        %3653 = vmatprep.subr.bf16.mxu0 0
        %3654 = vmatpush1.bf16.msra.mxu0 0
        %3655 = vmatprep.mubr.bf16.mxu0 0
        %3656 = vmatmul.mubr.bf16.gmra.mrb[0].mxu0 %v3621
        %v3657 = vpop.f32.mrb[0].mxu0
        %v3658 = vadd.f32 %v3594, %v3657
        %v3659 = vpop.f32.mrb[0].mxu0
        %v3660 = vpop.f32.mrb[0].mxu0
        %v3661 = vpop.f32.mrb[0].mxu0
        %3662 = vdwg.mxu0
        %v3663 = vadd.f32 %v3507, %v3658
        %s3664 = scalar_lea.vmem %s29, 1
        %v3665 = vld [vmem:[%s3664] sm:$0x1]
        %s3666 = scalar_lea.vmem %s31, 1
        %v3667 = vld [vmem:[%s3666] sm:$0x1]
        %v3668 = vsel %vm1643, %v3663, 0.0
        %3669 = vadd.xlane.f32.xlu0 %v3668
        %v3670 = vpop.xlane.xlu0 %3669
        %v3671 = vmul.f32 %v3670, %v2444
        %v3672 = vsub.f32 %v3663, %v3671
        %v3673 = vmul.f32 %v3672, %v3672
        %v3674 = vsel %vm1643, %v3673, 0.0
        %3675 = vadd.xlane.f32.xlu0 %v3674
        %v3676 = vpop.xlane.xlu0 %3675
        %v3677 = vmul.f32 %v3676, %v2444
        %v3678 = vadd.f32 %v3677, 1e-05
        %v3679 = vrsqrt.pop %v3678
        %v3680 = vmul.f32 %v3672, %v3679
        %v3682 = vlaneseq
        %v3683 = vshrl.u32 %v3682, 7
        %v3684 = vsub.s32 0, %v3683
        %v3685 = vrot.slane %v3665, %v3684
        %v3687 = vmul.f32 %v3680, %v3685
        %v3689 = vlaneseq
        %v3690 = vshrl.u32 %v3689, 7
        %v3691 = vsub.s32 0, %v3690
        %v3692 = vrot.slane %v3667, %v3691
        %v3694 = vadd.f32 %v3687, %v3692
        %v3695 = vld [vmem:[%s33] sm:$0xf]
        %v3696 = vld [vmem:[%s33 + $0x4] sm:$0xf]
        %v3697 = vld [vmem:[%s33 + $0x8] sm:$0xf]
        %v3698 = vld [vmem:[%s33 + $0xc] sm:$0xf]
        %v3699 = vld [vmem:[#allocation6] sm:$0x1]
        %v3700 = vpack.c.bf16 %v1618, %v1618
        %v3702 = vlaneseq
        %v3703 = vshrl.u32 %v3702, 7
        %v3704 = vsub.s32 0, %v3703
        %v3705 = vrot.slane %v3699, %v3704
        %v3711 = vunpack.c.l.b16 %v3695
        %v3712 = vunpack.c.l.b16 %v3696
        %v3713 = vunpack.c.l.b16 %v3697
        %v3714 = vunpack.c.l.b16 %v3698
        %v3715 = vpack.c.b16 %v3712, %v3711
        %v3716 = vpack.c.b16 %v3714, %v3713
        %v3720 = vsel %vm1643, %v3700, 0
        %3722 = vmatprep.subr.bf16.mxu0 0
        %3723 = vmatpush1.bf16.msra.mxu0 %v3715
        %3724 = vmatprep.subr.bf16.mxu0 0
        %3725 = vmatpush1.bf16.msra.mxu0 %v3716
        %3726 = vmatprep.subr.bf16.mxu0 0
        %3727 = vmatpush1.bf16.msra.mxu0 0
        %3728 = vmatprep.subr.bf16.mxu0 0
        %3729 = vmatpush1.bf16.msra.mxu0 0
        %3730 = vmatprep.subr.bf16.mxu0 0
        %3731 = vmatpush1.bf16.msra.mxu0 0
        %3732 = vmatprep.subr.bf16.mxu0 0
        %3733 = vmatpush1.bf16.msra.mxu0 0
        %3734 = vmatprep.subr.bf16.mxu0 0
        %3735 = vmatpush1.bf16.msra.mxu0 0
        %3736 = vmatprep.subr.bf16.mxu0 0
        %3737 = vmatpush1.bf16.msra.mxu0 0
        %3738 = vmatprep.subr.bf16.mxu0 0
        %3739 = vmatpush1.bf16.msra.mxu0 0
        %3740 = vmatprep.subr.bf16.mxu0 0
        %3741 = vmatpush1.bf16.msra.mxu0 0
        %3742 = vmatprep.subr.bf16.mxu0 0
        %3743 = vmatpush1.bf16.msra.mxu0 0
        %3744 = vmatprep.subr.bf16.mxu0 0
        %3745 = vmatpush1.bf16.msra.mxu0 0
        %3746 = vmatprep.subr.bf16.mxu0 0
        %3747 = vmatpush1.bf16.msra.mxu0 0
        %3748 = vmatprep.subr.bf16.mxu0 0
        %3749 = vmatpush1.bf16.msra.mxu0 0
        %3750 = vmatprep.subr.bf16.mxu0 0
        %3751 = vmatpush1.bf16.msra.mxu0 0
        %3752 = vmatprep.subr.bf16.mxu0 0
        %3753 = vmatpush1.bf16.msra.mxu0 0
        %3754 = vmatprep.mubr.bf16.mxu0 0
        %3755 = vmatmul.mubr.bf16.gmra.mrb[0].mxu0 %v3720
        %v3756 = vpop.f32.mrb[0].mxu0
        %v3757 = vadd.f32 %v3705, %v3756
        %v3758 = vpop.f32.mrb[0].mxu0
        %v3759 = vpop.f32.mrb[0].mxu0
        %v3760 = vpop.f32.mrb[0].mxu0
        %3761 = vdwg.mxu0
        %v3762 = vlaneseq
        %v3763 = vshrl.u32 %v3762, 7
        %vm3764 = vcmp.le.s32.totalorder %v1448, %v3763
        %3766 = vrot.lane.b32.xlu0 %v3757, 96
        %v3767 = vpop.permute.xlu0 %3766
        %v3768 = vsel %vm1690, %v3757, 0
        %v3770 = vsel %vm1690, %v3767, 0
        %3772 = vmatprep.subr.mxu0 0.0
        %3773 = vmatpush1.xpose.msra.mxu0 %v3770
        %3774 = vmatprep.subr.mxu0 0.0
        %3775 = vmatpush1.xpose.msra.mxu0 0.0
        %3776 = vmatprep.subr.mxu0 0.0
        %3777 = vmatpush1.xpose.msra.mxu0 0.0
        %3778 = vmatprep.subr.mxu0 0.0
        %3779 = vmatpush1.xpose.msra.mxu0 0.0
        %3780 = vmatprep.subr.mxu0 0.0
        %3781 = vmatpush1.xpose.msra.mxu0 0.0
        %3782 = vmatprep.subr.mxu0 0.0
        %3783 = vmatpush1.xpose.msra.mxu0 0.0
        %3784 = vmatprep.subr.mxu0 0.0
        %3785 = vmatpush1.xpose.msra.mxu0 0.0
        %3786 = vmatprep.subr.mxu0 0.0
        %3787 = vmatpush1.xpose.msra.mxu0 0.0
        %3788 = vmatprep.subr.mxu0 0.0
        %3789 = vmatpush1.xpose.msra.mxu0 0.0
        %3790 = vmatprep.subr.mxu0 0.0
        %3791 = vmatpush1.xpose.msra.mxu0 0.0
        %3792 = vmatprep.subr.mxu0 0.0
        %3793 = vmatpush1.xpose.msra.mxu0 0.0
        %3794 = vmatprep.subr.mxu0 0.0
        %3795 = vmatpush1.xpose.msra.mxu0 0.0
        %3796 = vmatprep.subr.mxu0 0.0
        %3797 = vmatpush1.xpose.msra.mxu0 0.0
        %3798 = vmatprep.subr.mxu0 0.0
        %3799 = vmatpush1.xpose.msra.mxu0 0.0
        %3800 = vmatprep.subr.mxu0 0.0
        %3801 = vmatpush1.xpose.msra.mxu0 0.0
        %3802 = vmatprep.subr.mxu0 0.0
        %3803 = vmatpush1.xpose.msra.mxu0 0.0
        %3804 = vmatprep.subr.mxu0 0.0
        %3805 = vmatpush1.xpose.msra.mxu0 0.0
        %3806 = vmatprep.subr.mxu0 0.0
        %3807 = vmatpush1.xpose.msra.mxu0 0.0
        %3808 = vmatprep.subr.mxu0 0.0
        %3809 = vmatpush1.xpose.msra.mxu0 0.0
        %3810 = vmatprep.subr.mxu0 0.0
        %3811 = vmatpush1.xpose.msra.mxu0 0.0
        %3812 = vmatprep.subr.mxu0 0.0
        %3813 = vmatpush1.xpose.msra.mxu0 0.0
        %3814 = vmatprep.subr.mxu0 0.0
        %3815 = vmatpush1.xpose.msra.mxu0 0.0
        %3816 = vmatprep.subr.mxu0 0.0
        %3817 = vmatpush1.xpose.msra.mxu0 0.0
        %3818 = vmatprep.subr.mxu0 0.0
        %3819 = vmatpush1.xpose.msra.mxu0 0.0
        %3820 = vmatprep.subr.mxu0 0.0
        %3821 = vmatpush1.xpose.msra.mxu0 0.0
        %3822 = vmatprep.subr.mxu0 0.0
        %3823 = vmatpush1.xpose.msra.mxu0 0.0
        %3824 = vmatprep.subr.mxu0 0.0
        %3825 = vmatpush1.xpose.msra.mxu0 0.0
        %3826 = vmatprep.subr.mxu0 0.0
        %3827 = vmatpush1.xpose.msra.mxu0 0.0
        %3828 = vmatprep.subr.mxu0 0.0
        %3829 = vmatpush1.xpose.msra.mxu0 0.0
        %3830 = vmatprep.subr.mxu0 0.0
        %3831 = vmatpush1.xpose.msra.mxu0 0.0
        %3832 = vmatprep.subr.mxu0 0.0
        %3833 = vmatpush1.xpose.msra.mxu0 0.0
        %3834 = vmatprep.subr.mxu0 0.0
        %3835 = vmatpush1.xpose.msra.mxu0 0.0
        %3836 = vmatprep.mubr.f32.mxu0 0.0
        %3837 = vmatmul.mubr.f32.gmra.mrb[0].mxu0 %v3768
        %v3838 = vpop.f32.mrb[0].mxu0
        %v3839 = vadd.f32 0.0, %v3838
        %v3840 = vpop.f32.mrb[0].mxu0
        %3841 = vdwg.mxu0
        %v3842 = vmul.f32 %v3839, 0.35355338
        %v3843 = vsel %vm3764, %v3842, -1e+30
        %v3844 = vsel %vm1690, %v3843, -inf
        %3845 = vmax.xlane.f32.xlu0 %v3844
        %v3846 = vpop.xlane.xlu0 %3845
        %v3847 = vsub.f32 %v3843, %v3846
        %v3848 = vmul.f32 %v3847, 1.442695
        %v3849 = vpow.pop %v3848
        %v3850 = vsel %vm1690, %v3849, 0.0
        %3851 = vadd.xlane.f32.xlu0 %v3850
        %v3852 = vpop.xlane.xlu0 %3851
        %v3853 = vrcp.pop %v3852
        %v3854 = vmul.f32 %v3849, %v3853
        %3855 = vrot.lane.b32.xlu0 %v3757, 64
        %v3856 = vpop.permute.xlu0 %3855
        %v3859 = vsel %vm1690, %v3854, 0
        %3861 = vmatprep.subr.mxu0 0.0
        %3862 = vmatpush1.msra.mxu0 %v3856
        %3863 = vmatprep.subr.mxu0 0.0
        %3864 = vmatpush1.msra.mxu0 0.0
        %3865 = vmatprep.subr.mxu0 0.0
        %3866 = vmatpush1.msra.mxu0 0.0
        %3867 = vmatprep.subr.mxu0 0.0
        %3868 = vmatpush1.msra.mxu0 0.0
        %3869 = vmatprep.subr.mxu0 0.0
        %3870 = vmatpush1.msra.mxu0 0.0
        %3871 = vmatprep.subr.mxu0 0.0
        %3872 = vmatpush1.msra.mxu0 0.0
        %3873 = vmatprep.subr.mxu0 0.0
        %3874 = vmatpush1.msra.mxu0 0.0
        %3875 = vmatprep.subr.mxu0 0.0
        %3876 = vmatpush1.msra.mxu0 0.0
        %3877 = vmatprep.subr.mxu0 0.0
        %3878 = vmatpush1.msra.mxu0 0.0
        %3879 = vmatprep.subr.mxu0 0.0
        %3880 = vmatpush1.msra.mxu0 0.0
        %3881 = vmatprep.subr.mxu0 0.0
        %3882 = vmatpush1.msra.mxu0 0.0
        %3883 = vmatprep.subr.mxu0 0.0
        %3884 = vmatpush1.msra.mxu0 0.0
        %3885 = vmatprep.subr.mxu0 0.0
        %3886 = vmatpush1.msra.mxu0 0.0
        %3887 = vmatprep.subr.mxu0 0.0
        %3888 = vmatpush1.msra.mxu0 0.0
        %3889 = vmatprep.subr.mxu0 0.0
        %3890 = vmatpush1.msra.mxu0 0.0
        %3891 = vmatprep.subr.mxu0 0.0
        %3892 = vmatpush1.msra.mxu0 0.0
        %3893 = vmatprep.subr.mxu0 0.0
        %3894 = vmatpush1.msra.mxu0 0.0
        %3895 = vmatprep.subr.mxu0 0.0
        %3896 = vmatpush1.msra.mxu0 0.0
        %3897 = vmatprep.subr.mxu0 0.0
        %3898 = vmatpush1.msra.mxu0 0.0
        %3899 = vmatprep.subr.mxu0 0.0
        %3900 = vmatpush1.msra.mxu0 0.0
        %3901 = vmatprep.subr.mxu0 0.0
        %3902 = vmatpush1.msra.mxu0 0.0
        %3903 = vmatprep.subr.mxu0 0.0
        %3904 = vmatpush1.msra.mxu0 0.0
        %3905 = vmatprep.subr.mxu0 0.0
        %3906 = vmatpush1.msra.mxu0 0.0
        %3907 = vmatprep.subr.mxu0 0.0
        %3908 = vmatpush1.msra.mxu0 0.0
        %3909 = vmatprep.subr.mxu0 0.0
        %3910 = vmatpush1.msra.mxu0 0.0
        %3911 = vmatprep.subr.mxu0 0.0
        %3912 = vmatpush1.msra.mxu0 0.0
        %3913 = vmatprep.subr.mxu0 0.0
        %3914 = vmatpush1.msra.mxu0 0.0
        %3915 = vmatprep.subr.mxu0 0.0
        %3916 = vmatpush1.msra.mxu0 0.0
        %3917 = vmatprep.subr.mxu0 0.0
        %3918 = vmatpush1.msra.mxu0 0.0
        %3919 = vmatprep.subr.mxu0 0.0
        %3920 = vmatpush1.msra.mxu0 0.0
        %3921 = vmatprep.subr.mxu0 0.0
        %3922 = vmatpush1.msra.mxu0 0.0
        %3923 = vmatprep.subr.mxu0 0.0
        %3924 = vmatpush1.msra.mxu0 0.0
        %3925 = vmatprep.mubr.f32.mxu0 0.0
        %3926 = vmatmul.mubr.f32.gmra.mrb[0].mxu0 %v3859
        %v3927 = vpop.f32.mrb[0].mxu0
        %v3928 = vadd.f32 0.0, %v3927
        %v3929 = vpop.f32.mrb[0].mxu0
        %3930 = vdwg.mxu0
        %3931 = vst.msk [vmem:[#allocation2] sm:$0xff] %vm1690, %v3928
        %3932 = vrot.lane.b32.xlu0 %v3757, 120
        %v3933 = vpop.permute.xlu0 %3932
        %3934 = vrot.lane.b32.xlu0 %v3757, 88
        %v3935 = vpop.permute.xlu0 %3934
        %v3936 = vsel %vm1690, %v3933, 0
        %v3938 = vsel %vm1690, %v3935, 0
        %3940 = vmatprep.subr.mxu0 0.0
        %3941 = vmatpush1.xpose.msra.mxu0 %v3938
        %3942 = vmatprep.subr.mxu0 0.0
        %3943 = vmatpush1.xpose.msra.mxu0 0.0
        %3944 = vmatprep.subr.mxu0 0.0
        %3945 = vmatpush1.xpose.msra.mxu0 0.0
        %3946 = vmatprep.subr.mxu0 0.0
        %3947 = vmatpush1.xpose.msra.mxu0 0.0
        %3948 = vmatprep.subr.mxu0 0.0
        %3949 = vmatpush1.xpose.msra.mxu0 0.0
        %3950 = vmatprep.subr.mxu0 0.0
        %3951 = vmatpush1.xpose.msra.mxu0 0.0
        %3952 = vmatprep.subr.mxu0 0.0
        %3953 = vmatpush1.xpose.msra.mxu0 0.0
        %3954 = vmatprep.subr.mxu0 0.0
        %3955 = vmatpush1.xpose.msra.mxu0 0.0
        %3956 = vmatprep.subr.mxu0 0.0
        %3957 = vmatpush1.xpose.msra.mxu0 0.0
        %3958 = vmatprep.subr.mxu0 0.0
        %3959 = vmatpush1.xpose.msra.mxu0 0.0
        %3960 = vmatprep.subr.mxu0 0.0
        %3961 = vmatpush1.xpose.msra.mxu0 0.0
        %3962 = vmatprep.subr.mxu0 0.0
        %3963 = vmatpush1.xpose.msra.mxu0 0.0
        %3964 = vmatprep.subr.mxu0 0.0
        %3965 = vmatpush1.xpose.msra.mxu0 0.0
        %3966 = vmatprep.subr.mxu0 0.0
        %3967 = vmatpush1.xpose.msra.mxu0 0.0
        %3968 = vmatprep.subr.mxu0 0.0
        %3969 = vmatpush1.xpose.msra.mxu0 0.0
        %3970 = vmatprep.subr.mxu0 0.0
        %3971 = vmatpush1.xpose.msra.mxu0 0.0
        %3972 = vmatprep.subr.mxu0 0.0
        %3973 = vmatpush1.xpose.msra.mxu0 0.0
        %3974 = vmatprep.subr.mxu0 0.0
        %3975 = vmatpush1.xpose.msra.mxu0 0.0
        %3976 = vmatprep.subr.mxu0 0.0
        %3977 = vmatpush1.xpose.msra.mxu0 0.0
        %3978 = vmatprep.subr.mxu0 0.0
        %3979 = vmatpush1.xpose.msra.mxu0 0.0
        %3980 = vmatprep.subr.mxu0 0.0
        %3981 = vmatpush1.xpose.msra.mxu0 0.0
        %3982 = vmatprep.subr.mxu0 0.0
        %3983 = vmatpush1.xpose.msra.mxu0 0.0
        %3984 = vmatprep.subr.mxu0 0.0
        %3985 = vmatpush1.xpose.msra.mxu0 0.0
        %3986 = vmatprep.subr.mxu0 0.0
        %3987 = vmatpush1.xpose.msra.mxu0 0.0
        %3988 = vmatprep.subr.mxu0 0.0
        %3989 = vmatpush1.xpose.msra.mxu0 0.0
        %3990 = vmatprep.subr.mxu0 0.0
        %3991 = vmatpush1.xpose.msra.mxu0 0.0
        %3992 = vmatprep.subr.mxu0 0.0
        %3993 = vmatpush1.xpose.msra.mxu0 0.0
        %3994 = vmatprep.subr.mxu0 0.0
        %3995 = vmatpush1.xpose.msra.mxu0 0.0
        %3996 = vmatprep.subr.mxu0 0.0
        %3997 = vmatpush1.xpose.msra.mxu0 0.0
        %3998 = vmatprep.subr.mxu0 0.0
        %3999 = vmatpush1.xpose.msra.mxu0 0.0
        %4000 = vmatprep.subr.mxu0 0.0
        %4001 = vmatpush1.xpose.msra.mxu0 0.0
        %4002 = vmatprep.subr.mxu0 0.0
        %4003 = vmatpush1.xpose.msra.mxu0 0.0
        %4004 = vmatprep.mubr.f32.mxu0 0.0
        %4005 = vmatmul.mubr.f32.gmra.mrb[0].mxu0 %v3936
        %v4006 = vpop.f32.mrb[0].mxu0
        %v4007 = vadd.f32 0.0, %v4006
        %v4008 = vpop.f32.mrb[0].mxu0
        %4009 = vdwg.mxu0
        %v4010 = vmul.f32 %v4007, 0.35355338
        %v4011 = vsel %vm3764, %v4010, -1e+30
        %v4012 = vsel %vm1690, %v4011, -inf
        %4013 = vmax.xlane.f32.xlu0 %v4012
        %v4014 = vpop.xlane.xlu0 %4013
        %v4015 = vsub.f32 %v4011, %v4014
        %v4016 = vmul.f32 %v4015, 1.442695
        %v4017 = vpow.pop %v4016
        %v4018 = vsel %vm1690, %v4017, 0.0
        %4019 = vadd.xlane.f32.xlu0 %v4018
        %v4020 = vpop.xlane.xlu0 %4019
        %v4021 = vrcp.pop %v4020
        %v4022 = vmul.f32 %v4017, %v4021
        %4023 = vrot.lane.b32.xlu0 %v3757, 56
        %v4024 = vpop.permute.xlu0 %4023
        %v4027 = vsel %vm1690, %v4022, 0
        %4029 = vmatprep.subr.mxu0 0.0
        %4030 = vmatpush1.msra.mxu0 %v4024
        %4031 = vmatprep.subr.mxu0 0.0
        %4032 = vmatpush1.msra.mxu0 0.0
        %4033 = vmatprep.subr.mxu0 0.0
        %4034 = vmatpush1.msra.mxu0 0.0
        %4035 = vmatprep.subr.mxu0 0.0
        %4036 = vmatpush1.msra.mxu0 0.0
        %4037 = vmatprep.subr.mxu0 0.0
        %4038 = vmatpush1.msra.mxu0 0.0
        %4039 = vmatprep.subr.mxu0 0.0
        %4040 = vmatpush1.msra.mxu0 0.0
        %4041 = vmatprep.subr.mxu0 0.0
        %4042 = vmatpush1.msra.mxu0 0.0
        %4043 = vmatprep.subr.mxu0 0.0
        %4044 = vmatpush1.msra.mxu0 0.0
        %4045 = vmatprep.subr.mxu0 0.0
        %4046 = vmatpush1.msra.mxu0 0.0
        %4047 = vmatprep.subr.mxu0 0.0
        %4048 = vmatpush1.msra.mxu0 0.0
        %4049 = vmatprep.subr.mxu0 0.0
        %4050 = vmatpush1.msra.mxu0 0.0
        %4051 = vmatprep.subr.mxu0 0.0
        %4052 = vmatpush1.msra.mxu0 0.0
        %4053 = vmatprep.subr.mxu0 0.0
        %4054 = vmatpush1.msra.mxu0 0.0
        %4055 = vmatprep.subr.mxu0 0.0
        %4056 = vmatpush1.msra.mxu0 0.0
        %4057 = vmatprep.subr.mxu0 0.0
        %4058 = vmatpush1.msra.mxu0 0.0
        %4059 = vmatprep.subr.mxu0 0.0
        %4060 = vmatpush1.msra.mxu0 0.0
        %4061 = vmatprep.subr.mxu0 0.0
        %4062 = vmatpush1.msra.mxu0 0.0
        %4063 = vmatprep.subr.mxu0 0.0
        %4064 = vmatpush1.msra.mxu0 0.0
        %4065 = vmatprep.subr.mxu0 0.0
        %4066 = vmatpush1.msra.mxu0 0.0
        %4067 = vmatprep.subr.mxu0 0.0
        %4068 = vmatpush1.msra.mxu0 0.0
        %4069 = vmatprep.subr.mxu0 0.0
        %4070 = vmatpush1.msra.mxu0 0.0
        %4071 = vmatprep.subr.mxu0 0.0
        %4072 = vmatpush1.msra.mxu0 0.0
        %4073 = vmatprep.subr.mxu0 0.0
        %4074 = vmatpush1.msra.mxu0 0.0
        %4075 = vmatprep.subr.mxu0 0.0
        %4076 = vmatpush1.msra.mxu0 0.0
        %4077 = vmatprep.subr.mxu0 0.0
        %4078 = vmatpush1.msra.mxu0 0.0
        %4079 = vmatprep.subr.mxu0 0.0
        %4080 = vmatpush1.msra.mxu0 0.0
        %4081 = vmatprep.subr.mxu0 0.0
        %4082 = vmatpush1.msra.mxu0 0.0
        %4083 = vmatprep.subr.mxu0 0.0
        %4084 = vmatpush1.msra.mxu0 0.0
        %4085 = vmatprep.subr.mxu0 0.0
        %4086 = vmatpush1.msra.mxu0 0.0
        %4087 = vmatprep.subr.mxu0 0.0
        %4088 = vmatpush1.msra.mxu0 0.0
        %4089 = vmatprep.subr.mxu0 0.0
        %4090 = vmatpush1.msra.mxu0 0.0
        %4091 = vmatprep.subr.mxu0 0.0
        %4092 = vmatpush1.msra.mxu0 0.0
        %4093 = vmatprep.mubr.f32.mxu0 0.0
        %4094 = vmatmul.mubr.f32.gmra.mrb[0].mxu0 %v4027
        %v4095 = vpop.f32.mrb[0].mxu0
        %v4096 = vadd.f32 0.0, %v4095
        %v4097 = vpop.f32.mrb[0].mxu0
        %4098 = vdwg.mxu0
        %4100 = vrot.lane.b32.xlu0 %v4096, 8
        %v4101 = vpop.permute.xlu0 %4100
        %4103 = vst.msk [vmem:[#allocation2] sm:$0xff] %vm2024, %v4101
        %4104 = vrot.lane.b32.xlu0 %v3757, 112
        %v4105 = vpop.permute.xlu0 %4104
        %4106 = vrot.lane.b32.xlu0 %v3757, 80
        %v4107 = vpop.permute.xlu0 %4106
        %v4108 = vsel %vm1690, %v4105, 0
        %v4110 = vsel %vm1690, %v4107, 0
        %4112 = vmatprep.subr.mxu0 0.0
        %4113 = vmatpush1.xpose.msra.mxu0 %v4110
        %4114 = vmatprep.subr.mxu0 0.0
        %4115 = vmatpush1.xpose.msra.mxu0 0.0
        %4116 = vmatprep.subr.mxu0 0.0
        %4117 = vmatpush1.xpose.msra.mxu0 0.0
        %4118 = vmatprep.subr.mxu0 0.0
        %4119 = vmatpush1.xpose.msra.mxu0 0.0
        %4120 = vmatprep.subr.mxu0 0.0
        %4121 = vmatpush1.xpose.msra.mxu0 0.0
        %4122 = vmatprep.subr.mxu0 0.0
        %4123 = vmatpush1.xpose.msra.mxu0 0.0
        %4124 = vmatprep.subr.mxu0 0.0
        %4125 = vmatpush1.xpose.msra.mxu0 0.0
        %4126 = vmatprep.subr.mxu0 0.0
        %4127 = vmatpush1.xpose.msra.mxu0 0.0
        %4128 = vmatprep.subr.mxu0 0.0
        %4129 = vmatpush1.xpose.msra.mxu0 0.0
        %4130 = vmatprep.subr.mxu0 0.0
        %4131 = vmatpush1.xpose.msra.mxu0 0.0
        %4132 = vmatprep.subr.mxu0 0.0
        %4133 = vmatpush1.xpose.msra.mxu0 0.0
        %4134 = vmatprep.subr.mxu0 0.0
        %4135 = vmatpush1.xpose.msra.mxu0 0.0
        %4136 = vmatprep.subr.mxu0 0.0
        %4137 = vmatpush1.xpose.msra.mxu0 0.0
        %4138 = vmatprep.subr.mxu0 0.0
        %4139 = vmatpush1.xpose.msra.mxu0 0.0
        %4140 = vmatprep.subr.mxu0 0.0
        %4141 = vmatpush1.xpose.msra.mxu0 0.0
        %4142 = vmatprep.subr.mxu0 0.0
        %4143 = vmatpush1.xpose.msra.mxu0 0.0
        %4144 = vmatprep.subr.mxu0 0.0
        %4145 = vmatpush1.xpose.msra.mxu0 0.0
        %4146 = vmatprep.subr.mxu0 0.0
        %4147 = vmatpush1.xpose.msra.mxu0 0.0
        %4148 = vmatprep.subr.mxu0 0.0
        %4149 = vmatpush1.xpose.msra.mxu0 0.0
        %4150 = vmatprep.subr.mxu0 0.0
        %4151 = vmatpush1.xpose.msra.mxu0 0.0
        %4152 = vmatprep.subr.mxu0 0.0
        %4153 = vmatpush1.xpose.msra.mxu0 0.0
        %4154 = vmatprep.subr.mxu0 0.0
        %4155 = vmatpush1.xpose.msra.mxu0 0.0
        %4156 = vmatprep.subr.mxu0 0.0
        %4157 = vmatpush1.xpose.msra.mxu0 0.0
        %4158 = vmatprep.subr.mxu0 0.0
        %4159 = vmatpush1.xpose.msra.mxu0 0.0
        %4160 = vmatprep.subr.mxu0 0.0
        %4161 = vmatpush1.xpose.msra.mxu0 0.0
        %4162 = vmatprep.subr.mxu0 0.0
        %4163 = vmatpush1.xpose.msra.mxu0 0.0
        %4164 = vmatprep.subr.mxu0 0.0
        %4165 = vmatpush1.xpose.msra.mxu0 0.0
        %4166 = vmatprep.subr.mxu0 0.0
        %4167 = vmatpush1.xpose.msra.mxu0 0.0
        %4168 = vmatprep.subr.mxu0 0.0
        %4169 = vmatpush1.xpose.msra.mxu0 0.0
        %4170 = vmatprep.subr.mxu0 0.0
        %4171 = vmatpush1.xpose.msra.mxu0 0.0
        %4172 = vmatprep.subr.mxu0 0.0
        %4173 = vmatpush1.xpose.msra.mxu0 0.0
        %4174 = vmatprep.subr.mxu0 0.0
        %4175 = vmatpush1.xpose.msra.mxu0 0.0
        %4176 = vmatprep.mubr.f32.mxu0 0.0
        %4177 = vmatmul.mubr.f32.gmra.mrb[0].mxu0 %v4108
        %v4178 = vpop.f32.mrb[0].mxu0
        %v4179 = vadd.f32 0.0, %v4178
        %v4180 = vpop.f32.mrb[0].mxu0
        %4181 = vdwg.mxu0
        %v4182 = vmul.f32 %v4179, 0.35355338
        %v4183 = vsel %vm3764, %v4182, -1e+30
        %v4184 = vsel %vm1690, %v4183, -inf
        %4185 = vmax.xlane.f32.xlu0 %v4184
        %v4186 = vpop.xlane.xlu0 %4185
        %v4187 = vsub.f32 %v4183, %v4186
        %v4188 = vmul.f32 %v4187, 1.442695
        %v4189 = vpow.pop %v4188
        %v4190 = vsel %vm1690, %v4189, 0.0
        %4191 = vadd.xlane.f32.xlu0 %v4190
        %v4192 = vpop.xlane.xlu0 %4191
        %v4193 = vrcp.pop %v4192
        %v4194 = vmul.f32 %v4189, %v4193
        %4195 = vrot.lane.b32.xlu0 %v3757, 48
        %v4196 = vpop.permute.xlu0 %4195
        %v4199 = vsel %vm1690, %v4194, 0
        %4201 = vmatprep.subr.mxu0 0.0
        %4202 = vmatpush1.msra.mxu0 %v4196
        %4203 = vmatprep.subr.mxu0 0.0
        %4204 = vmatpush1.msra.mxu0 0.0
        %4205 = vmatprep.subr.mxu0 0.0
        %4206 = vmatpush1.msra.mxu0 0.0
        %4207 = vmatprep.subr.mxu0 0.0
        %4208 = vmatpush1.msra.mxu0 0.0
        %4209 = vmatprep.subr.mxu0 0.0
        %4210 = vmatpush1.msra.mxu0 0.0
        %4211 = vmatprep.subr.mxu0 0.0
        %4212 = vmatpush1.msra.mxu0 0.0
        %4213 = vmatprep.subr.mxu0 0.0
        %4214 = vmatpush1.msra.mxu0 0.0
        %4215 = vmatprep.subr.mxu0 0.0
        %4216 = vmatpush1.msra.mxu0 0.0
        %4217 = vmatprep.subr.mxu0 0.0
        %4218 = vmatpush1.msra.mxu0 0.0
        %4219 = vmatprep.subr.mxu0 0.0
        %4220 = vmatpush1.msra.mxu0 0.0
        %4221 = vmatprep.subr.mxu0 0.0
        %4222 = vmatpush1.msra.mxu0 0.0
        %4223 = vmatprep.subr.mxu0 0.0
        %4224 = vmatpush1.msra.mxu0 0.0
        %4225 = vmatprep.subr.mxu0 0.0
        %4226 = vmatpush1.msra.mxu0 0.0
        %4227 = vmatprep.subr.mxu0 0.0
        %4228 = vmatpush1.msra.mxu0 0.0
        %4229 = vmatprep.subr.mxu0 0.0
        %4230 = vmatpush1.msra.mxu0 0.0
        %4231 = vmatprep.subr.mxu0 0.0
        %4232 = vmatpush1.msra.mxu0 0.0
        %4233 = vmatprep.subr.mxu0 0.0
        %4234 = vmatpush1.msra.mxu0 0.0
        %4235 = vmatprep.subr.mxu0 0.0
        %4236 = vmatpush1.msra.mxu0 0.0
        %4237 = vmatprep.subr.mxu0 0.0
        %4238 = vmatpush1.msra.mxu0 0.0
        %4239 = vmatprep.subr.mxu0 0.0
        %4240 = vmatpush1.msra.mxu0 0.0
        %4241 = vmatprep.subr.mxu0 0.0
        %4242 = vmatpush1.msra.mxu0 0.0
        %4243 = vmatprep.subr.mxu0 0.0
        %4244 = vmatpush1.msra.mxu0 0.0
        %4245 = vmatprep.subr.mxu0 0.0
        %4246 = vmatpush1.msra.mxu0 0.0
        %4247 = vmatprep.subr.mxu0 0.0
        %4248 = vmatpush1.msra.mxu0 0.0
        %4249 = vmatprep.subr.mxu0 0.0
        %4250 = vmatpush1.msra.mxu0 0.0
        %4251 = vmatprep.subr.mxu0 0.0
        %4252 = vmatpush1.msra.mxu0 0.0
        %4253 = vmatprep.subr.mxu0 0.0
        %4254 = vmatpush1.msra.mxu0 0.0
        %4255 = vmatprep.subr.mxu0 0.0
        %4256 = vmatpush1.msra.mxu0 0.0
        %4257 = vmatprep.subr.mxu0 0.0
        %4258 = vmatpush1.msra.mxu0 0.0
        %4259 = vmatprep.subr.mxu0 0.0
        %4260 = vmatpush1.msra.mxu0 0.0
        %4261 = vmatprep.subr.mxu0 0.0
        %4262 = vmatpush1.msra.mxu0 0.0
        %4263 = vmatprep.subr.mxu0 0.0
        %4264 = vmatpush1.msra.mxu0 0.0
        %4265 = vmatprep.mubr.f32.mxu0 0.0
        %4266 = vmatmul.mubr.f32.gmra.mrb[0].mxu0 %v4199
        %v4267 = vpop.f32.mrb[0].mxu0
        %v4268 = vadd.f32 0.0, %v4267
        %v4269 = vpop.f32.mrb[0].mxu0
        %4270 = vdwg.mxu0
        %4272 = vrot.lane.b32.xlu0 %v4268, 16
        %v4273 = vpop.permute.xlu0 %4272
        %4275 = vst.msk [vmem:[#allocation2] sm:$0xff] %vm2196, %v4273
        %4276 = vrot.lane.b32.xlu0 %v3757, 104
        %v4277 = vpop.permute.xlu0 %4276
        %4278 = vrot.lane.b32.xlu0 %v3757, 72
        %v4279 = vpop.permute.xlu0 %4278
        %v4280 = vsel %vm1690, %v4277, 0
        %v4282 = vsel %vm1690, %v4279, 0
        %4284 = vmatprep.subr.mxu0 0.0
        %4285 = vmatpush1.xpose.msra.mxu0 %v4282
        %4286 = vmatprep.subr.mxu0 0.0
        %4287 = vmatpush1.xpose.msra.mxu0 0.0
        %4288 = vmatprep.subr.mxu0 0.0
        %4289 = vmatpush1.xpose.msra.mxu0 0.0
        %4290 = vmatprep.subr.mxu0 0.0
        %4291 = vmatpush1.xpose.msra.mxu0 0.0
        %4292 = vmatprep.subr.mxu0 0.0
        %4293 = vmatpush1.xpose.msra.mxu0 0.0
        %4294 = vmatprep.subr.mxu0 0.0
        %4295 = vmatpush1.xpose.msra.mxu0 0.0
        %4296 = vmatprep.subr.mxu0 0.0
        %4297 = vmatpush1.xpose.msra.mxu0 0.0
        %4298 = vmatprep.subr.mxu0 0.0
        %4299 = vmatpush1.xpose.msra.mxu0 0.0
        %4300 = vmatprep.subr.mxu0 0.0
        %4301 = vmatpush1.xpose.msra.mxu0 0.0
        %4302 = vmatprep.subr.mxu0 0.0
        %4303 = vmatpush1.xpose.msra.mxu0 0.0
        %4304 = vmatprep.subr.mxu0 0.0
        %4305 = vmatpush1.xpose.msra.mxu0 0.0
        %4306 = vmatprep.subr.mxu0 0.0
        %4307 = vmatpush1.xpose.msra.mxu0 0.0
        %4308 = vmatprep.subr.mxu0 0.0
        %4309 = vmatpush1.xpose.msra.mxu0 0.0
        %4310 = vmatprep.subr.mxu0 0.0
        %4311 = vmatpush1.xpose.msra.mxu0 0.0
        %4312 = vmatprep.subr.mxu0 0.0
        %4313 = vmatpush1.xpose.msra.mxu0 0.0
        %4314 = vmatprep.subr.mxu0 0.0
        %4315 = vmatpush1.xpose.msra.mxu0 0.0
        %4316 = vmatprep.subr.mxu0 0.0
        %4317 = vmatpush1.xpose.msra.mxu0 0.0
        %4318 = vmatprep.subr.mxu0 0.0
        %4319 = vmatpush1.xpose.msra.mxu0 0.0
        %4320 = vmatprep.subr.mxu0 0.0
        %4321 = vmatpush1.xpose.msra.mxu0 0.0
        %4322 = vmatprep.subr.mxu0 0.0
        %4323 = vmatpush1.xpose.msra.mxu0 0.0
        %4324 = vmatprep.subr.mxu0 0.0
        %4325 = vmatpush1.xpose.msra.mxu0 0.0
        %4326 = vmatprep.subr.mxu0 0.0
        %4327 = vmatpush1.xpose.msra.mxu0 0.0
        %4328 = vmatprep.subr.mxu0 0.0
        %4329 = vmatpush1.xpose.msra.mxu0 0.0
        %4330 = vmatprep.subr.mxu0 0.0
        %4331 = vmatpush1.xpose.msra.mxu0 0.0
        %4332 = vmatprep.subr.mxu0 0.0
        %4333 = vmatpush1.xpose.msra.mxu0 0.0
        %4334 = vmatprep.subr.mxu0 0.0
        %4335 = vmatpush1.xpose.msra.mxu0 0.0
        %4336 = vmatprep.subr.mxu0 0.0
        %4337 = vmatpush1.xpose.msra.mxu0 0.0
        %4338 = vmatprep.subr.mxu0 0.0
        %4339 = vmatpush1.xpose.msra.mxu0 0.0
        %4340 = vmatprep.subr.mxu0 0.0
        %4341 = vmatpush1.xpose.msra.mxu0 0.0
        %4342 = vmatprep.subr.mxu0 0.0
        %4343 = vmatpush1.xpose.msra.mxu0 0.0
        %4344 = vmatprep.subr.mxu0 0.0
        %4345 = vmatpush1.xpose.msra.mxu0 0.0
        %4346 = vmatprep.subr.mxu0 0.0
        %4347 = vmatpush1.xpose.msra.mxu0 0.0
        %4348 = vmatprep.mubr.f32.mxu0 0.0
        %4349 = vmatmul.mubr.f32.gmra.mrb[0].mxu0 %v4280
        %v4350 = vpop.f32.mrb[0].mxu0
        %v4351 = vadd.f32 0.0, %v4350
        %v4352 = vpop.f32.mrb[0].mxu0
        %4353 = vdwg.mxu0
        %v4354 = vmul.f32 %v4351, 0.35355338
        %v4355 = vsel %vm3764, %v4354, -1e+30
        %v4356 = vsel %vm1690, %v4355, -inf
        %4357 = vmax.xlane.f32.xlu0 %v4356
        %v4358 = vpop.xlane.xlu0 %4357
        %v4359 = vsub.f32 %v4355, %v4358
        %v4360 = vmul.f32 %v4359, 1.442695
        %v4361 = vpow.pop %v4360
        %v4362 = vsel %vm1690, %v4361, 0.0
        %4363 = vadd.xlane.f32.xlu0 %v4362
        %v4364 = vpop.xlane.xlu0 %4363
        %v4365 = vrcp.pop %v4364
        %v4366 = vmul.f32 %v4361, %v4365
        %4367 = vrot.lane.b32.xlu0 %v3757, 40
        %v4368 = vpop.permute.xlu0 %4367
        %v4371 = vsel %vm1690, %v4366, 0
        %4373 = vmatprep.subr.mxu0 0.0
        %4374 = vmatpush1.msra.mxu0 %v4368
        %4375 = vmatprep.subr.mxu0 0.0
        %4376 = vmatpush1.msra.mxu0 0.0
        %4377 = vmatprep.subr.mxu0 0.0
        %4378 = vmatpush1.msra.mxu0 0.0
        %4379 = vmatprep.subr.mxu0 0.0
        %4380 = vmatpush1.msra.mxu0 0.0
        %4381 = vmatprep.subr.mxu0 0.0
        %4382 = vmatpush1.msra.mxu0 0.0
        %4383 = vmatprep.subr.mxu0 0.0
        %4384 = vmatpush1.msra.mxu0 0.0
        %4385 = vmatprep.subr.mxu0 0.0
        %4386 = vmatpush1.msra.mxu0 0.0
        %4387 = vmatprep.subr.mxu0 0.0
        %4388 = vmatpush1.msra.mxu0 0.0
        %4389 = vmatprep.subr.mxu0 0.0
        %4390 = vmatpush1.msra.mxu0 0.0
        %4391 = vmatprep.subr.mxu0 0.0
        %4392 = vmatpush1.msra.mxu0 0.0
        %4393 = vmatprep.subr.mxu0 0.0
        %4394 = vmatpush1.msra.mxu0 0.0
        %4395 = vmatprep.subr.mxu0 0.0
        %4396 = vmatpush1.msra.mxu0 0.0
        %4397 = vmatprep.subr.mxu0 0.0
        %4398 = vmatpush1.msra.mxu0 0.0
        %4399 = vmatprep.subr.mxu0 0.0
        %4400 = vmatpush1.msra.mxu0 0.0
        %4401 = vmatprep.subr.mxu0 0.0
        %4402 = vmatpush1.msra.mxu0 0.0
        %4403 = vmatprep.subr.mxu0 0.0
        %4404 = vmatpush1.msra.mxu0 0.0
        %4405 = vmatprep.subr.mxu0 0.0
        %4406 = vmatpush1.msra.mxu0 0.0
        %4407 = vmatprep.subr.mxu0 0.0
        %4408 = vmatpush1.msra.mxu0 0.0
        %4409 = vmatprep.subr.mxu0 0.0
        %4410 = vmatpush1.msra.mxu0 0.0
        %4411 = vmatprep.subr.mxu0 0.0
        %4412 = vmatpush1.msra.mxu0 0.0
        %4413 = vmatprep.subr.mxu0 0.0
        %4414 = vmatpush1.msra.mxu0 0.0
        %4415 = vmatprep.subr.mxu0 0.0
        %4416 = vmatpush1.msra.mxu0 0.0
        %4417 = vmatprep.subr.mxu0 0.0
        %4418 = vmatpush1.msra.mxu0 0.0
        %4419 = vmatprep.subr.mxu0 0.0
        %4420 = vmatpush1.msra.mxu0 0.0
        %4421 = vmatprep.subr.mxu0 0.0
        %4422 = vmatpush1.msra.mxu0 0.0
        %4423 = vmatprep.subr.mxu0 0.0
        %4424 = vmatpush1.msra.mxu0 0.0
        %4425 = vmatprep.subr.mxu0 0.0
        %4426 = vmatpush1.msra.mxu0 0.0
        %4427 = vmatprep.subr.mxu0 0.0
        %4428 = vmatpush1.msra.mxu0 0.0
        %4429 = vmatprep.subr.mxu0 0.0
        %4430 = vmatpush1.msra.mxu0 0.0
        %4431 = vmatprep.subr.mxu0 0.0
        %4432 = vmatpush1.msra.mxu0 0.0
        %4433 = vmatprep.subr.mxu0 0.0
        %4434 = vmatpush1.msra.mxu0 0.0
        %4435 = vmatprep.subr.mxu0 0.0
        %4436 = vmatpush1.msra.mxu0 0.0
        %4437 = vmatprep.mubr.f32.mxu0 0.0
        %4438 = vmatmul.mubr.f32.gmra.mrb[0].mxu0 %v4371
        %v4439 = vpop.f32.mrb[0].mxu0
        %v4440 = vadd.f32 0.0, %v4439
        %v4441 = vpop.f32.mrb[0].mxu0
        %4442 = vdwg.mxu0
        %4444 = vrot.lane.b32.xlu0 %v4440, 24
        %v4445 = vpop.permute.xlu0 %4444
        %4447 = vst.msk [vmem:[#allocation2] sm:$0xff] %vm2368, %v4445
        %v4448 = vld [vmem:[#allocation2] sm:$0xff]
        %v4449 = vld [vmem:[%s37] sm:$0xf]
        %v4450 = vld [vmem:[%s37 + $0x4] sm:$0xf]
        %v4451 = vld [vmem:[%s37 + $0x8] sm:$0xf]
        %v4452 = vld [vmem:[%s37 + $0xc] sm:$0xf]
        %v4453 = vld [vmem:[#allocation8] sm:$0x1]
        %v4454 = vpack.c.bf16 %v4448, %v4448
        %v4456 = vlaneseq
        %v4457 = vshrl.u32 %v4456, 7
        %v4458 = vsub.s32 0, %v4457
        %v4459 = vrot.slane %v4453, %v4458
        %v4465 = vunpack.c.l.b16 %v4449
        %v4466 = vunpack.c.l.b16 %v4450
        %v4467 = vunpack.c.l.b16 %v4451
        %v4468 = vunpack.c.l.b16 %v4452
        %v4469 = vpack.c.b16 %v4466, %v4465
        %v4470 = vpack.c.b16 %v4468, %v4467
        %v4474 = vsel %vm1643, %v4454, 0
        %4476 = vmatprep.subr.bf16.mxu0 0
        %4477 = vmatpush1.bf16.msra.mxu0 %v4469
        %4478 = vmatprep.subr.bf16.mxu0 0
        %4479 = vmatpush1.bf16.msra.mxu0 %v4470
        %4480 = vmatprep.subr.bf16.mxu0 0
        %4481 = vmatpush1.bf16.msra.mxu0 0
        %4482 = vmatprep.subr.bf16.mxu0 0
        %4483 = vmatpush1.bf16.msra.mxu0 0
        %4484 = vmatprep.subr.bf16.mxu0 0
        %4485 = vmatpush1.bf16.msra.mxu0 0
        %4486 = vmatprep.subr.bf16.mxu0 0
        %4487 = vmatpush1.bf16.msra.mxu0 0
        %4488 = vmatprep.subr.bf16.mxu0 0
        %4489 = vmatpush1.bf16.msra.mxu0 0
        %4490 = vmatprep.subr.bf16.mxu0 0
        %4491 = vmatpush1.bf16.msra.mxu0 0
        %4492 = vmatprep.subr.bf16.mxu0 0
        %4493 = vmatpush1.bf16.msra.mxu0 0
        %4494 = vmatprep.subr.bf16.mxu0 0
        %4495 = vmatpush1.bf16.msra.mxu0 0
        %4496 = vmatprep.subr.bf16.mxu0 0
        %4497 = vmatpush1.bf16.msra.mxu0 0
        %4498 = vmatprep.subr.bf16.mxu0 0
        %4499 = vmatpush1.bf16.msra.mxu0 0
        %4500 = vmatprep.subr.bf16.mxu0 0
        %4501 = vmatpush1.bf16.msra.mxu0 0
        %4502 = vmatprep.subr.bf16.mxu0 0
        %4503 = vmatpush1.bf16.msra.mxu0 0
        %4504 = vmatprep.subr.bf16.mxu0 0
        %4505 = vmatpush1.bf16.msra.mxu0 0
        %4506 = vmatprep.subr.bf16.mxu0 0
        %4507 = vmatpush1.bf16.msra.mxu0 0
        %4508 = vmatprep.mubr.bf16.mxu0 0
        %4509 = vmatmul.mubr.bf16.gmra.mrb[0].mxu0 %v4474
        %v4510 = vpop.f32.mrb[0].mxu0
        %v4511 = vadd.f32 %v4459, %v4510
        %v4512 = vpop.f32.mrb[0].mxu0
        %v4513 = vpop.f32.mrb[0].mxu0
        %v4514 = vpop.f32.mrb[0].mxu0
        %4515 = vdwg.mxu0
        %v4516 = vadd.f32 %v1618, %v4511
        %v4517 = vld [vmem:[#allocation9] sm:$0x1]
        %v4518 = vld [vmem:[#allocation11] sm:$0x1]
        %v4519 = vsel %vm1643, %v4516, 0.0
        %4520 = vadd.xlane.f32.xlu0 %v4519
        %v4521 = vpop.xlane.xlu0 %4520
        %v4522 = vmul.f32 %v4521, %v2444
        %v4523 = vsub.f32 %v4516, %v4522
        %v4524 = vmul.f32 %v4523, %v4523
        %v4525 = vsel %vm1643, %v4524, 0.0
        %4526 = vadd.xlane.f32.xlu0 %v4525
        %v4527 = vpop.xlane.xlu0 %4526
        %v4528 = vmul.f32 %v4527, %v2444
        %v4529 = vadd.f32 %v4528, 1e-05
        %v4530 = vrsqrt.pop %v4529
        %v4531 = vmul.f32 %v4523, %v4530
        %v4533 = vlaneseq
        %v4534 = vshrl.u32 %v4533, 7
        %v4535 = vsub.s32 0, %v4534
        %v4536 = vrot.slane %v4517, %v4535
        %v4538 = vmul.f32 %v4531, %v4536
        %v4540 = vlaneseq
        %v4541 = vshrl.u32 %v4540, 7
        %v4542 = vsub.s32 0, %v4541
        %v4543 = vrot.slane %v4518, %v4542
        %v4545 = vadd.f32 %v4538, %v4543
        %v4546 = vld [vmem:[%s45] sm:$0xf]
        %v4547 = vld [vmem:[%s45 + $0x4] sm:$0xf]
        %v4548 = vld [vmem:[%s45 + $0x8] sm:$0xf]
        %v4549 = vld [vmem:[%s45 + $0xc] sm:$0xf]
        %v4550 = vld [vmem:[#allocation12] sm:$0x1]
        %v4551 = vpack.c.bf16 %v4545, %v4545
        %v4553 = vlaneseq
        %v4554 = vshrl.u32 %v4553, 7
        %v4555 = vsub.s32 0, %v4554
        %v4556 = vrot.slane %v4550, %v4555
        %v4562 = vunpack.c.l.b16 %v4546
        %v4563 = vunpack.c.l.b16 %v4547
        %v4564 = vunpack.c.l.b16 %v4548
        %v4565 = vunpack.c.l.b16 %v4549
        %v4566 = vpack.c.b16 %v4563, %v4562
        %v4567 = vpack.c.b16 %v4565, %v4564
        %v4571 = vsel %vm1643, %v4551, 0
        %4573 = vmatprep.subr.bf16.mxu0 0
        %4574 = vmatpush1.bf16.msra.mxu0 %v4566
        %4575 = vmatprep.subr.bf16.mxu0 0
        %4576 = vmatpush1.bf16.msra.mxu0 %v4567
        %4577 = vmatprep.subr.bf16.mxu0 0
        %4578 = vmatpush1.bf16.msra.mxu0 0
        %4579 = vmatprep.subr.bf16.mxu0 0
        %4580 = vmatpush1.bf16.msra.mxu0 0
        %4581 = vmatprep.subr.bf16.mxu0 0
        %4582 = vmatpush1.bf16.msra.mxu0 0
        %4583 = vmatprep.subr.bf16.mxu0 0
        %4584 = vmatpush1.bf16.msra.mxu0 0
        %4585 = vmatprep.subr.bf16.mxu0 0
        %4586 = vmatpush1.bf16.msra.mxu0 0
        %4587 = vmatprep.subr.bf16.mxu0 0
        %4588 = vmatpush1.bf16.msra.mxu0 0
        %4589 = vmatprep.subr.bf16.mxu0 0
        %4590 = vmatpush1.bf16.msra.mxu0 0
        %4591 = vmatprep.subr.bf16.mxu0 0
        %4592 = vmatpush1.bf16.msra.mxu0 0
        %4593 = vmatprep.subr.bf16.mxu0 0
        %4594 = vmatpush1.bf16.msra.mxu0 0
        %4595 = vmatprep.subr.bf16.mxu0 0
        %4596 = vmatpush1.bf16.msra.mxu0 0
        %4597 = vmatprep.subr.bf16.mxu0 0
        %4598 = vmatpush1.bf16.msra.mxu0 0
        %4599 = vmatprep.subr.bf16.mxu0 0
        %4600 = vmatpush1.bf16.msra.mxu0 0
        %4601 = vmatprep.subr.bf16.mxu0 0
        %4602 = vmatpush1.bf16.msra.mxu0 0
        %4603 = vmatprep.subr.bf16.mxu0 0
        %4604 = vmatpush1.bf16.msra.mxu0 0
        %4605 = vmatprep.mubr.bf16.mxu0 0
        %4606 = vmatmul.mubr.bf16.gmra.mrb[0].mxu0 %v4571
        %v4607 = vpop.f32.mrb[0].mxu0
        %v4608 = vadd.f32 %v4556, %v4607
        %v4609 = vpop.f32.mrb[0].mxu0
        %v4610 = vpop.f32.mrb[0].mxu0
        %v4611 = vpop.f32.mrb[0].mxu0
        %4612 = vdwg.mxu0
        %v4613 = vld [vmem:[%s49] sm:$0xf]
        %v4614 = vld [vmem:[%s49 + $0x4] sm:$0xf]
        %v4615 = vld [vmem:[%s49 + $0x8] sm:$0xf]
        %v4616 = vld [vmem:[%s49 + $0xc] sm:$0xf]
        %v4617 = vld [vmem:[#allocation14] sm:$0x1]
        %v4618 = vpack.c.bf16 %v3694, %v3694
        %v4620 = vlaneseq
        %v4621 = vshrl.u32 %v4620, 7
        %v4622 = vsub.s32 0, %v4621
        %v4623 = vrot.slane %v4617, %v4622
        %v4629 = vunpack.c.l.b16 %v4613
        %v4630 = vunpack.c.l.b16 %v4614
        %v4631 = vunpack.c.l.b16 %v4615
        %v4632 = vunpack.c.l.b16 %v4616
        %v4633 = vpack.c.b16 %v4630, %v4629
        %v4634 = vpack.c.b16 %v4632, %v4631
        %v4638 = vsel %vm1643, %v4618, 0
        %4640 = vmatprep.subr.bf16.mxu0 0
        %4641 = vmatpush1.bf16.msra.mxu0 %v4633
        %4642 = vmatprep.subr.bf16.mxu0 0
        %4643 = vmatpush1.bf16.msra.mxu0 %v4634
        %4644 = vmatprep.subr.bf16.mxu0 0
        %4645 = vmatpush1.bf16.msra.mxu0 0
        %4646 = vmatprep.subr.bf16.mxu0 0
        %4647 = vmatpush1.bf16.msra.mxu0 0
        %4648 = vmatprep.subr.bf16.mxu0 0
        %4649 = vmatpush1.bf16.msra.mxu0 0
        %4650 = vmatprep.subr.bf16.mxu0 0
        %4651 = vmatpush1.bf16.msra.mxu0 0
        %4652 = vmatprep.subr.bf16.mxu0 0
        %4653 = vmatpush1.bf16.msra.mxu0 0
        %4654 = vmatprep.subr.bf16.mxu0 0
        %4655 = vmatpush1.bf16.msra.mxu0 0
        %4656 = vmatprep.subr.bf16.mxu0 0
        %4657 = vmatpush1.bf16.msra.mxu0 0
        %4658 = vmatprep.subr.bf16.mxu0 0
        %4659 = vmatpush1.bf16.msra.mxu0 0
        %4660 = vmatprep.subr.bf16.mxu0 0
        %4661 = vmatpush1.bf16.msra.mxu0 0
        %4662 = vmatprep.subr.bf16.mxu0 0
        %4663 = vmatpush1.bf16.msra.mxu0 0
        %4664 = vmatprep.subr.bf16.mxu0 0
        %4665 = vmatpush1.bf16.msra.mxu0 0
        %4666 = vmatprep.subr.bf16.mxu0 0
        %4667 = vmatpush1.bf16.msra.mxu0 0
        %4668 = vmatprep.subr.bf16.mxu0 0
        %4669 = vmatpush1.bf16.msra.mxu0 0
        %4670 = vmatprep.subr.bf16.mxu0 0
        %4671 = vmatpush1.bf16.msra.mxu0 0
        %4672 = vmatprep.mubr.bf16.mxu0 0
        %4673 = vmatmul.mubr.bf16.gmra.mrb[0].mxu0 %v4638
        %v4674 = vpop.f32.mrb[0].mxu0
        %v4675 = vadd.f32 %v4623, %v4674
        %v4676 = vpop.f32.mrb[0].mxu0
        %v4677 = vpop.f32.mrb[0].mxu0
        %v4678 = vpop.f32.mrb[0].mxu0
        %4679 = vdwg.mxu0
        %v4681 = vsel %vm1690, %v4608, 0
        %v4684 = vsel %vm1690, %v4675, 0
        %4686 = vmatprep.subr.mxu0 0.0
        %4687 = vmatpush1.xpose.msra.mxu0 %v4684
        %4688 = vmatprep.subr.mxu0 0.0
        %4689 = vmatpush1.xpose.msra.mxu0 0.0
        %4690 = vmatprep.subr.mxu0 0.0
        %4691 = vmatpush1.xpose.msra.mxu0 0.0
        %4692 = vmatprep.subr.mxu0 0.0
        %4693 = vmatpush1.xpose.msra.mxu0 0.0
        %4694 = vmatprep.subr.mxu0 0.0
        %4695 = vmatpush1.xpose.msra.mxu0 0.0
        %4696 = vmatprep.subr.mxu0 0.0
        %4697 = vmatpush1.xpose.msra.mxu0 0.0
        %4698 = vmatprep.subr.mxu0 0.0
        %4699 = vmatpush1.xpose.msra.mxu0 0.0
        %4700 = vmatprep.subr.mxu0 0.0
        %4701 = vmatpush1.xpose.msra.mxu0 0.0
        %4702 = vmatprep.subr.mxu0 0.0
        %4703 = vmatpush1.xpose.msra.mxu0 0.0
        %4704 = vmatprep.subr.mxu0 0.0
        %4705 = vmatpush1.xpose.msra.mxu0 0.0
        %4706 = vmatprep.subr.mxu0 0.0
        %4707 = vmatpush1.xpose.msra.mxu0 0.0
        %4708 = vmatprep.subr.mxu0 0.0
        %4709 = vmatpush1.xpose.msra.mxu0 0.0
        %4710 = vmatprep.subr.mxu0 0.0
        %4711 = vmatpush1.xpose.msra.mxu0 0.0
        %4712 = vmatprep.subr.mxu0 0.0
        %4713 = vmatpush1.xpose.msra.mxu0 0.0
        %4714 = vmatprep.subr.mxu0 0.0
        %4715 = vmatpush1.xpose.msra.mxu0 0.0
        %4716 = vmatprep.subr.mxu0 0.0
        %4717 = vmatpush1.xpose.msra.mxu0 0.0
        %4718 = vmatprep.subr.mxu0 0.0
        %4719 = vmatpush1.xpose.msra.mxu0 0.0
        %4720 = vmatprep.subr.mxu0 0.0
        %4721 = vmatpush1.xpose.msra.mxu0 0.0
        %4722 = vmatprep.subr.mxu0 0.0
        %4723 = vmatpush1.xpose.msra.mxu0 0.0
        %4724 = vmatprep.subr.mxu0 0.0
        %4725 = vmatpush1.xpose.msra.mxu0 0.0
        %4726 = vmatprep.subr.mxu0 0.0
        %4727 = vmatpush1.xpose.msra.mxu0 0.0
        %4728 = vmatprep.subr.mxu0 0.0
        %4729 = vmatpush1.xpose.msra.mxu0 0.0
        %4730 = vmatprep.subr.mxu0 0.0
        %4731 = vmatpush1.xpose.msra.mxu0 0.0
        %4732 = vmatprep.subr.mxu0 0.0
        %4733 = vmatpush1.xpose.msra.mxu0 0.0
        %4734 = vmatprep.subr.mxu0 0.0
        %4735 = vmatpush1.xpose.msra.mxu0 0.0
        %4736 = vmatprep.subr.mxu0 0.0
        %4737 = vmatpush1.xpose.msra.mxu0 0.0
        %4738 = vmatprep.subr.mxu0 0.0
        %4739 = vmatpush1.xpose.msra.mxu0 0.0
        %4740 = vmatprep.subr.mxu0 0.0
        %4741 = vmatpush1.xpose.msra.mxu0 0.0
        %4742 = vmatprep.subr.mxu0 0.0
        %4743 = vmatpush1.xpose.msra.mxu0 0.0
        %4744 = vmatprep.subr.mxu0 0.0
        %4745 = vmatpush1.xpose.msra.mxu0 0.0
        %4746 = vmatprep.subr.mxu0 0.0
        %4747 = vmatpush1.xpose.msra.mxu0 0.0
        %4748 = vmatprep.subr.mxu0 0.0
        %4749 = vmatpush1.xpose.msra.mxu0 0.0
        %4750 = vmatprep.mubr.f32.mxu0 0.0
        %4751 = vmatmul.mubr.f32.gmra.mrb[0].mxu0 %v4681
        %v4752 = vpop.f32.mrb[0].mxu0
        %v4753 = vadd.f32 0.0, %v4752
        %v4754 = vpop.f32.mrb[0].mxu0
        %4755 = vdwg.mxu0
        %v4756 = vmul.f32 %v4753, 0.35355338
        %v4757 = vsel %vm1690, %v4756, -inf
        %4758 = vmax.xlane.f32.xlu0 %v4757
        %v4759 = vpop.xlane.xlu0 %4758
        %v4760 = vsub.f32 %v4756, %v4759
        %v4761 = vmul.f32 %v4760, 1.442695
        %v4762 = vpow.pop %v4761
        %v4763 = vsel %vm1690, %v4762, 0.0
        %4764 = vadd.xlane.f32.xlu0 %v4763
        %v4765 = vpop.xlane.xlu0 %4764
        %v4766 = vrcp.pop %v4765
        %v4767 = vmul.f32 %v4762, %v4766
        %4768 = vrot.lane.b32.xlu0 %v4675, 96
        %v4769 = vpop.permute.xlu0 %4768
        %v4772 = vsel %vm1690, %v4767, 0
        %4774 = vmatprep.subr.mxu0 0.0
        %4775 = vmatpush1.msra.mxu0 %v4769
        %4776 = vmatprep.subr.mxu0 0.0
        %4777 = vmatpush1.msra.mxu0 0.0
        %4778 = vmatprep.subr.mxu0 0.0
        %4779 = vmatpush1.msra.mxu0 0.0
        %4780 = vmatprep.subr.mxu0 0.0
        %4781 = vmatpush1.msra.mxu0 0.0
        %4782 = vmatprep.subr.mxu0 0.0
        %4783 = vmatpush1.msra.mxu0 0.0
        %4784 = vmatprep.subr.mxu0 0.0
        %4785 = vmatpush1.msra.mxu0 0.0
        %4786 = vmatprep.subr.mxu0 0.0
        %4787 = vmatpush1.msra.mxu0 0.0
        %4788 = vmatprep.subr.mxu0 0.0
        %4789 = vmatpush1.msra.mxu0 0.0
        %4790 = vmatprep.subr.mxu0 0.0
        %4791 = vmatpush1.msra.mxu0 0.0
        %4792 = vmatprep.subr.mxu0 0.0
        %4793 = vmatpush1.msra.mxu0 0.0
        %4794 = vmatprep.subr.mxu0 0.0
        %4795 = vmatpush1.msra.mxu0 0.0
        %4796 = vmatprep.subr.mxu0 0.0
        %4797 = vmatpush1.msra.mxu0 0.0
        %4798 = vmatprep.subr.mxu0 0.0
        %4799 = vmatpush1.msra.mxu0 0.0
        %4800 = vmatprep.subr.mxu0 0.0
        %4801 = vmatpush1.msra.mxu0 0.0
        %4802 = vmatprep.subr.mxu0 0.0
        %4803 = vmatpush1.msra.mxu0 0.0
        %4804 = vmatprep.subr.mxu0 0.0
        %4805 = vmatpush1.msra.mxu0 0.0
        %4806 = vmatprep.subr.mxu0 0.0
        %4807 = vmatpush1.msra.mxu0 0.0
        %4808 = vmatprep.subr.mxu0 0.0
        %4809 = vmatpush1.msra.mxu0 0.0
        %4810 = vmatprep.subr.mxu0 0.0
        %4811 = vmatpush1.msra.mxu0 0.0
        %4812 = vmatprep.subr.mxu0 0.0
        %4813 = vmatpush1.msra.mxu0 0.0
        %4814 = vmatprep.subr.mxu0 0.0
        %4815 = vmatpush1.msra.mxu0 0.0
        %4816 = vmatprep.subr.mxu0 0.0
        %4817 = vmatpush1.msra.mxu0 0.0
        %4818 = vmatprep.subr.mxu0 0.0
        %4819 = vmatpush1.msra.mxu0 0.0
        %4820 = vmatprep.subr.mxu0 0.0
        %4821 = vmatpush1.msra.mxu0 0.0
        %4822 = vmatprep.subr.mxu0 0.0
        %4823 = vmatpush1.msra.mxu0 0.0
        %4824 = vmatprep.subr.mxu0 0.0
        %4825 = vmatpush1.msra.mxu0 0.0
        %4826 = vmatprep.subr.mxu0 0.0
        %4827 = vmatpush1.msra.mxu0 0.0
        %4828 = vmatprep.subr.mxu0 0.0
        %4829 = vmatpush1.msra.mxu0 0.0
        %4830 = vmatprep.subr.mxu0 0.0
        %4831 = vmatpush1.msra.mxu0 0.0
        %4832 = vmatprep.subr.mxu0 0.0
        %4833 = vmatpush1.msra.mxu0 0.0
        %4834 = vmatprep.subr.mxu0 0.0
        %4835 = vmatpush1.msra.mxu0 0.0
        %4836 = vmatprep.subr.mxu0 0.0
        %4837 = vmatpush1.msra.mxu0 0.0
        %4838 = vmatprep.mubr.f32.mxu0 0.0
        %4839 = vmatmul.mubr.f32.gmra.mrb[0].mxu0 %v4772
        %v4840 = vpop.f32.mrb[0].mxu0
        %v4841 = vadd.f32 0.0, %v4840
        %v4842 = vpop.f32.mrb[0].mxu0
        %4843 = vdwg.mxu0
        %4844 = vst.msk [vmem:[#allocation2] sm:$0xff] %vm1690, %v4841
        %4845 = vrot.lane.b32.xlu0 %v4608, 120
        %v4846 = vpop.permute.xlu0 %4845
        %4847 = vrot.lane.b32.xlu0 %v4675, 120
        %v4848 = vpop.permute.xlu0 %4847
        %v4849 = vsel %vm1690, %v4846, 0
        %v4851 = vsel %vm1690, %v4848, 0
        %4853 = vmatprep.subr.mxu0 0.0
        %4854 = vmatpush1.xpose.msra.mxu0 %v4851
        %4855 = vmatprep.subr.mxu0 0.0
        %4856 = vmatpush1.xpose.msra.mxu0 0.0
        %4857 = vmatprep.subr.mxu0 0.0
        %4858 = vmatpush1.xpose.msra.mxu0 0.0
        %4859 = vmatprep.subr.mxu0 0.0
        %4860 = vmatpush1.xpose.msra.mxu0 0.0
        %4861 = vmatprep.subr.mxu0 0.0
        %4862 = vmatpush1.xpose.msra.mxu0 0.0
        %4863 = vmatprep.subr.mxu0 0.0
        %4864 = vmatpush1.xpose.msra.mxu0 0.0
        %4865 = vmatprep.subr.mxu0 0.0
        %4866 = vmatpush1.xpose.msra.mxu0 0.0
        %4867 = vmatprep.subr.mxu0 0.0
        %4868 = vmatpush1.xpose.msra.mxu0 0.0
        %4869 = vmatprep.subr.mxu0 0.0
        %4870 = vmatpush1.xpose.msra.mxu0 0.0
        %4871 = vmatprep.subr.mxu0 0.0
        %4872 = vmatpush1.xpose.msra.mxu0 0.0
        %4873 = vmatprep.subr.mxu0 0.0
        %4874 = vmatpush1.xpose.msra.mxu0 0.0
        %4875 = vmatprep.subr.mxu0 0.0
        %4876 = vmatpush1.xpose.msra.mxu0 0.0
        %4877 = vmatprep.subr.mxu0 0.0
        %4878 = vmatpush1.xpose.msra.mxu0 0.0
        %4879 = vmatprep.subr.mxu0 0.0
        %4880 = vmatpush1.xpose.msra.mxu0 0.0
        %4881 = vmatprep.subr.mxu0 0.0
        %4882 = vmatpush1.xpose.msra.mxu0 0.0
        %4883 = vmatprep.subr.mxu0 0.0
        %4884 = vmatpush1.xpose.msra.mxu0 0.0
        %4885 = vmatprep.subr.mxu0 0.0
        %4886 = vmatpush1.xpose.msra.mxu0 0.0
        %4887 = vmatprep.subr.mxu0 0.0
        %4888 = vmatpush1.xpose.msra.mxu0 0.0
        %4889 = vmatprep.subr.mxu0 0.0
        %4890 = vmatpush1.xpose.msra.mxu0 0.0
        %4891 = vmatprep.subr.mxu0 0.0
        %4892 = vmatpush1.xpose.msra.mxu0 0.0
        %4893 = vmatprep.subr.mxu0 0.0
        %4894 = vmatpush1.xpose.msra.mxu0 0.0
        %4895 = vmatprep.subr.mxu0 0.0
        %4896 = vmatpush1.xpose.msra.mxu0 0.0
        %4897 = vmatprep.subr.mxu0 0.0
        %4898 = vmatpush1.xpose.msra.mxu0 0.0
        %4899 = vmatprep.subr.mxu0 0.0
        %4900 = vmatpush1.xpose.msra.mxu0 0.0
        %4901 = vmatprep.subr.mxu0 0.0
        %4902 = vmatpush1.xpose.msra.mxu0 0.0
        %4903 = vmatprep.subr.mxu0 0.0
        %4904 = vmatpush1.xpose.msra.mxu0 0.0
        %4905 = vmatprep.subr.mxu0 0.0
        %4906 = vmatpush1.xpose.msra.mxu0 0.0
        %4907 = vmatprep.subr.mxu0 0.0
        %4908 = vmatpush1.xpose.msra.mxu0 0.0
        %4909 = vmatprep.subr.mxu0 0.0
        %4910 = vmatpush1.xpose.msra.mxu0 0.0
        %4911 = vmatprep.subr.mxu0 0.0
        %4912 = vmatpush1.xpose.msra.mxu0 0.0
        %4913 = vmatprep.subr.mxu0 0.0
        %4914 = vmatpush1.xpose.msra.mxu0 0.0
        %4915 = vmatprep.subr.mxu0 0.0
        %4916 = vmatpush1.xpose.msra.mxu0 0.0
        %4917 = vmatprep.mubr.f32.mxu0 0.0
        %4918 = vmatmul.mubr.f32.gmra.mrb[0].mxu0 %v4849
        %v4919 = vpop.f32.mrb[0].mxu0
        %v4920 = vadd.f32 0.0, %v4919
        %v4921 = vpop.f32.mrb[0].mxu0
        %4922 = vdwg.mxu0
        %v4923 = vmul.f32 %v4920, 0.35355338
        %v4924 = vsel %vm1690, %v4923, -inf
        %4925 = vmax.xlane.f32.xlu0 %v4924
        %v4926 = vpop.xlane.xlu0 %4925
        %v4927 = vsub.f32 %v4923, %v4926
        %v4928 = vmul.f32 %v4927, 1.442695
        %v4929 = vpow.pop %v4928
        %v4930 = vsel %vm1690, %v4929, 0.0
        %4931 = vadd.xlane.f32.xlu0 %v4930
        %v4932 = vpop.xlane.xlu0 %4931
        %v4933 = vrcp.pop %v4932
        %v4934 = vmul.f32 %v4929, %v4933
        %4935 = vrot.lane.b32.xlu0 %v4675, 88
        %v4936 = vpop.permute.xlu0 %4935
        %v4939 = vsel %vm1690, %v4934, 0
        %4941 = vmatprep.subr.mxu0 0.0
        %4942 = vmatpush1.msra.mxu0 %v4936
        %4943 = vmatprep.subr.mxu0 0.0
        %4944 = vmatpush1.msra.mxu0 0.0
        %4945 = vmatprep.subr.mxu0 0.0
        %4946 = vmatpush1.msra.mxu0 0.0
        %4947 = vmatprep.subr.mxu0 0.0
        %4948 = vmatpush1.msra.mxu0 0.0
        %4949 = vmatprep.subr.mxu0 0.0
        %4950 = vmatpush1.msra.mxu0 0.0
        %4951 = vmatprep.subr.mxu0 0.0
        %4952 = vmatpush1.msra.mxu0 0.0
        %4953 = vmatprep.subr.mxu0 0.0
        %4954 = vmatpush1.msra.mxu0 0.0
        %4955 = vmatprep.subr.mxu0 0.0
        %4956 = vmatpush1.msra.mxu0 0.0
        %4957 = vmatprep.subr.mxu0 0.0
        %4958 = vmatpush1.msra.mxu0 0.0
        %4959 = vmatprep.subr.mxu0 0.0
        %4960 = vmatpush1.msra.mxu0 0.0
        %4961 = vmatprep.subr.mxu0 0.0
        %4962 = vmatpush1.msra.mxu0 0.0
        %4963 = vmatprep.subr.mxu0 0.0
        %4964 = vmatpush1.msra.mxu0 0.0
        %4965 = vmatprep.subr.mxu0 0.0
        %4966 = vmatpush1.msra.mxu0 0.0
        %4967 = vmatprep.subr.mxu0 0.0
        %4968 = vmatpush1.msra.mxu0 0.0
        %4969 = vmatprep.subr.mxu0 0.0
        %4970 = vmatpush1.msra.mxu0 0.0
        %4971 = vmatprep.subr.mxu0 0.0
        %4972 = vmatpush1.msra.mxu0 0.0
        %4973 = vmatprep.subr.mxu0 0.0
        %4974 = vmatpush1.msra.mxu0 0.0
        %4975 = vmatprep.subr.mxu0 0.0
        %4976 = vmatpush1.msra.mxu0 0.0
        %4977 = vmatprep.subr.mxu0 0.0
        %4978 = vmatpush1.msra.mxu0 0.0
        %4979 = vmatprep.subr.mxu0 0.0
        %4980 = vmatpush1.msra.mxu0 0.0
        %4981 = vmatprep.subr.mxu0 0.0
        %4982 = vmatpush1.msra.mxu0 0.0
        %4983 = vmatprep.subr.mxu0 0.0
        %4984 = vmatpush1.msra.mxu0 0.0
        %4985 = vmatprep.subr.mxu0 0.0
        %4986 = vmatpush1.msra.mxu0 0.0
        %4987 = vmatprep.subr.mxu0 0.0
        %4988 = vmatpush1.msra.mxu0 0.0
        %4989 = vmatprep.subr.mxu0 0.0
        %4990 = vmatpush1.msra.mxu0 0.0
        %4991 = vmatprep.subr.mxu0 0.0
        %4992 = vmatpush1.msra.mxu0 0.0
        %4993 = vmatprep.subr.mxu0 0.0
        %4994 = vmatpush1.msra.mxu0 0.0
        %4995 = vmatprep.subr.mxu0 0.0
        %4996 = vmatpush1.msra.mxu0 0.0
        %4997 = vmatprep.subr.mxu0 0.0
        %4998 = vmatpush1.msra.mxu0 0.0
        %4999 = vmatprep.subr.mxu0 0.0
        %5000 = vmatpush1.msra.mxu0 0.0
        %5001 = vmatprep.subr.mxu0 0.0
        %5002 = vmatpush1.msra.mxu0 0.0
        %5003 = vmatprep.subr.mxu0 0.0
        %5004 = vmatpush1.msra.mxu0 0.0
        %5005 = vmatprep.mubr.f32.mxu0 0.0
        %5006 = vmatmul.mubr.f32.gmra.mrb[0].mxu0 %v4939
        %v5007 = vpop.f32.mrb[0].mxu0
        %v5008 = vadd.f32 0.0, %v5007
        %v5009 = vpop.f32.mrb[0].mxu0
        %5010 = vdwg.mxu0
        %5012 = vrot.lane.b32.xlu0 %v5008, 8
        %v5013 = vpop.permute.xlu0 %5012
        %5015 = vst.msk [vmem:[#allocation2] sm:$0xff] %vm2024, %v5013
        %5016 = vrot.lane.b32.xlu0 %v4608, 112
        %v5017 = vpop.permute.xlu0 %5016
        %5018 = vrot.lane.b32.xlu0 %v4675, 112
        %v5019 = vpop.permute.xlu0 %5018
        %v5020 = vsel %vm1690, %v5017, 0
        %v5022 = vsel %vm1690, %v5019, 0
        %5024 = vmatprep.subr.mxu0 0.0
        %5025 = vmatpush1.xpose.msra.mxu0 %v5022
        %5026 = vmatprep.subr.mxu0 0.0
        %5027 = vmatpush1.xpose.msra.mxu0 0.0
        %5028 = vmatprep.subr.mxu0 0.0
        %5029 = vmatpush1.xpose.msra.mxu0 0.0
        %5030 = vmatprep.subr.mxu0 0.0
        %5031 = vmatpush1.xpose.msra.mxu0 0.0
        %5032 = vmatprep.subr.mxu0 0.0
        %5033 = vmatpush1.xpose.msra.mxu0 0.0
        %5034 = vmatprep.subr.mxu0 0.0
        %5035 = vmatpush1.xpose.msra.mxu0 0.0
        %5036 = vmatprep.subr.mxu0 0.0
        %5037 = vmatpush1.xpose.msra.mxu0 0.0
        %5038 = vmatprep.subr.mxu0 0.0
        %5039 = vmatpush1.xpose.msra.mxu0 0.0
        %5040 = vmatprep.subr.mxu0 0.0
        %5041 = vmatpush1.xpose.msra.mxu0 0.0
        %5042 = vmatprep.subr.mxu0 0.0
        %5043 = vmatpush1.xpose.msra.mxu0 0.0
        %5044 = vmatprep.subr.mxu0 0.0
        %5045 = vmatpush1.xpose.msra.mxu0 0.0
        %5046 = vmatprep.subr.mxu0 0.0
        %5047 = vmatpush1.xpose.msra.mxu0 0.0
        %5048 = vmatprep.subr.mxu0 0.0
        %5049 = vmatpush1.xpose.msra.mxu0 0.0
        %5050 = vmatprep.subr.mxu0 0.0
        %5051 = vmatpush1.xpose.msra.mxu0 0.0
        %5052 = vmatprep.subr.mxu0 0.0
        %5053 = vmatpush1.xpose.msra.mxu0 0.0
        %5054 = vmatprep.subr.mxu0 0.0
        %5055 = vmatpush1.xpose.msra.mxu0 0.0
        %5056 = vmatprep.subr.mxu0 0.0
        %5057 = vmatpush1.xpose.msra.mxu0 0.0
        %5058 = vmatprep.subr.mxu0 0.0
        %5059 = vmatpush1.xpose.msra.mxu0 0.0
        %5060 = vmatprep.subr.mxu0 0.0
        %5061 = vmatpush1.xpose.msra.mxu0 0.0
        %5062 = vmatprep.subr.mxu0 0.0
        %5063 = vmatpush1.xpose.msra.mxu0 0.0
        %5064 = vmatprep.subr.mxu0 0.0
        %5065 = vmatpush1.xpose.msra.mxu0 0.0
        %5066 = vmatprep.subr.mxu0 0.0
        %5067 = vmatpush1.xpose.msra.mxu0 0.0
        %5068 = vmatprep.subr.mxu0 0.0
        %5069 = vmatpush1.xpose.msra.mxu0 0.0
        %5070 = vmatprep.subr.mxu0 0.0
        %5071 = vmatpush1.xpose.msra.mxu0 0.0
        %5072 = vmatprep.subr.mxu0 0.0
        %5073 = vmatpush1.xpose.msra.mxu0 0.0
        %5074 = vmatprep.subr.mxu0 0.0
        %5075 = vmatpush1.xpose.msra.mxu0 0.0
        %5076 = vmatprep.subr.mxu0 0.0
        %5077 = vmatpush1.xpose.msra.mxu0 0.0
        %5078 = vmatprep.subr.mxu0 0.0
        %5079 = vmatpush1.xpose.msra.mxu0 0.0
        %5080 = vmatprep.subr.mxu0 0.0
        %5081 = vmatpush1.xpose.msra.mxu0 0.0
        %5082 = vmatprep.subr.mxu0 0.0
        %5083 = vmatpush1.xpose.msra.mxu0 0.0
        %5084 = vmatprep.subr.mxu0 0.0
        %5085 = vmatpush1.xpose.msra.mxu0 0.0
        %5086 = vmatprep.subr.mxu0 0.0
        %5087 = vmatpush1.xpose.msra.mxu0 0.0
        %5088 = vmatprep.mubr.f32.mxu0 0.0
        %5089 = vmatmul.mubr.f32.gmra.mrb[0].mxu0 %v5020
        %v5090 = vpop.f32.mrb[0].mxu0
        %v5091 = vadd.f32 0.0, %v5090
        %v5092 = vpop.f32.mrb[0].mxu0
        %5093 = vdwg.mxu0
        %v5094 = vmul.f32 %v5091, 0.35355338
        %v5095 = vsel %vm1690, %v5094, -inf
        %5096 = vmax.xlane.f32.xlu0 %v5095
        %v5097 = vpop.xlane.xlu0 %5096
        %v5098 = vsub.f32 %v5094, %v5097
        %v5099 = vmul.f32 %v5098, 1.442695
        %v5100 = vpow.pop %v5099
        %v5101 = vsel %vm1690, %v5100, 0.0
        %5102 = vadd.xlane.f32.xlu0 %v5101
        %v5103 = vpop.xlane.xlu0 %5102
        %v5104 = vrcp.pop %v5103
        %v5105 = vmul.f32 %v5100, %v5104
        %5106 = vrot.lane.b32.xlu0 %v4675, 80
        %v5107 = vpop.permute.xlu0 %5106
        %v5110 = vsel %vm1690, %v5105, 0
        %5112 = vmatprep.subr.mxu0 0.0
        %5113 = vmatpush1.msra.mxu0 %v5107
        %5114 = vmatprep.subr.mxu0 0.0
        %5115 = vmatpush1.msra.mxu0 0.0
        %5116 = vmatprep.subr.mxu0 0.0
        %5117 = vmatpush1.msra.mxu0 0.0
        %5118 = vmatprep.subr.mxu0 0.0
        %5119 = vmatpush1.msra.mxu0 0.0
        %5120 = vmatprep.subr.mxu0 0.0
        %5121 = vmatpush1.msra.mxu0 0.0
        %5122 = vmatprep.subr.mxu0 0.0
        %5123 = vmatpush1.msra.mxu0 0.0
        %5124 = vmatprep.subr.mxu0 0.0
        %5125 = vmatpush1.msra.mxu0 0.0
        %5126 = vmatprep.subr.mxu0 0.0
        %5127 = vmatpush1.msra.mxu0 0.0
        %5128 = vmatprep.subr.mxu0 0.0
        %5129 = vmatpush1.msra.mxu0 0.0
        %5130 = vmatprep.subr.mxu0 0.0
        %5131 = vmatpush1.msra.mxu0 0.0
        %5132 = vmatprep.subr.mxu0 0.0
        %5133 = vmatpush1.msra.mxu0 0.0
        %5134 = vmatprep.subr.mxu0 0.0
        %5135 = vmatpush1.msra.mxu0 0.0
        %5136 = vmatprep.subr.mxu0 0.0
        %5137 = vmatpush1.msra.mxu0 0.0
        %5138 = vmatprep.subr.mxu0 0.0
        %5139 = vmatpush1.msra.mxu0 0.0
        %5140 = vmatprep.subr.mxu0 0.0
        %5141 = vmatpush1.msra.mxu0 0.0
        %5142 = vmatprep.subr.mxu0 0.0
        %5143 = vmatpush1.msra.mxu0 0.0
        %5144 = vmatprep.subr.mxu0 0.0
        %5145 = vmatpush1.msra.mxu0 0.0
        %5146 = vmatprep.subr.mxu0 0.0
        %5147 = vmatpush1.msra.mxu0 0.0
        %5148 = vmatprep.subr.mxu0 0.0
        %5149 = vmatpush1.msra.mxu0 0.0
        %5150 = vmatprep.subr.mxu0 0.0
        %5151 = vmatpush1.msra.mxu0 0.0
        %5152 = vmatprep.subr.mxu0 0.0
        %5153 = vmatpush1.msra.mxu0 0.0
        %5154 = vmatprep.subr.mxu0 0.0
        %5155 = vmatpush1.msra.mxu0 0.0
        %5156 = vmatprep.subr.mxu0 0.0
        %5157 = vmatpush1.msra.mxu0 0.0
        %5158 = vmatprep.subr.mxu0 0.0
        %5159 = vmatpush1.msra.mxu0 0.0
        %5160 = vmatprep.subr.mxu0 0.0
        %5161 = vmatpush1.msra.mxu0 0.0
        %5162 = vmatprep.subr.mxu0 0.0
        %5163 = vmatpush1.msra.mxu0 0.0
        %5164 = vmatprep.subr.mxu0 0.0
        %5165 = vmatpush1.msra.mxu0 0.0
        %5166 = vmatprep.subr.mxu0 0.0
        %5167 = vmatpush1.msra.mxu0 0.0
        %5168 = vmatprep.subr.mxu0 0.0
        %5169 = vmatpush1.msra.mxu0 0.0
        %5170 = vmatprep.subr.mxu0 0.0
        %5171 = vmatpush1.msra.mxu0 0.0
        %5172 = vmatprep.subr.mxu0 0.0
        %5173 = vmatpush1.msra.mxu0 0.0
        %5174 = vmatprep.subr.mxu0 0.0
        %5175 = vmatpush1.msra.mxu0 0.0
        %5176 = vmatprep.mubr.f32.mxu0 0.0
        %5177 = vmatmul.mubr.f32.gmra.mrb[0].mxu0 %v5110
        %v5178 = vpop.f32.mrb[0].mxu0
        %v5179 = vadd.f32 0.0, %v5178
        %v5180 = vpop.f32.mrb[0].mxu0
        %5181 = vdwg.mxu0
        %5183 = vrot.lane.b32.xlu0 %v5179, 16
        %v5184 = vpop.permute.xlu0 %5183
        %5186 = vst.msk [vmem:[#allocation2] sm:$0xff] %vm2196, %v5184
        %5187 = vrot.lane.b32.xlu0 %v4608, 104
        %v5188 = vpop.permute.xlu0 %5187
        %5189 = vrot.lane.b32.xlu0 %v4675, 104
        %v5190 = vpop.permute.xlu0 %5189
        %v5191 = vsel %vm1690, %v5188, 0
        %v5193 = vsel %vm1690, %v5190, 0
        %5195 = vmatprep.subr.mxu0 0.0
        %5196 = vmatpush1.xpose.msra.mxu0 %v5193
        %5197 = vmatprep.subr.mxu0 0.0
        %5198 = vmatpush1.xpose.msra.mxu0 0.0
        %5199 = vmatprep.subr.mxu0 0.0
        %5200 = vmatpush1.xpose.msra.mxu0 0.0
        %5201 = vmatprep.subr.mxu0 0.0
        %5202 = vmatpush1.xpose.msra.mxu0 0.0
        %5203 = vmatprep.subr.mxu0 0.0
        %5204 = vmatpush1.xpose.msra.mxu0 0.0
        %5205 = vmatprep.subr.mxu0 0.0
        %5206 = vmatpush1.xpose.msra.mxu0 0.0
        %5207 = vmatprep.subr.mxu0 0.0
        %5208 = vmatpush1.xpose.msra.mxu0 0.0
        %5209 = vmatprep.subr.mxu0 0.0
        %5210 = vmatpush1.xpose.msra.mxu0 0.0
        %5211 = vmatprep.subr.mxu0 0.0
        %5212 = vmatpush1.xpose.msra.mxu0 0.0
        %5213 = vmatprep.subr.mxu0 0.0
        %5214 = vmatpush1.xpose.msra.mxu0 0.0
        %5215 = vmatprep.subr.mxu0 0.0
        %5216 = vmatpush1.xpose.msra.mxu0 0.0
        %5217 = vmatprep.subr.mxu0 0.0
        %5218 = vmatpush1.xpose.msra.mxu0 0.0
        %5219 = vmatprep.subr.mxu0 0.0
        %5220 = vmatpush1.xpose.msra.mxu0 0.0
        %5221 = vmatprep.subr.mxu0 0.0
        %5222 = vmatpush1.xpose.msra.mxu0 0.0
        %5223 = vmatprep.subr.mxu0 0.0
        %5224 = vmatpush1.xpose.msra.mxu0 0.0
        %5225 = vmatprep.subr.mxu0 0.0
        %5226 = vmatpush1.xpose.msra.mxu0 0.0
        %5227 = vmatprep.subr.mxu0 0.0
        %5228 = vmatpush1.xpose.msra.mxu0 0.0
        %5229 = vmatprep.subr.mxu0 0.0
        %5230 = vmatpush1.xpose.msra.mxu0 0.0
        %5231 = vmatprep.subr.mxu0 0.0
        %5232 = vmatpush1.xpose.msra.mxu0 0.0
        %5233 = vmatprep.subr.mxu0 0.0
        %5234 = vmatpush1.xpose.msra.mxu0 0.0
        %5235 = vmatprep.subr.mxu0 0.0
        %5236 = vmatpush1.xpose.msra.mxu0 0.0
        %5237 = vmatprep.subr.mxu0 0.0
        %5238 = vmatpush1.xpose.msra.mxu0 0.0
        %5239 = vmatprep.subr.mxu0 0.0
        %5240 = vmatpush1.xpose.msra.mxu0 0.0
        %5241 = vmatprep.subr.mxu0 0.0
        %5242 = vmatpush1.xpose.msra.mxu0 0.0
        %5243 = vmatprep.subr.mxu0 0.0
        %5244 = vmatpush1.xpose.msra.mxu0 0.0
        %5245 = vmatprep.subr.mxu0 0.0
        %5246 = vmatpush1.xpose.msra.mxu0 0.0
        %5247 = vmatprep.subr.mxu0 0.0
        %5248 = vmatpush1.xpose.msra.mxu0 0.0
        %5249 = vmatprep.subr.mxu0 0.0
        %5250 = vmatpush1.xpose.msra.mxu0 0.0
        %5251 = vmatprep.subr.mxu0 0.0
        %5252 = vmatpush1.xpose.msra.mxu0 0.0
        %5253 = vmatprep.subr.mxu0 0.0
        %5254 = vmatpush1.xpose.msra.mxu0 0.0
        %5255 = vmatprep.subr.mxu0 0.0
        %5256 = vmatpush1.xpose.msra.mxu0 0.0
        %5257 = vmatprep.subr.mxu0 0.0
        %5258 = vmatpush1.xpose.msra.mxu0 0.0
        %5259 = vmatprep.mubr.f32.mxu0 0.0
        %5260 = vmatmul.mubr.f32.gmra.mrb[0].mxu0 %v5191
        %v5261 = vpop.f32.mrb[0].mxu0
        %v5262 = vadd.f32 0.0, %v5261
        %v5263 = vpop.f32.mrb[0].mxu0
        %5264 = vdwg.mxu0
        %v5265 = vmul.f32 %v5262, 0.35355338
        %v5266 = vsel %vm1690, %v5265, -inf
        %5267 = vmax.xlane.f32.xlu0 %v5266
        %v5268 = vpop.xlane.xlu0 %5267
        %v5269 = vsub.f32 %v5265, %v5268
        %v5270 = vmul.f32 %v5269, 1.442695
        %v5271 = vpow.pop %v5270
        %v5272 = vsel %vm1690, %v5271, 0.0
        %5273 = vadd.xlane.f32.xlu0 %v5272
        %v5274 = vpop.xlane.xlu0 %5273
        %v5275 = vrcp.pop %v5274
        %v5276 = vmul.f32 %v5271, %v5275
        %5277 = vrot.lane.b32.xlu0 %v4675, 72
        %v5278 = vpop.permute.xlu0 %5277
        %v5281 = vsel %vm1690, %v5276, 0
        %5283 = vmatprep.subr.mxu0 0.0
        %5284 = vmatpush1.msra.mxu0 %v5278
        %5285 = vmatprep.subr.mxu0 0.0
        %5286 = vmatpush1.msra.mxu0 0.0
        %5287 = vmatprep.subr.mxu0 0.0
        %5288 = vmatpush1.msra.mxu0 0.0
        %5289 = vmatprep.subr.mxu0 0.0
        %5290 = vmatpush1.msra.mxu0 0.0
        %5291 = vmatprep.subr.mxu0 0.0
        %5292 = vmatpush1.msra.mxu0 0.0
        %5293 = vmatprep.subr.mxu0 0.0
        %5294 = vmatpush1.msra.mxu0 0.0
        %5295 = vmatprep.subr.mxu0 0.0
        %5296 = vmatpush1.msra.mxu0 0.0
        %5297 = vmatprep.subr.mxu0 0.0
        %5298 = vmatpush1.msra.mxu0 0.0
        %5299 = vmatprep.subr.mxu0 0.0
        %5300 = vmatpush1.msra.mxu0 0.0
        %5301 = vmatprep.subr.mxu0 0.0
        %5302 = vmatpush1.msra.mxu0 0.0
        %5303 = vmatprep.subr.mxu0 0.0
        %5304 = vmatpush1.msra.mxu0 0.0
        %5305 = vmatprep.subr.mxu0 0.0
        %5306 = vmatpush1.msra.mxu0 0.0
        %5307 = vmatprep.subr.mxu0 0.0
        %5308 = vmatpush1.msra.mxu0 0.0
        %5309 = vmatprep.subr.mxu0 0.0
        %5310 = vmatpush1.msra.mxu0 0.0
        %5311 = vmatprep.subr.mxu0 0.0
        %5312 = vmatpush1.msra.mxu0 0.0
        %5313 = vmatprep.subr.mxu0 0.0
        %5314 = vmatpush1.msra.mxu0 0.0
        %5315 = vmatprep.subr.mxu0 0.0
        %5316 = vmatpush1.msra.mxu0 0.0
        %5317 = vmatprep.subr.mxu0 0.0
        %5318 = vmatpush1.msra.mxu0 0.0
        %5319 = vmatprep.subr.mxu0 0.0
        %5320 = vmatpush1.msra.mxu0 0.0
        %5321 = vmatprep.subr.mxu0 0.0
        %5322 = vmatpush1.msra.mxu0 0.0
        %5323 = vmatprep.subr.mxu0 0.0
        %5324 = vmatpush1.msra.mxu0 0.0
        %5325 = vmatprep.subr.mxu0 0.0
        %5326 = vmatpush1.msra.mxu0 0.0
        %5327 = vmatprep.subr.mxu0 0.0
        %5328 = vmatpush1.msra.mxu0 0.0
        %5329 = vmatprep.subr.mxu0 0.0
        %5330 = vmatpush1.msra.mxu0 0.0
        %5331 = vmatprep.subr.mxu0 0.0
        %5332 = vmatpush1.msra.mxu0 0.0
        %5333 = vmatprep.subr.mxu0 0.0
        %5334 = vmatpush1.msra.mxu0 0.0
        %5335 = vmatprep.subr.mxu0 0.0
        %5336 = vmatpush1.msra.mxu0 0.0
        %5337 = vmatprep.subr.mxu0 0.0
        %5338 = vmatpush1.msra.mxu0 0.0
        %5339 = vmatprep.subr.mxu0 0.0
        %5340 = vmatpush1.msra.mxu0 0.0
        %5341 = vmatprep.subr.mxu0 0.0
        %5342 = vmatpush1.msra.mxu0 0.0
        %5343 = vmatprep.subr.mxu0 0.0
        %5344 = vmatpush1.msra.mxu0 0.0
        %5345 = vmatprep.subr.mxu0 0.0
        %5346 = vmatpush1.msra.mxu0 0.0
        %5347 = vmatprep.mubr.f32.mxu0 0.0
        %5348 = vmatmul.mubr.f32.gmra.mrb[0].mxu0 %v5281
        %v5349 = vpop.f32.mrb[0].mxu0
        %v5350 = vadd.f32 0.0, %v5349
        %v5351 = vpop.f32.mrb[0].mxu0
        %5352 = vdwg.mxu0
        %5354 = vrot.lane.b32.xlu0 %v5350, 24
        %v5355 = vpop.permute.xlu0 %5354
        %5357 = vst.msk [vmem:[#allocation2] sm:$0xff] %vm2368, %v5355
        %v5358 = vld [vmem:[#allocation2] sm:$0xff]
        %v5359 = vld [vmem:[%s53] sm:$0xf]
        %v5360 = vld [vmem:[%s53 + $0x4] sm:$0xf]
        %v5361 = vld [vmem:[%s53 + $0x8] sm:$0xf]
        %v5362 = vld [vmem:[%s53 + $0xc] sm:$0xf]
        %v5363 = vld [vmem:[#allocation15] sm:$0x1]
        %v5364 = vpack.c.bf16 %v5358, %v5358
        %v5366 = vlaneseq
        %v5367 = vshrl.u32 %v5366, 7
        %v5368 = vsub.s32 0, %v5367
        %v5369 = vrot.slane %v5363, %v5368
        %v5375 = vunpack.c.l.b16 %v5359
        %v5376 = vunpack.c.l.b16 %v5360
        %v5377 = vunpack.c.l.b16 %v5361
        %v5378 = vunpack.c.l.b16 %v5362
        %v5379 = vpack.c.b16 %v5376, %v5375
        %v5380 = vpack.c.b16 %v5378, %v5377
        %v5384 = vsel %vm1643, %v5364, 0
        %5386 = vmatprep.subr.bf16.mxu0 0
        %5387 = vmatpush1.bf16.msra.mxu0 %v5379
        %5388 = vmatprep.subr.bf16.mxu0 0
        %5389 = vmatpush1.bf16.msra.mxu0 %v5380
        %5390 = vmatprep.subr.bf16.mxu0 0
        %5391 = vmatpush1.bf16.msra.mxu0 0
        %5392 = vmatprep.subr.bf16.mxu0 0
        %5393 = vmatpush1.bf16.msra.mxu0 0
        %5394 = vmatprep.subr.bf16.mxu0 0
        %5395 = vmatpush1.bf16.msra.mxu0 0
        %5396 = vmatprep.subr.bf16.mxu0 0
        %5397 = vmatpush1.bf16.msra.mxu0 0
        %5398 = vmatprep.subr.bf16.mxu0 0
        %5399 = vmatpush1.bf16.msra.mxu0 0
        %5400 = vmatprep.subr.bf16.mxu0 0
        %5401 = vmatpush1.bf16.msra.mxu0 0
        %5402 = vmatprep.subr.bf16.mxu0 0
        %5403 = vmatpush1.bf16.msra.mxu0 0
        %5404 = vmatprep.subr.bf16.mxu0 0
        %5405 = vmatpush1.bf16.msra.mxu0 0
        %5406 = vmatprep.subr.bf16.mxu0 0
        %5407 = vmatpush1.bf16.msra.mxu0 0
        %5408 = vmatprep.subr.bf16.mxu0 0
        %5409 = vmatpush1.bf16.msra.mxu0 0
        %5410 = vmatprep.subr.bf16.mxu0 0
        %5411 = vmatpush1.bf16.msra.mxu0 0
        %5412 = vmatprep.subr.bf16.mxu0 0
        %5413 = vmatpush1.bf16.msra.mxu0 0
        %5414 = vmatprep.subr.bf16.mxu0 0
        %5415 = vmatpush1.bf16.msra.mxu0 0
        %5416 = vmatprep.subr.bf16.mxu0 0
        %5417 = vmatpush1.bf16.msra.mxu0 0
        %5418 = vmatprep.mubr.bf16.mxu0 0
        %5419 = vmatmul.mubr.bf16.gmra.mrb[0].mxu0 %v5384
        %v5420 = vpop.f32.mrb[0].mxu0
        %v5421 = vadd.f32 %v5369, %v5420
        %v5422 = vpop.f32.mrb[0].mxu0
        %v5423 = vpop.f32.mrb[0].mxu0
        %v5424 = vpop.f32.mrb[0].mxu0
        %5425 = vdwg.mxu0
        %v5426 = vadd.f32 %v4545, %v5421
        %v5427 = vld [vmem:[#allocation17] sm:$0x1]
        %v5428 = vld [vmem:[#allocation18] sm:$0x1]
        %v5429 = vsel %vm1643, %v5426, 0.0
        %5430 = vadd.xlane.f32.xlu0 %v5429
        %v5431 = vpop.xlane.xlu0 %5430
        %v5432 = vmul.f32 %v5431, %v2444
        %v5433 = vsub.f32 %v5426, %v5432
        %v5434 = vmul.f32 %v5433, %v5433
        %v5435 = vsel %vm1643, %v5434, 0.0
        %5436 = vadd.xlane.f32.xlu0 %v5435
        %v5437 = vpop.xlane.xlu0 %5436
        %v5438 = vmul.f32 %v5437, %v2444
        %v5439 = vadd.f32 %v5438, 1e-05
        %v5440 = vrsqrt.pop %v5439
        %v5441 = vmul.f32 %v5433, %v5440
        %v5443 = vlaneseq
        %v5444 = vshrl.u32 %v5443, 7
        %v5445 = vsub.s32 0, %v5444
        %v5446 = vrot.slane %v5427, %v5445
        %v5448 = vmul.f32 %v5441, %v5446
        %v5450 = vlaneseq
        %v5451 = vshrl.u32 %v5450, 7
        %v5452 = vsub.s32 0, %v5451
        %v5453 = vrot.slane %v5428, %v5452
        %v5455 = vadd.f32 %v5448, %v5453
        %v5456 = vld [vmem:[%s61] sm:$0xf]
        %v5457 = vld [vmem:[%s61 + $0x4] sm:$0xf]
        %v5458 = vld [vmem:[%s61 + $0x8] sm:$0xf]
        %v5459 = vld [vmem:[%s61 + $0xc] sm:$0xf]
        %v5460 = vld [vmem:[#allocation20] sm:$0x1]
        %v5461 = vpack.c.bf16 %v5455, %v5455
        %v5463 = vlaneseq
        %v5464 = vshrl.u32 %v5463, 7
        %v5465 = vsub.s32 0, %v5464
        %v5466 = vrot.slane %v5460, %v5465
        %v5472 = vunpack.c.l.b16 %v5456
        %v5473 = vunpack.c.l.b16 %v5457
        %v5474 = vunpack.c.l.b16 %v5458
        %v5475 = vunpack.c.l.b16 %v5459
        %v5476 = vpack.c.b16 %v5473, %v5472
        %v5477 = vpack.c.b16 %v5475, %v5474
        %v5481 = vsel %vm1643, %v5461, 0
        %5483 = vmatprep.subr.bf16.mxu0 0
        %5484 = vmatpush1.bf16.msra.mxu0 %v5476
        %5485 = vmatprep.subr.bf16.mxu0 0
        %5486 = vmatpush1.bf16.msra.mxu0 %v5477
        %5487 = vmatprep.subr.bf16.mxu0 0
        %5488 = vmatpush1.bf16.msra.mxu0 0
        %5489 = vmatprep.subr.bf16.mxu0 0
        %5490 = vmatpush1.bf16.msra.mxu0 0
        %5491 = vmatprep.subr.bf16.mxu0 0
        %5492 = vmatpush1.bf16.msra.mxu0 0
        %5493 = vmatprep.subr.bf16.mxu0 0
        %5494 = vmatpush1.bf16.msra.mxu0 0
        %5495 = vmatprep.subr.bf16.mxu0 0
        %5496 = vmatpush1.bf16.msra.mxu0 0
        %5497 = vmatprep.subr.bf16.mxu0 0
        %5498 = vmatpush1.bf16.msra.mxu0 0
        %5499 = vmatprep.subr.bf16.mxu0 0
        %5500 = vmatpush1.bf16.msra.mxu0 0
        %5501 = vmatprep.subr.bf16.mxu0 0
        %5502 = vmatpush1.bf16.msra.mxu0 0
        %5503 = vmatprep.subr.bf16.mxu0 0
        %5504 = vmatpush1.bf16.msra.mxu0 0
        %5505 = vmatprep.subr.bf16.mxu0 0
        %5506 = vmatpush1.bf16.msra.mxu0 0
        %5507 = vmatprep.subr.bf16.mxu0 0
        %5508 = vmatpush1.bf16.msra.mxu0 0
        %5509 = vmatprep.subr.bf16.mxu0 0
        %5510 = vmatpush1.bf16.msra.mxu0 0
        %5511 = vmatprep.subr.bf16.mxu0 0
        %5512 = vmatpush1.bf16.msra.mxu0 0
        %5513 = vmatprep.subr.bf16.mxu0 0
        %5514 = vmatpush1.bf16.msra.mxu0 0
        %5515 = vmatprep.mubr.bf16.mxu0 0
        %5516 = vmatmul.mubr.bf16.gmra.mrb[0].mxu0 %v5481
        %v5517 = vpop.f32.mrb[0].mxu0
        %v5518 = vadd.f32 %v5466, %v5517
        %v5519 = vpop.f32.mrb[0].mxu0
        %v5520 = vpop.f32.mrb[0].mxu0
        %v5521 = vpop.f32.mrb[0].mxu0
        %5522 = vdwg.mxu0
        %v5523 = vmax.f32 %v5518, 0.0
        %v5524 = vld [vmem:[%s65] sm:$0xf]
        %v5525 = vld [vmem:[%s65 + $0x4] sm:$0xf]
        %v5526 = vld [vmem:[%s65 + $0x8] sm:$0xf]
        %v5527 = vld [vmem:[%s65 + $0xc] sm:$0xf]
        %v5528 = vld [vmem:[%s65 + $0x10] sm:$0xf]
        %v5529 = vld [vmem:[%s65 + $0x14] sm:$0xf]
        %v5530 = vld [vmem:[%s65 + $0x18] sm:$0xf]
        %v5531 = vld [vmem:[%s65 + $0x1c] sm:$0xf]
        %v5532 = vld [vmem:[#allocation21] sm:$0x1]
        %v5533 = vpack.c.bf16 %v5523, %v5523
        %v5535 = vlaneseq
        %v5536 = vshrl.u32 %v5535, 7
        %v5537 = vsub.s32 0, %v5536
        %v5538 = vrot.slane %v5532, %v5537
        %v5548 = vunpack.c.l.b16 %v5524
        %v5549 = vunpack.c.l.b16 %v5525
        %v5550 = vunpack.c.l.b16 %v5526
        %v5551 = vunpack.c.l.b16 %v5527
        %v5552 = vunpack.c.l.b16 %v5528
        %v5553 = vunpack.c.l.b16 %v5529
        %v5554 = vunpack.c.l.b16 %v5530
        %v5555 = vunpack.c.l.b16 %v5531
        %v5556 = vpack.c.b16 %v5549, %v5548
        %v5557 = vpack.c.b16 %v5551, %v5550
        %v5558 = vpack.c.b16 %v5553, %v5552
        %v5559 = vpack.c.b16 %v5555, %v5554
        %v5565 = vsel %vm2577, %v5533, 0
        %5567 = vmatprep.subr.bf16.mxu0 0
        %5568 = vmatpush1.bf16.msra.mxu0 %v5556
        %5569 = vmatprep.subr.bf16.mxu0 0
        %5570 = vmatpush1.bf16.msra.mxu0 %v5557
        %5571 = vmatprep.subr.bf16.mxu0 0
        %5572 = vmatpush1.bf16.msra.mxu0 %v5558
        %5573 = vmatprep.subr.bf16.mxu0 0
        %5574 = vmatpush1.bf16.msra.mxu0 %v5559
        %5575 = vmatprep.subr.bf16.mxu0 0
        %5576 = vmatpush1.bf16.msra.mxu0 0
        %5577 = vmatprep.subr.bf16.mxu0 0
        %5578 = vmatpush1.bf16.msra.mxu0 0
        %5579 = vmatprep.subr.bf16.mxu0 0
        %5580 = vmatpush1.bf16.msra.mxu0 0
        %5581 = vmatprep.subr.bf16.mxu0 0
        %5582 = vmatpush1.bf16.msra.mxu0 0
        %5583 = vmatprep.subr.bf16.mxu0 0
        %5584 = vmatpush1.bf16.msra.mxu0 0
        %5585 = vmatprep.subr.bf16.mxu0 0
        %5586 = vmatpush1.bf16.msra.mxu0 0
        %5587 = vmatprep.subr.bf16.mxu0 0
        %5588 = vmatpush1.bf16.msra.mxu0 0
        %5589 = vmatprep.subr.bf16.mxu0 0
        %5590 = vmatpush1.bf16.msra.mxu0 0
        %5591 = vmatprep.subr.bf16.mxu0 0
        %5592 = vmatpush1.bf16.msra.mxu0 0
        %5593 = vmatprep.subr.bf16.mxu0 0
        %5594 = vmatpush1.bf16.msra.mxu0 0
        %5595 = vmatprep.subr.bf16.mxu0 0
        %5596 = vmatpush1.bf16.msra.mxu0 0
        %5597 = vmatprep.subr.bf16.mxu0 0
        %5598 = vmatpush1.bf16.msra.mxu0 0
        %5599 = vmatprep.mubr.bf16.mxu0 0
        %5600 = vmatmul.mubr.bf16.gmra.mrb[0].mxu0 %v5565
        %v5601 = vpop.f32.mrb[0].mxu0
        %v5602 = vadd.f32 %v5538, %v5601
        %v5603 = vpop.f32.mrb[0].mxu0
        %v5604 = vpop.f32.mrb[0].mxu0
        %v5605 = vpop.f32.mrb[0].mxu0
        %5606 = vdwg.mxu0
        %v5607 = vadd.f32 %v5455, %v5602
        %v5608 = vld [vmem:[#allocation23] sm:$0x1]
        %v5609 = vld [vmem:[#allocation24] sm:$0x1]
        %v5610 = vsel %vm1643, %v5607, 0.0
        %5611 = vadd.xlane.f32.xlu0 %v5610
        %v5612 = vpop.xlane.xlu0 %5611
        %v5613 = vmul.f32 %v5612, %v2444
        %v5614 = vsub.f32 %v5607, %v5613
        %v5615 = vmul.f32 %v5614, %v5614
        %v5616 = vsel %vm1643, %v5615, 0.0
        %5617 = vadd.xlane.f32.xlu0 %v5616
        %v5618 = vpop.xlane.xlu0 %5617
        %v5619 = vmul.f32 %v5618, %v2444
        %v5620 = vadd.f32 %v5619, 1e-05
        %v5621 = vrsqrt.pop %v5620
        %v5622 = vmul.f32 %v5614, %v5621
        %v5624 = vlaneseq
        %v5625 = vshrl.u32 %v5624, 7
        %v5626 = vsub.s32 0, %v5625
        %v5627 = vrot.slane %v5608, %v5626
        %v5629 = vmul.f32 %v5622, %v5627
        %v5631 = vlaneseq
        %v5632 = vshrl.u32 %v5631, 7
        %v5633 = vsub.s32 0, %v5632
        %v5634 = vrot.slane %v5609, %v5633
        %v5636 = vadd.f32 %v5629, %v5634
        %s5637 = scalar_lea.vmem %s33, 16
        %v5638 = vld [vmem:[%s5637] sm:$0xf]
        %v5639 = vld [vmem:[%s5637 + $0x4] sm:$0xf]
        %v5640 = vld [vmem:[%s5637 + $0x8] sm:$0xf]
        %v5641 = vld [vmem:[%s5637 + $0xc] sm:$0xf]
        %s5642 = scalar_lea.vmem [#allocation6], 1
        %v5643 = vld [vmem:[%s5642] sm:$0x1]
        %v5644 = vpack.c.bf16 %v5636, %v5636
        %v5646 = vlaneseq
        %v5647 = vshrl.u32 %v5646, 7
        %v5648 = vsub.s32 0, %v5647
        %v5649 = vrot.slane %v5643, %v5648
        %v5655 = vunpack.c.l.b16 %v5638
        %v5656 = vunpack.c.l.b16 %v5639
        %v5657 = vunpack.c.l.b16 %v5640
        %v5658 = vunpack.c.l.b16 %v5641
        %v5659 = vpack.c.b16 %v5656, %v5655
        %v5660 = vpack.c.b16 %v5658, %v5657
        %v5664 = vsel %vm1643, %v5644, 0
        %5666 = vmatprep.subr.bf16.mxu0 0
        %5667 = vmatpush1.bf16.msra.mxu0 %v5659
        %5668 = vmatprep.subr.bf16.mxu0 0
        %5669 = vmatpush1.bf16.msra.mxu0 %v5660
        %5670 = vmatprep.subr.bf16.mxu0 0
        %5671 = vmatpush1.bf16.msra.mxu0 0
        %5672 = vmatprep.subr.bf16.mxu0 0
        %5673 = vmatpush1.bf16.msra.mxu0 0
        %5674 = vmatprep.subr.bf16.mxu0 0
        %5675 = vmatpush1.bf16.msra.mxu0 0
        %5676 = vmatprep.subr.bf16.mxu0 0
        %5677 = vmatpush1.bf16.msra.mxu0 0
        %5678 = vmatprep.subr.bf16.mxu0 0
        %5679 = vmatpush1.bf16.msra.mxu0 0
        %5680 = vmatprep.subr.bf16.mxu0 0
        %5681 = vmatpush1.bf16.msra.mxu0 0
        %5682 = vmatprep.subr.bf16.mxu0 0
        %5683 = vmatpush1.bf16.msra.mxu0 0
        %5684 = vmatprep.subr.bf16.mxu0 0
        %5685 = vmatpush1.bf16.msra.mxu0 0
        %5686 = vmatprep.subr.bf16.mxu0 0
        %5687 = vmatpush1.bf16.msra.mxu0 0
        %5688 = vmatprep.subr.bf16.mxu0 0
        %5689 = vmatpush1.bf16.msra.mxu0 0
        %5690 = vmatprep.subr.bf16.mxu0 0
        %5691 = vmatpush1.bf16.msra.mxu0 0
        %5692 = vmatprep.subr.bf16.mxu0 0
        %5693 = vmatpush1.bf16.msra.mxu0 0
        %5694 = vmatprep.subr.bf16.mxu0 0
        %5695 = vmatpush1.bf16.msra.mxu0 0
        %5696 = vmatprep.subr.bf16.mxu0 0
        %5697 = vmatpush1.bf16.msra.mxu0 0
        %5698 = vmatprep.mubr.bf16.mxu0 0
        %5699 = vmatmul.mubr.bf16.gmra.mrb[0].mxu0 %v5664
        %v5700 = vpop.f32.mrb[0].mxu0
        %v5701 = vadd.f32 %v5649, %v5700
        %v5702 = vpop.f32.mrb[0].mxu0
        %v5703 = vpop.f32.mrb[0].mxu0
        %v5704 = vpop.f32.mrb[0].mxu0
        %5705 = vdwg.mxu0
        %5707 = vrot.lane.b32.xlu0 %v5701, 96
        %v5708 = vpop.permute.xlu0 %5707
        %v5709 = vsel %vm1690, %v5701, 0
        %v5711 = vsel %vm1690, %v5708, 0
        %5713 = vmatprep.subr.mxu0 0.0
        %5714 = vmatpush1.xpose.msra.mxu0 %v5711
        %5715 = vmatprep.subr.mxu0 0.0
        %5716 = vmatpush1.xpose.msra.mxu0 0.0
        %5717 = vmatprep.subr.mxu0 0.0
        %5718 = vmatpush1.xpose.msra.mxu0 0.0
        %5719 = vmatprep.subr.mxu0 0.0
        %5720 = vmatpush1.xpose.msra.mxu0 0.0
        %5721 = vmatprep.subr.mxu0 0.0
        %5722 = vmatpush1.xpose.msra.mxu0 0.0
        %5723 = vmatprep.subr.mxu0 0.0
        %5724 = vmatpush1.xpose.msra.mxu0 0.0
        %5725 = vmatprep.subr.mxu0 0.0
        %5726 = vmatpush1.xpose.msra.mxu0 0.0
        %5727 = vmatprep.subr.mxu0 0.0
        %5728 = vmatpush1.xpose.msra.mxu0 0.0
        %5729 = vmatprep.subr.mxu0 0.0
        %5730 = vmatpush1.xpose.msra.mxu0 0.0
        %5731 = vmatprep.subr.mxu0 0.0
        %5732 = vmatpush1.xpose.msra.mxu0 0.0
        %5733 = vmatprep.subr.mxu0 0.0
        %5734 = vmatpush1.xpose.msra.mxu0 0.0
        %5735 = vmatprep.subr.mxu0 0.0
        %5736 = vmatpush1.xpose.msra.mxu0 0.0
        %5737 = vmatprep.subr.mxu0 0.0
        %5738 = vmatpush1.xpose.msra.mxu0 0.0
        %5739 = vmatprep.subr.mxu0 0.0
        %5740 = vmatpush1.xpose.msra.mxu0 0.0
        %5741 = vmatprep.subr.mxu0 0.0
        %5742 = vmatpush1.xpose.msra.mxu0 0.0
        %5743 = vmatprep.subr.mxu0 0.0
        %5744 = vmatpush1.xpose.msra.mxu0 0.0
        %5745 = vmatprep.subr.mxu0 0.0
        %5746 = vmatpush1.xpose.msra.mxu0 0.0
        %5747 = vmatprep.subr.mxu0 0.0
        %5748 = vmatpush1.xpose.msra.mxu0 0.0
        %5749 = vmatprep.subr.mxu0 0.0
        %5750 = vmatpush1.xpose.msra.mxu0 0.0
        %5751 = vmatprep.subr.mxu0 0.0
        %5752 = vmatpush1.xpose.msra.mxu0 0.0
        %5753 = vmatprep.subr.mxu0 0.0
        %5754 = vmatpush1.xpose.msra.mxu0 0.0
        %5755 = vmatprep.subr.mxu0 0.0
        %5756 = vmatpush1.xpose.msra.mxu0 0.0
        %5757 = vmatprep.subr.mxu0 0.0
        %5758 = vmatpush1.xpose.msra.mxu0 0.0
        %5759 = vmatprep.subr.mxu0 0.0
        %5760 = vmatpush1.xpose.msra.mxu0 0.0
        %5761 = vmatprep.subr.mxu0 0.0
        %5762 = vmatpush1.xpose.msra.mxu0 0.0
        %5763 = vmatprep.subr.mxu0 0.0
        %5764 = vmatpush1.xpose.msra.mxu0 0.0
        %5765 = vmatprep.subr.mxu0 0.0
        %5766 = vmatpush1.xpose.msra.mxu0 0.0
        %5767 = vmatprep.subr.mxu0 0.0
        %5768 = vmatpush1.xpose.msra.mxu0 0.0
        %5769 = vmatprep.subr.mxu0 0.0
        %5770 = vmatpush1.xpose.msra.mxu0 0.0
        %5771 = vmatprep.subr.mxu0 0.0
        %5772 = vmatpush1.xpose.msra.mxu0 0.0
        %5773 = vmatprep.subr.mxu0 0.0
        %5774 = vmatpush1.xpose.msra.mxu0 0.0
        %5775 = vmatprep.subr.mxu0 0.0
        %5776 = vmatpush1.xpose.msra.mxu0 0.0
        %5777 = vmatprep.mubr.f32.mxu0 0.0
        %5778 = vmatmul.mubr.f32.gmra.mrb[0].mxu0 %v5709
        %v5779 = vpop.f32.mrb[0].mxu0
        %v5780 = vadd.f32 0.0, %v5779
        %v5781 = vpop.f32.mrb[0].mxu0
        %5782 = vdwg.mxu0
        %v5783 = vmul.f32 %v5780, 0.35355338
        %v5784 = vsel %vm3764, %v5783, -1e+30
        %v5785 = vsel %vm1690, %v5784, -inf
        %5786 = vmax.xlane.f32.xlu0 %v5785
        %v5787 = vpop.xlane.xlu0 %5786
        %v5788 = vsub.f32 %v5784, %v5787
        %v5789 = vmul.f32 %v5788, 1.442695
        %v5790 = vpow.pop %v5789
        %v5791 = vsel %vm1690, %v5790, 0.0
        %5792 = vadd.xlane.f32.xlu0 %v5791
        %v5793 = vpop.xlane.xlu0 %5792
        %v5794 = vrcp.pop %v5793
        %v5795 = vmul.f32 %v5790, %v5794
        %5796 = vrot.lane.b32.xlu0 %v5701, 64
        %v5797 = vpop.permute.xlu0 %5796
        %v5800 = vsel %vm1690, %v5795, 0
        %5802 = vmatprep.subr.mxu0 0.0
        %5803 = vmatpush1.msra.mxu0 %v5797
        %5804 = vmatprep.subr.mxu0 0.0
        %5805 = vmatpush1.msra.mxu0 0.0
        %5806 = vmatprep.subr.mxu0 0.0
        %5807 = vmatpush1.msra.mxu0 0.0
        %5808 = vmatprep.subr.mxu0 0.0
        %5809 = vmatpush1.msra.mxu0 0.0
        %5810 = vmatprep.subr.mxu0 0.0
        %5811 = vmatpush1.msra.mxu0 0.0
        %5812 = vmatprep.subr.mxu0 0.0
        %5813 = vmatpush1.msra.mxu0 0.0
        %5814 = vmatprep.subr.mxu0 0.0
        %5815 = vmatpush1.msra.mxu0 0.0
        %5816 = vmatprep.subr.mxu0 0.0
        %5817 = vmatpush1.msra.mxu0 0.0
        %5818 = vmatprep.subr.mxu0 0.0
        %5819 = vmatpush1.msra.mxu0 0.0
        %5820 = vmatprep.subr.mxu0 0.0
        %5821 = vmatpush1.msra.mxu0 0.0
        %5822 = vmatprep.subr.mxu0 0.0
        %5823 = vmatpush1.msra.mxu0 0.0
        %5824 = vmatprep.subr.mxu0 0.0
        %5825 = vmatpush1.msra.mxu0 0.0
        %5826 = vmatprep.subr.mxu0 0.0
        %5827 = vmatpush1.msra.mxu0 0.0
        %5828 = vmatprep.subr.mxu0 0.0
        %5829 = vmatpush1.msra.mxu0 0.0
        %5830 = vmatprep.subr.mxu0 0.0
        %5831 = vmatpush1.msra.mxu0 0.0
        %5832 = vmatprep.subr.mxu0 0.0
        %5833 = vmatpush1.msra.mxu0 0.0
        %5834 = vmatprep.subr.mxu0 0.0
        %5835 = vmatpush1.msra.mxu0 0.0
        %5836 = vmatprep.subr.mxu0 0.0
        %5837 = vmatpush1.msra.mxu0 0.0
        %5838 = vmatprep.subr.mxu0 0.0
        %5839 = vmatpush1.msra.mxu0 0.0
        %5840 = vmatprep.subr.mxu0 0.0
        %5841 = vmatpush1.msra.mxu0 0.0
        %5842 = vmatprep.subr.mxu0 0.0
        %5843 = vmatpush1.msra.mxu0 0.0
        %5844 = vmatprep.subr.mxu0 0.0
        %5845 = vmatpush1.msra.mxu0 0.0
        %5846 = vmatprep.subr.mxu0 0.0
        %5847 = vmatpush1.msra.mxu0 0.0
        %5848 = vmatprep.subr.mxu0 0.0
        %5849 = vmatpush1.msra.mxu0 0.0
        %5850 = vmatprep.subr.mxu0 0.0
        %5851 = vmatpush1.msra.mxu0 0.0
        %5852 = vmatprep.subr.mxu0 0.0
        %5853 = vmatpush1.msra.mxu0 0.0
        %5854 = vmatprep.subr.mxu0 0.0
        %5855 = vmatpush1.msra.mxu0 0.0
        %5856 = vmatprep.subr.mxu0 0.0
        %5857 = vmatpush1.msra.mxu0 0.0
        %5858 = vmatprep.subr.mxu0 0.0
        %5859 = vmatpush1.msra.mxu0 0.0
        %5860 = vmatprep.subr.mxu0 0.0
        %5861 = vmatpush1.msra.mxu0 0.0
        %5862 = vmatprep.subr.mxu0 0.0
        %5863 = vmatpush1.msra.mxu0 0.0
        %5864 = vmatprep.subr.mxu0 0.0
        %5865 = vmatpush1.msra.mxu0 0.0
        %5866 = vmatprep.mubr.f32.mxu0 0.0
        %5867 = vmatmul.mubr.f32.gmra.mrb[0].mxu0 %v5800
        %v5868 = vpop.f32.mrb[0].mxu0
        %v5869 = vadd.f32 0.0, %v5868
        %v5870 = vpop.f32.mrb[0].mxu0
        %5871 = vdwg.mxu0
        %5872 = vst.msk [vmem:[#allocation2] sm:$0xff] %vm1690, %v5869
        %5873 = vrot.lane.b32.xlu0 %v5701, 120
        %v5874 = vpop.permute.xlu0 %5873
        %5875 = vrot.lane.b32.xlu0 %v5701, 88
        %v5876 = vpop.permute.xlu0 %5875
        %v5877 = vsel %vm1690, %v5874, 0
        %v5879 = vsel %vm1690, %v5876, 0
        %5881 = vmatprep.subr.mxu0 0.0
        %5882 = vmatpush1.xpose.msra.mxu0 %v5879
        %5883 = vmatprep.subr.mxu0 0.0
        %5884 = vmatpush1.xpose.msra.mxu0 0.0
        %5885 = vmatprep.subr.mxu0 0.0
        %5886 = vmatpush1.xpose.msra.mxu0 0.0
        %5887 = vmatprep.subr.mxu0 0.0
        %5888 = vmatpush1.xpose.msra.mxu0 0.0
        %5889 = vmatprep.subr.mxu0 0.0
        %5890 = vmatpush1.xpose.msra.mxu0 0.0
        %5891 = vmatprep.subr.mxu0 0.0
        %5892 = vmatpush1.xpose.msra.mxu0 0.0
        %5893 = vmatprep.subr.mxu0 0.0
        %5894 = vmatpush1.xpose.msra.mxu0 0.0
        %5895 = vmatprep.subr.mxu0 0.0
        %5896 = vmatpush1.xpose.msra.mxu0 0.0
        %5897 = vmatprep.subr.mxu0 0.0
        %5898 = vmatpush1.xpose.msra.mxu0 0.0
        %5899 = vmatprep.subr.mxu0 0.0
        %5900 = vmatpush1.xpose.msra.mxu0 0.0
        %5901 = vmatprep.subr.mxu0 0.0
        %5902 = vmatpush1.xpose.msra.mxu0 0.0
        %5903 = vmatprep.subr.mxu0 0.0
        %5904 = vmatpush1.xpose.msra.mxu0 0.0
        %5905 = vmatprep.subr.mxu0 0.0
        %5906 = vmatpush1.xpose.msra.mxu0 0.0
        %5907 = vmatprep.subr.mxu0 0.0
        %5908 = vmatpush1.xpose.msra.mxu0 0.0
        %5909 = vmatprep.subr.mxu0 0.0
        %5910 = vmatpush1.xpose.msra.mxu0 0.0
        %5911 = vmatprep.subr.mxu0 0.0
        %5912 = vmatpush1.xpose.msra.mxu0 0.0
        %5913 = vmatprep.subr.mxu0 0.0
        %5914 = vmatpush1.xpose.msra.mxu0 0.0
        %5915 = vmatprep.subr.mxu0 0.0
        %5916 = vmatpush1.xpose.msra.mxu0 0.0
        %5917 = vmatprep.subr.mxu0 0.0
        %5918 = vmatpush1.xpose.msra.mxu0 0.0
        %5919 = vmatprep.subr.mxu0 0.0
        %5920 = vmatpush1.xpose.msra.mxu0 0.0
        %5921 = vmatprep.subr.mxu0 0.0
        %5922 = vmatpush1.xpose.msra.mxu0 0.0
        %5923 = vmatprep.subr.mxu0 0.0
        %5924 = vmatpush1.xpose.msra.mxu0 0.0
        %5925 = vmatprep.subr.mxu0 0.0
        %5926 = vmatpush1.xpose.msra.mxu0 0.0
        %5927 = vmatprep.subr.mxu0 0.0
        %5928 = vmatpush1.xpose.msra.mxu0 0.0
        %5929 = vmatprep.subr.mxu0 0.0
        %5930 = vmatpush1.xpose.msra.mxu0 0.0
        %5931 = vmatprep.subr.mxu0 0.0
        %5932 = vmatpush1.xpose.msra.mxu0 0.0
        %5933 = vmatprep.subr.mxu0 0.0
        %5934 = vmatpush1.xpose.msra.mxu0 0.0
        %5935 = vmatprep.subr.mxu0 0.0
        %5936 = vmatpush1.xpose.msra.mxu0 0.0
        %5937 = vmatprep.subr.mxu0 0.0
        %5938 = vmatpush1.xpose.msra.mxu0 0.0
        %5939 = vmatprep.subr.mxu0 0.0
        %5940 = vmatpush1.xpose.msra.mxu0 0.0
        %5941 = vmatprep.subr.mxu0 0.0
        %5942 = vmatpush1.xpose.msra.mxu0 0.0
        %5943 = vmatprep.subr.mxu0 0.0
        %5944 = vmatpush1.xpose.msra.mxu0 0.0
        %5945 = vmatprep.mubr.f32.mxu0 0.0
        %5946 = vmatmul.mubr.f32.gmra.mrb[0].mxu0 %v5877
        %v5947 = vpop.f32.mrb[0].mxu0
        %v5948 = vadd.f32 0.0, %v5947
        %v5949 = vpop.f32.mrb[0].mxu0
        %5950 = vdwg.mxu0
        %v5951 = vmul.f32 %v5948, 0.35355338
        %v5952 = vsel %vm3764, %v5951, -1e+30
        %v5953 = vsel %vm1690, %v5952, -inf
        %5954 = vmax.xlane.f32.xlu0 %v5953
        %v5955 = vpop.xlane.xlu0 %5954
        %v5956 = vsub.f32 %v5952, %v5955
        %v5957 = vmul.f32 %v5956, 1.442695
        %v5958 = vpow.pop %v5957
        %v5959 = vsel %vm1690, %v5958, 0.0
        %5960 = vadd.xlane.f32.xlu0 %v5959
        %v5961 = vpop.xlane.xlu0 %5960
        %v5962 = vrcp.pop %v5961
        %v5963 = vmul.f32 %v5958, %v5962
        %5964 = vrot.lane.b32.xlu0 %v5701, 56
        %v5965 = vpop.permute.xlu0 %5964
        %v5968 = vsel %vm1690, %v5963, 0
        %5970 = vmatprep.subr.mxu0 0.0
        %5971 = vmatpush1.msra.mxu0 %v5965
        %5972 = vmatprep.subr.mxu0 0.0
        %5973 = vmatpush1.msra.mxu0 0.0
        %5974 = vmatprep.subr.mxu0 0.0
        %5975 = vmatpush1.msra.mxu0 0.0
        %5976 = vmatprep.subr.mxu0 0.0
        %5977 = vmatpush1.msra.mxu0 0.0
        %5978 = vmatprep.subr.mxu0 0.0
        %5979 = vmatpush1.msra.mxu0 0.0
        %5980 = vmatprep.subr.mxu0 0.0
        %5981 = vmatpush1.msra.mxu0 0.0
        %5982 = vmatprep.subr.mxu0 0.0
        %5983 = vmatpush1.msra.mxu0 0.0
        %5984 = vmatprep.subr.mxu0 0.0
        %5985 = vmatpush1.msra.mxu0 0.0
        %5986 = vmatprep.subr.mxu0 0.0
        %5987 = vmatpush1.msra.mxu0 0.0
        %5988 = vmatprep.subr.mxu0 0.0
        %5989 = vmatpush1.msra.mxu0 0.0
        %5990 = vmatprep.subr.mxu0 0.0
        %5991 = vmatpush1.msra.mxu0 0.0
        %5992 = vmatprep.subr.mxu0 0.0
        %5993 = vmatpush1.msra.mxu0 0.0
        %5994 = vmatprep.subr.mxu0 0.0
        %5995 = vmatpush1.msra.mxu0 0.0
        %5996 = vmatprep.subr.mxu0 0.0
        %5997 = vmatpush1.msra.mxu0 0.0
        %5998 = vmatprep.subr.mxu0 0.0
        %5999 = vmatpush1.msra.mxu0 0.0
        %6000 = vmatprep.subr.mxu0 0.0
        %6001 = vmatpush1.msra.mxu0 0.0
        %6002 = vmatprep.subr.mxu0 0.0
        %6003 = vmatpush1.msra.mxu0 0.0
        %6004 = vmatprep.subr.mxu0 0.0
        %6005 = vmatpush1.msra.mxu0 0.0
        %6006 = vmatprep.subr.mxu0 0.0
        %6007 = vmatpush1.msra.mxu0 0.0
        %6008 = vmatprep.subr.mxu0 0.0
        %6009 = vmatpush1.msra.mxu0 0.0
        %6010 = vmatprep.subr.mxu0 0.0
        %6011 = vmatpush1.msra.mxu0 0.0
        %6012 = vmatprep.subr.mxu0 0.0
        %6013 = vmatpush1.msra.mxu0 0.0
        %6014 = vmatprep.subr.mxu0 0.0
        %6015 = vmatpush1.msra.mxu0 0.0
        %6016 = vmatprep.subr.mxu0 0.0
        %6017 = vmatpush1.msra.mxu0 0.0
        %6018 = vmatprep.subr.mxu0 0.0
        %6019 = vmatpush1.msra.mxu0 0.0
        %6020 = vmatprep.subr.mxu0 0.0
        %6021 = vmatpush1.msra.mxu0 0.0
        %6022 = vmatprep.subr.mxu0 0.0
        %6023 = vmatpush1.msra.mxu0 0.0
        %6024 = vmatprep.subr.mxu0 0.0
        %6025 = vmatpush1.msra.mxu0 0.0
        %6026 = vmatprep.subr.mxu0 0.0
        %6027 = vmatpush1.msra.mxu0 0.0
        %6028 = vmatprep.subr.mxu0 0.0
        %6029 = vmatpush1.msra.mxu0 0.0
        %6030 = vmatprep.subr.mxu0 0.0
        %6031 = vmatpush1.msra.mxu0 0.0
        %6032 = vmatprep.subr.mxu0 0.0
        %6033 = vmatpush1.msra.mxu0 0.0
        %6034 = vmatprep.mubr.f32.mxu0 0.0
        %6035 = vmatmul.mubr.f32.gmra.mrb[0].mxu0 %v5968
        %v6036 = vpop.f32.mrb[0].mxu0
        %v6037 = vadd.f32 0.0, %v6036
        %v6038 = vpop.f32.mrb[0].mxu0
        %6039 = vdwg.mxu0
        %6041 = vrot.lane.b32.xlu0 %v6037, 8
        %v6042 = vpop.permute.xlu0 %6041
        %6044 = vst.msk [vmem:[#allocation2] sm:$0xff] %vm2024, %v6042
        %6045 = vrot.lane.b32.xlu0 %v5701, 112
        %v6046 = vpop.permute.xlu0 %6045
        %6047 = vrot.lane.b32.xlu0 %v5701, 80
        %v6048 = vpop.permute.xlu0 %6047
        %v6049 = vsel %vm1690, %v6046, 0
        %v6051 = vsel %vm1690, %v6048, 0
        %6053 = vmatprep.subr.mxu0 0.0
        %6054 = vmatpush1.xpose.msra.mxu0 %v6051
        %6055 = vmatprep.subr.mxu0 0.0
        %6056 = vmatpush1.xpose.msra.mxu0 0.0
        %6057 = vmatprep.subr.mxu0 0.0
        %6058 = vmatpush1.xpose.msra.mxu0 0.0
        %6059 = vmatprep.subr.mxu0 0.0
        %6060 = vmatpush1.xpose.msra.mxu0 0.0
        %6061 = vmatprep.subr.mxu0 0.0
        %6062 = vmatpush1.xpose.msra.mxu0 0.0
        %6063 = vmatprep.subr.mxu0 0.0
        %6064 = vmatpush1.xpose.msra.mxu0 0.0
        %6065 = vmatprep.subr.mxu0 0.0
        %6066 = vmatpush1.xpose.msra.mxu0 0.0
        %6067 = vmatprep.subr.mxu0 0.0
        %6068 = vmatpush1.xpose.msra.mxu0 0.0
        %6069 = vmatprep.subr.mxu0 0.0
        %6070 = vmatpush1.xpose.msra.mxu0 0.0
        %6071 = vmatprep.subr.mxu0 0.0
        %6072 = vmatpush1.xpose.msra.mxu0 0.0
        %6073 = vmatprep.subr.mxu0 0.0
        %6074 = vmatpush1.xpose.msra.mxu0 0.0
        %6075 = vmatprep.subr.mxu0 0.0
        %6076 = vmatpush1.xpose.msra.mxu0 0.0
        %6077 = vmatprep.subr.mxu0 0.0
        %6078 = vmatpush1.xpose.msra.mxu0 0.0
        %6079 = vmatprep.subr.mxu0 0.0
        %6080 = vmatpush1.xpose.msra.mxu0 0.0
        %6081 = vmatprep.subr.mxu0 0.0
        %6082 = vmatpush1.xpose.msra.mxu0 0.0
        %6083 = vmatprep.subr.mxu0 0.0
        %6084 = vmatpush1.xpose.msra.mxu0 0.0
        %6085 = vmatprep.subr.mxu0 0.0
        %6086 = vmatpush1.xpose.msra.mxu0 0.0
        %6087 = vmatprep.subr.mxu0 0.0
        %6088 = vmatpush1.xpose.msra.mxu0 0.0
        %6089 = vmatprep.subr.mxu0 0.0
        %6090 = vmatpush1.xpose.msra.mxu0 0.0
        %6091 = vmatprep.subr.mxu0 0.0
        %6092 = vmatpush1.xpose.msra.mxu0 0.0
        %6093 = vmatprep.subr.mxu0 0.0
        %6094 = vmatpush1.xpose.msra.mxu0 0.0
        %6095 = vmatprep.subr.mxu0 0.0
        %6096 = vmatpush1.xpose.msra.mxu0 0.0
        %6097 = vmatprep.subr.mxu0 0.0
        %6098 = vmatpush1.xpose.msra.mxu0 0.0
        %6099 = vmatprep.subr.mxu0 0.0
        %6100 = vmatpush1.xpose.msra.mxu0 0.0
        %6101 = vmatprep.subr.mxu0 0.0
        %6102 = vmatpush1.xpose.msra.mxu0 0.0
        %6103 = vmatprep.subr.mxu0 0.0
        %6104 = vmatpush1.xpose.msra.mxu0 0.0
        %6105 = vmatprep.subr.mxu0 0.0
        %6106 = vmatpush1.xpose.msra.mxu0 0.0
        %6107 = vmatprep.subr.mxu0 0.0
        %6108 = vmatpush1.xpose.msra.mxu0 0.0
        %6109 = vmatprep.subr.mxu0 0.0
        %6110 = vmatpush1.xpose.msra.mxu0 0.0
        %6111 = vmatprep.subr.mxu0 0.0
        %6112 = vmatpush1.xpose.msra.mxu0 0.0
        %6113 = vmatprep.subr.mxu0 0.0
        %6114 = vmatpush1.xpose.msra.mxu0 0.0
        %6115 = vmatprep.subr.mxu0 0.0
        %6116 = vmatpush1.xpose.msra.mxu0 0.0
        %6117 = vmatprep.mubr.f32.mxu0 0.0
        %6118 = vmatmul.mubr.f32.gmra.mrb[0].mxu0 %v6049
        %v6119 = vpop.f32.mrb[0].mxu0
        %v6120 = vadd.f32 0.0, %v6119
        %v6121 = vpop.f32.mrb[0].mxu0
        %6122 = vdwg.mxu0
        %v6123 = vmul.f32 %v6120, 0.35355338
        %v6124 = vsel %vm3764, %v6123, -1e+30
        %v6125 = vsel %vm1690, %v6124, -inf
        %6126 = vmax.xlane.f32.xlu0 %v6125
        %v6127 = vpop.xlane.xlu0 %6126
        %v6128 = vsub.f32 %v6124, %v6127
        %v6129 = vmul.f32 %v6128, 1.442695
        %v6130 = vpow.pop %v6129
        %v6131 = vsel %vm1690, %v6130, 0.0
        %6132 = vadd.xlane.f32.xlu0 %v6131
        %v6133 = vpop.xlane.xlu0 %6132
        %v6134 = vrcp.pop %v6133
        %v6135 = vmul.f32 %v6130, %v6134
        %6136 = vrot.lane.b32.xlu0 %v5701, 48
        %v6137 = vpop.permute.xlu0 %6136
        %v6140 = vsel %vm1690, %v6135, 0
        %6142 = vmatprep.subr.mxu0 0.0
        %6143 = vmatpush1.msra.mxu0 %v6137
        %6144 = vmatprep.subr.mxu0 0.0
        %6145 = vmatpush1.msra.mxu0 0.0
        %6146 = vmatprep.subr.mxu0 0.0
        %6147 = vmatpush1.msra.mxu0 0.0
        %6148 = vmatprep.subr.mxu0 0.0
        %6149 = vmatpush1.msra.mxu0 0.0
        %6150 = vmatprep.subr.mxu0 0.0
        %6151 = vmatpush1.msra.mxu0 0.0
        %6152 = vmatprep.subr.mxu0 0.0
        %6153 = vmatpush1.msra.mxu0 0.0
        %6154 = vmatprep.subr.mxu0 0.0
        %6155 = vmatpush1.msra.mxu0 0.0
        %6156 = vmatprep.subr.mxu0 0.0
        %6157 = vmatpush1.msra.mxu0 0.0
        %6158 = vmatprep.subr.mxu0 0.0
        %6159 = vmatpush1.msra.mxu0 0.0
        %6160 = vmatprep.subr.mxu0 0.0
        %6161 = vmatpush1.msra.mxu0 0.0
        %6162 = vmatprep.subr.mxu0 0.0
        %6163 = vmatpush1.msra.mxu0 0.0
        %6164 = vmatprep.subr.mxu0 0.0
        %6165 = vmatpush1.msra.mxu0 0.0
        %6166 = vmatprep.subr.mxu0 0.0
        %6167 = vmatpush1.msra.mxu0 0.0
        %6168 = vmatprep.subr.mxu0 0.0
        %6169 = vmatpush1.msra.mxu0 0.0
        %6170 = vmatprep.subr.mxu0 0.0
        %6171 = vmatpush1.msra.mxu0 0.0
        %6172 = vmatprep.subr.mxu0 0.0
        %6173 = vmatpush1.msra.mxu0 0.0
        %6174 = vmatprep.subr.mxu0 0.0
        %6175 = vmatpush1.msra.mxu0 0.0
        %6176 = vmatprep.subr.mxu0 0.0
        %6177 = vmatpush1.msra.mxu0 0.0
        %6178 = vmatprep.subr.mxu0 0.0
        %6179 = vmatpush1.msra.mxu0 0.0
        %6180 = vmatprep.subr.mxu0 0.0
        %6181 = vmatpush1.msra.mxu0 0.0
        %6182 = vmatprep.subr.mxu0 0.0
        %6183 = vmatpush1.msra.mxu0 0.0
        %6184 = vmatprep.subr.mxu0 0.0
        %6185 = vmatpush1.msra.mxu0 0.0
        %6186 = vmatprep.subr.mxu0 0.0
        %6187 = vmatpush1.msra.mxu0 0.0
        %6188 = vmatprep.subr.mxu0 0.0
        %6189 = vmatpush1.msra.mxu0 0.0
        %6190 = vmatprep.subr.mxu0 0.0
        %6191 = vmatpush1.msra.mxu0 0.0
        %6192 = vmatprep.subr.mxu0 0.0
        %6193 = vmatpush1.msra.mxu0 0.0
        %6194 = vmatprep.subr.mxu0 0.0
        %6195 = vmatpush1.msra.mxu0 0.0
        %6196 = vmatprep.subr.mxu0 0.0
        %6197 = vmatpush1.msra.mxu0 0.0
        %6198 = vmatprep.subr.mxu0 0.0
        %6199 = vmatpush1.msra.mxu0 0.0
        %6200 = vmatprep.subr.mxu0 0.0
        %6201 = vmatpush1.msra.mxu0 0.0
        %6202 = vmatprep.subr.mxu0 0.0
        %6203 = vmatpush1.msra.mxu0 0.0
        %6204 = vmatprep.subr.mxu0 0.0
        %6205 = vmatpush1.msra.mxu0 0.0
        %6206 = vmatprep.mubr.f32.mxu0 0.0
        %6207 = vmatmul.mubr.f32.gmra.mrb[0].mxu0 %v6140
        %v6208 = vpop.f32.mrb[0].mxu0
        %v6209 = vadd.f32 0.0, %v6208
        %v6210 = vpop.f32.mrb[0].mxu0
        %6211 = vdwg.mxu0
        %6213 = vrot.lane.b32.xlu0 %v6209, 16
        %v6214 = vpop.permute.xlu0 %6213
        %6216 = vst.msk [vmem:[#allocation2] sm:$0xff] %vm2196, %v6214
        %6217 = vrot.lane.b32.xlu0 %v5701, 104
        %v6218 = vpop.permute.xlu0 %6217
        %6219 = vrot.lane.b32.xlu0 %v5701, 72
        %v6220 = vpop.permute.xlu0 %6219
        %v6221 = vsel %vm1690, %v6218, 0
        %v6223 = vsel %vm1690, %v6220, 0
        %6225 = vmatprep.subr.mxu0 0.0
        %6226 = vmatpush1.xpose.msra.mxu0 %v6223
        %6227 = vmatprep.subr.mxu0 0.0
        %6228 = vmatpush1.xpose.msra.mxu0 0.0
        %6229 = vmatprep.subr.mxu0 0.0
        %6230 = vmatpush1.xpose.msra.mxu0 0.0
        %6231 = vmatprep.subr.mxu0 0.0
        %6232 = vmatpush1.xpose.msra.mxu0 0.0
        %6233 = vmatprep.subr.mxu0 0.0
        %6234 = vmatpush1.xpose.msra.mxu0 0.0
        %6235 = vmatprep.subr.mxu0 0.0
        %6236 = vmatpush1.xpose.msra.mxu0 0.0
        %6237 = vmatprep.subr.mxu0 0.0
        %6238 = vmatpush1.xpose.msra.mxu0 0.0
        %6239 = vmatprep.subr.mxu0 0.0
        %6240 = vmatpush1.xpose.msra.mxu0 0.0
        %6241 = vmatprep.subr.mxu0 0.0
        %6242 = vmatpush1.xpose.msra.mxu0 0.0
        %6243 = vmatprep.subr.mxu0 0.0
        %6244 = vmatpush1.xpose.msra.mxu0 0.0
        %6245 = vmatprep.subr.mxu0 0.0
        %6246 = vmatpush1.xpose.msra.mxu0 0.0
        %6247 = vmatprep.subr.mxu0 0.0
        %6248 = vmatpush1.xpose.msra.mxu0 0.0
        %6249 = vmatprep.subr.mxu0 0.0
        %6250 = vmatpush1.xpose.msra.mxu0 0.0
        %6251 = vmatprep.subr.mxu0 0.0
        %6252 = vmatpush1.xpose.msra.mxu0 0.0
        %6253 = vmatprep.subr.mxu0 0.0
        %6254 = vmatpush1.xpose.msra.mxu0 0.0
        %6255 = vmatprep.subr.mxu0 0.0
        %6256 = vmatpush1.xpose.msra.mxu0 0.0
        %6257 = vmatprep.subr.mxu0 0.0
        %6258 = vmatpush1.xpose.msra.mxu0 0.0
        %6259 = vmatprep.subr.mxu0 0.0
        %6260 = vmatpush1.xpose.msra.mxu0 0.0
        %6261 = vmatprep.subr.mxu0 0.0
        %6262 = vmatpush1.xpose.msra.mxu0 0.0
        %6263 = vmatprep.subr.mxu0 0.0
        %6264 = vmatpush1.xpose.msra.mxu0 0.0
        %6265 = vmatprep.subr.mxu0 0.0
        %6266 = vmatpush1.xpose.msra.mxu0 0.0
        %6267 = vmatprep.subr.mxu0 0.0
        %6268 = vmatpush1.xpose.msra.mxu0 0.0
        %6269 = vmatprep.subr.mxu0 0.0
        %6270 = vmatpush1.xpose.msra.mxu0 0.0
        %6271 = vmatprep.subr.mxu0 0.0
        %6272 = vmatpush1.xpose.msra.mxu0 0.0
        %6273 = vmatprep.subr.mxu0 0.0
        %6274 = vmatpush1.xpose.msra.mxu0 0.0
        %6275 = vmatprep.subr.mxu0 0.0
        %6276 = vmatpush1.xpose.msra.mxu0 0.0
        %6277 = vmatprep.subr.mxu0 0.0
        %6278 = vmatpush1.xpose.msra.mxu0 0.0
        %6279 = vmatprep.subr.mxu0 0.0
        %6280 = vmatpush1.xpose.msra.mxu0 0.0
        %6281 = vmatprep.subr.mxu0 0.0
        %6282 = vmatpush1.xpose.msra.mxu0 0.0
        %6283 = vmatprep.subr.mxu0 0.0
        %6284 = vmatpush1.xpose.msra.mxu0 0.0
        %6285 = vmatprep.subr.mxu0 0.0
        %6286 = vmatpush1.xpose.msra.mxu0 0.0
        %6287 = vmatprep.subr.mxu0 0.0
        %6288 = vmatpush1.xpose.msra.mxu0 0.0
        %6289 = vmatprep.mubr.f32.mxu0 0.0
        %6290 = vmatmul.mubr.f32.gmra.mrb[0].mxu0 %v6221
        %v6291 = vpop.f32.mrb[0].mxu0
        %v6292 = vadd.f32 0.0, %v6291
        %v6293 = vpop.f32.mrb[0].mxu0
        %6294 = vdwg.mxu0
        %v6295 = vmul.f32 %v6292, 0.35355338
        %v6296 = vsel %vm3764, %v6295, -1e+30
        %v6297 = vsel %vm1690, %v6296, -inf
        %6298 = vmax.xlane.f32.xlu0 %v6297
        %v6299 = vpop.xlane.xlu0 %6298
        %v6300 = vsub.f32 %v6296, %v6299
        %v6301 = vmul.f32 %v6300, 1.442695
        %v6302 = vpow.pop %v6301
        %v6303 = vsel %vm1690, %v6302, 0.0
        %6304 = vadd.xlane.f32.xlu0 %v6303
        %v6305 = vpop.xlane.xlu0 %6304
        %v6306 = vrcp.pop %v6305
        %v6307 = vmul.f32 %v6302, %v6306
        %6308 = vrot.lane.b32.xlu0 %v5701, 40
        %v6309 = vpop.permute.xlu0 %6308
        %v6312 = vsel %vm1690, %v6307, 0
        %6314 = vmatprep.subr.mxu0 0.0
        %6315 = vmatpush1.msra.mxu0 %v6309
        %6316 = vmatprep.subr.mxu0 0.0
        %6317 = vmatpush1.msra.mxu0 0.0
        %6318 = vmatprep.subr.mxu0 0.0
        %6319 = vmatpush1.msra.mxu0 0.0
        %6320 = vmatprep.subr.mxu0 0.0
        %6321 = vmatpush1.msra.mxu0 0.0
        %6322 = vmatprep.subr.mxu0 0.0
        %6323 = vmatpush1.msra.mxu0 0.0
        %6324 = vmatprep.subr.mxu0 0.0
        %6325 = vmatpush1.msra.mxu0 0.0
        %6326 = vmatprep.subr.mxu0 0.0
        %6327 = vmatpush1.msra.mxu0 0.0
        %6328 = vmatprep.subr.mxu0 0.0
        %6329 = vmatpush1.msra.mxu0 0.0
        %6330 = vmatprep.subr.mxu0 0.0
        %6331 = vmatpush1.msra.mxu0 0.0
        %6332 = vmatprep.subr.mxu0 0.0
        %6333 = vmatpush1.msra.mxu0 0.0
        %6334 = vmatprep.subr.mxu0 0.0
        %6335 = vmatpush1.msra.mxu0 0.0
        %6336 = vmatprep.subr.mxu0 0.0
        %6337 = vmatpush1.msra.mxu0 0.0
        %6338 = vmatprep.subr.mxu0 0.0
        %6339 = vmatpush1.msra.mxu0 0.0
        %6340 = vmatprep.subr.mxu0 0.0
        %6341 = vmatpush1.msra.mxu0 0.0
        %6342 = vmatprep.subr.mxu0 0.0
        %6343 = vmatpush1.msra.mxu0 0.0
        %6344 = vmatprep.subr.mxu0 0.0
        %6345 = vmatpush1.msra.mxu0 0.0
        %6346 = vmatprep.subr.mxu0 0.0
        %6347 = vmatpush1.msra.mxu0 0.0
        %6348 = vmatprep.subr.mxu0 0.0
        %6349 = vmatpush1.msra.mxu0 0.0
        %6350 = vmatprep.subr.mxu0 0.0
        %6351 = vmatpush1.msra.mxu0 0.0
        %6352 = vmatprep.subr.mxu0 0.0
        %6353 = vmatpush1.msra.mxu0 0.0
        %6354 = vmatprep.subr.mxu0 0.0
        %6355 = vmatpush1.msra.mxu0 0.0
        %6356 = vmatprep.subr.mxu0 0.0
        %6357 = vmatpush1.msra.mxu0 0.0
        %6358 = vmatprep.subr.mxu0 0.0
        %6359 = vmatpush1.msra.mxu0 0.0
        %6360 = vmatprep.subr.mxu0 0.0
        %6361 = vmatpush1.msra.mxu0 0.0
        %6362 = vmatprep.subr.mxu0 0.0
        %6363 = vmatpush1.msra.mxu0 0.0
        %6364 = vmatprep.subr.mxu0 0.0
        %6365 = vmatpush1.msra.mxu0 0.0
        %6366 = vmatprep.subr.mxu0 0.0
        %6367 = vmatpush1.msra.mxu0 0.0
        %6368 = vmatprep.subr.mxu0 0.0
        %6369 = vmatpush1.msra.mxu0 0.0
        %6370 = vmatprep.subr.mxu0 0.0
        %6371 = vmatpush1.msra.mxu0 0.0
        %6372 = vmatprep.subr.mxu0 0.0
        %6373 = vmatpush1.msra.mxu0 0.0
        %6374 = vmatprep.subr.mxu0 0.0
        %6375 = vmatpush1.msra.mxu0 0.0
        %6376 = vmatprep.subr.mxu0 0.0
        %6377 = vmatpush1.msra.mxu0 0.0
        %6378 = vmatprep.mubr.f32.mxu0 0.0
        %6379 = vmatmul.mubr.f32.gmra.mrb[0].mxu0 %v6312
        %v6380 = vpop.f32.mrb[0].mxu0
        %v6381 = vadd.f32 0.0, %v6380
        %v6382 = vpop.f32.mrb[0].mxu0
        %6383 = vdwg.mxu0
        %6385 = vrot.lane.b32.xlu0 %v6381, 24
        %v6386 = vpop.permute.xlu0 %6385
        %6388 = vst.msk [vmem:[#allocation2] sm:$0xff] %vm2368, %v6386
        %v6389 = vld [vmem:[#allocation2] sm:$0xff]
        %s6390 = scalar_lea.vmem %s37, 16
        %v6391 = vld [vmem:[%s6390] sm:$0xf]
        %v6392 = vld [vmem:[%s6390 + $0x4] sm:$0xf]
        %v6393 = vld [vmem:[%s6390 + $0x8] sm:$0xf]
        %v6394 = vld [vmem:[%s6390 + $0xc] sm:$0xf]
        %s6395 = scalar_lea.vmem [#allocation8], 1
        %v6396 = vld [vmem:[%s6395] sm:$0x1]
        %v6397 = vpack.c.bf16 %v6389, %v6389
        %v6399 = vlaneseq
        %v6400 = vshrl.u32 %v6399, 7
        %v6401 = vsub.s32 0, %v6400
        %v6402 = vrot.slane %v6396, %v6401
        %v6408 = vunpack.c.l.b16 %v6391
        %v6409 = vunpack.c.l.b16 %v6392
        %v6410 = vunpack.c.l.b16 %v6393
        %v6411 = vunpack.c.l.b16 %v6394
        %v6412 = vpack.c.b16 %v6409, %v6408
        %v6413 = vpack.c.b16 %v6411, %v6410
        %v6417 = vsel %vm1643, %v6397, 0
        %6419 = vmatprep.subr.bf16.mxu0 0
        %6420 = vmatpush1.bf16.msra.mxu0 %v6412
        %6421 = vmatprep.subr.bf16.mxu0 0
        %6422 = vmatpush1.bf16.msra.mxu0 %v6413
        %6423 = vmatprep.subr.bf16.mxu0 0
        %6424 = vmatpush1.bf16.msra.mxu0 0
        %6425 = vmatprep.subr.bf16.mxu0 0
        %6426 = vmatpush1.bf16.msra.mxu0 0
        %6427 = vmatprep.subr.bf16.mxu0 0
        %6428 = vmatpush1.bf16.msra.mxu0 0
        %6429 = vmatprep.subr.bf16.mxu0 0
        %6430 = vmatpush1.bf16.msra.mxu0 0
        %6431 = vmatprep.subr.bf16.mxu0 0
        %6432 = vmatpush1.bf16.msra.mxu0 0
        %6433 = vmatprep.subr.bf16.mxu0 0
        %6434 = vmatpush1.bf16.msra.mxu0 0
        %6435 = vmatprep.subr.bf16.mxu0 0
        %6436 = vmatpush1.bf16.msra.mxu0 0
        %6437 = vmatprep.subr.bf16.mxu0 0
        %6438 = vmatpush1.bf16.msra.mxu0 0
        %6439 = vmatprep.subr.bf16.mxu0 0
        %6440 = vmatpush1.bf16.msra.mxu0 0
        %6441 = vmatprep.subr.bf16.mxu0 0
        %6442 = vmatpush1.bf16.msra.mxu0 0
        %6443 = vmatprep.subr.bf16.mxu0 0
        %6444 = vmatpush1.bf16.msra.mxu0 0
        %6445 = vmatprep.subr.bf16.mxu0 0
        %6446 = vmatpush1.bf16.msra.mxu0 0
        %6447 = vmatprep.subr.bf16.mxu0 0
        %6448 = vmatpush1.bf16.msra.mxu0 0
        %6449 = vmatprep.subr.bf16.mxu0 0
        %6450 = vmatpush1.bf16.msra.mxu0 0
        %6451 = vmatprep.mubr.bf16.mxu0 0
        %6452 = vmatmul.mubr.bf16.gmra.mrb[0].mxu0 %v6417
        %v6453 = vpop.f32.mrb[0].mxu0
        %v6454 = vadd.f32 %v6402, %v6453
        %v6455 = vpop.f32.mrb[0].mxu0
        %v6456 = vpop.f32.mrb[0].mxu0
        %v6457 = vpop.f32.mrb[0].mxu0
        %6458 = vdwg.mxu0
        %v6459 = vadd.f32 %v5636, %v6454
        %s6460 = scalar_lea.vmem [#allocation9], 1
        %v6461 = vld [vmem:[%s6460] sm:$0x1]
        %s6462 = scalar_lea.vmem [#allocation11], 1
        %v6463 = vld [vmem:[%s6462] sm:$0x1]
        %v6464 = vsel %vm1643, %v6459, 0.0
        %6465 = vadd.xlane.f32.xlu0 %v6464
        %v6466 = vpop.xlane.xlu0 %6465
        %v6467 = vmul.f32 %v6466, %v2444
        %v6468 = vsub.f32 %v6459, %v6467
        %v6469 = vmul.f32 %v6468, %v6468
        %v6470 = vsel %vm1643, %v6469, 0.0
        %6471 = vadd.xlane.f32.xlu0 %v6470
        %v6472 = vpop.xlane.xlu0 %6471
        %v6473 = vmul.f32 %v6472, %v2444
        %v6474 = vadd.f32 %v6473, 1e-05
        %v6475 = vrsqrt.pop %v6474
        %v6476 = vmul.f32 %v6468, %v6475
        %v6478 = vlaneseq
        %v6479 = vshrl.u32 %v6478, 7
        %v6480 = vsub.s32 0, %v6479
        %v6481 = vrot.slane %v6461, %v6480
        %v6483 = vmul.f32 %v6476, %v6481
        %v6485 = vlaneseq
        %v6486 = vshrl.u32 %v6485, 7
        %v6487 = vsub.s32 0, %v6486
        %v6488 = vrot.slane %v6463, %v6487
        %v6490 = vadd.f32 %v6483, %v6488
        %s6491 = scalar_lea.vmem %s45, 16
        %v6492 = vld [vmem:[%s6491] sm:$0xf]
        %v6493 = vld [vmem:[%s6491 + $0x4] sm:$0xf]
        %v6494 = vld [vmem:[%s6491 + $0x8] sm:$0xf]
        %v6495 = vld [vmem:[%s6491 + $0xc] sm:$0xf]
        %s6496 = scalar_lea.vmem [#allocation12], 1
        %v6497 = vld [vmem:[%s6496] sm:$0x1]
        %v6498 = vpack.c.bf16 %v6490, %v6490
        %v6500 = vlaneseq
        %v6501 = vshrl.u32 %v6500, 7
        %v6502 = vsub.s32 0, %v6501
        %v6503 = vrot.slane %v6497, %v6502
        %v6509 = vunpack.c.l.b16 %v6492
        %v6510 = vunpack.c.l.b16 %v6493
        %v6511 = vunpack.c.l.b16 %v6494
        %v6512 = vunpack.c.l.b16 %v6495
        %v6513 = vpack.c.b16 %v6510, %v6509
        %v6514 = vpack.c.b16 %v6512, %v6511
        %v6518 = vsel %vm1643, %v6498, 0
        %6520 = vmatprep.subr.bf16.mxu0 0
        %6521 = vmatpush1.bf16.msra.mxu0 %v6513
        %6522 = vmatprep.subr.bf16.mxu0 0
        %6523 = vmatpush1.bf16.msra.mxu0 %v6514
        %6524 = vmatprep.subr.bf16.mxu0 0
        %6525 = vmatpush1.bf16.msra.mxu0 0
        %6526 = vmatprep.subr.bf16.mxu0 0
        %6527 = vmatpush1.bf16.msra.mxu0 0
        %6528 = vmatprep.subr.bf16.mxu0 0
        %6529 = vmatpush1.bf16.msra.mxu0 0
        %6530 = vmatprep.subr.bf16.mxu0 0
        %6531 = vmatpush1.bf16.msra.mxu0 0
        %6532 = vmatprep.subr.bf16.mxu0 0
        %6533 = vmatpush1.bf16.msra.mxu0 0
        %6534 = vmatprep.subr.bf16.mxu0 0
        %6535 = vmatpush1.bf16.msra.mxu0 0
        %6536 = vmatprep.subr.bf16.mxu0 0
        %6537 = vmatpush1.bf16.msra.mxu0 0
        %6538 = vmatprep.subr.bf16.mxu0 0
        %6539 = vmatpush1.bf16.msra.mxu0 0
        %6540 = vmatprep.subr.bf16.mxu0 0
        %6541 = vmatpush1.bf16.msra.mxu0 0
        %6542 = vmatprep.subr.bf16.mxu0 0
        %6543 = vmatpush1.bf16.msra.mxu0 0
        %6544 = vmatprep.subr.bf16.mxu0 0
        %6545 = vmatpush1.bf16.msra.mxu0 0
        %6546 = vmatprep.subr.bf16.mxu0 0
        %6547 = vmatpush1.bf16.msra.mxu0 0
        %6548 = vmatprep.subr.bf16.mxu0 0
        %6549 = vmatpush1.bf16.msra.mxu0 0
        %6550 = vmatprep.subr.bf16.mxu0 0
        %6551 = vmatpush1.bf16.msra.mxu0 0
        %6552 = vmatprep.mubr.bf16.mxu0 0
        %6553 = vmatmul.mubr.bf16.gmra.mrb[0].mxu0 %v6518
        %v6554 = vpop.f32.mrb[0].mxu0
        %v6555 = vadd.f32 %v6503, %v6554
        %v6556 = vpop.f32.mrb[0].mxu0
        %v6557 = vpop.f32.mrb[0].mxu0
        %v6558 = vpop.f32.mrb[0].mxu0
        %6559 = vdwg.mxu0
        %s6560 = scalar_lea.vmem %s49, 16
        %v6561 = vld [vmem:[%s6560] sm:$0xf]
        %v6562 = vld [vmem:[%s6560 + $0x4] sm:$0xf]
        %v6563 = vld [vmem:[%s6560 + $0x8] sm:$0xf]
        %v6564 = vld [vmem:[%s6560 + $0xc] sm:$0xf]
        %s6565 = scalar_lea.vmem [#allocation14], 1
        %v6566 = vld [vmem:[%s6565] sm:$0x1]
        %v6568 = vlaneseq
        %v6569 = vshrl.u32 %v6568, 7
        %v6570 = vsub.s32 0, %v6569
        %v6571 = vrot.slane %v6566, %v6570
        %v6577 = vunpack.c.l.b16 %v6561
        %v6578 = vunpack.c.l.b16 %v6562
        %v6579 = vunpack.c.l.b16 %v6563
        %v6580 = vunpack.c.l.b16 %v6564
        %v6581 = vpack.c.b16 %v6578, %v6577
        %v6582 = vpack.c.b16 %v6580, %v6579
        %6585 = vmatprep.subr.bf16.mxu0 0
        %6586 = vmatpush1.bf16.msra.mxu0 %v6581
        %6587 = vmatprep.subr.bf16.mxu0 0
        %6588 = vmatpush1.bf16.msra.mxu0 %v6582
        %6589 = vmatprep.subr.bf16.mxu0 0
        %6590 = vmatpush1.bf16.msra.mxu0 0
        %6591 = vmatprep.subr.bf16.mxu0 0
        %6592 = vmatpush1.bf16.msra.mxu0 0
        %6593 = vmatprep.subr.bf16.mxu0 0
        %6594 = vmatpush1.bf16.msra.mxu0 0
        %6595 = vmatprep.subr.bf16.mxu0 0
        %6596 = vmatpush1.bf16.msra.mxu0 0
        %6597 = vmatprep.subr.bf16.mxu0 0
        %6598 = vmatpush1.bf16.msra.mxu0 0
        %6599 = vmatprep.subr.bf16.mxu0 0
        %6600 = vmatpush1.bf16.msra.mxu0 0
        %6601 = vmatprep.subr.bf16.mxu0 0
        %6602 = vmatpush1.bf16.msra.mxu0 0
        %6603 = vmatprep.subr.bf16.mxu0 0
        %6604 = vmatpush1.bf16.msra.mxu0 0
        %6605 = vmatprep.subr.bf16.mxu0 0
        %6606 = vmatpush1.bf16.msra.mxu0 0
        %6607 = vmatprep.subr.bf16.mxu0 0
        %6608 = vmatpush1.bf16.msra.mxu0 0
        %6609 = vmatprep.subr.bf16.mxu0 0
        %6610 = vmatpush1.bf16.msra.mxu0 0
        %6611 = vmatprep.subr.bf16.mxu0 0
        %6612 = vmatpush1.bf16.msra.mxu0 0
        %6613 = vmatprep.subr.bf16.mxu0 0
        %6614 = vmatpush1.bf16.msra.mxu0 0
        %6615 = vmatprep.subr.bf16.mxu0 0
        %6616 = vmatpush1.bf16.msra.mxu0 0
        %6617 = vmatprep.mubr.bf16.mxu0 0
        %6618 = vmatmul.mubr.bf16.gmra.mrb[0].mxu0 %v4638
        %v6619 = vpop.f32.mrb[0].mxu0
        %v6620 = vadd.f32 %v6571, %v6619
        %v6621 = vpop.f32.mrb[0].mxu0
        %v6622 = vpop.f32.mrb[0].mxu0
        %v6623 = vpop.f32.mrb[0].mxu0
        %6624 = vdwg.mxu0
        %v6626 = vsel %vm1690, %v6555, 0
        %v6629 = vsel %vm1690, %v6620, 0
        %6631 = vmatprep.subr.mxu0 0.0
        %6632 = vmatpush1.xpose.msra.mxu0 %v6629
        %6633 = vmatprep.subr.mxu0 0.0
        %6634 = vmatpush1.xpose.msra.mxu0 0.0
        %6635 = vmatprep.subr.mxu0 0.0
        %6636 = vmatpush1.xpose.msra.mxu0 0.0
        %6637 = vmatprep.subr.mxu0 0.0
        %6638 = vmatpush1.xpose.msra.mxu0 0.0
        %6639 = vmatprep.subr.mxu0 0.0
        %6640 = vmatpush1.xpose.msra.mxu0 0.0
        %6641 = vmatprep.subr.mxu0 0.0
        %6642 = vmatpush1.xpose.msra.mxu0 0.0
        %6643 = vmatprep.subr.mxu0 0.0
        %6644 = vmatpush1.xpose.msra.mxu0 0.0
        %6645 = vmatprep.subr.mxu0 0.0
        %6646 = vmatpush1.xpose.msra.mxu0 0.0
        %6647 = vmatprep.subr.mxu0 0.0
        %6648 = vmatpush1.xpose.msra.mxu0 0.0
        %6649 = vmatprep.subr.mxu0 0.0
        %6650 = vmatpush1.xpose.msra.mxu0 0.0
        %6651 = vmatprep.subr.mxu0 0.0
        %6652 = vmatpush1.xpose.msra.mxu0 0.0
        %6653 = vmatprep.subr.mxu0 0.0
        %6654 = vmatpush1.xpose.msra.mxu0 0.0
        %6655 = vmatprep.subr.mxu0 0.0
        %6656 = vmatpush1.xpose.msra.mxu0 0.0
        %6657 = vmatprep.subr.mxu0 0.0
        %6658 = vmatpush1.xpose.msra.mxu0 0.0
        %6659 = vmatprep.subr.mxu0 0.0
        %6660 = vmatpush1.xpose.msra.mxu0 0.0
        %6661 = vmatprep.subr.mxu0 0.0
        %6662 = vmatpush1.xpose.msra.mxu0 0.0
        %6663 = vmatprep.subr.mxu0 0.0
        %6664 = vmatpush1.xpose.msra.mxu0 0.0
        %6665 = vmatprep.subr.mxu0 0.0
        %6666 = vmatpush1.xpose.msra.mxu0 0.0
        %6667 = vmatprep.subr.mxu0 0.0
        %6668 = vmatpush1.xpose.msra.mxu0 0.0
        %6669 = vmatprep.subr.mxu0 0.0
        %6670 = vmatpush1.xpose.msra.mxu0 0.0
        %6671 = vmatprep.subr.mxu0 0.0
        %6672 = vmatpush1.xpose.msra.mxu0 0.0
        %6673 = vmatprep.subr.mxu0 0.0
        %6674 = vmatpush1.xpose.msra.mxu0 0.0
        %6675 = vmatprep.subr.mxu0 0.0
        %6676 = vmatpush1.xpose.msra.mxu0 0.0
        %6677 = vmatprep.subr.mxu0 0.0
        %6678 = vmatpush1.xpose.msra.mxu0 0.0
        %6679 = vmatprep.subr.mxu0 0.0
        %6680 = vmatpush1.xpose.msra.mxu0 0.0
        %6681 = vmatprep.subr.mxu0 0.0
        %6682 = vmatpush1.xpose.msra.mxu0 0.0
        %6683 = vmatprep.subr.mxu0 0.0
        %6684 = vmatpush1.xpose.msra.mxu0 0.0
        %6685 = vmatprep.subr.mxu0 0.0
        %6686 = vmatpush1.xpose.msra.mxu0 0.0
        %6687 = vmatprep.subr.mxu0 0.0
        %6688 = vmatpush1.xpose.msra.mxu0 0.0
        %6689 = vmatprep.subr.mxu0 0.0
        %6690 = vmatpush1.xpose.msra.mxu0 0.0
        %6691 = vmatprep.subr.mxu0 0.0
        %6692 = vmatpush1.xpose.msra.mxu0 0.0
        %6693 = vmatprep.subr.mxu0 0.0
        %6694 = vmatpush1.xpose.msra.mxu0 0.0
        %6695 = vmatprep.mubr.f32.mxu0 0.0
        %6696 = vmatmul.mubr.f32.gmra.mrb[0].mxu0 %v6626
        %v6697 = vpop.f32.mrb[0].mxu0
        %v6698 = vadd.f32 0.0, %v6697
        %v6699 = vpop.f32.mrb[0].mxu0
        %6700 = vdwg.mxu0
        %v6701 = vmul.f32 %v6698, 0.35355338
        %v6702 = vsel %vm1690, %v6701, -inf
        %6703 = vmax.xlane.f32.xlu0 %v6702
        %v6704 = vpop.xlane.xlu0 %6703
        %v6705 = vsub.f32 %v6701, %v6704
        %v6706 = vmul.f32 %v6705, 1.442695
        %v6707 = vpow.pop %v6706
        %v6708 = vsel %vm1690, %v6707, 0.0
        %6709 = vadd.xlane.f32.xlu0 %v6708
        %v6710 = vpop.xlane.xlu0 %6709
        %v6711 = vrcp.pop %v6710
        %v6712 = vmul.f32 %v6707, %v6711
        %6713 = vrot.lane.b32.xlu0 %v6620, 96
        %v6714 = vpop.permute.xlu0 %6713
        %v6717 = vsel %vm1690, %v6712, 0
        %6719 = vmatprep.subr.mxu0 0.0
        %6720 = vmatpush1.msra.mxu0 %v6714
        %6721 = vmatprep.subr.mxu0 0.0
        %6722 = vmatpush1.msra.mxu0 0.0
        %6723 = vmatprep.subr.mxu0 0.0
        %6724 = vmatpush1.msra.mxu0 0.0
        %6725 = vmatprep.subr.mxu0 0.0
        %6726 = vmatpush1.msra.mxu0 0.0
        %6727 = vmatprep.subr.mxu0 0.0
        %6728 = vmatpush1.msra.mxu0 0.0
        %6729 = vmatprep.subr.mxu0 0.0
        %6730 = vmatpush1.msra.mxu0 0.0
        %6731 = vmatprep.subr.mxu0 0.0
        %6732 = vmatpush1.msra.mxu0 0.0
        %6733 = vmatprep.subr.mxu0 0.0
        %6734 = vmatpush1.msra.mxu0 0.0
        %6735 = vmatprep.subr.mxu0 0.0
        %6736 = vmatpush1.msra.mxu0 0.0
        %6737 = vmatprep.subr.mxu0 0.0
        %6738 = vmatpush1.msra.mxu0 0.0
        %6739 = vmatprep.subr.mxu0 0.0
        %6740 = vmatpush1.msra.mxu0 0.0
        %6741 = vmatprep.subr.mxu0 0.0
        %6742 = vmatpush1.msra.mxu0 0.0
        %6743 = vmatprep.subr.mxu0 0.0
        %6744 = vmatpush1.msra.mxu0 0.0
        %6745 = vmatprep.subr.mxu0 0.0
        %6746 = vmatpush1.msra.mxu0 0.0
        %6747 = vmatprep.subr.mxu0 0.0
        %6748 = vmatpush1.msra.mxu0 0.0
        %6749 = vmatprep.subr.mxu0 0.0
        %6750 = vmatpush1.msra.mxu0 0.0
        %6751 = vmatprep.subr.mxu0 0.0
        %6752 = vmatpush1.msra.mxu0 0.0
        %6753 = vmatprep.subr.mxu0 0.0
        %6754 = vmatpush1.msra.mxu0 0.0
        %6755 = vmatprep.subr.mxu0 0.0
        %6756 = vmatpush1.msra.mxu0 0.0
        %6757 = vmatprep.subr.mxu0 0.0
        %6758 = vmatpush1.msra.mxu0 0.0
        %6759 = vmatprep.subr.mxu0 0.0
        %6760 = vmatpush1.msra.mxu0 0.0
        %6761 = vmatprep.subr.mxu0 0.0
        %6762 = vmatpush1.msra.mxu0 0.0
        %6763 = vmatprep.subr.mxu0 0.0
        %6764 = vmatpush1.msra.mxu0 0.0
        %6765 = vmatprep.subr.mxu0 0.0
        %6766 = vmatpush1.msra.mxu0 0.0
        %6767 = vmatprep.subr.mxu0 0.0
        %6768 = vmatpush1.msra.mxu0 0.0
        %6769 = vmatprep.subr.mxu0 0.0
        %6770 = vmatpush1.msra.mxu0 0.0
        %6771 = vmatprep.subr.mxu0 0.0
        %6772 = vmatpush1.msra.mxu0 0.0
        %6773 = vmatprep.subr.mxu0 0.0
        %6774 = vmatpush1.msra.mxu0 0.0
        %6775 = vmatprep.subr.mxu0 0.0
        %6776 = vmatpush1.msra.mxu0 0.0
        %6777 = vmatprep.subr.mxu0 0.0
        %6778 = vmatpush1.msra.mxu0 0.0
        %6779 = vmatprep.subr.mxu0 0.0
        %6780 = vmatpush1.msra.mxu0 0.0
        %6781 = vmatprep.subr.mxu0 0.0
        %6782 = vmatpush1.msra.mxu0 0.0
        %6783 = vmatprep.mubr.f32.mxu0 0.0
        %6784 = vmatmul.mubr.f32.gmra.mrb[0].mxu0 %v6717
        %v6785 = vpop.f32.mrb[0].mxu0
        %v6786 = vadd.f32 0.0, %v6785
        %v6787 = vpop.f32.mrb[0].mxu0
        %6788 = vdwg.mxu0
        %6789 = vst.msk [vmem:[#allocation2] sm:$0xff] %vm1690, %v6786
        %6790 = vst.msk [vmem:[%s1436] sm:$0xff] %vm1690, %v6712
        %6791 = vrot.lane.b32.xlu0 %v6555, 120
        %v6792 = vpop.permute.xlu0 %6791
        %6793 = vrot.lane.b32.xlu0 %v6620, 120
        %v6794 = vpop.permute.xlu0 %6793
        %v6795 = vsel %vm1690, %v6792, 0
        %v6797 = vsel %vm1690, %v6794, 0
        %6799 = vmatprep.subr.mxu0 0.0
        %6800 = vmatpush1.xpose.msra.mxu0 %v6797
        %6801 = vmatprep.subr.mxu0 0.0
        %6802 = vmatpush1.xpose.msra.mxu0 0.0
        %6803 = vmatprep.subr.mxu0 0.0
        %6804 = vmatpush1.xpose.msra.mxu0 0.0
        %6805 = vmatprep.subr.mxu0 0.0
        %6806 = vmatpush1.xpose.msra.mxu0 0.0
        %6807 = vmatprep.subr.mxu0 0.0
        %6808 = vmatpush1.xpose.msra.mxu0 0.0
        %6809 = vmatprep.subr.mxu0 0.0
        %6810 = vmatpush1.xpose.msra.mxu0 0.0
        %6811 = vmatprep.subr.mxu0 0.0
        %6812 = vmatpush1.xpose.msra.mxu0 0.0
        %6813 = vmatprep.subr.mxu0 0.0
        %6814 = vmatpush1.xpose.msra.mxu0 0.0
        %6815 = vmatprep.subr.mxu0 0.0
        %6816 = vmatpush1.xpose.msra.mxu0 0.0
        %6817 = vmatprep.subr.mxu0 0.0
        %6818 = vmatpush1.xpose.msra.mxu0 0.0
        %6819 = vmatprep.subr.mxu0 0.0
        %6820 = vmatpush1.xpose.msra.mxu0 0.0
        %6821 = vmatprep.subr.mxu0 0.0
        %6822 = vmatpush1.xpose.msra.mxu0 0.0
        %6823 = vmatprep.subr.mxu0 0.0
        %6824 = vmatpush1.xpose.msra.mxu0 0.0
        %6825 = vmatprep.subr.mxu0 0.0
        %6826 = vmatpush1.xpose.msra.mxu0 0.0
        %6827 = vmatprep.subr.mxu0 0.0
        %6828 = vmatpush1.xpose.msra.mxu0 0.0
        %6829 = vmatprep.subr.mxu0 0.0
        %6830 = vmatpush1.xpose.msra.mxu0 0.0
        %6831 = vmatprep.subr.mxu0 0.0
        %6832 = vmatpush1.xpose.msra.mxu0 0.0
        %6833 = vmatprep.subr.mxu0 0.0
        %6834 = vmatpush1.xpose.msra.mxu0 0.0
        %6835 = vmatprep.subr.mxu0 0.0
        %6836 = vmatpush1.xpose.msra.mxu0 0.0
        %6837 = vmatprep.subr.mxu0 0.0
        %6838 = vmatpush1.xpose.msra.mxu0 0.0
        %6839 = vmatprep.subr.mxu0 0.0
        %6840 = vmatpush1.xpose.msra.mxu0 0.0
        %6841 = vmatprep.subr.mxu0 0.0
        %6842 = vmatpush1.xpose.msra.mxu0 0.0
        %6843 = vmatprep.subr.mxu0 0.0
        %6844 = vmatpush1.xpose.msra.mxu0 0.0
        %6845 = vmatprep.subr.mxu0 0.0
        %6846 = vmatpush1.xpose.msra.mxu0 0.0
        %6847 = vmatprep.subr.mxu0 0.0
        %6848 = vmatpush1.xpose.msra.mxu0 0.0
        %6849 = vmatprep.subr.mxu0 0.0
        %6850 = vmatpush1.xpose.msra.mxu0 0.0
        %6851 = vmatprep.subr.mxu0 0.0
        %6852 = vmatpush1.xpose.msra.mxu0 0.0
        %6853 = vmatprep.subr.mxu0 0.0
        %6854 = vmatpush1.xpose.msra.mxu0 0.0
        %6855 = vmatprep.subr.mxu0 0.0
        %6856 = vmatpush1.xpose.msra.mxu0 0.0
        %6857 = vmatprep.subr.mxu0 0.0
        %6858 = vmatpush1.xpose.msra.mxu0 0.0
        %6859 = vmatprep.subr.mxu0 0.0
        %6860 = vmatpush1.xpose.msra.mxu0 0.0
        %6861 = vmatprep.subr.mxu0 0.0
        %6862 = vmatpush1.xpose.msra.mxu0 0.0
        %6863 = vmatprep.mubr.f32.mxu0 0.0
        %6864 = vmatmul.mubr.f32.gmra.mrb[0].mxu0 %v6795
        %v6865 = vpop.f32.mrb[0].mxu0
        %v6866 = vadd.f32 0.0, %v6865
        %v6867 = vpop.f32.mrb[0].mxu0
        %6868 = vdwg.mxu0
        %v6869 = vmul.f32 %v6866, 0.35355338
        %v6870 = vsel %vm1690, %v6869, -inf
        %6871 = vmax.xlane.f32.xlu0 %v6870
        %v6872 = vpop.xlane.xlu0 %6871
        %v6873 = vsub.f32 %v6869, %v6872
        %v6874 = vmul.f32 %v6873, 1.442695
        %v6875 = vpow.pop %v6874
        %v6876 = vsel %vm1690, %v6875, 0.0
        %6877 = vadd.xlane.f32.xlu0 %v6876
        %v6878 = vpop.xlane.xlu0 %6877
        %v6879 = vrcp.pop %v6878
        %v6880 = vmul.f32 %v6875, %v6879
        %6881 = vrot.lane.b32.xlu0 %v6620, 88
        %v6882 = vpop.permute.xlu0 %6881
        %v6885 = vsel %vm1690, %v6880, 0
        %6887 = vmatprep.subr.mxu0 0.0
        %6888 = vmatpush1.msra.mxu0 %v6882
        %6889 = vmatprep.subr.mxu0 0.0
        %6890 = vmatpush1.msra.mxu0 0.0
        %6891 = vmatprep.subr.mxu0 0.0
        %6892 = vmatpush1.msra.mxu0 0.0
        %6893 = vmatprep.subr.mxu0 0.0
        %6894 = vmatpush1.msra.mxu0 0.0
        %6895 = vmatprep.subr.mxu0 0.0
        %6896 = vmatpush1.msra.mxu0 0.0
        %6897 = vmatprep.subr.mxu0 0.0
        %6898 = vmatpush1.msra.mxu0 0.0
        %6899 = vmatprep.subr.mxu0 0.0
        %6900 = vmatpush1.msra.mxu0 0.0
        %6901 = vmatprep.subr.mxu0 0.0
        %6902 = vmatpush1.msra.mxu0 0.0
        %6903 = vmatprep.subr.mxu0 0.0
        %6904 = vmatpush1.msra.mxu0 0.0
        %6905 = vmatprep.subr.mxu0 0.0
        %6906 = vmatpush1.msra.mxu0 0.0
        %6907 = vmatprep.subr.mxu0 0.0
        %6908 = vmatpush1.msra.mxu0 0.0
        %6909 = vmatprep.subr.mxu0 0.0
        %6910 = vmatpush1.msra.mxu0 0.0
        %6911 = vmatprep.subr.mxu0 0.0
        %6912 = vmatpush1.msra.mxu0 0.0
        %6913 = vmatprep.subr.mxu0 0.0
        %6914 = vmatpush1.msra.mxu0 0.0
        %6915 = vmatprep.subr.mxu0 0.0
        %6916 = vmatpush1.msra.mxu0 0.0
        %6917 = vmatprep.subr.mxu0 0.0
        %6918 = vmatpush1.msra.mxu0 0.0
        %6919 = vmatprep.subr.mxu0 0.0
        %6920 = vmatpush1.msra.mxu0 0.0
        %6921 = vmatprep.subr.mxu0 0.0
        %6922 = vmatpush1.msra.mxu0 0.0
        %6923 = vmatprep.subr.mxu0 0.0
        %6924 = vmatpush1.msra.mxu0 0.0
        %6925 = vmatprep.subr.mxu0 0.0
        %6926 = vmatpush1.msra.mxu0 0.0
        %6927 = vmatprep.subr.mxu0 0.0
        %6928 = vmatpush1.msra.mxu0 0.0
        %6929 = vmatprep.subr.mxu0 0.0
        %6930 = vmatpush1.msra.mxu0 0.0
        %6931 = vmatprep.subr.mxu0 0.0
        %6932 = vmatpush1.msra.mxu0 0.0
        %6933 = vmatprep.subr.mxu0 0.0
        %6934 = vmatpush1.msra.mxu0 0.0
        %6935 = vmatprep.subr.mxu0 0.0
        %6936 = vmatpush1.msra.mxu0 0.0
        %6937 = vmatprep.subr.mxu0 0.0
        %6938 = vmatpush1.msra.mxu0 0.0
        %6939 = vmatprep.subr.mxu0 0.0
        %6940 = vmatpush1.msra.mxu0 0.0
        %6941 = vmatprep.subr.mxu0 0.0
        %6942 = vmatpush1.msra.mxu0 0.0
        %6943 = vmatprep.subr.mxu0 0.0
        %6944 = vmatpush1.msra.mxu0 0.0
        %6945 = vmatprep.subr.mxu0 0.0
        %6946 = vmatpush1.msra.mxu0 0.0
        %6947 = vmatprep.subr.mxu0 0.0
        %6948 = vmatpush1.msra.mxu0 0.0
        %6949 = vmatprep.subr.mxu0 0.0
        %6950 = vmatpush1.msra.mxu0 0.0
        %6951 = vmatprep.mubr.f32.mxu0 0.0
        %6952 = vmatmul.mubr.f32.gmra.mrb[0].mxu0 %v6885
        %v6953 = vpop.f32.mrb[0].mxu0
        %v6954 = vadd.f32 0.0, %v6953
        %v6955 = vpop.f32.mrb[0].mxu0
        %6956 = vdwg.mxu0
        %6958 = vrot.lane.b32.xlu0 %v6954, 8
        %v6959 = vpop.permute.xlu0 %6958
        %6961 = vst.msk [vmem:[#allocation2] sm:$0xff] %vm2024, %v6959
        %s6962 = scalar_lea.vmem %s1436, 8 [#allocation29]
        %6963 = vst.msk [vmem:[%s6962] sm:$0xff] %vm1690, %v6880
        %6964 = vrot.lane.b32.xlu0 %v6555, 112
        %v6965 = vpop.permute.xlu0 %6964
        %6966 = vrot.lane.b32.xlu0 %v6620, 112
        %v6967 = vpop.permute.xlu0 %6966
        %v6968 = vsel %vm1690, %v6965, 0
        %v6970 = vsel %vm1690, %v6967, 0
        %6972 = vmatprep.subr.mxu0 0.0
        %6973 = vmatpush1.xpose.msra.mxu0 %v6970
        %6974 = vmatprep.subr.mxu0 0.0
        %6975 = vmatpush1.xpose.msra.mxu0 0.0
        %6976 = vmatprep.subr.mxu0 0.0
        %6977 = vmatpush1.xpose.msra.mxu0 0.0
        %6978 = vmatprep.subr.mxu0 0.0
        %6979 = vmatpush1.xpose.msra.mxu0 0.0
        %6980 = vmatprep.subr.mxu0 0.0
        %6981 = vmatpush1.xpose.msra.mxu0 0.0
        %6982 = vmatprep.subr.mxu0 0.0
        %6983 = vmatpush1.xpose.msra.mxu0 0.0
        %6984 = vmatprep.subr.mxu0 0.0
        %6985 = vmatpush1.xpose.msra.mxu0 0.0
        %6986 = vmatprep.subr.mxu0 0.0
        %6987 = vmatpush1.xpose.msra.mxu0 0.0
        %6988 = vmatprep.subr.mxu0 0.0
        %6989 = vmatpush1.xpose.msra.mxu0 0.0
        %6990 = vmatprep.subr.mxu0 0.0
        %6991 = vmatpush1.xpose.msra.mxu0 0.0
        %6992 = vmatprep.subr.mxu0 0.0
        %6993 = vmatpush1.xpose.msra.mxu0 0.0
        %6994 = vmatprep.subr.mxu0 0.0
        %6995 = vmatpush1.xpose.msra.mxu0 0.0
        %6996 = vmatprep.subr.mxu0 0.0
        %6997 = vmatpush1.xpose.msra.mxu0 0.0
        %6998 = vmatprep.subr.mxu0 0.0
        %6999 = vmatpush1.xpose.msra.mxu0 0.0
        %7000 = vmatprep.subr.mxu0 0.0
        %7001 = vmatpush1.xpose.msra.mxu0 0.0
        %7002 = vmatprep.subr.mxu0 0.0
        %7003 = vmatpush1.xpose.msra.mxu0 0.0
        %7004 = vmatprep.subr.mxu0 0.0
        %7005 = vmatpush1.xpose.msra.mxu0 0.0
        %7006 = vmatprep.subr.mxu0 0.0
        %7007 = vmatpush1.xpose.msra.mxu0 0.0
        %7008 = vmatprep.subr.mxu0 0.0
        %7009 = vmatpush1.xpose.msra.mxu0 0.0
        %7010 = vmatprep.subr.mxu0 0.0
        %7011 = vmatpush1.xpose.msra.mxu0 0.0
        %7012 = vmatprep.subr.mxu0 0.0
        %7013 = vmatpush1.xpose.msra.mxu0 0.0
        %7014 = vmatprep.subr.mxu0 0.0
        %7015 = vmatpush1.xpose.msra.mxu0 0.0
        %7016 = vmatprep.subr.mxu0 0.0
        %7017 = vmatpush1.xpose.msra.mxu0 0.0
        %7018 = vmatprep.subr.mxu0 0.0
        %7019 = vmatpush1.xpose.msra.mxu0 0.0
        %7020 = vmatprep.subr.mxu0 0.0
        %7021 = vmatpush1.xpose.msra.mxu0 0.0
        %7022 = vmatprep.subr.mxu0 0.0
        %7023 = vmatpush1.xpose.msra.mxu0 0.0
        %7024 = vmatprep.subr.mxu0 0.0
        %7025 = vmatpush1.xpose.msra.mxu0 0.0
        %7026 = vmatprep.subr.mxu0 0.0
        %7027 = vmatpush1.xpose.msra.mxu0 0.0
        %7028 = vmatprep.subr.mxu0 0.0
        %7029 = vmatpush1.xpose.msra.mxu0 0.0
        %7030 = vmatprep.subr.mxu0 0.0
        %7031 = vmatpush1.xpose.msra.mxu0 0.0
        %7032 = vmatprep.subr.mxu0 0.0
        %7033 = vmatpush1.xpose.msra.mxu0 0.0
        %7034 = vmatprep.subr.mxu0 0.0
        %7035 = vmatpush1.xpose.msra.mxu0 0.0
        %7036 = vmatprep.mubr.f32.mxu0 0.0
        %7037 = vmatmul.mubr.f32.gmra.mrb[0].mxu0 %v6968
        %v7038 = vpop.f32.mrb[0].mxu0
        %v7039 = vadd.f32 0.0, %v7038
        %v7040 = vpop.f32.mrb[0].mxu0
        %7041 = vdwg.mxu0
        %v7042 = vmul.f32 %v7039, 0.35355338
        %v7043 = vsel %vm1690, %v7042, -inf
        %7044 = vmax.xlane.f32.xlu0 %v7043
        %v7045 = vpop.xlane.xlu0 %7044
        %v7046 = vsub.f32 %v7042, %v7045
        %v7047 = vmul.f32 %v7046, 1.442695
        %v7048 = vpow.pop %v7047
        %v7049 = vsel %vm1690, %v7048, 0.0
        %7050 = vadd.xlane.f32.xlu0 %v7049
        %v7051 = vpop.xlane.xlu0 %7050
        %v7052 = vrcp.pop %v7051
        %v7053 = vmul.f32 %v7048, %v7052
        %7054 = vrot.lane.b32.xlu0 %v6620, 80
        %v7055 = vpop.permute.xlu0 %7054
        %v7058 = vsel %vm1690, %v7053, 0
        %7060 = vmatprep.subr.mxu0 0.0
        %7061 = vmatpush1.msra.mxu0 %v7055
        %7062 = vmatprep.subr.mxu0 0.0
        %7063 = vmatpush1.msra.mxu0 0.0
        %7064 = vmatprep.subr.mxu0 0.0
        %7065 = vmatpush1.msra.mxu0 0.0
        %7066 = vmatprep.subr.mxu0 0.0
        %7067 = vmatpush1.msra.mxu0 0.0
        %7068 = vmatprep.subr.mxu0 0.0
        %7069 = vmatpush1.msra.mxu0 0.0
        %7070 = vmatprep.subr.mxu0 0.0
        %7071 = vmatpush1.msra.mxu0 0.0
        %7072 = vmatprep.subr.mxu0 0.0
        %7073 = vmatpush1.msra.mxu0 0.0
        %7074 = vmatprep.subr.mxu0 0.0
        %7075 = vmatpush1.msra.mxu0 0.0
        %7076 = vmatprep.subr.mxu0 0.0
        %7077 = vmatpush1.msra.mxu0 0.0
        %7078 = vmatprep.subr.mxu0 0.0
        %7079 = vmatpush1.msra.mxu0 0.0
        %7080 = vmatprep.subr.mxu0 0.0
        %7081 = vmatpush1.msra.mxu0 0.0
        %7082 = vmatprep.subr.mxu0 0.0
        %7083 = vmatpush1.msra.mxu0 0.0
        %7084 = vmatprep.subr.mxu0 0.0
        %7085 = vmatpush1.msra.mxu0 0.0
        %7086 = vmatprep.subr.mxu0 0.0
        %7087 = vmatpush1.msra.mxu0 0.0
        %7088 = vmatprep.subr.mxu0 0.0
        %7089 = vmatpush1.msra.mxu0 0.0
        %7090 = vmatprep.subr.mxu0 0.0
        %7091 = vmatpush1.msra.mxu0 0.0
        %7092 = vmatprep.subr.mxu0 0.0
        %7093 = vmatpush1.msra.mxu0 0.0
        %7094 = vmatprep.subr.mxu0 0.0
        %7095 = vmatpush1.msra.mxu0 0.0
        %7096 = vmatprep.subr.mxu0 0.0
        %7097 = vmatpush1.msra.mxu0 0.0
        %7098 = vmatprep.subr.mxu0 0.0
        %7099 = vmatpush1.msra.mxu0 0.0
        %7100 = vmatprep.subr.mxu0 0.0
        %7101 = vmatpush1.msra.mxu0 0.0
        %7102 = vmatprep.subr.mxu0 0.0
        %7103 = vmatpush1.msra.mxu0 0.0
        %7104 = vmatprep.subr.mxu0 0.0
        %7105 = vmatpush1.msra.mxu0 0.0
        %7106 = vmatprep.subr.mxu0 0.0
        %7107 = vmatpush1.msra.mxu0 0.0
        %7108 = vmatprep.subr.mxu0 0.0
        %7109 = vmatpush1.msra.mxu0 0.0
        %7110 = vmatprep.subr.mxu0 0.0
        %7111 = vmatpush1.msra.mxu0 0.0
        %7112 = vmatprep.subr.mxu0 0.0
        %7113 = vmatpush1.msra.mxu0 0.0
        %7114 = vmatprep.subr.mxu0 0.0
        %7115 = vmatpush1.msra.mxu0 0.0
        %7116 = vmatprep.subr.mxu0 0.0
        %7117 = vmatpush1.msra.mxu0 0.0
        %7118 = vmatprep.subr.mxu0 0.0
        %7119 = vmatpush1.msra.mxu0 0.0
        %7120 = vmatprep.subr.mxu0 0.0
        %7121 = vmatpush1.msra.mxu0 0.0
        %7122 = vmatprep.subr.mxu0 0.0
        %7123 = vmatpush1.msra.mxu0 0.0
        %7124 = vmatprep.mubr.f32.mxu0 0.0
        %7125 = vmatmul.mubr.f32.gmra.mrb[0].mxu0 %v7058
        %v7126 = vpop.f32.mrb[0].mxu0
        %v7127 = vadd.f32 0.0, %v7126
        %v7128 = vpop.f32.mrb[0].mxu0
        %7129 = vdwg.mxu0
        %7131 = vrot.lane.b32.xlu0 %v7127, 16
        %v7132 = vpop.permute.xlu0 %7131
        %7134 = vst.msk [vmem:[#allocation2] sm:$0xff] %vm2196, %v7132
        %s7135 = scalar_lea.vmem %s1436, 16 [#allocation29]
        %7136 = vst.msk [vmem:[%s7135] sm:$0xff] %vm1690, %v7053
        %7137 = vrot.lane.b32.xlu0 %v6555, 104
        %v7138 = vpop.permute.xlu0 %7137
        %7139 = vrot.lane.b32.xlu0 %v6620, 104
        %v7140 = vpop.permute.xlu0 %7139
        %v7141 = vsel %vm1690, %v7138, 0
        %v7143 = vsel %vm1690, %v7140, 0
        %7145 = vmatprep.subr.mxu0 0.0
        %7146 = vmatpush1.xpose.msra.mxu0 %v7143
        %7147 = vmatprep.subr.mxu0 0.0
        %7148 = vmatpush1.xpose.msra.mxu0 0.0
        %7149 = vmatprep.subr.mxu0 0.0
        %7150 = vmatpush1.xpose.msra.mxu0 0.0
        %7151 = vmatprep.subr.mxu0 0.0
        %7152 = vmatpush1.xpose.msra.mxu0 0.0
        %7153 = vmatprep.subr.mxu0 0.0
        %7154 = vmatpush1.xpose.msra.mxu0 0.0
        %7155 = vmatprep.subr.mxu0 0.0
        %7156 = vmatpush1.xpose.msra.mxu0 0.0
        %7157 = vmatprep.subr.mxu0 0.0
        %7158 = vmatpush1.xpose.msra.mxu0 0.0
        %7159 = vmatprep.subr.mxu0 0.0
        %7160 = vmatpush1.xpose.msra.mxu0 0.0
        %7161 = vmatprep.subr.mxu0 0.0
        %7162 = vmatpush1.xpose.msra.mxu0 0.0
        %7163 = vmatprep.subr.mxu0 0.0
        %7164 = vmatpush1.xpose.msra.mxu0 0.0
        %7165 = vmatprep.subr.mxu0 0.0
        %7166 = vmatpush1.xpose.msra.mxu0 0.0
        %7167 = vmatprep.subr.mxu0 0.0
        %7168 = vmatpush1.xpose.msra.mxu0 0.0
        %7169 = vmatprep.subr.mxu0 0.0
        %7170 = vmatpush1.xpose.msra.mxu0 0.0
        %7171 = vmatprep.subr.mxu0 0.0
        %7172 = vmatpush1.xpose.msra.mxu0 0.0
        %7173 = vmatprep.subr.mxu0 0.0
        %7174 = vmatpush1.xpose.msra.mxu0 0.0
        %7175 = vmatprep.subr.mxu0 0.0
        %7176 = vmatpush1.xpose.msra.mxu0 0.0
        %7177 = vmatprep.subr.mxu0 0.0
        %7178 = vmatpush1.xpose.msra.mxu0 0.0
        %7179 = vmatprep.subr.mxu0 0.0
        %7180 = vmatpush1.xpose.msra.mxu0 0.0
        %7181 = vmatprep.subr.mxu0 0.0
        %7182 = vmatpush1.xpose.msra.mxu0 0.0
        %7183 = vmatprep.subr.mxu0 0.0
        %7184 = vmatpush1.xpose.msra.mxu0 0.0
        %7185 = vmatprep.subr.mxu0 0.0
        %7186 = vmatpush1.xpose.msra.mxu0 0.0
        %7187 = vmatprep.subr.mxu0 0.0
        %7188 = vmatpush1.xpose.msra.mxu0 0.0
        %7189 = vmatprep.subr.mxu0 0.0
        %7190 = vmatpush1.xpose.msra.mxu0 0.0
        %7191 = vmatprep.subr.mxu0 0.0
        %7192 = vmatpush1.xpose.msra.mxu0 0.0
        %7193 = vmatprep.subr.mxu0 0.0
        %7194 = vmatpush1.xpose.msra.mxu0 0.0
        %7195 = vmatprep.subr.mxu0 0.0
        %7196 = vmatpush1.xpose.msra.mxu0 0.0
        %7197 = vmatprep.subr.mxu0 0.0
        %7198 = vmatpush1.xpose.msra.mxu0 0.0
        %7199 = vmatprep.subr.mxu0 0.0
        %7200 = vmatpush1.xpose.msra.mxu0 0.0
        %7201 = vmatprep.subr.mxu0 0.0
        %7202 = vmatpush1.xpose.msra.mxu0 0.0
        %7203 = vmatprep.subr.mxu0 0.0
        %7204 = vmatpush1.xpose.msra.mxu0 0.0
        %7205 = vmatprep.subr.mxu0 0.0
        %7206 = vmatpush1.xpose.msra.mxu0 0.0
        %7207 = vmatprep.subr.mxu0 0.0
        %7208 = vmatpush1.xpose.msra.mxu0 0.0
        %7209 = vmatprep.mubr.f32.mxu0 0.0
        %7210 = vmatmul.mubr.f32.gmra.mrb[0].mxu0 %v7141
        %v7211 = vpop.f32.mrb[0].mxu0
        %v7212 = vadd.f32 0.0, %v7211
        %v7213 = vpop.f32.mrb[0].mxu0
        %7214 = vdwg.mxu0
        %v7215 = vmul.f32 %v7212, 0.35355338
        %v7216 = vsel %vm1690, %v7215, -inf
        %7217 = vmax.xlane.f32.xlu0 %v7216
        %v7218 = vpop.xlane.xlu0 %7217
        %v7219 = vsub.f32 %v7215, %v7218
        %v7220 = vmul.f32 %v7219, 1.442695
        %v7221 = vpow.pop %v7220
        %v7222 = vsel %vm1690, %v7221, 0.0
        %7223 = vadd.xlane.f32.xlu0 %v7222
        %v7224 = vpop.xlane.xlu0 %7223
        %v7225 = vrcp.pop %v7224
        %v7226 = vmul.f32 %v7221, %v7225
        %7227 = vrot.lane.b32.xlu0 %v6620, 72
        %v7228 = vpop.permute.xlu0 %7227
        %v7231 = vsel %vm1690, %v7226, 0
        %7233 = vmatprep.subr.mxu0 0.0
        %7234 = vmatpush1.msra.mxu0 %v7228
        %7235 = vmatprep.subr.mxu0 0.0
        %7236 = vmatpush1.msra.mxu0 0.0
        %7237 = vmatprep.subr.mxu0 0.0
        %7238 = vmatpush1.msra.mxu0 0.0
        %7239 = vmatprep.subr.mxu0 0.0
        %7240 = vmatpush1.msra.mxu0 0.0
        %7241 = vmatprep.subr.mxu0 0.0
        %7242 = vmatpush1.msra.mxu0 0.0
        %7243 = vmatprep.subr.mxu0 0.0
        %7244 = vmatpush1.msra.mxu0 0.0
        %7245 = vmatprep.subr.mxu0 0.0
        %7246 = vmatpush1.msra.mxu0 0.0
        %7247 = vmatprep.subr.mxu0 0.0
        %7248 = vmatpush1.msra.mxu0 0.0
        %7249 = vmatprep.subr.mxu0 0.0
        %7250 = vmatpush1.msra.mxu0 0.0
        %7251 = vmatprep.subr.mxu0 0.0
        %7252 = vmatpush1.msra.mxu0 0.0
        %7253 = vmatprep.subr.mxu0 0.0
        %7254 = vmatpush1.msra.mxu0 0.0
        %7255 = vmatprep.subr.mxu0 0.0
        %7256 = vmatpush1.msra.mxu0 0.0
        %7257 = vmatprep.subr.mxu0 0.0
        %7258 = vmatpush1.msra.mxu0 0.0
        %7259 = vmatprep.subr.mxu0 0.0
        %7260 = vmatpush1.msra.mxu0 0.0
        %7261 = vmatprep.subr.mxu0 0.0
        %7262 = vmatpush1.msra.mxu0 0.0
        %7263 = vmatprep.subr.mxu0 0.0
        %7264 = vmatpush1.msra.mxu0 0.0
        %7265 = vmatprep.subr.mxu0 0.0
        %7266 = vmatpush1.msra.mxu0 0.0
        %7267 = vmatprep.subr.mxu0 0.0
        %7268 = vmatpush1.msra.mxu0 0.0
        %7269 = vmatprep.subr.mxu0 0.0
        %7270 = vmatpush1.msra.mxu0 0.0
        %7271 = vmatprep.subr.mxu0 0.0
        %7272 = vmatpush1.msra.mxu0 0.0
        %7273 = vmatprep.subr.mxu0 0.0
        %7274 = vmatpush1.msra.mxu0 0.0
        %7275 = vmatprep.subr.mxu0 0.0
        %7276 = vmatpush1.msra.mxu0 0.0
        %7277 = vmatprep.subr.mxu0 0.0
        %7278 = vmatpush1.msra.mxu0 0.0
        %7279 = vmatprep.subr.mxu0 0.0
        %7280 = vmatpush1.msra.mxu0 0.0
        %7281 = vmatprep.subr.mxu0 0.0
        %7282 = vmatpush1.msra.mxu0 0.0
        %7283 = vmatprep.subr.mxu0 0.0
        %7284 = vmatpush1.msra.mxu0 0.0
        %7285 = vmatprep.subr.mxu0 0.0
        %7286 = vmatpush1.msra.mxu0 0.0
        %7287 = vmatprep.subr.mxu0 0.0
        %7288 = vmatpush1.msra.mxu0 0.0
        %7289 = vmatprep.subr.mxu0 0.0
        %7290 = vmatpush1.msra.mxu0 0.0
        %7291 = vmatprep.subr.mxu0 0.0
        %7292 = vmatpush1.msra.mxu0 0.0
        %7293 = vmatprep.subr.mxu0 0.0
        %7294 = vmatpush1.msra.mxu0 0.0
        %7295 = vmatprep.subr.mxu0 0.0
        %7296 = vmatpush1.msra.mxu0 0.0
        %7297 = vmatprep.mubr.f32.mxu0 0.0
        %7298 = vmatmul.mubr.f32.gmra.mrb[0].mxu0 %v7231
        %v7299 = vpop.f32.mrb[0].mxu0
        %v7300 = vadd.f32 0.0, %v7299
        %v7301 = vpop.f32.mrb[0].mxu0
        %7302 = vdwg.mxu0
        %7304 = vrot.lane.b32.xlu0 %v7300, 24
        %v7305 = vpop.permute.xlu0 %7304
        %7307 = vst.msk [vmem:[#allocation2] sm:$0xff] %vm2368, %v7305
        %s7308 = scalar_lea.vmem %s1436, 24 [#allocation29]
        %7309 = vst.msk [vmem:[%s7308] sm:$0xff] %vm1690, %v7226
        %v7310 = vld [vmem:[#allocation2] sm:$0xff]
        %s7311 = scalar_lea.vmem %s53, 16
        %v7312 = vld [vmem:[%s7311] sm:$0xf]
        %v7313 = vld [vmem:[%s7311 + $0x4] sm:$0xf]
        %v7314 = vld [vmem:[%s7311 + $0x8] sm:$0xf]
        %v7315 = vld [vmem:[%s7311 + $0xc] sm:$0xf]
        %s7316 = scalar_lea.vmem [#allocation15], 1
        %v7317 = vld [vmem:[%s7316] sm:$0x1]
        %v7318 = vpack.c.bf16 %v7310, %v7310
        %v7320 = vlaneseq
        %v7321 = vshrl.u32 %v7320, 7
        %v7322 = vsub.s32 0, %v7321
        %v7323 = vrot.slane %v7317, %v7322
        %v7329 = vunpack.c.l.b16 %v7312
        %v7330 = vunpack.c.l.b16 %v7313
        %v7331 = vunpack.c.l.b16 %v7314
        %v7332 = vunpack.c.l.b16 %v7315
        %v7333 = vpack.c.b16 %v7330, %v7329
        %v7334 = vpack.c.b16 %v7332, %v7331
        %v7338 = vsel %vm1643, %v7318, 0
        %7340 = vmatprep.subr.bf16.mxu0 0
        %7341 = vmatpush1.bf16.msra.mxu0 %v7333
        %7342 = vmatprep.subr.bf16.mxu0 0
        %7343 = vmatpush1.bf16.msra.mxu0 %v7334
        %7344 = vmatprep.subr.bf16.mxu0 0
        %7345 = vmatpush1.bf16.msra.mxu0 0
        %7346 = vmatprep.subr.bf16.mxu0 0
        %7347 = vmatpush1.bf16.msra.mxu0 0
        %7348 = vmatprep.subr.bf16.mxu0 0
        %7349 = vmatpush1.bf16.msra.mxu0 0
        %7350 = vmatprep.subr.bf16.mxu0 0
        %7351 = vmatpush1.bf16.msra.mxu0 0
        %7352 = vmatprep.subr.bf16.mxu0 0
        %7353 = vmatpush1.bf16.msra.mxu0 0
        %7354 = vmatprep.subr.bf16.mxu0 0
        %7355 = vmatpush1.bf16.msra.mxu0 0
        %7356 = vmatprep.subr.bf16.mxu0 0
        %7357 = vmatpush1.bf16.msra.mxu0 0
        %7358 = vmatprep.subr.bf16.mxu0 0
        %7359 = vmatpush1.bf16.msra.mxu0 0
        %7360 = vmatprep.subr.bf16.mxu0 0
        %7361 = vmatpush1.bf16.msra.mxu0 0
        %7362 = vmatprep.subr.bf16.mxu0 0
        %7363 = vmatpush1.bf16.msra.mxu0 0
        %7364 = vmatprep.subr.bf16.mxu0 0
        %7365 = vmatpush1.bf16.msra.mxu0 0
        %7366 = vmatprep.subr.bf16.mxu0 0
        %7367 = vmatpush1.bf16.msra.mxu0 0
        %7368 = vmatprep.subr.bf16.mxu0 0
        %7369 = vmatpush1.bf16.msra.mxu0 0
        %7370 = vmatprep.subr.bf16.mxu0 0
        %7371 = vmatpush1.bf16.msra.mxu0 0
        %7372 = vmatprep.mubr.bf16.mxu0 0
        %7373 = vmatmul.mubr.bf16.gmra.mrb[0].mxu0 %v7338
        %v7374 = vpop.f32.mrb[0].mxu0
        %v7375 = vadd.f32 %v7323, %v7374
        %v7376 = vpop.f32.mrb[0].mxu0
        %v7377 = vpop.f32.mrb[0].mxu0
        %v7378 = vpop.f32.mrb[0].mxu0
        %7379 = vdwg.mxu0
        %v7380 = vadd.f32 %v6490, %v7375
        %s7381 = scalar_lea.vmem [#allocation17], 1
        %v7382 = vld [vmem:[%s7381] sm:$0x1]
        %s7383 = scalar_lea.vmem [#allocation18], 1
        %v7384 = vld [vmem:[%s7383] sm:$0x1]
        %v7385 = vsel %vm1643, %v7380, 0.0
        %7386 = vadd.xlane.f32.xlu0 %v7385
        %v7387 = vpop.xlane.xlu0 %7386
        %v7388 = vmul.f32 %v7387, %v2444
        %v7389 = vsub.f32 %v7380, %v7388
        %v7390 = vmul.f32 %v7389, %v7389
        %v7391 = vsel %vm1643, %v7390, 0.0
        %7392 = vadd.xlane.f32.xlu0 %v7391
        %v7393 = vpop.xlane.xlu0 %7392
        %v7394 = vmul.f32 %v7393, %v2444
        %v7395 = vadd.f32 %v7394, 1e-05
        %v7396 = vrsqrt.pop %v7395
        %v7397 = vmul.f32 %v7389, %v7396
        %v7399 = vlaneseq
        %v7400 = vshrl.u32 %v7399, 7
        %v7401 = vsub.s32 0, %v7400
        %v7402 = vrot.slane %v7382, %v7401
        %v7404 = vmul.f32 %v7397, %v7402
        %v7406 = vlaneseq
        %v7407 = vshrl.u32 %v7406, 7
        %v7408 = vsub.s32 0, %v7407
        %v7409 = vrot.slane %v7384, %v7408
        %v7411 = vadd.f32 %v7404, %v7409
        %s7412 = scalar_lea.vmem %s61, 16
        %v7413 = vld [vmem:[%s7412] sm:$0xf]
        %v7414 = vld [vmem:[%s7412 + $0x4] sm:$0xf]
        %v7415 = vld [vmem:[%s7412 + $0x8] sm:$0xf]
        %v7416 = vld [vmem:[%s7412 + $0xc] sm:$0xf]
        %s7417 = scalar_lea.vmem [#allocation20], 1
        %v7418 = vld [vmem:[%s7417] sm:$0x1]
        %v7419 = vpack.c.bf16 %v7411, %v7411
        %v7421 = vlaneseq
        %v7422 = vshrl.u32 %v7421, 7
        %v7423 = vsub.s32 0, %v7422
        %v7424 = vrot.slane %v7418, %v7423
        %v7430 = vunpack.c.l.b16 %v7413
        %v7431 = vunpack.c.l.b16 %v7414
        %v7432 = vunpack.c.l.b16 %v7415
        %v7433 = vunpack.c.l.b16 %v7416
        %v7434 = vpack.c.b16 %v7431, %v7430
        %v7435 = vpack.c.b16 %v7433, %v7432
        %v7439 = vsel %vm1643, %v7419, 0
        %7441 = vmatprep.subr.bf16.mxu0 0
        %7442 = vmatpush1.bf16.msra.mxu0 %v7434
        %7443 = vmatprep.subr.bf16.mxu0 0
        %7444 = vmatpush1.bf16.msra.mxu0 %v7435
        %7445 = vmatprep.subr.bf16.mxu0 0
        %7446 = vmatpush1.bf16.msra.mxu0 0
        %7447 = vmatprep.subr.bf16.mxu0 0
        %7448 = vmatpush1.bf16.msra.mxu0 0
        %7449 = vmatprep.subr.bf16.mxu0 0
        %7450 = vmatpush1.bf16.msra.mxu0 0
        %7451 = vmatprep.subr.bf16.mxu0 0
        %7452 = vmatpush1.bf16.msra.mxu0 0
        %7453 = vmatprep.subr.bf16.mxu0 0
        %7454 = vmatpush1.bf16.msra.mxu0 0
        %7455 = vmatprep.subr.bf16.mxu0 0
        %7456 = vmatpush1.bf16.msra.mxu0 0
        %7457 = vmatprep.subr.bf16.mxu0 0
        %7458 = vmatpush1.bf16.msra.mxu0 0
        %7459 = vmatprep.subr.bf16.mxu0 0
        %7460 = vmatpush1.bf16.msra.mxu0 0
        %7461 = vmatprep.subr.bf16.mxu0 0
        %7462 = vmatpush1.bf16.msra.mxu0 0
        %7463 = vmatprep.subr.bf16.mxu0 0
        %7464 = vmatpush1.bf16.msra.mxu0 0
        %7465 = vmatprep.subr.bf16.mxu0 0
        %7466 = vmatpush1.bf16.msra.mxu0 0
        %7467 = vmatprep.subr.bf16.mxu0 0
        %7468 = vmatpush1.bf16.msra.mxu0 0
        %7469 = vmatprep.subr.bf16.mxu0 0
        %7470 = vmatpush1.bf16.msra.mxu0 0
        %7471 = vmatprep.subr.bf16.mxu0 0
        %7472 = vmatpush1.bf16.msra.mxu0 0
        %7473 = vmatprep.mubr.bf16.mxu0 0
        %7474 = vmatmul.mubr.bf16.gmra.mrb[0].mxu0 %v7439
        %v7475 = vpop.f32.mrb[0].mxu0
        %v7476 = vadd.f32 %v7424, %v7475
        %v7477 = vpop.f32.mrb[0].mxu0
        %v7478 = vpop.f32.mrb[0].mxu0
        %v7479 = vpop.f32.mrb[0].mxu0
        %7480 = vdwg.mxu0
        %v7481 = vmax.f32 %v7476, 0.0
        %s7482 = scalar_lea.vmem %s65, 32
        %v7483 = vld [vmem:[%s7482] sm:$0xf]
        %v7484 = vld [vmem:[%s7482 + $0x4] sm:$0xf]
        %v7485 = vld [vmem:[%s7482 + $0x8] sm:$0xf]
        %v7486 = vld [vmem:[%s7482 + $0xc] sm:$0xf]
        %v7487 = vld [vmem:[%s7482 + $0x10] sm:$0xf]
        %v7488 = vld [vmem:[%s7482 + $0x14] sm:$0xf]
        %v7489 = vld [vmem:[%s7482 + $0x18] sm:$0xf]
        %v7490 = vld [vmem:[%s7482 + $0x1c] sm:$0xf]
        %s7491 = scalar_lea.vmem [#allocation21], 1
        %v7492 = vld [vmem:[%s7491] sm:$0x1]
        %v7493 = vpack.c.bf16 %v7481, %v7481
        %v7495 = vlaneseq
        %v7496 = vshrl.u32 %v7495, 7
        %v7497 = vsub.s32 0, %v7496
        %v7498 = vrot.slane %v7492, %v7497
        %v7508 = vunpack.c.l.b16 %v7483
        %v7509 = vunpack.c.l.b16 %v7484
        %v7510 = vunpack.c.l.b16 %v7485
        %v7511 = vunpack.c.l.b16 %v7486
        %v7512 = vunpack.c.l.b16 %v7487
        %v7513 = vunpack.c.l.b16 %v7488
        %v7514 = vunpack.c.l.b16 %v7489
        %v7515 = vunpack.c.l.b16 %v7490
        %v7516 = vpack.c.b16 %v7509, %v7508
        %v7517 = vpack.c.b16 %v7511, %v7510
        %v7518 = vpack.c.b16 %v7513, %v7512
        %v7519 = vpack.c.b16 %v7515, %v7514
        %v7525 = vsel %vm2577, %v7493, 0
        %7527 = vmatprep.subr.bf16.mxu0 0
        %7528 = vmatpush1.bf16.msra.mxu0 %v7516
        %7529 = vmatprep.subr.bf16.mxu0 0
        %7530 = vmatpush1.bf16.msra.mxu0 %v7517
        %7531 = vmatprep.subr.bf16.mxu0 0
        %7532 = vmatpush1.bf16.msra.mxu0 %v7518
        %7533 = vmatprep.subr.bf16.mxu0 0
        %7534 = vmatpush1.bf16.msra.mxu0 %v7519
        %7535 = vmatprep.subr.bf16.mxu0 0
        %7536 = vmatpush1.bf16.msra.mxu0 0
        %7537 = vmatprep.subr.bf16.mxu0 0
        %7538 = vmatpush1.bf16.msra.mxu0 0
        %7539 = vmatprep.subr.bf16.mxu0 0
        %7540 = vmatpush1.bf16.msra.mxu0 0
        %7541 = vmatprep.subr.bf16.mxu0 0
        %7542 = vmatpush1.bf16.msra.mxu0 0
        %7543 = vmatprep.subr.bf16.mxu0 0
        %7544 = vmatpush1.bf16.msra.mxu0 0
        %7545 = vmatprep.subr.bf16.mxu0 0
        %7546 = vmatpush1.bf16.msra.mxu0 0
        %7547 = vmatprep.subr.bf16.mxu0 0
        %7548 = vmatpush1.bf16.msra.mxu0 0
        %7549 = vmatprep.subr.bf16.mxu0 0
        %7550 = vmatpush1.bf16.msra.mxu0 0
        %7551 = vmatprep.subr.bf16.mxu0 0
        %7552 = vmatpush1.bf16.msra.mxu0 0
        %7553 = vmatprep.subr.bf16.mxu0 0
        %7554 = vmatpush1.bf16.msra.mxu0 0
        %7555 = vmatprep.subr.bf16.mxu0 0
        %7556 = vmatpush1.bf16.msra.mxu0 0
        %7557 = vmatprep.subr.bf16.mxu0 0
        %7558 = vmatpush1.bf16.msra.mxu0 0
        %7559 = vmatprep.mubr.bf16.mxu0 0
        %7560 = vmatmul.mubr.bf16.gmra.mrb[0].mxu0 %v7525
        %v7561 = vpop.f32.mrb[0].mxu0
        %v7562 = vadd.f32 %v7498, %v7561
        %v7563 = vpop.f32.mrb[0].mxu0
        %v7564 = vpop.f32.mrb[0].mxu0
        %v7565 = vpop.f32.mrb[0].mxu0
        %7566 = vdwg.mxu0
        %v7567 = vadd.f32 %v7411, %v7562
        %s7568 = scalar_lea.vmem [#allocation23], 1
        %v7569 = vld [vmem:[%s7568] sm:$0x1]
        %s7570 = scalar_lea.vmem [#allocation24], 1
        %v7571 = vld [vmem:[%s7570] sm:$0x1]
        %v7572 = vsel %vm1643, %v7567, 0.0
        %7573 = vadd.xlane.f32.xlu0 %v7572
        %v7574 = vpop.xlane.xlu0 %7573
        %v7575 = vmul.f32 %v7574, %v2444
        %v7576 = vsub.f32 %v7567, %v7575
        %v7577 = vmul.f32 %v7576, %v7576
        %v7578 = vsel %vm1643, %v7577, 0.0
        %7579 = vadd.xlane.f32.xlu0 %v7578
        %v7580 = vpop.xlane.xlu0 %7579
        %v7581 = vmul.f32 %v7580, %v2444
        %v7582 = vadd.f32 %v7581, 1e-05
        %v7583 = vrsqrt.pop %v7582
        %v7584 = vmul.f32 %v7576, %v7583
        %v7586 = vlaneseq
        %v7587 = vshrl.u32 %v7586, 7
        %v7588 = vsub.s32 0, %v7587
        %v7589 = vrot.slane %v7569, %v7588
        %v7591 = vmul.f32 %v7584, %v7589
        %v7593 = vlaneseq
        %v7594 = vshrl.u32 %v7593, 7
        %v7595 = vsub.s32 0, %v7594
        %v7596 = vrot.slane %v7571, %v7595
        %v7598 = vadd.f32 %v7591, %v7596
        %v7599 = vld [vmem:[%s73] sm:$0xf]
        %v7600 = vld [vmem:[%s73 + $0x4] sm:$0xf]
        %v7601 = vld [vmem:[%s73 + $0x8] sm:$0xf]
        %v7602 = vld [vmem:[%s73 + $0xc] sm:$0xf]
        %v7603 = vld [vmem:[%s75] sm:$0x1]
        %v7604 = vpack.c.bf16 %v7598, %v7598
        %v7606 = vlaneseq
        %v7607 = vshrl.u32 %v7606, 7
        %v7608 = vsub.s32 0, %v7607
        %v7609 = vrot.slane %v7603, %v7608
        %v7615 = vunpack.c.l.b16 %v7599
        %v7616 = vunpack.c.l.b16 %v7600
        %v7617 = vunpack.c.l.b16 %v7601
        %v7618 = vunpack.c.l.b16 %v7602
        %v7619 = vpack.c.b16 %v7616, %v7615
        %v7620 = vpack.c.b16 %v7618, %v7617
        %v7624 = vsel %vm1643, %v7604, 0
        %7626 = vmatprep.subr.bf16.mxu0 0
        %7627 = vmatpush1.bf16.msra.mxu0 %v7619
        %7628 = vmatprep.subr.bf16.mxu0 0
        %7629 = vmatpush1.bf16.msra.mxu0 %v7620
        %7630 = vmatprep.subr.bf16.mxu0 0
        %7631 = vmatpush1.bf16.msra.mxu0 0
        %7632 = vmatprep.subr.bf16.mxu0 0
        %7633 = vmatpush1.bf16.msra.mxu0 0
        %7634 = vmatprep.subr.bf16.mxu0 0
        %7635 = vmatpush1.bf16.msra.mxu0 0
        %7636 = vmatprep.subr.bf16.mxu0 0
        %7637 = vmatpush1.bf16.msra.mxu0 0
        %7638 = vmatprep.subr.bf16.mxu0 0
        %7639 = vmatpush1.bf16.msra.mxu0 0
        %7640 = vmatprep.subr.bf16.mxu0 0
        %7641 = vmatpush1.bf16.msra.mxu0 0
        %7642 = vmatprep.subr.bf16.mxu0 0
        %7643 = vmatpush1.bf16.msra.mxu0 0
        %7644 = vmatprep.subr.bf16.mxu0 0
        %7645 = vmatpush1.bf16.msra.mxu0 0
        %7646 = vmatprep.subr.bf16.mxu0 0
        %7647 = vmatpush1.bf16.msra.mxu0 0
        %7648 = vmatprep.subr.bf16.mxu0 0
        %7649 = vmatpush1.bf16.msra.mxu0 0
        %7650 = vmatprep.subr.bf16.mxu0 0
        %7651 = vmatpush1.bf16.msra.mxu0 0
        %7652 = vmatprep.subr.bf16.mxu0 0
        %7653 = vmatpush1.bf16.msra.mxu0 0
        %7654 = vmatprep.subr.bf16.mxu0 0
        %7655 = vmatpush1.bf16.msra.mxu0 0
        %7656 = vmatprep.subr.bf16.mxu0 0
        %7657 = vmatpush1.bf16.msra.mxu0 0
        %7658 = vmatprep.mubr.bf16.mxu0 0
        %7659 = vmatmul.mubr.bf16.gmra.mrb[0].mxu0 %v7624
        %v7660 = vpop.f32.mrb[0].mxu0
        %v7661 = vadd.f32 %v7609, %v7660
        %v7662 = vpop.f32.mrb[0].mxu0
        %v7663 = vpop.f32.mrb[0].mxu0
        %v7664 = vpop.f32.mrb[0].mxu0
        %7665 = vdwg.mxu0
        %7666 = vst [vmem:[%s1422] sm:$0xff] %v7661
        %s7667 = sand.u32 %s923, 1
        %s7668 = scalar_lea.sflag [#allocation5], %s7667
        %s7669 = sand.u32 %s923, 1
        %s7670 = smul.addr %s7669, 8
        %s7671 = scalar_lea.vmem [#allocation26], %s7670
        %s7672 = sand.u32 %s107, 1
        %s7673 = scalar_lea.sflag [#allocation28], %s7672
        %s7674 = sand.u32 %s949, 1
        %s7675 = smul.addr %s7674, 32
        %s7676 = scalar_lea.vmem [#allocation27], %s7675
        %s7677 = sand.u32 %s107, 1
        %s7678 = scalar_lea.sflag [#allocation28], %s7677
        %s7679 = sand.u32 %s975, 1
        %s7680 = smul.addr %s7679, 32
        %s7681 = scalar_lea.vmem [#allocation29], %s7680
        // Predicated region
        $region229: #{_lambda_.1} parent=171 // pred_check
          %p7682 = pneg %p933
        $region230: #{_lambda_.1} parent=171 // pred_check_branch
          %7684 = sbr.rel (%p7682) target = $region232
        $region231: #{_lambda_.1} parent=171 // pred_region
          %s7686 = ssub.s32 128, 128
          %7687 = vsyncadd %s7668, %s7686
          %s7688 = smul.addr %s107, 128
          %s7689 = scalar_lea.hbm %s77, %s7688
          %s7691 = sshll.u32 %s7671, 4
          %s7692 = int_to_ptr.vmem [resolvable:$true] %s7691
          %7694 = dma.vmem_to_hbm [thread:$0]  %s7692, 128, %s7689, %s7668
        $region232: #{_lambda_.1} parent=171 // pred_fallthru
          _
        // Predicated region
        $region233: #{_lambda_.1} parent=171 // pred_check
          %p7695 = pneg %p959
        $region234: #{_lambda_.1} parent=171 // pred_check_branch
          %7697 = sbr.rel (%p7695) target = $region236
        $region235: #{_lambda_.1} parent=171 // pred_region
          %s7699 = ssub.s32 512, 512
          %7700 = vsyncadd %s7673, %s7699
          %s7701 = smul.addr %s107, 4
          %s7702 = smul.addr %s7701, 128
          %s7703 = scalar_lea.hbm %s79, %s7702
          %s7704 = sshll.u32 %s7676, 4
          %s7705 = int_to_ptr.vmem [resolvable:$true] %s7704
          %7710 = dma.vmem_to_hbm [thread:$0]  %s7705, 512, %s7703, %s7673, 128, 128, 8
        $region236: #{_lambda_.1} parent=171 // pred_fallthru
          _
        // Predicated region
        $region237: #{_lambda_.1} parent=171 // pred_check
          %p7711 = pneg %p985
        $region238: #{_lambda_.1} parent=171 // pred_check_branch
          %7713 = sbr.rel (%p7711) target = $region240
        $region239: #{_lambda_.1} parent=171 // pred_region
          %s7715 = ssub.s32 512, 512
          %7716 = vsyncadd %s7678, %s7715
          %s7717 = smul.addr %s107, 4
          %s7718 = smul.addr %s7717, 128
          %s7719 = scalar_lea.hbm %s81, %s7718
          %s7720 = sshll.u32 %s7681, 4
          %s7721 = int_to_ptr.vmem [resolvable:$true] %s7720
          %7726 = dma.vmem_to_hbm [thread:$0]  %s7721, 512, %s7719, %s7678, 128, 128, 8
        $region240: #{_lambda_.1} parent=171 // pred_fallthru
          _
      $region172: #{_lambda_.1} parent=5 // pred_fallthru
        _
      %p7727 = scmp.le.s32.totalorder 2, %s102
      // Predicated region
      $region241: #{_lambda_.1} parent=5 // pred_check
        %p7728 = pneg %p7727
      $region242: #{_lambda_.1} parent=5 // pred_check_branch
        %7730 = sbr.rel (%p7728) target = $region244
      $region243: #{_lambda_.1} parent=5 // pred_region
        %s7731 = ssub.s32 %s102, 2
        // Predicated region
        $region245: #{_lambda_.1} parent=243 // pred_check
          %p7732 = pneg %p939
        $region246: #{_lambda_.1} parent=243 // pred_check_branch
          %7734 = sbr.rel (%p7732) target = $region248
        $region247: #{_lambda_.1} parent=243 // pred_region
          %s7735 = sand.u32 %s924, 1
          %s7736 = scalar_lea.sflag [#allocation5], %s7735
          %s7737 = sand.u32 %s924, 1
          %s7738 = smul.addr %s7737, 8
          %s7739 = scalar_lea.vmem [#allocation26], %s7738
          %7740 = dma.done %s7736, 128
        $region248: #{_lambda_.1} parent=243 // pred_fallthru
          _
        // Predicated region
        $region249: #{_lambda_.1} parent=243 // pred_check
          %p7741 = pneg %p965
        $region250: #{_lambda_.1} parent=243 // pred_check_branch
          %7743 = sbr.rel (%p7741) target = $region252
        $region251: #{_lambda_.1} parent=243 // pred_region
          %s7744 = sand.u32 %s108, 1
          %s7745 = scalar_lea.sflag [#allocation28], %s7744
          %s7746 = sand.u32 %s950, 1
          %s7747 = smul.addr %s7746, 32
          %s7748 = scalar_lea.vmem [#allocation27], %s7747
          %7749 = dma.done %s7745, 512
        $region252: #{_lambda_.1} parent=243 // pred_fallthru
          _
        // Predicated region
        $region253: #{_lambda_.1} parent=243 // pred_check
          %p7750 = pneg %p991
        $region254: #{_lambda_.1} parent=243 // pred_check_branch
          %7752 = sbr.rel (%p7750) target = $region256
        $region255: #{_lambda_.1} parent=243 // pred_region
          %s7753 = sand.u32 %s108, 1
          %s7754 = scalar_lea.sflag [#allocation28], %s7753
          %s7755 = sand.u32 %s976, 1
          %s7756 = smul.addr %s7755, 32
          %s7757 = scalar_lea.vmem [#allocation29], %s7756
          %7758 = dma.done %s7754, 512
        $region256: #{_lambda_.1} parent=243 // pred_fallthru
          _
      $region244: #{_lambda_.1} parent=5 // pred_fallthru
        _
    $region6: #{_lambda_.1} parent=1 // loop_footer
      %s106 = sadd.s32 1, %s102
    $region7: #{_lambda_.1} parent=1 // loop_footer_branch
      %101 = sbr.rel target = $region3
    $region8: #{_lambda_.1} parent=1 // loop_exit
      _
    %7759 = vsyncpa [#allocation4], 1
    %s7760 = scalar_lea.sflag [#allocation4], 1
    %7761 = vsyncpa %s7760, 1
    %7762 = vsyncpa [#allocation7], 1
    %7763 = vsyncpa [#allocation10], 1
    %7764 = vsyncpa [#allocation13], 1
    %7765 = vsyncpa [#allocation16], 1
    %7766 = vsyncpa [#allocation19], 1
    %7767 = vsyncpa [#allocation22], 1
    %7768 = vsyncpa [#allocation25], 1
    %7769 = vsyncpa [#allocation5], 1
    %s7770 = scalar_lea.sflag [#allocation5], 1
    %7771 = vsyncpa %s7770, 1
    %7772 = vsyncpa [#allocation28], 1
    %s7773 = scalar_lea.sflag [#allocation28], 1
    %7774 = vsyncpa %s7773, 1

</llo_original>
